<compile_context>
chip_gen: v5e
topology: v5e:2x2
jax: 0.10.0
libtpu: 0.0.40
codegen_flags: <defaults>
</compile_context>

<pallas_src>
import functools

import jax
import jax.numpy as jnp
from jax.experimental import pallas as pl
from jax.experimental.pallas import tpu as pltpu


def _round_up(x, m):
    return ((x + m - 1) // m) * m


# ----------------------------------------------------------------------------
# Pallas kernel 1: tiled matmul + bias + optional LeakyReLU (bf16 in, f32 acc)
# ----------------------------------------------------------------------------
def _matmul_bias_act_kernel(x_ref, w_ref, b_ref, o_ref, *, negative_slope):
    acc = jnp.dot(x_ref[...], w_ref[...], preferred_element_type=jnp.float32)
    acc = acc + b_ref[...]
    if negative_slope is not None:
        acc = jnp.where(acc >= 0, acc, negative_slope * acc)
    o_ref[...] = acc.astype(o_ref.dtype)


def _pick_tm(mp, kp, np_, out_bytes, tm_max=2048, budget=24 * 1024 * 1024):
    """Largest M-tile whose double-buffered footprint stays under `budget`
    (budget chosen so the kernel is safe on v7x's 64 MiB VMEM)."""
    tm = min(tm_max, _round_up(mp, 64))
    while tm > 64:
        need = 2 * tm * kp * 2 + 2 * tm * np_ * out_bytes + 2 * kp * np_ * 2
        if need <= budget:
            break
        tm //= 2
    return max(64, tm)


def matmul_bias_act(x, w, b, negative_slope=None, out_dtype=jnp.bfloat16,
                    tm_max=2048, vmem_budget=24 * 1024 * 1024):
    """y = leaky_relu(x @ w + b).  x: (M, K), w: (K, N), b: (N,).

    * No padded copy of x: grid = cdiv(M, tm); the ragged tail tile's garbage
      rows are masked on store by Pallas.
    * Narrow outputs (N < 128) are packed lane-dense: p = 128 // N rows are
      folded into one 128-lane output row using a block-diagonal weight
      (kron(I_p, W)), giving unmasked full-width stores.  Same math, same MXU
      pass count; the host-side reshapes are free (row-major compatible).
    """
    M, K = x.shape
    K2, N = w.shape
    assert K == K2
    x = x.astype(jnp.bfloat16)
    w = w.astype(jnp.float32)
    b = b.astype(jnp.float32)

    p = 1
    if N < 128 and 128 % N == 0:
        p_cand = 128 // N
        if M % p_cand == 0 and M >= p_cand:
            p = p_cand
    Mp, Kp, Np = M // p, p * K, p * N
    xk = x.reshape(Mp, Kp)                                   # free reshape
    if p > 1:
        wk = jnp.kron(jnp.eye(p, dtype=jnp.float32), w).astype(jnp.bfloat16)
        bk = jnp.tile(b, p).reshape(1, Np)
    else:
        wk = w.astype(jnp.bfloat16)
        bk = b.reshape(1, N)

    out_bytes = jnp.dtype(out_dtype).itemsize
    tm = _pick_tm(Mp, Kp, Np, out_bytes, tm_max=tm_max, budget=vmem_budget)
    grid_m = pl.cdiv(Mp, tm)
    cost = pl.CostEstimate(
        flops=2 * M * K * N,
        transcendentals=0,
        bytes_accessed=2 * M * K + 2 * Kp * Np + out_bytes * M * N,
    )
    y = pl.pallas_call(
        functools.partial(_matmul_bias_act_kernel, negative_slope=negative_slope),
        out_shape=jax.ShapeDtypeStruct((Mp, Np), out_dtype),
        grid_spec=pltpu.PrefetchScalarGridSpec(
            num_scalar_prefetch=0,
            grid=(grid_m,),
            in_specs=[
                pl.BlockSpec((tm, Kp), lambda i: (i, 0)),    # activation tile
                pl.BlockSpec((Kp, Np), lambda i: (0, 0)),    # resident weight
                pl.BlockSpec((1, Np), lambda i: (0, 0)),     # resident bias row
            ],
            out_specs=pl.BlockSpec((tm, Np), lambda i: (i, 0)),
        ),
        compiler_params=pltpu.CompilerParams(
            dimension_semantics=("parallel",),               # M sharded on megacore
            vmem_limit_bytes=32 * 1024 * 1024,               # v7x-safe
        ),
        cost_estimate=cost,
    )(xk, wk, bk)
    return y.reshape(M, N)


# ----------------------------------------------------------------------------
# Pallas kernel 2: fused stride-1 4x4 conv (layer 1) -- no im2col in HBM,
# single store per sub-chunk, bf16 operands, f32 accumulation in vregs.
# ----------------------------------------------------------------------------
def _conv_s1_kernel(x0_ref, x1_ref, w_ref, b_ref, o_ref, *, wp, sub,
                    negative_slope):
    # x0_ref/x1_ref : (1, Cin, block) two consecutive lane blocks of the padded
    #                 image ((H, W) flattened on lanes), bf16
    # w_ref         : (16, Cout, Cin) taps, t = kh*4 + kw, bf16
    # b_ref         : (Cout, 1) f32
    # o_ref         : (1, Cout, block)
    block = o_ref.shape[2]
    xcat = jnp.concatenate([x0_ref[0], x1_ref[0]], axis=-1)   # (Cin, 2*block)
    bias = b_ref[...]
    for s in range(block // sub):
        acc = None
        for t in range(16):
            off = s * sub + (t // 4) * wp + (t % 4)
            xs = xcat[:, off:off + sub]                        # (Cin, sub)
            d = jnp.dot(w_ref[t], xs, preferred_element_type=jnp.float32)
            acc = d if acc is None else acc + d
        y = acc + bias
        y = jnp.where(y >= 0, y, negative_slope * y)
        o_ref[0, :, s * sub:(s + 1) * sub] = y.astype(o_ref.dtype)


def conv2d_s1_fused(x_nchw, w_oihw, b, negative_slope=0.2,
                    out_dtype=jnp.bfloat16, sub=512, block_max=4096):
    """4x4 / stride 1 / pad 1 conv + bias + LeakyReLU, fused in one kernel.

    Patch extraction happens in VMEM (16 shifted matmuls over the flattened
    image), so the 16x im2col blowup never hits HBM.  NCHW in / NCHW out."""
    N, Cin, H, W = x_nchw.shape
    Cout = w_oihw.shape[0]
    Ho, Wo = H - 1, W - 1
    Hp, Wp = H + 2, W + 2
    m_out = Ho * Wp
    max_off = 3 * Wp + 3
    # block must cover the largest tap offset so the 2-block window suffices;
    # it is a multiple of `sub` so the inner sub-chunk loop tiles it exactly.
    block = max(_round_up(max_off, sub), min(block_max, _round_up(m_out, sub)))
    nblocks = pl.cdiv(m_out, block)
    R = (nblocks + 1) * block

    xp = jnp.pad(x_nchw.astype(jnp.bfloat16), ((0, 0), (0, 0), (1, 1), (1, 1)))
    xf = jnp.pad(xp.reshape(N, Cin, Hp * Wp), ((0, 0), (0, 0), (0, R - Hp * Wp)))
    w16 = jnp.transpose(w_oihw, (2, 3, 0, 1)).reshape(16, Cout, Cin)
    w16 = w16.astype(jnp.bfloat16)
    b2 = b.reshape(Cout, 1).astype(jnp.float32)

    out_bytes = jnp.dtype(out_dtype).itemsize
    cost = pl.CostEstimate(
        flops=2 * N * m_out * 16 * Cin * Cout,
        transcendentals=0,
        bytes_accessed=2 * N * Cin * R * 2 + out_bytes * N * Cout * nblocks * block,
    )
    out = pl.pallas_call(
        functools.partial(_conv_s1_kernel, wp=Wp, sub=sub,
                          negative_slope=negative_slope),
        out_shape=jax.ShapeDtypeStruct((N, Cout, nblocks * block), out_dtype),
        grid_spec=pltpu.PrefetchScalarGridSpec(
            num_scalar_prefetch=0,
            grid=(N, nblocks),
            in_specs=[
                pl.BlockSpec((1, Cin, block), lambda n, c: (n, 0, c)),
                pl.BlockSpec((1, Cin, block), lambda n, c: (n, 0, c + 1)),
                pl.BlockSpec((16, Cout, Cin), lambda n, c: (0, 0, 0)),  # taps
                pl.BlockSpec((Cout, 1), lambda n, c: (0, 0)),           # bias
            ],
            out_specs=pl.BlockSpec((1, Cout, block), lambda n, c: (n, 0, c)),
        ),
        compiler_params=pltpu.CompilerParams(
            dimension_semantics=("parallel", "parallel"),  # both cores on v7x
        ),
        cost_estimate=cost,
    )(xf, xf, w16, b2)
    # Crop padded lanes + the 3 wrap-around columns per row -> valid NCHW.
    return out[:, :, :m_out].reshape(N, Cout, Ho, Wp)[:, :, :, :Wo]


# ----------------------------------------------------------------------------
# Strided convs: bf16 im2col (host glue) + Pallas matmul
# ----------------------------------------------------------------------------
def _im2col_nhwc(x, ksize, stride, pad):
    N, H, W, C = x.shape
    xp = jnp.pad(x, ((0, 0), (pad, pad), (pad, pad), (0, 0)))
    Ho = (H + 2 * pad - ksize) // stride + 1
    Wo = (W + 2 * pad - ksize) // stride + 1
    cols = []
    for kh in range(ksize):
        for kw in range(ksize):
            cols.append(xp[:, kh:kh + stride * Ho:stride,
                           kw:kw + stride * Wo:stride, :])
    patches = jnp.stack(cols, axis=3)                     # (N, Ho, Wo, k*k, C)
    return patches.reshape(N * Ho * Wo, ksize * ksize * C), Ho, Wo


def conv2d_im2col_leaky(x_nhwc, w_oihw, b, stride, pad, negative_slope=0.2):
    Cout, Cin, kh, kw = w_oihw.shape
    patches, Ho, Wo = _im2col_nhwc(x_nhwc.astype(jnp.bfloat16), kh, stride, pad)
    w2 = jnp.transpose(w_oihw, (2, 3, 1, 0)).reshape(kh * kw * Cin, Cout)
    y = matmul_bias_act(patches, w2, b, negative_slope=negative_slope,
                        out_dtype=jnp.bfloat16)
    N = x_nhwc.shape[0]
    return y.reshape(N, Ho, Wo, Cout)


# ----------------------------------------------------------------------------
# Pallas kernel 3: K-tiled linear layer (flat -> 1) as a reduction
# ----------------------------------------------------------------------------
def _linear_reduce_kernel(x_ref, w_ref, b_ref, o_ref):
    k = pl.program_id(0)

    @pl.when(k == 0)
    def _():
        o_ref[...] = jnp.zeros_like(o_ref)

    prod = x_ref[...].astype(jnp.float32) * w_ref[...].astype(jnp.float32)
    o_ref[...] += jnp.sum(prod, axis=1, keepdims=True)

    @pl.when(k == pl.num_programs(0) - 1)
    def _():
        o_ref[...] += b_ref[...]


def linear_reduce(x, w_row, b, tk=32768):
    """logits = x @ w_row.T + b, with K tiled on an 'arbitrary' grid axis and
    a resident (B, 1) f32 accumulator.  bf16 loads halve HBM/VMEM traffic."""
    B, K = x.shape
    assert w_row.shape == (1, K)
    tk = min(tk, _round_up(K, 128))
    Kp = _round_up(K, tk)
    x = x.astype(jnp.bfloat16)
    w_row = w_row.astype(jnp.bfloat16)
    if Kp != K:                      # zero-pad so the reduction sees exact zeros
        x = jnp.pad(x, ((0, 0), (0, Kp - K)))
        w_row = jnp.pad(w_row, ((0, 0), (0, Kp - K)))
    b2 = b.reshape(1, 1).astype(jnp.float32)

    return pl.pallas_call(
        _linear_reduce_kernel,
        out_shape=jax.ShapeDtypeStruct((B, 1), jnp.float32),
        grid_spec=pltpu.PrefetchScalarGridSpec(
            num_scalar_prefetch=0,
            grid=(Kp // tk,),
            in_specs=[
                pl.BlockSpec((B, tk), lambda k: (0, k)),
                pl.BlockSpec((1, tk), lambda k: (0, k)),
                pl.BlockSpec((1, 1), lambda k: (0, 0)),
            ],
            out_specs=pl.BlockSpec((B, 1), lambda k: (0, 0)),
        ),
        compiler_params=pltpu.CompilerParams(
            dimension_semantics=("arbitrary",),            # K is a reduction axis
        ),
        cost_estimate=pl.CostEstimate(flops=2 * B * K, transcendentals=0,
                                      bytes_accessed=2 * (B * Kp + Kp) + 4 * B),
    )(x, w_row, b2)


# ----------------------------------------------------------------------------
# Parameter setup (deterministic, synthetic) + spectral normalization
# ----------------------------------------------------------------------------
def _spectral_normalize(w, n_iter=30):
    cout = w.shape[0]
    wm = w.reshape(cout, -1)
    v = jnp.ones((wm.shape[1],), jnp.float32) / jnp.sqrt(wm.shape[1])
    u = jnp.ones((cout,), jnp.float32) / jnp.sqrt(cout)
    for _ in range(n_iter):
        u = wm @ v
        u = u / (jnp.linalg.norm(u) + 1e-12)
        v = wm.T @ u
        v = v / (jnp.linalg.norm(v) + 1e-12)
    sigma = u @ (wm @ v)
    return w / sigma


def _conv_out(h, k, s, p):
    return (h + 2 * p - k) // s + 1


def init_params(key, input_shape):
    cin, H, W = input_shape
    conv_cfg = [  # (cin, cout, stride)
        (cin, 32, 1),
        (32, 64, 2),
        (64, 128, 2),
        (128, 256, 2),
    ]
    keys = jax.random.split(key, 2 * len(conv_cfg) + 2)
    params = {"convs": []}
    h, w = H, W
    for i, (ci, co, s) in enumerate(conv_cfg):
        wk = 0.05 * jax.random.normal(keys[2 * i], (co, ci, 4, 4), jnp.float32)
        wk = _spectral_normalize(wk)
        bk = 0.01 * jax.random.normal(keys[2 * i + 1], (co,), jnp.float32)
        params["convs"].append({"w": wk, "b": bk, "stride": s})
        h, w = _conv_out(h, 4, s, 1), _conv_out(w, 4, s, 1)
    flat = 256 * h * w
    params["fc_w"] = 0.05 * jax.random.normal(keys[-2], (1, flat), jnp.float32)
    params["fc_b"] = 0.01 * jax.random.normal(keys[-1], (1,), jnp.float32)
    return params


# ----------------------------------------------------------------------------
# Forward pass (matches Discriminator.forward; eval-mode Dropout2d = identity)
# ----------------------------------------------------------------------------
def discriminator_forward(params, x_nchw):
    convs = params["convs"]
    features = []

    # Layer 1 (stride 1): fused direct-conv kernel, NCHW in / NCHW out (bf16).
    assert convs[0]["stride"] == 1
    y_nchw = conv2d_s1_fused(x_nchw, convs[0]["w"], convs[0]["b"],
                             negative_slope=0.2)
    features.append(y_nchw)                         # NCHW (PyTorch layout)

    # Layers 2-4 (stride 2): channels-last im2col + Pallas matmul, bf16 acts.
    x = jnp.transpose(y_nchw, (0, 2, 3, 1))         # NHWC for lane-dense patches
    for cfg in convs[1:]:
        x = conv2d_im2col_leaky(x, cfg["w"], cfg["b"], stride=cfg["stride"],
                                pad=1, negative_slope=0.2)
        # NCHW only at the return boundary (PyTorch interface).
        features.append(jnp.transpose(x, (0, 3, 1, 2)))

    # FC: permute the (tiny) fc weight into HWC order instead of transposing
    # the activation, then run the K-tiled reduction kernel.
    n, h, w, c = x.shape
    x_flat = x.reshape(n, h * w * c)
    fc_w_hwc = params["fc_w"].reshape(1, c, h, w).transpose(0, 2, 3, 1)
    fc_w_hwc = fc_w_hwc.reshape(1, h * w * c)
    logits = linear_reduce(x_flat, fc_w_hwc, params["fc_b"])
    return logits, features


# ----------------------------------------------------------------------------
if __name__ == "__main__":
    key = jax.random.PRNGKey(0)
    k_param, k_in = jax.random.split(key)

    # Small, self-consistent shapes (original module uses 3x224x296)
    input_shape = (3, 16, 16)
    x = jax.random.normal(k_in, (2,) + input_shape, jnp.float32)  # NCHW

    params = init_params(k_param, input_shape)
    fwd = jax.jit(lambda inp: discriminator_forward(params, inp))
    logits, features = fwd(x)

    jax.block_until_ready(logits)
    for f in features:
        jax.block_until_ready(f)

    assert logits.shape == (2, 1)
    assert features[0].shape == (2, 32, 15, 15)
    assert features[1].shape == (2, 64, 7, 7)
    assert features[2].shape == (2, 128, 3, 3)
    assert features[3].shape == (2, 256, 1, 1)
    print("KERNEL_OK")
</pallas_src>

<mosaic_0001>
module attributes {stable_mosaic.version = 11 : i64} {
  func.func @_conv_s1_kernel(%arg0: i32, %arg1: i32, %arg2: memref<1x3x512xbf16, #tpu.memory_space<vmem>>, %arg3: memref<1x3x512xbf16, #tpu.memory_space<vmem>>, %arg4: memref<16x32x3xbf16, #tpu.memory_space<vmem>>, %arg5: memref<32x1xf32, #tpu.memory_space<vmem>>, %arg6: memref<1x32x512xbf16, #tpu.memory_space<vmem>>) attributes {dimension_semantics = [#tpu.dimension_semantics<parallel>, #tpu.dimension_semantics<parallel>], iteration_bounds = array<i64: 2, 1>, scalar_prefetch = 0 : i64, scratch_operands = 0 : i64, tpu.core_type = #tpu.core_type<tc>, window_params = [{transform_indices = @transform_0, window_bounds = array<i64: 1, 3, 512>}, {transform_indices = @transform_1, window_bounds = array<i64: 1, 3, 512>}, {pipeline_mode = #tpu.pipeline_mode<synchronous>, transform_indices = @transform_2, window_bounds = array<i64: 16, 32, 3>}, {pipeline_mode = #tpu.pipeline_mode<synchronous>, transform_indices = @transform_3, window_bounds = array<i64: 32, 1>}, {transform_indices = @transform_4, window_bounds = array<i64: 1, 32, 512>}]} {
    %c0 = arith.constant 0 : index
    %c0_0 = arith.constant 0 : index
    %c0_1 = arith.constant 0 : index
    %0 = vector.load %arg2[%c0, %c0_0, %c0_1] : memref<1x3x512xbf16, #tpu.memory_space<vmem>>, vector<1x3x512xbf16>
    %1 = vector.shape_cast %0 : vector<1x3x512xbf16> to vector<3x512xbf16>
    %c0_2 = arith.constant 0 : index
    %c0_3 = arith.constant 0 : index
    %c0_4 = arith.constant 0 : index
    %2 = vector.load %arg3[%c0_2, %c0_3, %c0_4] : memref<1x3x512xbf16, #tpu.memory_space<vmem>>, vector<1x3x512xbf16>
    %3 = vector.shape_cast %2 : vector<1x3x512xbf16> to vector<3x512xbf16>
    %4 = tpu.concatenate %1, %3 in 1 : vector<3x512xbf16>, vector<3x512xbf16> -> vector<3x1024xbf16>
    %c0_5 = arith.constant 0 : index
    %c0_6 = arith.constant 0 : index
    %5 = vector.load %arg5[%c0_5, %c0_6] : memref<32x1xf32, #tpu.memory_space<vmem>>, vector<32x1xf32>
    %6 = vector.extract_strided_slice %4 {offsets = [0, 0], sizes = [3, 512], strides = [1, 1]} : vector<3x1024xbf16> to vector<3x512xbf16>
    %c0_7 = arith.constant 0 : index
    %c0_8 = arith.constant 0 : index
    %c0_9 = arith.constant 0 : index
    %7 = vector.load %arg4[%c0_7, %c0_8, %c0_9] : memref<16x32x3xbf16, #tpu.memory_space<vmem>>, vector<1x32x3xbf16>
    %8 = vector.shape_cast %7 : vector<1x32x3xbf16> to vector<32x3xbf16>
    %cst = arith.constant dense<0.000000e+00> : vector<32x512xf32>
    %9 = tpu.matmul %8, %6, %cst {dimension_numbers = #tpu.dot_dimension_numbers<[1], [0], [0], [1], [0, 0, 1, 1], [], []>} : vector<32x3xbf16>, vector<3x512xbf16>, vector<32x512xf32> -> vector<32x512xf32>
    %10 = vector.extract_strided_slice %4 {offsets = [0, 1], sizes = [3, 512], strides = [1, 1]} : vector<3x1024xbf16> to vector<3x512xbf16>
    %c1 = arith.constant 1 : index
    %c0_10 = arith.constant 0 : index
    %c0_11 = arith.constant 0 : index
    %11 = vector.load %arg4[%c1, %c0_10, %c0_11] : memref<16x32x3xbf16, #tpu.memory_space<vmem>>, vector<1x32x3xbf16>
    %12 = vector.shape_cast %11 : vector<1x32x3xbf16> to vector<32x3xbf16>
    %cst_12 = arith.constant dense<0.000000e+00> : vector<32x512xf32>
    %13 = tpu.matmul %12, %10, %cst_12 {dimension_numbers = #tpu.dot_dimension_numbers<[1], [0], [0], [1], [0, 0, 1, 1], [], []>} : vector<32x3xbf16>, vector<3x512xbf16>, vector<32x512xf32> -> vector<32x512xf32>
    %14 = arith.addf %9, %13 : vector<32x512xf32>
    %15 = vector.extract_strided_slice %4 {offsets = [0, 2], sizes = [3, 512], strides = [1, 1]} : vector<3x1024xbf16> to vector<3x512xbf16>
    %c2 = arith.constant 2 : index
    %c0_13 = arith.constant 0 : index
    %c0_14 = arith.constant 0 : index
    %16 = vector.load %arg4[%c2, %c0_13, %c0_14] : memref<16x32x3xbf16, #tpu.memory_space<vmem>>, vector<1x32x3xbf16>
    %17 = vector.shape_cast %16 : vector<1x32x3xbf16> to vector<32x3xbf16>
    %cst_15 = arith.constant dense<0.000000e+00> : vector<32x512xf32>
    %18 = tpu.matmul %17, %15, %cst_15 {dimension_numbers = #tpu.dot_dimension_numbers<[1], [0], [0], [1], [0, 0, 1, 1], [], []>} : vector<32x3xbf16>, vector<3x512xbf16>, vector<32x512xf32> -> vector<32x512xf32>
    %19 = arith.addf %14, %18 : vector<32x512xf32>
    %20 = vector.extract_strided_slice %4 {offsets = [0, 3], sizes = [3, 512], strides = [1, 1]} : vector<3x1024xbf16> to vector<3x512xbf16>
    %c3 = arith.constant 3 : index
    %c0_16 = arith.constant 0 : index
    %c0_17 = arith.constant 0 : index
    %21 = vector.load %arg4[%c3, %c0_16, %c0_17] : memref<16x32x3xbf16, #tpu.memory_space<vmem>>, vector<1x32x3xbf16>
    %22 = vector.shape_cast %21 : vector<1x32x3xbf16> to vector<32x3xbf16>
    %cst_18 = arith.constant dense<0.000000e+00> : vector<32x512xf32>
    %23 = tpu.matmul %22, %20, %cst_18 {dimension_numbers = #tpu.dot_dimension_numbers<[1], [0], [0], [1], [0, 0, 1, 1], [], []>} : vector<32x3xbf16>, vector<3x512xbf16>, vector<32x512xf32> -> vector<32x512xf32>
    %24 = arith.addf %19, %23 : vector<32x512xf32>
    %25 = vector.extract_strided_slice %4 {offsets = [0, 18], sizes = [3, 512], strides = [1, 1]} : vector<3x1024xbf16> to vector<3x512xbf16>
    %c4 = arith.constant 4 : index
    %c0_19 = arith.constant 0 : index
    %c0_20 = arith.constant 0 : index
    %26 = vector.load %arg4[%c4, %c0_19, %c0_20] : memref<16x32x3xbf16, #tpu.memory_space<vmem>>, vector<1x32x3xbf16>
    %27 = vector.shape_cast %26 : vector<1x32x3xbf16> to vector<32x3xbf16>
    %cst_21 = arith.constant dense<0.000000e+00> : vector<32x512xf32>
    %28 = tpu.matmul %27, %25, %cst_21 {dimension_numbers = #tpu.dot_dimension_numbers<[1], [0], [0], [1], [0, 0, 1, 1], [], []>} : vector<32x3xbf16>, vector<3x512xbf16>, vector<32x512xf32> -> vector<32x512xf32>
    %29 = arith.addf %24, %28 : vector<32x512xf32>
    %30 = vector.extract_strided_slice %4 {offsets = [0, 19], sizes = [3, 512], strides = [1, 1]} : vector<3x1024xbf16> to vector<3x512xbf16>
    %c5 = arith.constant 5 : index
    %c0_22 = arith.constant 0 : index
    %c0_23 = arith.constant 0 : index
    %31 = vector.load %arg4[%c5, %c0_22, %c0_23] : memref<16x32x3xbf16, #tpu.memory_space<vmem>>, vector<1x32x3xbf16>
    %32 = vector.shape_cast %31 : vector<1x32x3xbf16> to vector<32x3xbf16>
    %cst_24 = arith.constant dense<0.000000e+00> : vector<32x512xf32>
    %33 = tpu.matmul %32, %30, %cst_24 {dimension_numbers = #tpu.dot_dimension_numbers<[1], [0], [0], [1], [0, 0, 1, 1], [], []>} : vector<32x3xbf16>, vector<3x512xbf16>, vector<32x512xf32> -> vector<32x512xf32>
    %34 = arith.addf %29, %33 : vector<32x512xf32>
    %35 = vector.extract_strided_slice %4 {offsets = [0, 20], sizes = [3, 512], strides = [1, 1]} : vector<3x1024xbf16> to vector<3x512xbf16>
    %c6 = arith.constant 6 : index
    %c0_25 = arith.constant 0 : index
    %c0_26 = arith.constant 0 : index
    %36 = vector.load %arg4[%c6, %c0_25, %c0_26] : memref<16x32x3xbf16, #tpu.memory_space<vmem>>, vector<1x32x3xbf16>
    %37 = vector.shape_cast %36 : vector<1x32x3xbf16> to vector<32x3xbf16>
    %cst_27 = arith.constant dense<0.000000e+00> : vector<32x512xf32>
    %38 = tpu.matmul %37, %35, %cst_27 {dimension_numbers = #tpu.dot_dimension_numbers<[1], [0], [0], [1], [0, 0, 1, 1], [], []>} : vector<32x3xbf16>, vector<3x512xbf16>, vector<32x512xf32> -> vector<32x512xf32>
    %39 = arith.addf %34, %38 : vector<32x512xf32>
    %40 = vector.extract_strided_slice %4 {offsets = [0, 21], sizes = [3, 512], strides = [1, 1]} : vector<3x1024xbf16> to vector<3x512xbf16>
    %c7 = arith.constant 7 : index
    %c0_28 = arith.constant 0 : index
    %c0_29 = arith.constant 0 : index
    %41 = vector.load %arg4[%c7, %c0_28, %c0_29] : memref<16x32x3xbf16, #tpu.memory_space<vmem>>, vector<1x32x3xbf16>
    %42 = vector.shape_cast %41 : vector<1x32x3xbf16> to vector<32x3xbf16>
    %cst_30 = arith.constant dense<0.000000e+00> : vector<32x512xf32>
    %43 = tpu.matmul %42, %40, %cst_30 {dimension_numbers = #tpu.dot_dimension_numbers<[1], [0], [0], [1], [0, 0, 1, 1], [], []>} : vector<32x3xbf16>, vector<3x512xbf16>, vector<32x512xf32> -> vector<32x512xf32>
    %44 = arith.addf %39, %43 : vector<32x512xf32>
    %45 = vector.extract_strided_slice %4 {offsets = [0, 36], sizes = [3, 512], strides = [1, 1]} : vector<3x1024xbf16> to vector<3x512xbf16>
    %c8 = arith.constant 8 : index
    %c0_31 = arith.constant 0 : index
    %c0_32 = arith.constant 0 : index
    %46 = vector.load %arg4[%c8, %c0_31, %c0_32] : memref<16x32x3xbf16, #tpu.memory_space<vmem>>, vector<1x32x3xbf16>
    %47 = vector.shape_cast %46 : vector<1x32x3xbf16> to vector<32x3xbf16>
    %cst_33 = arith.constant dense<0.000000e+00> : vector<32x512xf32>
    %48 = tpu.matmul %47, %45, %cst_33 {dimension_numbers = #tpu.dot_dimension_numbers<[1], [0], [0], [1], [0, 0, 1, 1], [], []>} : vector<32x3xbf16>, vector<3x512xbf16>, vector<32x512xf32> -> vector<32x512xf32>
    %49 = arith.addf %44, %48 : vector<32x512xf32>
    %50 = vector.extract_strided_slice %4 {offsets = [0, 37], sizes = [3, 512], strides = [1, 1]} : vector<3x1024xbf16> to vector<3x512xbf16>
    %c9 = arith.constant 9 : index
    %c0_34 = arith.constant 0 : index
    %c0_35 = arith.constant 0 : index
    %51 = vector.load %arg4[%c9, %c0_34, %c0_35] : memref<16x32x3xbf16, #tpu.memory_space<vmem>>, vector<1x32x3xbf16>
    %52 = vector.shape_cast %51 : vector<1x32x3xbf16> to vector<32x3xbf16>
    %cst_36 = arith.constant dense<0.000000e+00> : vector<32x512xf32>
    %53 = tpu.matmul %52, %50, %cst_36 {dimension_numbers = #tpu.dot_dimension_numbers<[1], [0], [0], [1], [0, 0, 1, 1], [], []>} : vector<32x3xbf16>, vector<3x512xbf16>, vector<32x512xf32> -> vector<32x512xf32>
    %54 = arith.addf %49, %53 : vector<32x512xf32>
    %55 = vector.extract_strided_slice %4 {offsets = [0, 38], sizes = [3, 512], strides = [1, 1]} : vector<3x1024xbf16> to vector<3x512xbf16>
    %c10 = arith.constant 10 : index
    %c0_37 = arith.constant 0 : index
    %c0_38 = arith.constant 0 : index
    %56 = vector.load %arg4[%c10, %c0_37, %c0_38] : memref<16x32x3xbf16, #tpu.memory_space<vmem>>, vector<1x32x3xbf16>
    %57 = vector.shape_cast %56 : vector<1x32x3xbf16> to vector<32x3xbf16>
    %cst_39 = arith.constant dense<0.000000e+00> : vector<32x512xf32>
    %58 = tpu.matmul %57, %55, %cst_39 {dimension_numbers = #tpu.dot_dimension_numbers<[1], [0], [0], [1], [0, 0, 1, 1], [], []>} : vector<32x3xbf16>, vector<3x512xbf16>, vector<32x512xf32> -> vector<32x512xf32>
    %59 = arith.addf %54, %58 : vector<32x512xf32>
    %60 = vector.extract_strided_slice %4 {offsets = [0, 39], sizes = [3, 512], strides = [1, 1]} : vector<3x1024xbf16> to vector<3x512xbf16>
    %c11 = arith.constant 11 : index
    %c0_40 = arith.constant 0 : index
    %c0_41 = arith.constant 0 : index
    %61 = vector.load %arg4[%c11, %c0_40, %c0_41] : memref<16x32x3xbf16, #tpu.memory_space<vmem>>, vector<1x32x3xbf16>
    %62 = vector.shape_cast %61 : vector<1x32x3xbf16> to vector<32x3xbf16>
    %cst_42 = arith.constant dense<0.000000e+00> : vector<32x512xf32>
    %63 = tpu.matmul %62, %60, %cst_42 {dimension_numbers = #tpu.dot_dimension_numbers<[1], [0], [0], [1], [0, 0, 1, 1], [], []>} : vector<32x3xbf16>, vector<3x512xbf16>, vector<32x512xf32> -> vector<32x512xf32>
    %64 = arith.addf %59, %63 : vector<32x512xf32>
    %65 = vector.extract_strided_slice %4 {offsets = [0, 54], sizes = [3, 512], strides = [1, 1]} : vector<3x1024xbf16> to vector<3x512xbf16>
    %c12 = arith.constant 12 : index
    %c0_43 = arith.constant 0 : index
    %c0_44 = arith.constant 0 : index
    %66 = vector.load %arg4[%c12, %c0_43, %c0_44] : memref<16x32x3xbf16, #tpu.memory_space<vmem>>, vector<1x32x3xbf16>
    %67 = vector.shape_cast %66 : vector<1x32x3xbf16> to vector<32x3xbf16>
    %cst_45 = arith.constant dense<0.000000e+00> : vector<32x512xf32>
    %68 = tpu.matmul %67, %65, %cst_45 {dimension_numbers = #tpu.dot_dimension_numbers<[1], [0], [0], [1], [0, 0, 1, 1], [], []>} : vector<32x3xbf16>, vector<3x512xbf16>, vector<32x512xf32> -> vector<32x512xf32>
    %69 = arith.addf %64, %68 : vector<32x512xf32>
    %70 = vector.extract_strided_slice %4 {offsets = [0, 55], sizes = [3, 512], strides = [1, 1]} : vector<3x1024xbf16> to vector<3x512xbf16>
    %c13 = arith.constant 13 : index
    %c0_46 = arith.constant 0 : index
    %c0_47 = arith.constant 0 : index
    %71 = vector.load %arg4[%c13, %c0_46, %c0_47] : memref<16x32x3xbf16, #tpu.memory_space<vmem>>, vector<1x32x3xbf16>
    %72 = vector.shape_cast %71 : vector<1x32x3xbf16> to vector<32x3xbf16>
    %cst_48 = arith.constant dense<0.000000e+00> : vector<32x512xf32>
    %73 = tpu.matmul %72, %70, %cst_48 {dimension_numbers = #tpu.dot_dimension_numbers<[1], [0], [0], [1], [0, 0, 1, 1], [], []>} : vector<32x3xbf16>, vector<3x512xbf16>, vector<32x512xf32> -> vector<32x512xf32>
    %74 = arith.addf %69, %73 : vector<32x512xf32>
    %75 = vector.extract_strided_slice %4 {offsets = [0, 56], sizes = [3, 512], strides = [1, 1]} : vector<3x1024xbf16> to vector<3x512xbf16>
    %c14 = arith.constant 14 : index
    %c0_49 = arith.constant 0 : index
    %c0_50 = arith.constant 0 : index
    %76 = vector.load %arg4[%c14, %c0_49, %c0_50] : memref<16x32x3xbf16, #tpu.memory_space<vmem>>, vector<1x32x3xbf16>
    %77 = vector.shape_cast %76 : vector<1x32x3xbf16> to vector<32x3xbf16>
    %cst_51 = arith.constant dense<0.000000e+00> : vector<32x512xf32>
    %78 = tpu.matmul %77, %75, %cst_51 {dimension_numbers = #tpu.dot_dimension_numbers<[1], [0], [0], [1], [0, 0, 1, 1], [], []>} : vector<32x3xbf16>, vector<3x512xbf16>, vector<32x512xf32> -> vector<32x512xf32>
    %79 = arith.addf %74, %78 : vector<32x512xf32>
    %80 = vector.extract_strided_slice %4 {offsets = [0, 57], sizes = [3, 512], strides = [1, 1]} : vector<3x1024xbf16> to vector<3x512xbf16>
    %c15 = arith.constant 15 : index
    %c0_52 = arith.constant 0 : index
    %c0_53 = arith.constant 0 : index
    %81 = vector.load %arg4[%c15, %c0_52, %c0_53] : memref<16x32x3xbf16, #tpu.memory_space<vmem>>, vector<1x32x3xbf16>
    %82 = vector.shape_cast %81 : vector<1x32x3xbf16> to vector<32x3xbf16>
    %cst_54 = arith.constant dense<0.000000e+00> : vector<32x512xf32>
    %83 = tpu.matmul %82, %80, %cst_54 {dimension_numbers = #tpu.dot_dimension_numbers<[1], [0], [0], [1], [0, 0, 1, 1], [], []>} : vector<32x3xbf16>, vector<3x512xbf16>, vector<32x512xf32> -> vector<32x512xf32>
    %84 = arith.addf %79, %83 : vector<32x512xf32>
    %85 = vector.broadcast %5 : vector<32x1xf32> to vector<32x512xf32>
    %86 = arith.addf %84, %85 : vector<32x512xf32>
    %cst_55 = arith.constant 0.000000e+00 : f32
    %87 = vector.broadcast %cst_55 : f32 to vector<32x512xf32>
    %88 = arith.cmpf oge, %86, %87 : vector<32x512xf32>
    %cst_56 = arith.constant 2.000000e-01 : f32
    %89 = vector.broadcast %cst_56 : f32 to vector<32x512xf32>
    %90 = arith.mulf %89, %86 : vector<32x512xf32>
    %91 = arith.select %88, %86, %90 : vector<32x512xi1>, vector<32x512xf32>
    %92 = arith.truncf %91 : vector<32x512xf32> to vector<32x512xbf16>
    %c0_57 = arith.constant 0 : index
    %c0_58 = arith.constant 0 : index
    %c0_59 = arith.constant 0 : index
    %93 = vector.load %arg6[%c0_57, %c0_58, %c0_59] : memref<1x32x512xbf16, #tpu.memory_space<vmem>>, vector<1x32x512xbf16>
    %94 = vector.shape_cast %93 : vector<1x32x512xbf16> to vector<32x512xbf16>
    %95 = vector.shape_cast %92 : vector<32x512xbf16> to vector<1x32x512xbf16>
    tpu.vector_store %arg6[%c0_57, %c0_58, %c0_59], %95 {strides = array<i32>} : memref<1x32x512xbf16, #tpu.memory_space<vmem>>, vector<1x32x512xbf16>,
    return
  }
  func.func @transform_0(%arg0: i32, %arg1: i32) -> (i32, i32, i32) {
    %c0_i32 = arith.constant 0 : i32
    %c0_i32_0 = arith.constant 0 : i32
    return %arg0, %c0_i32, %arg1 : i32, i32, i32
  }
  func.func @transform_1(%arg0: i32, %arg1: i32) -> (i32, i32, i32) {
    %c1_i32 = arith.constant 1 : i32
    %0 = arith.addi %arg1, %c1_i32 : i32
    %c0_i32 = arith.constant 0 : i32
    %c0_i32_0 = arith.constant 0 : i32
    return %arg0, %c0_i32, %0 : i32, i32, i32
  }
  func.func @transform_2(%arg0: i32, %arg1: i32) -> (i32, i32, i32) {
    %c0_i32 = arith.constant 0 : i32
    %c0_i32_0 = arith.constant 0 : i32
    %c0_i32_1 = arith.constant 0 : i32
    %c0_i32_2 = arith.constant 0 : i32
    return %c0_i32, %c0_i32_0, %c0_i32_1 : i32, i32, i32
  }
  func.func @transform_3(%arg0: i32, %arg1: i32) -> (i32, i32) {
    %c0_i32 = arith.constant 0 : i32
    %c0_i32_0 = arith.constant 0 : i32
    %c0_i32_1 = arith.constant 0 : i32
    return %c0_i32, %c0_i32_0 : i32, i32
  }
  func.func @transform_4(%arg0: i32, %arg1: i32) -> (i32, i32, i32) {
    %c0_i32 = arith.constant 0 : i32
    %c0_i32_0 = arith.constant 0 : i32
    return %arg0, %c0_i32, %arg1 : i32, i32, i32
  }
}

module attributes {stable_mosaic.version = 11 : i64} {
  func.func @_matmul_bias_act_kernel(%arg0: i32, %arg1: memref<64x1024xbf16, #tpu.memory_space<vmem>>, %arg2: memref<1024x128xbf16, #tpu.memory_space<vmem>>, %arg3: memref<1x128xf32, #tpu.memory_space<vmem>>, %arg4: memref<64x128xbf16, #tpu.memory_space<vmem>>) attributes {dimension_semantics = [#tpu.dimension_semantics<parallel>], iteration_bounds = array<i64: 1>, scalar_prefetch = 0 : i64, scratch_operands = 0 : i64, tpu.core_type = #tpu.core_type<tc>, window_params = [{transform_indices = @transform_0, window_bounds = array<i64: 64, 1024>}, {pipeline_mode = #tpu.pipeline_mode<synchronous>, transform_indices = @transform_1, window_bounds = array<i64: 1024, 128>}, {pipeline_mode = #tpu.pipeline_mode<synchronous>, transform_indices = @transform_2, window_bounds = array<i64: 1, 128>}, {transform_indices = @transform_3, window_bounds = array<i64: 64, 128>}]} {
    %c0 = arith.constant 0 : index
    %c0_0 = arith.constant 0 : index
    %0 = vector.load %arg1[%c0, %c0_0] : memref<64x1024xbf16, #tpu.memory_space<vmem>>, vector<64x1024xbf16>
    %c0_1 = arith.constant 0 : index
    %c0_2 = arith.constant 0 : index
    %1 = vector.load %arg2[%c0_1, %c0_2] : memref<1024x128xbf16, #tpu.memory_space<vmem>>, vector<1024x128xbf16>
    %cst = arith.constant dense<0.000000e+00> : vector<64x128xf32>
    %2 = tpu.matmul %0, %1, %cst {dimension_numbers = #tpu.dot_dimension_numbers<[1], [0], [0], [1], [0, 0, 1, 1], [], []>} : vector<64x1024xbf16>, vector<1024x128xbf16>, vector<64x128xf32> -> vector<64x128xf32>
    %c0_3 = arith.constant 0 : index
    %c0_4 = arith.constant 0 : index
    %3 = vector.load %arg3[%c0_3, %c0_4] : memref<1x128xf32, #tpu.memory_space<vmem>>, vector<1x128xf32>
    %4 = vector.broadcast %3 : vector<1x128xf32> to vector<64x128xf32>
    %5 = arith.addf %2, %4 : vector<64x128xf32>
    %cst_5 = arith.constant 0.000000e+00 : f32
    %6 = vector.broadcast %cst_5 : f32 to vector<64x128xf32>
    %7 = arith.cmpf oge, %5, %6 : vector<64x128xf32>
    %cst_6 = arith.constant 2.000000e-01 : f32
    %8 = vector.broadcast %cst_6 : f32 to vector<64x128xf32>
    %9 = arith.mulf %8, %5 : vector<64x128xf32>
    %10 = arith.select %7, %5, %9 : vector<64x128xi1>, vector<64x128xf32>
    %11 = arith.truncf %10 : vector<64x128xf32> to vector<64x128xbf16>
    %c0_7 = arith.constant 0 : index
    %c0_8 = arith.constant 0 : index
    %12 = vector.load %arg4[%c0_7, %c0_8] : memref<64x128xbf16, #tpu.memory_space<vmem>>, vector<64x128xbf16>
    tpu.vector_store %arg4[%c0_7, %c0_8], %11 {strides = array<i32>} : memref<64x128xbf16, #tpu.memory_space<vmem>>, vector<64x128xbf16>,
    return
  }
  func.func @transform_0(%arg0: i32) -> (i32, i32) {
    %c0_i32 = arith.constant 0 : i32
    %c0_i32_0 = arith.constant 0 : i32
    return %arg0, %c0_i32 : i32, i32
  }
  func.func @transform_1(%arg0: i32) -> (i32, i32) {
    %c0_i32 = arith.constant 0 : i32
    %c0_i32_0 = arith.constant 0 : i32
    %c0_i32_1 = arith.constant 0 : i32
    return %c0_i32, %c0_i32_0 : i32, i32
  }
  func.func @transform_2(%arg0: i32) -> (i32, i32) {
    %c0_i32 = arith.constant 0 : i32
    %c0_i32_0 = arith.constant 0 : i32
    %c0_i32_1 = arith.constant 0 : i32
    return %c0_i32, %c0_i32_0 : i32, i32
  }
  func.func @transform_3(%arg0: i32) -> (i32, i32) {
    %c0_i32 = arith.constant 0 : i32
    %c0_i32_0 = arith.constant 0 : i32
    return %arg0, %c0_i32 : i32, i32
  }
}

module attributes {stable_mosaic.version = 11 : i64} {
  func.func @_matmul_bias_act_kernel(%arg0: i32, %arg1: memref<64x1024xbf16, #tpu.memory_space<vmem>>, %arg2: memref<1024x128xbf16, #tpu.memory_space<vmem>>, %arg3: memref<1x128xf32, #tpu.memory_space<vmem>>, %arg4: memref<64x128xbf16, #tpu.memory_space<vmem>>) attributes {dimension_semantics = [#tpu.dimension_semantics<parallel>], iteration_bounds = array<i64: 1>, scalar_prefetch = 0 : i64, scratch_operands = 0 : i64, tpu.core_type = #tpu.core_type<tc>, window_params = [{transform_indices = @transform_0, window_bounds = array<i64: 64, 1024>}, {pipeline_mode = #tpu.pipeline_mode<synchronous>, transform_indices = @transform_1, window_bounds = array<i64: 1024, 128>}, {pipeline_mode = #tpu.pipeline_mode<synchronous>, transform_indices = @transform_2, window_bounds = array<i64: 1, 128>}, {transform_indices = @transform_3, window_bounds = array<i64: 64, 128>}]} {
    %c0 = arith.constant 0 : index
    %c0_0 = arith.constant 0 : index
    %0 = vector.load %arg1[%c0, %c0_0] : memref<64x1024xbf16, #tpu.memory_space<vmem>>, vector<64x1024xbf16>
    %c0_1 = arith.constant 0 : index
    %c0_2 = arith.constant 0 : index
    %1 = vector.load %arg2[%c0_1, %c0_2] : memref<1024x128xbf16, #tpu.memory_space<vmem>>, vector<1024x128xbf16>
    %cst = arith.constant dense<0.000000e+00> : vector<64x128xf32>
    %2 = tpu.matmul %0, %1, %cst {dimension_numbers = #tpu.dot_dimension_numbers<[1], [0], [0], [1], [0, 0, 1, 1], [], []>} : vector<64x1024xbf16>, vector<1024x128xbf16>, vector<64x128xf32> -> vector<64x128xf32>
    %c0_3 = arith.constant 0 : index
    %c0_4 = arith.constant 0 : index
    %3 = vector.load %arg3[%c0_3, %c0_4] : memref<1x128xf32, #tpu.memory_space<vmem>>, vector<1x128xf32>
    %4 = vector.broadcast %3 : vector<1x128xf32> to vector<64x128xf32>
    %5 = arith.addf %2, %4 : vector<64x128xf32>
    %cst_5 = arith.constant 0.000000e+00 : f32
    %6 = vector.broadcast %cst_5 : f32 to vector<64x128xf32>
    %7 = arith.cmpf oge, %5, %6 : vector<64x128xf32>
    %cst_6 = arith.constant 2.000000e-01 : f32
    %8 = vector.broadcast %cst_6 : f32 to vector<64x128xf32>
    %9 = arith.mulf %8, %5 : vector<64x128xf32>
    %10 = arith.select %7, %5, %9 : vector<64x128xi1>, vector<64x128xf32>
    %11 = arith.truncf %10 : vector<64x128xf32> to vector<64x128xbf16>
    %c0_7 = arith.constant 0 : index
    %c0_8 = arith.constant 0 : index
    %12 = vector.load %arg4[%c0_7, %c0_8] : memref<64x128xbf16, #tpu.memory_space<vmem>>, vector<64x128xbf16>
    tpu.vector_store %arg4[%c0_7, %c0_8], %11 {strides = array<i32>} : memref<64x128xbf16, #tpu.memory_space<vmem>>, vector<64x128xbf16>,
    return
  }
  func.func @transform_0(%arg0: i32) -> (i32, i32) {
    %c0_i32 = arith.constant 0 : i32
    %c0_i32_0 = arith.constant 0 : i32
    return %arg0, %c0_i32 : i32, i32
  }
  func.func @transform_1(%arg0: i32) -> (i32, i32) {
    %c0_i32 = arith.constant 0 : i32
    %c0_i32_0 = arith.constant 0 : i32
    %c0_i32_1 = arith.constant 0 : i32
    return %c0_i32, %c0_i32_0 : i32, i32
  }
  func.func @transform_2(%arg0: i32) -> (i32, i32) {
    %c0_i32 = arith.constant 0 : i32
    %c0_i32_0 = arith.constant 0 : i32
    %c0_i32_1 = arith.constant 0 : i32
    return %c0_i32, %c0_i32_0 : i32, i32
  }
  func.func @transform_3(%arg0: i32) -> (i32, i32) {
    %c0_i32 = arith.constant 0 : i32
    %c0_i32_0 = arith.constant 0 : i32
    return %arg0, %c0_i32 : i32, i32
  }
}

module attributes {stable_mosaic.version = 11 : i64} {
  func.func @_linear_reduce_kernel(%arg0: i32, %arg1: memref<2x256xbf16, #tpu.memory_space<vmem>>, %arg2: memref<1x256xbf16, #tpu.memory_space<vmem>>, %arg3: memref<1x1xf32, #tpu.memory_space<vmem>>, %arg4: memref<2x1xf32, #tpu.memory_space<vmem>>) attributes {dimension_semantics = [#tpu.dimension_semantics<arbitrary>], iteration_bounds = array<i64: 1>, scalar_prefetch = 0 : i64, scratch_operands = 0 : i64, tpu.core_type = #tpu.core_type<tc>, window_params = [{transform_indices = @transform_0, window_bounds = array<i64: 2, 256>}, {transform_indices = @transform_1, window_bounds = array<i64: 1, 256>}, {pipeline_mode = #tpu.pipeline_mode<synchronous>, transform_indices = @transform_2, window_bounds = array<i64: 1, 1>}, {pipeline_mode = #tpu.pipeline_mode<synchronous>, transform_indices = @transform_3, window_bounds = array<i64: 2, 1>}]} {
    %c0_i32 = arith.constant 0 : i32
    %0 = arith.cmpi eq, %arg0, %c0_i32 : i32
    %1 = arith.extui %0 : i1 to i32
    %c0_i32_0 = arith.constant 0 : i32
    %2 = arith.cmpi ne, %1, %c0_i32_0 : i32
    scf.if %2 {
      %cst_10 = arith.constant 0.000000e+00 : f32
      %17 = vector.broadcast %cst_10 : f32 to vector<2x1xf32>
      %c0_11 = arith.constant 0 : index
      %c0_12 = arith.constant 0 : index
      %18 = vector.load %arg4[%c0_11, %c0_12] : memref<2x1xf32, #tpu.memory_space<vmem>>, vector<2x1xf32>
      tpu.vector_store %arg4[%c0_11, %c0_12], %17 {strides = array<i32>} : memref<2x1xf32, #tpu.memory_space<vmem>>, vector<2x1xf32>,
    } else {
    }
    %c0 = arith.constant 0 : index
    %c0_1 = arith.constant 0 : index
    %3 = vector.load %arg1[%c0, %c0_1] : memref<2x256xbf16, #tpu.memory_space<vmem>>, vector<2x256xbf16>
    %4 = arith.extf %3 : vector<2x256xbf16> to vector<2x256xf32>
    %c0_2 = arith.constant 0 : index
    %c0_3 = arith.constant 0 : index
    %5 = vector.load %arg2[%c0_2, %c0_3] : memref<1x256xbf16, #tpu.memory_space<vmem>>, vector<1x256xbf16>
    %6 = arith.extf %5 : vector<1x256xbf16> to vector<1x256xf32>
    %7 = vector.broadcast %6 : vector<1x256xf32> to vector<2x256xf32>
    %8 = arith.mulf %4, %7 : vector<2x256xf32>
    %c0_4 = arith.constant 0 : index
    %c0_5 = arith.constant 0 : index
    %9 = vector.load %arg4[%c0_4, %c0_5] : memref<2x1xf32, #tpu.memory_space<vmem>>, vector<2x1xf32>
    %cst = arith.constant dense<0.000000e+00> : vector<2xf32>
    %10 = vector.multi_reduction <add>, %8, %cst [1] : vector<2x256xf32> to vector<2xf32>
    %11 = vector.shape_cast %10 : vector<2xf32> to vector<2x1xf32>
    %12 = arith.addf %9, %11 : vector<2x1xf32>
    %c0_6 = arith.constant 0 : index
    %c0_7 = arith.constant 0 : index
    %13 = vector.load %arg4[%c0_6, %c0_7] : memref<2x1xf32, #tpu.memory_space<vmem>>, vector<2x1xf32>
    tpu.vector_store %arg4[%c0_6, %c0_7], %12 {strides = array<i32>} : memref<2x1xf32, #tpu.memory_space<vmem>>, vector<2x1xf32>,
    %c0_i32_8 = arith.constant 0 : i32
    %14 = arith.cmpi eq, %arg0, %c0_i32_8 : i32
    %15 = arith.extui %14 : i1 to i32
    %c0_i32_9 = arith.constant 0 : i32
    %16 = arith.cmpi ne, %15, %c0_i32_9 : i32
    scf.if %16 {
      %c0_10 = arith.constant 0 : index
      %c0_11 = arith.constant 0 : index
      %17 = vector.load %arg4[%c0_10, %c0_11] : memref<2x1xf32, #tpu.memory_space<vmem>>, vector<2x1xf32>
      %c0_12 = arith.constant 0 : index
      %c0_13 = arith.constant 0 : index
      %18 = vector.load %arg3[%c0_12, %c0_13] : memref<1x1xf32, #tpu.memory_space<vmem>>, vector<1x1xf32>
      %19 = vector.broadcast %18 : vector<1x1xf32> to vector<2x1xf32>
      %20 = arith.addf %17, %19 : vector<2x1xf32>
      %c0_14 = arith.constant 0 : index
      %c0_15 = arith.constant 0 : index
      %21 = vector.load %arg4[%c0_14, %c0_15] : memref<2x1xf32, #tpu.memory_space<vmem>>, vector<2x1xf32>
      tpu.vector_store %arg4[%c0_14, %c0_15], %20 {strides = array<i32>} : memref<2x1xf32, #tpu.memory_space<vmem>>, vector<2x1xf32>,
    } else {
    }
    return
  }
  func.func @transform_0(%arg0: i32) -> (i32, i32) {
    %c0_i32 = arith.constant 0 : i32
    %c0_i32_0 = arith.constant 0 : i32
    return %c0_i32, %arg0 : i32, i32
  }
  func.func @transform_1(%arg0: i32) -> (i32, i32) {
    %c0_i32 = arith.constant 0 : i32
    %c0_i32_0 = arith.constant 0 : i32
    return %c0_i32, %arg0 : i32, i32
  }
  func.func @transform_2(%arg0: i32) -> (i32, i32) {
    %c0_i32 = arith.constant 0 : i32
    %c0_i32_0 = arith.constant 0 : i32
    %c0_i32_1 = arith.constant 0 : i32
    return %c0_i32, %c0_i32_0 : i32, i32
  }
  func.func @transform_3(%arg0: i32) -> (i32, i32) {
    %c0_i32 = arith.constant 0 : i32
    %c0_i32_0 = arith.constant 0 : i32
    %c0_i32_1 = arith.constant 0 : i32
    return %c0_i32, %c0_i32_0 : i32, i32
  }
}

module attributes {stable_mosaic.version = 11 : i64} {
  func.func @_matmul_bias_act_kernel(%arg0: i32, %arg1: memref<64x2048xbf16, #tpu.memory_space<vmem>>, %arg2: memref<2048x256xbf16, #tpu.memory_space<vmem>>, %arg3: memref<1x256xf32, #tpu.memory_space<vmem>>, %arg4: memref<64x256xbf16, #tpu.memory_space<vmem>>) attributes {dimension_semantics = [#tpu.dimension_semantics<parallel>], iteration_bounds = array<i64: 1>, scalar_prefetch = 0 : i64, scratch_operands = 0 : i64, tpu.core_type = #tpu.core_type<tc>, window_params = [{transform_indices = @transform_0, window_bounds = array<i64: 64, 2048>}, {pipeline_mode = #tpu.pipeline_mode<synchronous>, transform_indices = @transform_1, window_bounds = array<i64: 2048, 256>}, {pipeline_mode = #tpu.pipeline_mode<synchronous>, transform_indices = @transform_2, window_bounds = array<i64: 1, 256>}, {transform_indices = @transform_3, window_bounds = array<i64: 64, 256>}]} {
    %c0 = arith.constant 0 : index
    %c0_0 = arith.constant 0 : index
    %0 = vector.load %arg1[%c0, %c0_0] : memref<64x2048xbf16, #tpu.memory_space<vmem>>, vector<64x2048xbf16>
    %c0_1 = arith.constant 0 : index
    %c0_2 = arith.constant 0 : index
    %1 = vector.load %arg2[%c0_1, %c0_2] : memref<2048x256xbf16, #tpu.memory_space<vmem>>, vector<2048x256xbf16>
    %cst = arith.constant dense<0.000000e+00> : vector<64x256xf32>
    %2 = tpu.matmul %0, %1, %cst {dimension_numbers = #tpu.dot_dimension_numbers<[1], [0], [0], [1], [0, 0, 1, 1], [], []>} : vector<64x2048xbf16>, vector<2048x256xbf16>, vector<64x256xf32> -> vector<64x256xf32>
    %c0_3 = arith.constant 0 : index
    %c0_4 = arith.constant 0 : index
    %3 = vector.load %arg3[%c0_3, %c0_4] : memref<1x256xf32, #tpu.memory_space<vmem>>, vector<1x256xf32>
    %4 = vector.broadcast %3 : vector<1x256xf32> to vector<64x256xf32>
    %5 = arith.addf %2, %4 : vector<64x256xf32>
    %cst_5 = arith.constant 0.000000e+00 : f32
    %6 = vector.broadcast %cst_5 : f32 to vector<64x256xf32>
    %7 = arith.cmpf oge, %5, %6 : vector<64x256xf32>
    %cst_6 = arith.constant 2.000000e-01 : f32
    %8 = vector.broadcast %cst_6 : f32 to vector<64x256xf32>
    %9 = arith.mulf %8, %5 : vector<64x256xf32>
    %10 = arith.select %7, %5, %9 : vector<64x256xi1>, vector<64x256xf32>
    %11 = arith.truncf %10 : vector<64x256xf32> to vector<64x256xbf16>
    %c0_7 = arith.constant 0 : index
    %c0_8 = arith.constant 0 : index
    %12 = vector.load %arg4[%c0_7, %c0_8] : memref<64x256xbf16, #tpu.memory_space<vmem>>, vector<64x256xbf16>
    tpu.vector_store %arg4[%c0_7, %c0_8], %11 {strides = array<i32>} : memref<64x256xbf16, #tpu.memory_space<vmem>>, vector<64x256xbf16>,
    return
  }
  func.func @transform_0(%arg0: i32) -> (i32, i32) {
    %c0_i32 = arith.constant 0 : i32
    %c0_i32_0 = arith.constant 0 : i32
    return %arg0, %c0_i32 : i32, i32
  }
  func.func @transform_1(%arg0: i32) -> (i32, i32) {
    %c0_i32 = arith.constant 0 : i32
    %c0_i32_0 = arith.constant 0 : i32
    %c0_i32_1 = arith.constant 0 : i32
    return %c0_i32, %c0_i32_0 : i32, i32
  }
  func.func @transform_2(%arg0: i32) -> (i32, i32) {
    %c0_i32 = arith.constant 0 : i32
    %c0_i32_0 = arith.constant 0 : i32
    %c0_i32_1 = arith.constant 0 : i32
    return %c0_i32, %c0_i32_0 : i32, i32
  }
  func.func @transform_3(%arg0: i32) -> (i32, i32) {
    %c0_i32 = arith.constant 0 : i32
    %c0_i32_0 = arith.constant 0 : i32
    return %arg0, %c0_i32 : i32, i32
  }
}

</mosaic_0001>

<llo_original>
// kernel: _lambda_.5
$region0: #{_lambda_.5}
  #allocation0 [shape = 'u32[]', space=smem, size = 0x4, offset = 0x4, fixed_abs, tag = 'smem constant byte address 0x4 - core index']
  #allocation1 [shape = 'u32[72,128]{1,0:T(1,128)}', space=vmem, size = 0x9000, scoped, tag = 'internal scratch']
  %s0 = inlined_call_operand.vmem [shape: bf16[2,3,1024], index: 0, kind: input, shape index: {}, may-alias: {0,1}]
  %s1 = inlined_call_operand.vmem [shape: bf16[2,3,1024], index: 1, kind: input, shape index: {}, may-alias: {0,1}]
  %s2 = inlined_call_operand.vmem [shape: bf16[16,32,3], index: 2, kind: input, shape index: {}]
  %s3 = inlined_call_operand.vmem [shape: f32[32,1], index: 3, kind: input, shape index: {}]
  %s4 = inlined_call_operand.vmem [shape: bf16[2,32,512], index: 4, kind: output, shape index: {}]
  %s5 = sld [smem:[#allocation0]]
  $region49: #{_lambda_.5} parent=0
    _
  %s7 = ssub.s32 1, %s5
  %s8 = scalar_select 0, %s7, %s5
  loop: start=0, step=1, limit=4
  $region2: #{_lambda_.5} parent=0 // loop_pre_header
    _
  $region3: #{_lambda_.5} parent=0 // loop_header
    %s10 = sphi 0, %s14
    %p11 = scmp.ge.s32.totalorder %s10, 4
    %s17 = sphi 0, %s29
    %s18 = sphi 0, %s25
    %s19 = sphi 0, %s17
    %s20 = sphi 0, %s18
    %s21 = sphi 0, %s19
    %s22 = sphi 0, %s20
    %s34 = sphi 0, %s36
    %s37 = sphi 0, %s34
    %s38 = sphi 0, %s37
    %s54 = sphi 0, %s38
    %s64 = sphi 0, %s66
    %s67 = sphi 0, %s64
    %s68 = sphi 0, %s67
    %s84 = sphi 0, %s68
    %s88 = sphi 0, %s88
    %s90 = sphi 0, %s88
    %s91 = sphi 0, %s90
    %s105 = sphi 0, %s91
    %s109 = sphi 0, %s109
    %s111 = sphi 0, %s109
    %s112 = sphi 0, %s111
    %s126 = sphi 0, %s112
    %s134 = sphi 0, %s136
    %s137 = sphi 0, %s134
    %s138 = sphi 0, %s137
    %s154 = sphi 0, %s138
  $region4: #{_lambda_.5} parent=0 // loop_header_branch
    %13 = sbr.rel (%p11) target = $region8
  $region5: #{_lambda_.5} parent=0 // loop_body
    %s15 = ssub.s32 %s10, 1
    %s16 = ssub.s32 %s10, 2
    %s23 = sadd.s32 1, %s18
    %p24 = scmp.ge.s32.totalorder %s23, 1
    %s25 = scalar_select %p24, 0, %s23
    %s26 = sadd.s32 1, %s17
    %s27 = scalar_select %p24, %s26, %s17
    %p28 = scmp.ge.s32.totalorder %s27, 2
    %s29 = scalar_select %p28, 0, %s27
    %s30 = ssub.s32 %s17, %s29
    %s31 = ssub.s32 %s18, %s25
    %s32 = sor.u32 %s30, %s31
    %p33 = scmp.eq.s32.totalorder %s32, 0
    %s35 = sadd.s32 %s34, 1
    %s36 = scalar_select %p33, %s34, %s35
    %p39 = pneg %p33
    %p40 = scmp.eq.s32.totalorder %s10, 1
    %p41 = por %p39, %p40
    %p42 = scmp.ne.s32.totalorder %s34, %s37
    %p43 = scmp.eq.s32.totalorder %s10, 0
    %p44 = por %p42, %p43
    %p45 = scmp.ne.s32.totalorder %s34, %s37
    %p46 = scmp.eq.s32.totalorder %s15, 1
    %p47 = por %p45, %p46
    %p48 = scmp.ne.s32.totalorder %s37, %s38
    %p49 = scmp.eq.s32.totalorder %s15, 0
    %p50 = por %p48, %p49
    %p51 = scmp.ne.s32.totalorder %s37, %s38
    %p52 = scmp.eq.s32.totalorder %s16, 1
    %p53 = por %p51, %p52
    %p55 = scmp.ne.s32.totalorder %s38, %s54
    %p56 = scmp.eq.s32.totalorder %s16, 0
    %p57 = por %p55, %p56
    %s58 = sadd.s32 %s18, 1
    %s59 = sadd.s32 %s25, 1
    %s60 = ssub.s32 %s17, %s29
    %s61 = ssub.s32 %s58, %s59
    %s62 = sor.u32 %s60, %s61
    %p63 = scmp.eq.s32.totalorder %s62, 0
    %s65 = sadd.s32 %s64, 1
    %s66 = scalar_select %p63, %s64, %s65
    %p69 = pneg %p63
    %p70 = scmp.eq.s32.totalorder %s10, 1
    %p71 = por %p69, %p70
    %p72 = scmp.ne.s32.totalorder %s64, %s67
    %p73 = scmp.eq.s32.totalorder %s10, 0
    %p74 = por %p72, %p73
    %p75 = scmp.ne.s32.totalorder %s64, %s67
    %p76 = scmp.eq.s32.totalorder %s15, 1
    %p77 = por %p75, %p76
    %p78 = scmp.ne.s32.totalorder %s67, %s68
    %p79 = scmp.eq.s32.totalorder %s15, 0
    %p80 = por %p78, %p79
    %p81 = scmp.ne.s32.totalorder %s67, %s68
    %p82 = scmp.eq.s32.totalorder %s16, 1
    %p83 = por %p81, %p82
    %p85 = scmp.ne.s32.totalorder %s68, %s84
    %p86 = scmp.eq.s32.totalorder %s16, 0
    %p87 = por %p85, %p86
    %s89 = sadd.s32 %s88, 1
    %p92 = scmp.eq.s32.totalorder %s10, 1
    %p93 = scmp.ne.s32.totalorder %s88, %s90
    %p94 = scmp.eq.s32.totalorder %s10, 0
    %p95 = por %p93, %p94
    %p96 = scmp.ne.s32.totalorder %s88, %s90
    %p97 = scmp.eq.s32.totalorder %s15, 1
    %p98 = por %p96, %p97
    %p99 = scmp.ne.s32.totalorder %s90, %s91
    %p100 = scmp.eq.s32.totalorder %s15, 0
    %p101 = por %p99, %p100
    %p102 = scmp.ne.s32.totalorder %s90, %s91
    %p103 = scmp.eq.s32.totalorder %s16, 1
    %p104 = por %p102, %p103
    %p106 = scmp.ne.s32.totalorder %s91, %s105
    %p107 = scmp.eq.s32.totalorder %s16, 0
    %p108 = por %p106, %p107
    %s110 = sadd.s32 %s109, 1
    %p113 = scmp.eq.s32.totalorder %s10, 1
    %p114 = scmp.ne.s32.totalorder %s109, %s111
    %p115 = scmp.eq.s32.totalorder %s10, 0
    %p116 = por %p114, %p115
    %p117 = scmp.ne.s32.totalorder %s109, %s111
    %p118 = scmp.eq.s32.totalorder %s15, 1
    %p119 = por %p117, %p118
    %p120 = scmp.ne.s32.totalorder %s111, %s112
    %p121 = scmp.eq.s32.totalorder %s15, 0
    %p122 = por %p120, %p121
    %p123 = scmp.ne.s32.totalorder %s111, %s112
    %p124 = scmp.eq.s32.totalorder %s16, 1
    %p125 = por %p123, %p124
    %p127 = scmp.ne.s32.totalorder %s112, %s126
    %p128 = scmp.eq.s32.totalorder %s16, 0
    %p129 = por %p127, %p128
    %s130 = ssub.s32 %s17, %s29
    %s131 = ssub.s32 %s18, %s25
    %s132 = sor.u32 %s130, %s131
    %p133 = scmp.eq.s32.totalorder %s132, 0
    %s135 = sadd.s32 %s134, 1
    %s136 = scalar_select %p133, %s134, %s135
    %p139 = pneg %p133
    %p140 = scmp.eq.s32.totalorder %s10, 1
    %p141 = por %p139, %p140
    %p142 = scmp.ne.s32.totalorder %s134, %s137
    %p143 = scmp.eq.s32.totalorder %s10, 0
    %p144 = por %p142, %p143
    %p145 = scmp.ne.s32.totalorder %s134, %s137
    %p146 = scmp.eq.s32.totalorder %s15, 1
    %p147 = por %p145, %p146
    %p148 = scmp.ne.s32.totalorder %s137, %s138
    %p149 = scmp.eq.s32.totalorder %s15, 0
    %p150 = por %p148, %p149
    %p151 = scmp.ne.s32.totalorder %s137, %s138
    %p152 = scmp.eq.s32.totalorder %s16, 1
    %p153 = por %p151, %p152
    %p155 = scmp.ne.s32.totalorder %s138, %s154
    %p156 = scmp.eq.s32.totalorder %s16, 0
    %p157 = por %p155, %p156
    %p158 = scmp.le.s32.totalorder 1, %s10
    %p159 = scmp.lt.s32.totalorder %s10, 3
    %p160 = pnand %p158, %p159
    %p161 = pneg %p160
    // Predicated region
    $region9: #{_lambda_.5} parent=5 // pred_check
      _
    $region10: #{_lambda_.5} parent=5 // pred_check_branch
      %163 = sbr.rel (%p160) target = $region12
    $region11: #{_lambda_.5} parent=5 // pred_region
      %s164 = ssub.s32 %s10, 1
      // Predicated region
      $region13: #{_lambda_.5} parent=11 // pred_check
        %p165 = pneg %p101
      $region14: #{_lambda_.5} parent=11 // pred_check_branch
        %167 = sbr.rel (%p165) target = $region16
      $region15: #{_lambda_.5} parent=11 // pred_region
        _
      $region16: #{_lambda_.5} parent=11 // pred_fallthru
        _
      // Predicated region
      $region17: #{_lambda_.5} parent=11 // pred_check
        %p168 = pneg %p122
      $region18: #{_lambda_.5} parent=11 // pred_check_branch
        %170 = sbr.rel (%p168) target = $region20
      $region19: #{_lambda_.5} parent=11 // pred_region
        _
      $region20: #{_lambda_.5} parent=11 // pred_fallthru
        _
    $region12: #{_lambda_.5} parent=5 // pred_fallthru
      _
    %p171 = scmp.lt.s32.totalorder %s10, 2
    // Predicated region
    $region21: #{_lambda_.5} parent=5 // pred_check
      %p172 = pneg %p171
    $region22: #{_lambda_.5} parent=5 // pred_check_branch
      %174 = sbr.rel (%p172) target = $region24
    $region23: #{_lambda_.5} parent=5 // pred_region
      // Predicated region
      $region25: #{_lambda_.5} parent=23 // pred_check
        %p175 = pneg %p44
      $region26: #{_lambda_.5} parent=23 // pred_check_branch
        %177 = sbr.rel (%p175) target = $region28
      $region27: #{_lambda_.5} parent=23 // pred_region
        %s178 = smul.u32 4, %s18
        %p179 = scmp.lt.s32.totalorder %s17, 1
        %s180 = scalar_select %p179, %s17, 1
        %p181 = scmp.lt.s32.totalorder %s178, 7
        %s182 = scalar_select %p181, %s178, 7
        %s183 = smul.addr %s180, 8
        %s184 = sadd.s32 %s182, %s183
        %s185 = smul.addr %s184, 2
        %s186 = scalar_lea.vmem %s0, %s185
        %s187 = smul.u32 4, %s18
      $region28: #{_lambda_.5} parent=23 // pred_fallthru
        _
      // Predicated region
      $region29: #{_lambda_.5} parent=23 // pred_check
        %p188 = pneg %p74
      $region30: #{_lambda_.5} parent=23 // pred_check_branch
        %190 = sbr.rel (%p188) target = $region32
      $region31: #{_lambda_.5} parent=23 // pred_region
        %s191 = sadd.s32 %s18, 1
        %s192 = smul.u32 4, %s191
        %p193 = scmp.lt.s32.totalorder %s17, 1
        %s194 = scalar_select %p193, %s17, 1
        %p195 = scmp.lt.s32.totalorder %s192, 7
        %s196 = scalar_select %p195, %s192, 7
        %s197 = smul.addr %s194, 8
        %s198 = sadd.s32 %s196, %s197
        %s199 = smul.addr %s198, 2
        %s200 = scalar_lea.vmem %s1, %s199
        %s201 = sadd.s32 %s18, 1
        %s202 = smul.u32 4, %s201
      $region32: #{_lambda_.5} parent=23 // pred_fallthru
        _
    $region24: #{_lambda_.5} parent=5 // pred_fallthru
      _
    %p203 = scmp.le.s32.totalorder 1, %s10
    %p204 = scmp.lt.s32.totalorder %s10, 3
    %p205 = pnand %p203, %p204
    %p206 = pneg %p205
    // Predicated region
    $region33: #{_lambda_.5} parent=5 // pred_check
      _
    $region34: #{_lambda_.5} parent=5 // pred_check_branch
      %208 = sbr.rel (%p205) target = $region36
    $region35: #{_lambda_.5} parent=5 // pred_region
      %s209 = ssub.s32 %s10, 1
      %s210 = smul.u32 4, %s20
      %p211 = scmp.lt.s32.totalorder %s19, 1
      %s212 = scalar_select %p211, %s19, 1
      %p213 = scmp.lt.s32.totalorder %s210, 7
      %s214 = scalar_select %p213, %s210, 7
      %s215 = smul.addr %s212, 8
      %s216 = sadd.s32 %s214, %s215
      %s217 = smul.addr %s216, 2
      %s218 = scalar_lea.vmem %s0, %s217
      %p219 = pneg %p50
      %p220 = pneg %p47
      %s221 = sadd.s32 %s20, 1
      %s222 = smul.u32 4, %s221
      %p223 = scmp.lt.s32.totalorder %s19, 1
      %s224 = scalar_select %p223, %s19, 1
      %p225 = scmp.lt.s32.totalorder %s222, 7
      %s226 = scalar_select %p225, %s222, 7
      %s227 = smul.addr %s224, 8
      %s228 = sadd.s32 %s226, %s227
      %s229 = smul.addr %s228, 2
      %s230 = scalar_lea.vmem %s1, %s229
      %p231 = pneg %p80
      %p232 = pneg %p77
      %p233 = pneg %p101
      %p234 = pneg %p98
      %p235 = pneg %p122
      %p236 = pneg %p119
      %p237 = pneg %p150
      %p238 = pneg %p147
      %s239 = smul.u32 4, %s20
      %p240 = scmp.lt.s32.totalorder %s19, 1
      %s241 = scalar_select %p240, %s19, 1
      %p242 = scmp.lt.s32.totalorder %s239, 3
      %s243 = scalar_select %p242, %s239, 3
      %s244 = smul.addr %s241, 16
      %s245 = sadd.s32 %s243, %s244
      %s246 = smul.addr %s245, 4
      %s247 = scalar_lea.vmem %s4, %s246
      %s248 = smul.u32 4, %s20
      %p249 = scmp.lt.s32.totalorder %s19, 1
      %s250 = scalar_select %p249, %s19, 1
      %p251 = scmp.lt.s32.totalorder %s248, 7
      %s252 = scalar_select %p251, %s248, 7
      %s253 = smul.addr %s250, 8
      %s254 = sadd.s32 %s252, %s253
      %s255 = smul.addr %s254, 2
      %s256 = scalar_lea.vmem %s0, %s255
      %s257 = smul.u32 4, %s20
      %s258 = sadd.s32 %s20, 1
      %s259 = smul.u32 4, %s258
      %p260 = scmp.lt.s32.totalorder %s19, 1
      %s261 = scalar_select %p260, %s19, 1
      %p262 = scmp.lt.s32.totalorder %s259, 7
      %s263 = scalar_select %p262, %s259, 7
      %s264 = smul.addr %s261, 8
      %s265 = sadd.s32 %s263, %s264
      %s266 = smul.addr %s265, 2
      %s267 = scalar_lea.vmem %s1, %s266
      %s268 = sadd.s32 %s20, 1
      %s269 = smul.u32 4, %s268
      %s270 = smul.u32 4, %s20
      %p271 = scmp.lt.s32.totalorder %s19, 1
      %s272 = scalar_select %p271, %s19, 1
      %p273 = scmp.lt.s32.totalorder %s270, 3
      %s274 = scalar_select %p273, %s270, 3
      %s275 = smul.addr %s272, 16
      %s276 = sadd.s32 %s274, %s275
      %s277 = smul.addr %s276, 4
      %s278 = scalar_lea.vmem %s4, %s277
      %s279 = smul.u32 4, %s20
      %v281 = vld [vmem:[%s256] sm:$0xff]
      %v282 = vld [vmem:[%s267] sm:$0xff]
      %284 = vst [vmem:[#allocation1] ss:$4 sm:$0xff] %v281
      %v285 = vld.sshfl [vmem:[#allocation1] sm:$0xff pattern:$0x73625140]
      %v287 = vld.sshfl [vmem:[#allocation1 + $0x8] sm:$0xff pattern:$0x73625140]
      %v289 = vld.sshfl [vmem:[#allocation1 + $0x10] sm:$0xff pattern:$0x73625140]
      %v291 = vld.sshfl [vmem:[#allocation1 + $0x18] sm:$0xff pattern:$0x73625140]
      %294 = vst [vmem:[#allocation1] ss:$4 sm:$0xff] %v282
      %v295 = vld.sshfl [vmem:[#allocation1] sm:$0xff pattern:$0x73625140]
      %v297 = vld [vmem:[%s3] sm:$0xff]
      %v298 = vld [vmem:[%s3 + $0x8] sm:$0xff]
      %v299 = vld [vmem:[%s3 + $0x10] sm:$0xff]
      %v300 = vld [vmem:[%s3 + $0x18] sm:$0xff]
      %v301 = vld [vmem:[%s2] sm:$0xf]
      %v302 = vld [vmem:[%s2 + $0x4] sm:$0xf]
      %v303 = vld [vmem:[%s2 + $0x8] sm:$0xf]
      %v304 = vld [vmem:[%s2 + $0xc] sm:$0xf]
      %s305 = scalar_lea.vmem %s2, 16
      %v306 = vld [vmem:[%s305] sm:$0xf]
      %v307 = vld [vmem:[%s305 + $0x4] sm:$0xf]
      %v308 = vld [vmem:[%s305 + $0x8] sm:$0xf]
      %v309 = vld [vmem:[%s305 + $0xc] sm:$0xf]
      %v314 = vunpack.c.l.b16 %v306
      %v315 = vunpack.c.l.b16 %v307
      %v316 = vunpack.c.l.b16 %v308
      %v317 = vunpack.c.l.b16 %v309
      %v318 = vpack.c.b16 %v315, %v314
      %v319 = vpack.c.b16 %v317, %v316
      %320 = vrot.lane.b32.xlu0 %v285, 127
      %v321 = vpop.permute.xlu0 %320
      %322 = vrot.lane.b32.xlu0 %v287, 127
      %v323 = vpop.permute.xlu0 %322
      %324 = vrot.lane.b32.xlu0 %v289, 127
      %v325 = vpop.permute.xlu0 %324
      %326 = vrot.lane.b32.xlu0 %v291, 127
      %v327 = vpop.permute.xlu0 %326
      %328 = vrot.lane.b32.xlu0 %v295, 127
      %v329 = vpop.permute.xlu0 %328
      %vm330 = vcmask 1039360
      %v331 = vsel %vm330, %v321, %v323
      %v332 = vsel %vm330, %v323, %v325
      %v333 = vsel %vm330, %v325, %v327
      %v334 = vsel %vm330, %v327, %v329
      %vm335 = vcmask 23552
      %v337 = vsel %vm335, %v318, 0
      %v340 = vsel %vm335, %v319, 0
      %vm342 = vcmask 1040384
      %vm343 = vcmask 1041408
      %v344 = vsel %vm342, 4294967295, 65535
      %v345 = vsel %vm343, %v344, 0
      %v347 = vand.u32 %v331, %v345
      %v350 = vand.u32 %v332, %v345
      %v353 = vand.u32 %v333, %v345
      %v356 = vand.u32 %v334, %v345
      %358 = vmatpush.bf16.msra.mxu0 0
      %359 = vmatpush.bf16.msra.mxu0 0
      %360 = vmatpush.bf16.msra.mxu0 0
      %361 = vmatpush.bf16.msra.mxu0 0
      %362 = vmatpush.bf16.msra.mxu0 0
      %363 = vmatpush.bf16.msra.mxu0 0
      %364 = vmatpush.bf16.msra.mxu0 0
      %365 = vmatpush.bf16.msra.mxu0 %v347
      %366 = vmatmul.bf16.gmra.mxu0 %v337
      %v367 = vpop.f32.mrf.mxu0
      %v368 = vadd.f32 0.0, %v367
      %v369 = vpop.f32.mrf.mxu0
      %v370 = vadd.f32 0.0, %v369
      %371 = vmatmul.bf16.gmra.mxu0 %v340
      %v372 = vpop.f32.mrf.mxu0
      %v373 = vadd.f32 0.0, %v372
      %v374 = vpop.f32.mrf.mxu0
      %v375 = vadd.f32 0.0, %v374
      %376 = vdwg.mxu0
      %377 = vmatpush.bf16.msra.mxu0 0
      %378 = vmatpush.bf16.msra.mxu0 0
      %379 = vmatpush.bf16.msra.mxu0 0
      %380 = vmatpush.bf16.msra.mxu0 0
      %381 = vmatpush.bf16.msra.mxu0 0
      %382 = vmatpush.bf16.msra.mxu0 0
      %383 = vmatpush.bf16.msra.mxu0 0
      %384 = vmatpush.bf16.msra.mxu0 %v350
      %385 = vmatmul.bf16.gmra.mxu0 %v337
      %v386 = vpop.f32.mrf.mxu0
      %v387 = vadd.f32 0.0, %v386
      %v388 = vpop.f32.mrf.mxu0
      %v389 = vadd.f32 0.0, %v388
      %390 = vmatmul.bf16.gmra.mxu0 %v340
      %v391 = vpop.f32.mrf.mxu0
      %v392 = vadd.f32 0.0, %v391
      %v393 = vpop.f32.mrf.mxu0
      %v394 = vadd.f32 0.0, %v393
      %395 = vdwg.mxu0
      %396 = vmatpush.bf16.msra.mxu0 0
      %397 = vmatpush.bf16.msra.mxu0 0
      %398 = vmatpush.bf16.msra.mxu0 0
      %399 = vmatpush.bf16.msra.mxu0 0
      %400 = vmatpush.bf16.msra.mxu0 0
      %401 = vmatpush.bf16.msra.mxu0 0
      %402 = vmatpush.bf16.msra.mxu0 0
      %403 = vmatpush.bf16.msra.mxu0 %v353
      %404 = vmatmul.bf16.gmra.mxu0 %v337
      %v405 = vpop.f32.mrf.mxu0
      %v406 = vadd.f32 0.0, %v405
      %v407 = vpop.f32.mrf.mxu0
      %v408 = vadd.f32 0.0, %v407
      %409 = vmatmul.bf16.gmra.mxu0 %v340
      %v410 = vpop.f32.mrf.mxu0
      %v411 = vadd.f32 0.0, %v410
      %v412 = vpop.f32.mrf.mxu0
      %v413 = vadd.f32 0.0, %v412
      %414 = vdwg.mxu0
      %415 = vmatpush.bf16.msra.mxu0 0
      %416 = vmatpush.bf16.msra.mxu0 0
      %417 = vmatpush.bf16.msra.mxu0 0
      %418 = vmatpush.bf16.msra.mxu0 0
      %419 = vmatpush.bf16.msra.mxu0 0
      %420 = vmatpush.bf16.msra.mxu0 0
      %421 = vmatpush.bf16.msra.mxu0 0
      %422 = vmatpush.bf16.msra.mxu0 %v356
      %423 = vmatmul.bf16.gmra.mxu0 %v337
      %v424 = vpop.f32.mrf.mxu0
      %v425 = vadd.f32 0.0, %v424
      %v426 = vpop.f32.mrf.mxu0
      %v427 = vadd.f32 0.0, %v426
      %428 = vmatmul.bf16.gmra.mxu0 %v340
      %v429 = vpop.f32.mrf.mxu0
      %v430 = vadd.f32 0.0, %v429
      %v431 = vpop.f32.mrf.mxu0
      %v432 = vadd.f32 0.0, %v431
      %433 = vdwg.mxu0
      %v438 = vunpack.c.l.b16 %v301
      %v439 = vunpack.c.l.b16 %v302
      %v440 = vunpack.c.l.b16 %v303
      %v441 = vunpack.c.l.b16 %v304
      %v442 = vpack.c.b16 %v439, %v438
      %v443 = vpack.c.b16 %v441, %v440
      %v445 = vsel %vm335, %v442, 0
      %v448 = vsel %vm335, %v443, 0
      %v450 = vand.u32 %v285, %v345
      %v452 = vand.u32 %v287, %v345
      %v454 = vand.u32 %v289, %v345
      %v456 = vand.u32 %v291, %v345
      %458 = vmatpush.bf16.msra.mxu0 0
      %459 = vmatpush.bf16.msra.mxu0 0
      %460 = vmatpush.bf16.msra.mxu0 0
      %461 = vmatpush.bf16.msra.mxu0 0
      %462 = vmatpush.bf16.msra.mxu0 0
      %463 = vmatpush.bf16.msra.mxu0 0
      %464 = vmatpush.bf16.msra.mxu0 0
      %465 = vmatpush.bf16.msra.mxu0 %v450
      %466 = vmatmul.bf16.gmra.mxu0 %v445
      %v467 = vpop.f32.mrf.mxu0
      %v468 = vadd.f32 %v368, %v467
      %v469 = vpop.f32.mrf.mxu0
      %v470 = vadd.f32 %v370, %v469
      %471 = vmatmul.bf16.gmra.mxu0 %v448
      %v472 = vpop.f32.mrf.mxu0
      %v473 = vadd.f32 %v373, %v472
      %v474 = vpop.f32.mrf.mxu0
      %v475 = vadd.f32 %v375, %v474
      %476 = vdwg.mxu0
      %477 = vmatpush.bf16.msra.mxu0 0
      %478 = vmatpush.bf16.msra.mxu0 0
      %479 = vmatpush.bf16.msra.mxu0 0
      %480 = vmatpush.bf16.msra.mxu0 0
      %481 = vmatpush.bf16.msra.mxu0 0
      %482 = vmatpush.bf16.msra.mxu0 0
      %483 = vmatpush.bf16.msra.mxu0 0
      %484 = vmatpush.bf16.msra.mxu0 %v452
      %485 = vmatmul.bf16.gmra.mxu0 %v445
      %v486 = vpop.f32.mrf.mxu0
      %v487 = vadd.f32 %v387, %v486
      %v488 = vpop.f32.mrf.mxu0
      %v489 = vadd.f32 %v389, %v488
      %490 = vmatmul.bf16.gmra.mxu0 %v448
      %v491 = vpop.f32.mrf.mxu0
      %v492 = vadd.f32 %v392, %v491
      %v493 = vpop.f32.mrf.mxu0
      %v494 = vadd.f32 %v394, %v493
      %495 = vdwg.mxu0
      %496 = vmatpush.bf16.msra.mxu0 0
      %497 = vmatpush.bf16.msra.mxu0 0
      %498 = vmatpush.bf16.msra.mxu0 0
      %499 = vmatpush.bf16.msra.mxu0 0
      %500 = vmatpush.bf16.msra.mxu0 0
      %501 = vmatpush.bf16.msra.mxu0 0
      %502 = vmatpush.bf16.msra.mxu0 0
      %503 = vmatpush.bf16.msra.mxu0 %v454
      %504 = vmatmul.bf16.gmra.mxu0 %v445
      %v505 = vpop.f32.mrf.mxu0
      %v506 = vadd.f32 %v406, %v505
      %v507 = vpop.f32.mrf.mxu0
      %v508 = vadd.f32 %v408, %v507
      %509 = vmatmul.bf16.gmra.mxu0 %v448
      %v510 = vpop.f32.mrf.mxu0
      %v511 = vadd.f32 %v411, %v510
      %v512 = vpop.f32.mrf.mxu0
      %v513 = vadd.f32 %v413, %v512
      %514 = vdwg.mxu0
      %515 = vmatpush.bf16.msra.mxu0 0
      %516 = vmatpush.bf16.msra.mxu0 0
      %517 = vmatpush.bf16.msra.mxu0 0
      %518 = vmatpush.bf16.msra.mxu0 0
      %519 = vmatpush.bf16.msra.mxu0 0
      %520 = vmatpush.bf16.msra.mxu0 0
      %521 = vmatpush.bf16.msra.mxu0 0
      %522 = vmatpush.bf16.msra.mxu0 %v456
      %523 = vmatmul.bf16.gmra.mxu0 %v445
      %v524 = vpop.f32.mrf.mxu0
      %v525 = vadd.f32 %v425, %v524
      %v526 = vpop.f32.mrf.mxu0
      %v527 = vadd.f32 %v427, %v526
      %528 = vmatmul.bf16.gmra.mxu0 %v448
      %v529 = vpop.f32.mrf.mxu0
      %v530 = vadd.f32 %v430, %v529
      %v531 = vpop.f32.mrf.mxu0
      %v532 = vadd.f32 %v432, %v531
      %533 = vdwg.mxu0
      %s534 = scalar_lea.vmem %s2, 32
      %v535 = vld [vmem:[%s534] sm:$0xf]
      %v536 = vld [vmem:[%s534 + $0x4] sm:$0xf]
      %v537 = vld [vmem:[%s534 + $0x8] sm:$0xf]
      %v538 = vld [vmem:[%s534 + $0xc] sm:$0xf]
      %v543 = vunpack.c.l.b16 %v535
      %v544 = vunpack.c.l.b16 %v536
      %v545 = vunpack.c.l.b16 %v537
      %v546 = vunpack.c.l.b16 %v538
      %v547 = vpack.c.b16 %v544, %v543
      %v548 = vpack.c.b16 %v546, %v545
      %549 = vrot.lane.b32.xlu0 %v285, 126
      %v550 = vpop.permute.xlu0 %549
      %551 = vrot.lane.b32.xlu0 %v287, 126
      %v552 = vpop.permute.xlu0 %551
      %553 = vrot.lane.b32.xlu0 %v289, 126
      %v554 = vpop.permute.xlu0 %553
      %555 = vrot.lane.b32.xlu0 %v291, 126
      %v556 = vpop.permute.xlu0 %555
      %557 = vrot.lane.b32.xlu0 %v295, 126
      %v558 = vpop.permute.xlu0 %557
      %vm559 = vcmask 1031168
      %v560 = vsel %vm559, %v550, %v552
      %v561 = vsel %vm559, %v552, %v554
      %v562 = vsel %vm559, %v554, %v556
      %v563 = vsel %vm559, %v556, %v558
      %v565 = vsel %vm335, %v547, 0
      %v568 = vsel %vm335, %v548, 0
      %v571 = vand.u32 %v560, %v345
      %v574 = vand.u32 %v561, %v345
      %v577 = vand.u32 %v562, %v345
      %v580 = vand.u32 %v563, %v345
      %582 = vmatpush.bf16.msra.mxu0 0
      %583 = vmatpush.bf16.msra.mxu0 0
      %584 = vmatpush.bf16.msra.mxu0 0
      %585 = vmatpush.bf16.msra.mxu0 0
      %586 = vmatpush.bf16.msra.mxu0 0
      %587 = vmatpush.bf16.msra.mxu0 0
      %588 = vmatpush.bf16.msra.mxu0 0
      %589 = vmatpush.bf16.msra.mxu0 %v571
      %590 = vmatmul.bf16.gmra.mxu0 %v565
      %v591 = vpop.f32.mrf.mxu0
      %v592 = vadd.f32 0.0, %v591
      %v593 = vpop.f32.mrf.mxu0
      %v594 = vadd.f32 0.0, %v593
      %595 = vmatmul.bf16.gmra.mxu0 %v568
      %v596 = vpop.f32.mrf.mxu0
      %v597 = vadd.f32 0.0, %v596
      %v598 = vpop.f32.mrf.mxu0
      %v599 = vadd.f32 0.0, %v598
      %600 = vdwg.mxu0
      %601 = vmatpush.bf16.msra.mxu0 0
      %602 = vmatpush.bf16.msra.mxu0 0
      %603 = vmatpush.bf16.msra.mxu0 0
      %604 = vmatpush.bf16.msra.mxu0 0
      %605 = vmatpush.bf16.msra.mxu0 0
      %606 = vmatpush.bf16.msra.mxu0 0
      %607 = vmatpush.bf16.msra.mxu0 0
      %608 = vmatpush.bf16.msra.mxu0 %v574
      %609 = vmatmul.bf16.gmra.mxu0 %v565
      %v610 = vpop.f32.mrf.mxu0
      %v611 = vadd.f32 0.0, %v610
      %v612 = vpop.f32.mrf.mxu0
      %v613 = vadd.f32 0.0, %v612
      %614 = vmatmul.bf16.gmra.mxu0 %v568
      %v615 = vpop.f32.mrf.mxu0
      %v616 = vadd.f32 0.0, %v615
      %v617 = vpop.f32.mrf.mxu0
      %v618 = vadd.f32 0.0, %v617
      %619 = vdwg.mxu0
      %620 = vmatpush.bf16.msra.mxu0 0
      %621 = vmatpush.bf16.msra.mxu0 0
      %622 = vmatpush.bf16.msra.mxu0 0
      %623 = vmatpush.bf16.msra.mxu0 0
      %624 = vmatpush.bf16.msra.mxu0 0
      %625 = vmatpush.bf16.msra.mxu0 0
      %626 = vmatpush.bf16.msra.mxu0 0
      %627 = vmatpush.bf16.msra.mxu0 %v577
      %628 = vmatmul.bf16.gmra.mxu0 %v565
      %v629 = vpop.f32.mrf.mxu0
      %v630 = vadd.f32 0.0, %v629
      %v631 = vpop.f32.mrf.mxu0
      %v632 = vadd.f32 0.0, %v631
      %633 = vmatmul.bf16.gmra.mxu0 %v568
      %v634 = vpop.f32.mrf.mxu0
      %v635 = vadd.f32 0.0, %v634
      %v636 = vpop.f32.mrf.mxu0
      %v637 = vadd.f32 0.0, %v636
      %638 = vdwg.mxu0
      %639 = vmatpush.bf16.msra.mxu0 0
      %640 = vmatpush.bf16.msra.mxu0 0
      %641 = vmatpush.bf16.msra.mxu0 0
      %642 = vmatpush.bf16.msra.mxu0 0
      %643 = vmatpush.bf16.msra.mxu0 0
      %644 = vmatpush.bf16.msra.mxu0 0
      %645 = vmatpush.bf16.msra.mxu0 0
      %646 = vmatpush.bf16.msra.mxu0 %v580
      %647 = vmatmul.bf16.gmra.mxu0 %v565
      %v648 = vpop.f32.mrf.mxu0
      %v649 = vadd.f32 0.0, %v648
      %v650 = vpop.f32.mrf.mxu0
      %v651 = vadd.f32 0.0, %v650
      %652 = vmatmul.bf16.gmra.mxu0 %v568
      %v653 = vpop.f32.mrf.mxu0
      %v654 = vadd.f32 0.0, %v653
      %v655 = vpop.f32.mrf.mxu0
      %v656 = vadd.f32 0.0, %v655
      %657 = vdwg.mxu0
      %v658 = vadd.f32 %v468, %v592
      %v659 = vadd.f32 %v487, %v611
      %v660 = vadd.f32 %v506, %v630
      %v661 = vadd.f32 %v525, %v649
      %v662 = vadd.f32 %v470, %v594
      %v663 = vadd.f32 %v489, %v613
      %v664 = vadd.f32 %v508, %v632
      %v665 = vadd.f32 %v527, %v651
      %v666 = vadd.f32 %v473, %v597
      %v667 = vadd.f32 %v492, %v616
      %v668 = vadd.f32 %v511, %v635
      %v669 = vadd.f32 %v530, %v654
      %v670 = vadd.f32 %v475, %v599
      %v671 = vadd.f32 %v494, %v618
      %v672 = vadd.f32 %v513, %v637
      %v673 = vadd.f32 %v532, %v656
      %s674 = scalar_lea.vmem %s2, 48
      %v675 = vld [vmem:[%s674] sm:$0xf]
      %v676 = vld [vmem:[%s674 + $0x4] sm:$0xf]
      %v677 = vld [vmem:[%s674 + $0x8] sm:$0xf]
      %v678 = vld [vmem:[%s674 + $0xc] sm:$0xf]
      %v683 = vunpack.c.l.b16 %v675
      %v684 = vunpack.c.l.b16 %v676
      %v685 = vunpack.c.l.b16 %v677
      %v686 = vunpack.c.l.b16 %v678
      %v687 = vpack.c.b16 %v684, %v683
      %v688 = vpack.c.b16 %v686, %v685
      %689 = vrot.lane.b32.xlu0 %v285, 125
      %v690 = vpop.permute.xlu0 %689
      %691 = vrot.lane.b32.xlu0 %v287, 125
      %v692 = vpop.permute.xlu0 %691
      %693 = vrot.lane.b32.xlu0 %v289, 125
      %v694 = vpop.permute.xlu0 %693
      %695 = vrot.lane.b32.xlu0 %v291, 125
      %v696 = vpop.permute.xlu0 %695
      %697 = vrot.lane.b32.xlu0 %v295, 125
      %v698 = vpop.permute.xlu0 %697
      %vm699 = vcmask 1022976
      %v700 = vsel %vm699, %v690, %v692
      %v701 = vsel %vm699, %v692, %v694
      %v702 = vsel %vm699, %v694, %v696
      %v703 = vsel %vm699, %v696, %v698
      %v705 = vsel %vm335, %v687, 0
      %v708 = vsel %vm335, %v688, 0
      %v711 = vand.u32 %v700, %v345
      %v714 = vand.u32 %v701, %v345
      %v717 = vand.u32 %v702, %v345
      %v720 = vand.u32 %v703, %v345
      %722 = vmatpush.bf16.msra.mxu0 0
      %723 = vmatpush.bf16.msra.mxu0 0
      %724 = vmatpush.bf16.msra.mxu0 0
      %725 = vmatpush.bf16.msra.mxu0 0
      %726 = vmatpush.bf16.msra.mxu0 0
      %727 = vmatpush.bf16.msra.mxu0 0
      %728 = vmatpush.bf16.msra.mxu0 0
      %729 = vmatpush.bf16.msra.mxu0 %v711
      %730 = vmatmul.bf16.gmra.mxu0 %v705
      %v731 = vpop.f32.mrf.mxu0
      %v732 = vadd.f32 0.0, %v731
      %v733 = vpop.f32.mrf.mxu0
      %v734 = vadd.f32 0.0, %v733
      %735 = vmatmul.bf16.gmra.mxu0 %v708
      %v736 = vpop.f32.mrf.mxu0
      %v737 = vadd.f32 0.0, %v736
      %v738 = vpop.f32.mrf.mxu0
      %v739 = vadd.f32 0.0, %v738
      %740 = vdwg.mxu0
      %741 = vmatpush.bf16.msra.mxu0 0
      %742 = vmatpush.bf16.msra.mxu0 0
      %743 = vmatpush.bf16.msra.mxu0 0
      %744 = vmatpush.bf16.msra.mxu0 0
      %745 = vmatpush.bf16.msra.mxu0 0
      %746 = vmatpush.bf16.msra.mxu0 0
      %747 = vmatpush.bf16.msra.mxu0 0
      %748 = vmatpush.bf16.msra.mxu0 %v714
      %749 = vmatmul.bf16.gmra.mxu0 %v705
      %v750 = vpop.f32.mrf.mxu0
      %v751 = vadd.f32 0.0, %v750
      %v752 = vpop.f32.mrf.mxu0
      %v753 = vadd.f32 0.0, %v752
      %754 = vmatmul.bf16.gmra.mxu0 %v708
      %v755 = vpop.f32.mrf.mxu0
      %v756 = vadd.f32 0.0, %v755
      %v757 = vpop.f32.mrf.mxu0
      %v758 = vadd.f32 0.0, %v757
      %759 = vdwg.mxu0
      %760 = vmatpush.bf16.msra.mxu0 0
      %761 = vmatpush.bf16.msra.mxu0 0
      %762 = vmatpush.bf16.msra.mxu0 0
      %763 = vmatpush.bf16.msra.mxu0 0
      %764 = vmatpush.bf16.msra.mxu0 0
      %765 = vmatpush.bf16.msra.mxu0 0
      %766 = vmatpush.bf16.msra.mxu0 0
      %767 = vmatpush.bf16.msra.mxu0 %v717
      %768 = vmatmul.bf16.gmra.mxu0 %v705
      %v769 = vpop.f32.mrf.mxu0
      %v770 = vadd.f32 0.0, %v769
      %v771 = vpop.f32.mrf.mxu0
      %v772 = vadd.f32 0.0, %v771
      %773 = vmatmul.bf16.gmra.mxu0 %v708
      %v774 = vpop.f32.mrf.mxu0
      %v775 = vadd.f32 0.0, %v774
      %v776 = vpop.f32.mrf.mxu0
      %v777 = vadd.f32 0.0, %v776
      %778 = vdwg.mxu0
      %779 = vmatpush.bf16.msra.mxu0 0
      %780 = vmatpush.bf16.msra.mxu0 0
      %781 = vmatpush.bf16.msra.mxu0 0
      %782 = vmatpush.bf16.msra.mxu0 0
      %783 = vmatpush.bf16.msra.mxu0 0
      %784 = vmatpush.bf16.msra.mxu0 0
      %785 = vmatpush.bf16.msra.mxu0 0
      %786 = vmatpush.bf16.msra.mxu0 %v720
      %787 = vmatmul.bf16.gmra.mxu0 %v705
      %v788 = vpop.f32.mrf.mxu0
      %v789 = vadd.f32 0.0, %v788
      %v790 = vpop.f32.mrf.mxu0
      %v791 = vadd.f32 0.0, %v790
      %792 = vmatmul.bf16.gmra.mxu0 %v708
      %v793 = vpop.f32.mrf.mxu0
      %v794 = vadd.f32 0.0, %v793
      %v795 = vpop.f32.mrf.mxu0
      %v796 = vadd.f32 0.0, %v795
      %797 = vdwg.mxu0
      %v798 = vadd.f32 %v658, %v732
      %v799 = vadd.f32 %v659, %v751
      %v800 = vadd.f32 %v660, %v770
      %v801 = vadd.f32 %v661, %v789
      %v802 = vadd.f32 %v662, %v734
      %v803 = vadd.f32 %v663, %v753
      %v804 = vadd.f32 %v664, %v772
      %v805 = vadd.f32 %v665, %v791
      %v806 = vadd.f32 %v666, %v737
      %v807 = vadd.f32 %v667, %v756
      %v808 = vadd.f32 %v668, %v775
      %v809 = vadd.f32 %v669, %v794
      %v810 = vadd.f32 %v670, %v739
      %v811 = vadd.f32 %v671, %v758
      %v812 = vadd.f32 %v672, %v777
      %v813 = vadd.f32 %v673, %v796
      %s814 = scalar_lea.vmem %s2, 64
      %v815 = vld [vmem:[%s814] sm:$0xf]
      %v816 = vld [vmem:[%s814 + $0x4] sm:$0xf]
      %v817 = vld [vmem:[%s814 + $0x8] sm:$0xf]
      %v818 = vld [vmem:[%s814 + $0xc] sm:$0xf]
      %v823 = vunpack.c.l.b16 %v815
      %v824 = vunpack.c.l.b16 %v816
      %v825 = vunpack.c.l.b16 %v817
      %v826 = vunpack.c.l.b16 %v818
      %v827 = vpack.c.b16 %v824, %v823
      %v828 = vpack.c.b16 %v826, %v825
      %829 = vrot.lane.b32.xlu0 %v285, 110
      %v830 = vpop.permute.xlu0 %829
      %831 = vrot.lane.b32.xlu0 %v287, 110
      %v832 = vpop.permute.xlu0 %831
      %833 = vrot.lane.b32.xlu0 %v289, 110
      %v834 = vpop.permute.xlu0 %833
      %835 = vrot.lane.b32.xlu0 %v291, 110
      %v836 = vpop.permute.xlu0 %835
      %837 = vrot.lane.b32.xlu0 %v295, 110
      %v838 = vpop.permute.xlu0 %837
      %vm839 = vcmask 900096
      %v840 = vsel %vm839, %v830, %v832
      %v841 = vsel %vm839, %v832, %v834
      %v842 = vsel %vm839, %v834, %v836
      %v843 = vsel %vm839, %v836, %v838
      %v845 = vsel %vm335, %v827, 0
      %v848 = vsel %vm335, %v828, 0
      %v851 = vand.u32 %v840, %v345
      %v854 = vand.u32 %v841, %v345
      %v857 = vand.u32 %v842, %v345
      %v860 = vand.u32 %v843, %v345
      %862 = vmatpush.bf16.msra.mxu0 0
      %863 = vmatpush.bf16.msra.mxu0 0
      %864 = vmatpush.bf16.msra.mxu0 0
      %865 = vmatpush.bf16.msra.mxu0 0
      %866 = vmatpush.bf16.msra.mxu0 0
      %867 = vmatpush.bf16.msra.mxu0 0
      %868 = vmatpush.bf16.msra.mxu0 0
      %869 = vmatpush.bf16.msra.mxu0 %v851
      %870 = vmatmul.bf16.gmra.mxu0 %v845
      %v871 = vpop.f32.mrf.mxu0
      %v872 = vadd.f32 0.0, %v871
      %v873 = vpop.f32.mrf.mxu0
      %v874 = vadd.f32 0.0, %v873
      %875 = vmatmul.bf16.gmra.mxu0 %v848
      %v876 = vpop.f32.mrf.mxu0
      %v877 = vadd.f32 0.0, %v876
      %v878 = vpop.f32.mrf.mxu0
      %v879 = vadd.f32 0.0, %v878
      %880 = vdwg.mxu0
      %881 = vmatpush.bf16.msra.mxu0 0
      %882 = vmatpush.bf16.msra.mxu0 0
      %883 = vmatpush.bf16.msra.mxu0 0
      %884 = vmatpush.bf16.msra.mxu0 0
      %885 = vmatpush.bf16.msra.mxu0 0
      %886 = vmatpush.bf16.msra.mxu0 0
      %887 = vmatpush.bf16.msra.mxu0 0
      %888 = vmatpush.bf16.msra.mxu0 %v854
      %889 = vmatmul.bf16.gmra.mxu0 %v845
      %v890 = vpop.f32.mrf.mxu0
      %v891 = vadd.f32 0.0, %v890
      %v892 = vpop.f32.mrf.mxu0
      %v893 = vadd.f32 0.0, %v892
      %894 = vmatmul.bf16.gmra.mxu0 %v848
      %v895 = vpop.f32.mrf.mxu0
      %v896 = vadd.f32 0.0, %v895
      %v897 = vpop.f32.mrf.mxu0
      %v898 = vadd.f32 0.0, %v897
      %899 = vdwg.mxu0
      %900 = vmatpush.bf16.msra.mxu0 0
      %901 = vmatpush.bf16.msra.mxu0 0
      %902 = vmatpush.bf16.msra.mxu0 0
      %903 = vmatpush.bf16.msra.mxu0 0
      %904 = vmatpush.bf16.msra.mxu0 0
      %905 = vmatpush.bf16.msra.mxu0 0
      %906 = vmatpush.bf16.msra.mxu0 0
      %907 = vmatpush.bf16.msra.mxu0 %v857
      %908 = vmatmul.bf16.gmra.mxu0 %v845
      %v909 = vpop.f32.mrf.mxu0
      %v910 = vadd.f32 0.0, %v909
      %v911 = vpop.f32.mrf.mxu0
      %v912 = vadd.f32 0.0, %v911
      %913 = vmatmul.bf16.gmra.mxu0 %v848
      %v914 = vpop.f32.mrf.mxu0
      %v915 = vadd.f32 0.0, %v914
      %v916 = vpop.f32.mrf.mxu0
      %v917 = vadd.f32 0.0, %v916
      %918 = vdwg.mxu0
      %919 = vmatpush.bf16.msra.mxu0 0
      %920 = vmatpush.bf16.msra.mxu0 0
      %921 = vmatpush.bf16.msra.mxu0 0
      %922 = vmatpush.bf16.msra.mxu0 0
      %923 = vmatpush.bf16.msra.mxu0 0
      %924 = vmatpush.bf16.msra.mxu0 0
      %925 = vmatpush.bf16.msra.mxu0 0
      %926 = vmatpush.bf16.msra.mxu0 %v860
      %927 = vmatmul.bf16.gmra.mxu0 %v845
      %v928 = vpop.f32.mrf.mxu0
      %v929 = vadd.f32 0.0, %v928
      %v930 = vpop.f32.mrf.mxu0
      %v931 = vadd.f32 0.0, %v930
      %932 = vmatmul.bf16.gmra.mxu0 %v848
      %v933 = vpop.f32.mrf.mxu0
      %v934 = vadd.f32 0.0, %v933
      %v935 = vpop.f32.mrf.mxu0
      %v936 = vadd.f32 0.0, %v935
      %937 = vdwg.mxu0
      %v938 = vadd.f32 %v798, %v872
      %v939 = vadd.f32 %v799, %v891
      %v940 = vadd.f32 %v800, %v910
      %v941 = vadd.f32 %v801, %v929
      %v942 = vadd.f32 %v802, %v874
      %v943 = vadd.f32 %v803, %v893
      %v944 = vadd.f32 %v804, %v912
      %v945 = vadd.f32 %v805, %v931
      %v946 = vadd.f32 %v806, %v877
      %v947 = vadd.f32 %v807, %v896
      %v948 = vadd.f32 %v808, %v915
      %v949 = vadd.f32 %v809, %v934
      %v950 = vadd.f32 %v810, %v879
      %v951 = vadd.f32 %v811, %v898
      %v952 = vadd.f32 %v812, %v917
      %v953 = vadd.f32 %v813, %v936
      %s954 = scalar_lea.vmem %s2, 80
      %v955 = vld [vmem:[%s954] sm:$0xf]
      %v956 = vld [vmem:[%s954 + $0x4] sm:$0xf]
      %v957 = vld [vmem:[%s954 + $0x8] sm:$0xf]
      %v958 = vld [vmem:[%s954 + $0xc] sm:$0xf]
      %v963 = vunpack.c.l.b16 %v955
      %v964 = vunpack.c.l.b16 %v956
      %v965 = vunpack.c.l.b16 %v957
      %v966 = vunpack.c.l.b16 %v958
      %v967 = vpack.c.b16 %v964, %v963
      %v968 = vpack.c.b16 %v966, %v965
      %969 = vrot.lane.b32.xlu0 %v285, 109
      %v970 = vpop.permute.xlu0 %969
      %971 = vrot.lane.b32.xlu0 %v287, 109
      %v972 = vpop.permute.xlu0 %971
      %973 = vrot.lane.b32.xlu0 %v289, 109
      %v974 = vpop.permute.xlu0 %973
      %975 = vrot.lane.b32.xlu0 %v291, 109
      %v976 = vpop.permute.xlu0 %975
      %977 = vrot.lane.b32.xlu0 %v295, 109
      %v978 = vpop.permute.xlu0 %977
      %vm979 = vcmask 891904
      %v980 = vsel %vm979, %v970, %v972
      %v981 = vsel %vm979, %v972, %v974
      %v982 = vsel %vm979, %v974, %v976
      %v983 = vsel %vm979, %v976, %v978
      %v985 = vsel %vm335, %v967, 0
      %v988 = vsel %vm335, %v968, 0
      %v991 = vand.u32 %v980, %v345
      %v994 = vand.u32 %v981, %v345
      %v997 = vand.u32 %v982, %v345
      %v1000 = vand.u32 %v983, %v345
      %1002 = vmatpush.bf16.msra.mxu0 0
      %1003 = vmatpush.bf16.msra.mxu0 0
      %1004 = vmatpush.bf16.msra.mxu0 0
      %1005 = vmatpush.bf16.msra.mxu0 0
      %1006 = vmatpush.bf16.msra.mxu0 0
      %1007 = vmatpush.bf16.msra.mxu0 0
      %1008 = vmatpush.bf16.msra.mxu0 0
      %1009 = vmatpush.bf16.msra.mxu0 %v991
      %1010 = vmatmul.bf16.gmra.mxu0 %v985
      %v1011 = vpop.f32.mrf.mxu0
      %v1012 = vadd.f32 0.0, %v1011
      %v1013 = vpop.f32.mrf.mxu0
      %v1014 = vadd.f32 0.0, %v1013
      %1015 = vmatmul.bf16.gmra.mxu0 %v988
      %v1016 = vpop.f32.mrf.mxu0
      %v1017 = vadd.f32 0.0, %v1016
      %v1018 = vpop.f32.mrf.mxu0
      %v1019 = vadd.f32 0.0, %v1018
      %1020 = vdwg.mxu0
      %1021 = vmatpush.bf16.msra.mxu0 0
      %1022 = vmatpush.bf16.msra.mxu0 0
      %1023 = vmatpush.bf16.msra.mxu0 0
      %1024 = vmatpush.bf16.msra.mxu0 0
      %1025 = vmatpush.bf16.msra.mxu0 0
      %1026 = vmatpush.bf16.msra.mxu0 0
      %1027 = vmatpush.bf16.msra.mxu0 0
      %1028 = vmatpush.bf16.msra.mxu0 %v994
      %1029 = vmatmul.bf16.gmra.mxu0 %v985
      %v1030 = vpop.f32.mrf.mxu0
      %v1031 = vadd.f32 0.0, %v1030
      %v1032 = vpop.f32.mrf.mxu0
      %v1033 = vadd.f32 0.0, %v1032
      %1034 = vmatmul.bf16.gmra.mxu0 %v988
      %v1035 = vpop.f32.mrf.mxu0
      %v1036 = vadd.f32 0.0, %v1035
      %v1037 = vpop.f32.mrf.mxu0
      %v1038 = vadd.f32 0.0, %v1037
      %1039 = vdwg.mxu0
      %1040 = vmatpush.bf16.msra.mxu0 0
      %1041 = vmatpush.bf16.msra.mxu0 0
      %1042 = vmatpush.bf16.msra.mxu0 0
      %1043 = vmatpush.bf16.msra.mxu0 0
      %1044 = vmatpush.bf16.msra.mxu0 0
      %1045 = vmatpush.bf16.msra.mxu0 0
      %1046 = vmatpush.bf16.msra.mxu0 0
      %1047 = vmatpush.bf16.msra.mxu0 %v997
      %1048 = vmatmul.bf16.gmra.mxu0 %v985
      %v1049 = vpop.f32.mrf.mxu0
      %v1050 = vadd.f32 0.0, %v1049
      %v1051 = vpop.f32.mrf.mxu0
      %v1052 = vadd.f32 0.0, %v1051
      %1053 = vmatmul.bf16.gmra.mxu0 %v988
      %v1054 = vpop.f32.mrf.mxu0
      %v1055 = vadd.f32 0.0, %v1054
      %v1056 = vpop.f32.mrf.mxu0
      %v1057 = vadd.f32 0.0, %v1056
      %1058 = vdwg.mxu0
      %1059 = vmatpush.bf16.msra.mxu0 0
      %1060 = vmatpush.bf16.msra.mxu0 0
      %1061 = vmatpush.bf16.msra.mxu0 0
      %1062 = vmatpush.bf16.msra.mxu0 0
      %1063 = vmatpush.bf16.msra.mxu0 0
      %1064 = vmatpush.bf16.msra.mxu0 0
      %1065 = vmatpush.bf16.msra.mxu0 0
      %1066 = vmatpush.bf16.msra.mxu0 %v1000
      %1067 = vmatmul.bf16.gmra.mxu0 %v985
      %v1068 = vpop.f32.mrf.mxu0
      %v1069 = vadd.f32 0.0, %v1068
      %v1070 = vpop.f32.mrf.mxu0
      %v1071 = vadd.f32 0.0, %v1070
      %1072 = vmatmul.bf16.gmra.mxu0 %v988
      %v1073 = vpop.f32.mrf.mxu0
      %v1074 = vadd.f32 0.0, %v1073
      %v1075 = vpop.f32.mrf.mxu0
      %v1076 = vadd.f32 0.0, %v1075
      %1077 = vdwg.mxu0
      %v1078 = vadd.f32 %v938, %v1012
      %v1079 = vadd.f32 %v939, %v1031
      %v1080 = vadd.f32 %v940, %v1050
      %v1081 = vadd.f32 %v941, %v1069
      %v1082 = vadd.f32 %v942, %v1014
      %v1083 = vadd.f32 %v943, %v1033
      %v1084 = vadd.f32 %v944, %v1052
      %v1085 = vadd.f32 %v945, %v1071
      %v1086 = vadd.f32 %v946, %v1017
      %v1087 = vadd.f32 %v947, %v1036
      %v1088 = vadd.f32 %v948, %v1055
      %v1089 = vadd.f32 %v949, %v1074
      %v1090 = vadd.f32 %v950, %v1019
      %v1091 = vadd.f32 %v951, %v1038
      %v1092 = vadd.f32 %v952, %v1057
      %v1093 = vadd.f32 %v953, %v1076
      %s1094 = scalar_lea.vmem %s2, 96
      %v1095 = vld [vmem:[%s1094] sm:$0xf]
      %v1096 = vld [vmem:[%s1094 + $0x4] sm:$0xf]
      %v1097 = vld [vmem:[%s1094 + $0x8] sm:$0xf]
      %v1098 = vld [vmem:[%s1094 + $0xc] sm:$0xf]
      %v1103 = vunpack.c.l.b16 %v1095
      %v1104 = vunpack.c.l.b16 %v1096
      %v1105 = vunpack.c.l.b16 %v1097
      %v1106 = vunpack.c.l.b16 %v1098
      %v1107 = vpack.c.b16 %v1104, %v1103
      %v1108 = vpack.c.b16 %v1106, %v1105
      %1109 = vrot.lane.b32.xlu0 %v285, 108
      %v1110 = vpop.permute.xlu0 %1109
      %1111 = vrot.lane.b32.xlu0 %v287, 108
      %v1112 = vpop.permute.xlu0 %1111
      %1113 = vrot.lane.b32.xlu0 %v289, 108
      %v1114 = vpop.permute.xlu0 %1113
      %1115 = vrot.lane.b32.xlu0 %v291, 108
      %v1116 = vpop.permute.xlu0 %1115
      %1117 = vrot.lane.b32.xlu0 %v295, 108
      %v1118 = vpop.permute.xlu0 %1117
      %vm1119 = vcmask 883712
      %v1120 = vsel %vm1119, %v1110, %v1112
      %v1121 = vsel %vm1119, %v1112, %v1114
      %v1122 = vsel %vm1119, %v1114, %v1116
      %v1123 = vsel %vm1119, %v1116, %v1118
      %v1125 = vsel %vm335, %v1107, 0
      %v1128 = vsel %vm335, %v1108, 0
      %v1131 = vand.u32 %v1120, %v345
      %v1134 = vand.u32 %v1121, %v345
      %v1137 = vand.u32 %v1122, %v345
      %v1140 = vand.u32 %v1123, %v345
      %1142 = vmatpush.bf16.msra.mxu0 0
      %1143 = vmatpush.bf16.msra.mxu0 0
      %1144 = vmatpush.bf16.msra.mxu0 0
      %1145 = vmatpush.bf16.msra.mxu0 0
      %1146 = vmatpush.bf16.msra.mxu0 0
      %1147 = vmatpush.bf16.msra.mxu0 0
      %1148 = vmatpush.bf16.msra.mxu0 0
      %1149 = vmatpush.bf16.msra.mxu0 %v1131
      %1150 = vmatmul.bf16.gmra.mxu0 %v1125
      %v1151 = vpop.f32.mrf.mxu0
      %v1152 = vadd.f32 0.0, %v1151
      %v1153 = vpop.f32.mrf.mxu0
      %v1154 = vadd.f32 0.0, %v1153
      %1155 = vmatmul.bf16.gmra.mxu0 %v1128
      %v1156 = vpop.f32.mrf.mxu0
      %v1157 = vadd.f32 0.0, %v1156
      %v1158 = vpop.f32.mrf.mxu0
      %v1159 = vadd.f32 0.0, %v1158
      %1160 = vdwg.mxu0
      %1161 = vmatpush.bf16.msra.mxu0 0
      %1162 = vmatpush.bf16.msra.mxu0 0
      %1163 = vmatpush.bf16.msra.mxu0 0
      %1164 = vmatpush.bf16.msra.mxu0 0
      %1165 = vmatpush.bf16.msra.mxu0 0
      %1166 = vmatpush.bf16.msra.mxu0 0
      %1167 = vmatpush.bf16.msra.mxu0 0
      %1168 = vmatpush.bf16.msra.mxu0 %v1134
      %1169 = vmatmul.bf16.gmra.mxu0 %v1125
      %v1170 = vpop.f32.mrf.mxu0
      %v1171 = vadd.f32 0.0, %v1170
      %v1172 = vpop.f32.mrf.mxu0
      %v1173 = vadd.f32 0.0, %v1172
      %1174 = vmatmul.bf16.gmra.mxu0 %v1128
      %v1175 = vpop.f32.mrf.mxu0
      %v1176 = vadd.f32 0.0, %v1175
      %v1177 = vpop.f32.mrf.mxu0
      %v1178 = vadd.f32 0.0, %v1177
      %1179 = vdwg.mxu0
      %1180 = vmatpush.bf16.msra.mxu0 0
      %1181 = vmatpush.bf16.msra.mxu0 0
      %1182 = vmatpush.bf16.msra.mxu0 0
      %1183 = vmatpush.bf16.msra.mxu0 0
      %1184 = vmatpush.bf16.msra.mxu0 0
      %1185 = vmatpush.bf16.msra.mxu0 0
      %1186 = vmatpush.bf16.msra.mxu0 0
      %1187 = vmatpush.bf16.msra.mxu0 %v1137
      %1188 = vmatmul.bf16.gmra.mxu0 %v1125
      %v1189 = vpop.f32.mrf.mxu0
      %v1190 = vadd.f32 0.0, %v1189
      %v1191 = vpop.f32.mrf.mxu0
      %v1192 = vadd.f32 0.0, %v1191
      %1193 = vmatmul.bf16.gmra.mxu0 %v1128
      %v1194 = vpop.f32.mrf.mxu0
      %v1195 = vadd.f32 0.0, %v1194
      %v1196 = vpop.f32.mrf.mxu0
      %v1197 = vadd.f32 0.0, %v1196
      %1198 = vdwg.mxu0
      %1199 = vmatpush.bf16.msra.mxu0 0
      %1200 = vmatpush.bf16.msra.mxu0 0
      %1201 = vmatpush.bf16.msra.mxu0 0
      %1202 = vmatpush.bf16.msra.mxu0 0
      %1203 = vmatpush.bf16.msra.mxu0 0
      %1204 = vmatpush.bf16.msra.mxu0 0
      %1205 = vmatpush.bf16.msra.mxu0 0
      %1206 = vmatpush.bf16.msra.mxu0 %v1140
      %1207 = vmatmul.bf16.gmra.mxu0 %v1125
      %v1208 = vpop.f32.mrf.mxu0
      %v1209 = vadd.f32 0.0, %v1208
      %v1210 = vpop.f32.mrf.mxu0
      %v1211 = vadd.f32 0.0, %v1210
      %1212 = vmatmul.bf16.gmra.mxu0 %v1128
      %v1213 = vpop.f32.mrf.mxu0
      %v1214 = vadd.f32 0.0, %v1213
      %v1215 = vpop.f32.mrf.mxu0
      %v1216 = vadd.f32 0.0, %v1215
      %1217 = vdwg.mxu0
      %v1218 = vadd.f32 %v1078, %v1152
      %v1219 = vadd.f32 %v1079, %v1171
      %v1220 = vadd.f32 %v1080, %v1190
      %v1221 = vadd.f32 %v1081, %v1209
      %v1222 = vadd.f32 %v1082, %v1154
      %v1223 = vadd.f32 %v1083, %v1173
      %v1224 = vadd.f32 %v1084, %v1192
      %v1225 = vadd.f32 %v1085, %v1211
      %v1226 = vadd.f32 %v1086, %v1157
      %v1227 = vadd.f32 %v1087, %v1176
      %v1228 = vadd.f32 %v1088, %v1195
      %v1229 = vadd.f32 %v1089, %v1214
      %v1230 = vadd.f32 %v1090, %v1159
      %v1231 = vadd.f32 %v1091, %v1178
      %v1232 = vadd.f32 %v1092, %v1197
      %v1233 = vadd.f32 %v1093, %v1216
      %s1234 = scalar_lea.vmem %s2, 112
      %v1235 = vld [vmem:[%s1234] sm:$0xf]
      %v1236 = vld [vmem:[%s1234 + $0x4] sm:$0xf]
      %v1237 = vld [vmem:[%s1234 + $0x8] sm:$0xf]
      %v1238 = vld [vmem:[%s1234 + $0xc] sm:$0xf]
      %v1243 = vunpack.c.l.b16 %v1235
      %v1244 = vunpack.c.l.b16 %v1236
      %v1245 = vunpack.c.l.b16 %v1237
      %v1246 = vunpack.c.l.b16 %v1238
      %v1247 = vpack.c.b16 %v1244, %v1243
      %v1248 = vpack.c.b16 %v1246, %v1245
      %1249 = vrot.lane.b32.xlu0 %v285, 107
      %v1250 = vpop.permute.xlu0 %1249
      %1251 = vrot.lane.b32.xlu0 %v287, 107
      %v1252 = vpop.permute.xlu0 %1251
      %1253 = vrot.lane.b32.xlu0 %v289, 107
      %v1254 = vpop.permute.xlu0 %1253
      %1255 = vrot.lane.b32.xlu0 %v291, 107
      %v1256 = vpop.permute.xlu0 %1255
      %1257 = vrot.lane.b32.xlu0 %v295, 107
      %v1258 = vpop.permute.xlu0 %1257
      %vm1259 = vcmask 875520
      %v1260 = vsel %vm1259, %v1250, %v1252
      %v1261 = vsel %vm1259, %v1252, %v1254
      %v1262 = vsel %vm1259, %v1254, %v1256
      %v1263 = vsel %vm1259, %v1256, %v1258
      %v1265 = vsel %vm335, %v1247, 0
      %v1268 = vsel %vm335, %v1248, 0
      %v1271 = vand.u32 %v1260, %v345
      %v1274 = vand.u32 %v1261, %v345
      %v1277 = vand.u32 %v1262, %v345
      %v1280 = vand.u32 %v1263, %v345
      %1282 = vmatpush.bf16.msra.mxu0 0
      %1283 = vmatpush.bf16.msra.mxu0 0
      %1284 = vmatpush.bf16.msra.mxu0 0
      %1285 = vmatpush.bf16.msra.mxu0 0
      %1286 = vmatpush.bf16.msra.mxu0 0
      %1287 = vmatpush.bf16.msra.mxu0 0
      %1288 = vmatpush.bf16.msra.mxu0 0
      %1289 = vmatpush.bf16.msra.mxu0 %v1271
      %1290 = vmatmul.bf16.gmra.mxu0 %v1265
      %v1291 = vpop.f32.mrf.mxu0
      %v1292 = vadd.f32 0.0, %v1291
      %v1293 = vpop.f32.mrf.mxu0
      %v1294 = vadd.f32 0.0, %v1293
      %1295 = vmatmul.bf16.gmra.mxu0 %v1268
      %v1296 = vpop.f32.mrf.mxu0
      %v1297 = vadd.f32 0.0, %v1296
      %v1298 = vpop.f32.mrf.mxu0
      %v1299 = vadd.f32 0.0, %v1298
      %1300 = vdwg.mxu0
      %1301 = vmatpush.bf16.msra.mxu0 0
      %1302 = vmatpush.bf16.msra.mxu0 0
      %1303 = vmatpush.bf16.msra.mxu0 0
      %1304 = vmatpush.bf16.msra.mxu0 0
      %1305 = vmatpush.bf16.msra.mxu0 0
      %1306 = vmatpush.bf16.msra.mxu0 0
      %1307 = vmatpush.bf16.msra.mxu0 0
      %1308 = vmatpush.bf16.msra.mxu0 %v1274
      %1309 = vmatmul.bf16.gmra.mxu0 %v1265
      %v1310 = vpop.f32.mrf.mxu0
      %v1311 = vadd.f32 0.0, %v1310
      %v1312 = vpop.f32.mrf.mxu0
      %v1313 = vadd.f32 0.0, %v1312
      %1314 = vmatmul.bf16.gmra.mxu0 %v1268
      %v1315 = vpop.f32.mrf.mxu0
      %v1316 = vadd.f32 0.0, %v1315
      %v1317 = vpop.f32.mrf.mxu0
      %v1318 = vadd.f32 0.0, %v1317
      %1319 = vdwg.mxu0
      %1320 = vmatpush.bf16.msra.mxu0 0
      %1321 = vmatpush.bf16.msra.mxu0 0
      %1322 = vmatpush.bf16.msra.mxu0 0
      %1323 = vmatpush.bf16.msra.mxu0 0
      %1324 = vmatpush.bf16.msra.mxu0 0
      %1325 = vmatpush.bf16.msra.mxu0 0
      %1326 = vmatpush.bf16.msra.mxu0 0
      %1327 = vmatpush.bf16.msra.mxu0 %v1277
      %1328 = vmatmul.bf16.gmra.mxu0 %v1265
      %v1329 = vpop.f32.mrf.mxu0
      %v1330 = vadd.f32 0.0, %v1329
      %v1331 = vpop.f32.mrf.mxu0
      %v1332 = vadd.f32 0.0, %v1331
      %1333 = vmatmul.bf16.gmra.mxu0 %v1268
      %v1334 = vpop.f32.mrf.mxu0
      %v1335 = vadd.f32 0.0, %v1334
      %v1336 = vpop.f32.mrf.mxu0
      %v1337 = vadd.f32 0.0, %v1336
      %1338 = vdwg.mxu0
      %1339 = vmatpush.bf16.msra.mxu0 0
      %1340 = vmatpush.bf16.msra.mxu0 0
      %1341 = vmatpush.bf16.msra.mxu0 0
      %1342 = vmatpush.bf16.msra.mxu0 0
      %1343 = vmatpush.bf16.msra.mxu0 0
      %1344 = vmatpush.bf16.msra.mxu0 0
      %1345 = vmatpush.bf16.msra.mxu0 0
      %1346 = vmatpush.bf16.msra.mxu0 %v1280
      %1347 = vmatmul.bf16.gmra.mxu0 %v1265
      %v1348 = vpop.f32.mrf.mxu0
      %v1349 = vadd.f32 0.0, %v1348
      %v1350 = vpop.f32.mrf.mxu0
      %v1351 = vadd.f32 0.0, %v1350
      %1352 = vmatmul.bf16.gmra.mxu0 %v1268
      %v1353 = vpop.f32.mrf.mxu0
      %v1354 = vadd.f32 0.0, %v1353
      %v1355 = vpop.f32.mrf.mxu0
      %v1356 = vadd.f32 0.0, %v1355
      %1357 = vdwg.mxu0
      %v1358 = vadd.f32 %v1218, %v1292
      %v1359 = vadd.f32 %v1219, %v1311
      %v1360 = vadd.f32 %v1220, %v1330
      %v1361 = vadd.f32 %v1221, %v1349
      %v1362 = vadd.f32 %v1222, %v1294
      %v1363 = vadd.f32 %v1223, %v1313
      %v1364 = vadd.f32 %v1224, %v1332
      %v1365 = vadd.f32 %v1225, %v1351
      %v1366 = vadd.f32 %v1226, %v1297
      %v1367 = vadd.f32 %v1227, %v1316
      %v1368 = vadd.f32 %v1228, %v1335
      %v1369 = vadd.f32 %v1229, %v1354
      %v1370 = vadd.f32 %v1230, %v1299
      %v1371 = vadd.f32 %v1231, %v1318
      %v1372 = vadd.f32 %v1232, %v1337
      %v1373 = vadd.f32 %v1233, %v1356
      %s1374 = scalar_lea.vmem %s2, 128
      %v1375 = vld [vmem:[%s1374] sm:$0xf]
      %v1376 = vld [vmem:[%s1374 + $0x4] sm:$0xf]
      %v1377 = vld [vmem:[%s1374 + $0x8] sm:$0xf]
      %v1378 = vld [vmem:[%s1374 + $0xc] sm:$0xf]
      %v1383 = vunpack.c.l.b16 %v1375
      %v1384 = vunpack.c.l.b16 %v1376
      %v1385 = vunpack.c.l.b16 %v1377
      %v1386 = vunpack.c.l.b16 %v1378
      %v1387 = vpack.c.b16 %v1384, %v1383
      %v1388 = vpack.c.b16 %v1386, %v1385
      %1389 = vrot.lane.b32.xlu0 %v285, 92
      %v1390 = vpop.permute.xlu0 %1389
      %1391 = vrot.lane.b32.xlu0 %v287, 92
      %v1392 = vpop.permute.xlu0 %1391
      %1393 = vrot.lane.b32.xlu0 %v289, 92
      %v1394 = vpop.permute.xlu0 %1393
      %1395 = vrot.lane.b32.xlu0 %v291, 92
      %v1396 = vpop.permute.xlu0 %1395
      %1397 = vrot.lane.b32.xlu0 %v295, 92
      %v1398 = vpop.permute.xlu0 %1397
      %vm1399 = vcmask 752640
      %v1400 = vsel %vm1399, %v1390, %v1392
      %v1401 = vsel %vm1399, %v1392, %v1394
      %v1402 = vsel %vm1399, %v1394, %v1396
      %v1403 = vsel %vm1399, %v1396, %v1398
      %v1405 = vsel %vm335, %v1387, 0
      %v1408 = vsel %vm335, %v1388, 0
      %v1411 = vand.u32 %v1400, %v345
      %v1414 = vand.u32 %v1401, %v345
      %v1417 = vand.u32 %v1402, %v345
      %v1420 = vand.u32 %v1403, %v345
      %1422 = vmatpush.bf16.msra.mxu0 0
      %1423 = vmatpush.bf16.msra.mxu0 0
      %1424 = vmatpush.bf16.msra.mxu0 0
      %1425 = vmatpush.bf16.msra.mxu0 0
      %1426 = vmatpush.bf16.msra.mxu0 0
      %1427 = vmatpush.bf16.msra.mxu0 0
      %1428 = vmatpush.bf16.msra.mxu0 0
      %1429 = vmatpush.bf16.msra.mxu0 %v1411
      %1430 = vmatmul.bf16.gmra.mxu0 %v1405
      %v1431 = vpop.f32.mrf.mxu0
      %v1432 = vadd.f32 0.0, %v1431
      %v1433 = vpop.f32.mrf.mxu0
      %v1434 = vadd.f32 0.0, %v1433
      %1435 = vmatmul.bf16.gmra.mxu0 %v1408
      %v1436 = vpop.f32.mrf.mxu0
      %v1437 = vadd.f32 0.0, %v1436
      %v1438 = vpop.f32.mrf.mxu0
      %v1439 = vadd.f32 0.0, %v1438
      %1440 = vdwg.mxu0
      %1441 = vmatpush.bf16.msra.mxu0 0
      %1442 = vmatpush.bf16.msra.mxu0 0
      %1443 = vmatpush.bf16.msra.mxu0 0
      %1444 = vmatpush.bf16.msra.mxu0 0
      %1445 = vmatpush.bf16.msra.mxu0 0
      %1446 = vmatpush.bf16.msra.mxu0 0
      %1447 = vmatpush.bf16.msra.mxu0 0
      %1448 = vmatpush.bf16.msra.mxu0 %v1414
      %1449 = vmatmul.bf16.gmra.mxu0 %v1405
      %v1450 = vpop.f32.mrf.mxu0
      %v1451 = vadd.f32 0.0, %v1450
      %v1452 = vpop.f32.mrf.mxu0
      %v1453 = vadd.f32 0.0, %v1452
      %1454 = vmatmul.bf16.gmra.mxu0 %v1408
      %v1455 = vpop.f32.mrf.mxu0
      %v1456 = vadd.f32 0.0, %v1455
      %v1457 = vpop.f32.mrf.mxu0
      %v1458 = vadd.f32 0.0, %v1457
      %1459 = vdwg.mxu0
      %1460 = vmatpush.bf16.msra.mxu0 0
      %1461 = vmatpush.bf16.msra.mxu0 0
      %1462 = vmatpush.bf16.msra.mxu0 0
      %1463 = vmatpush.bf16.msra.mxu0 0
      %1464 = vmatpush.bf16.msra.mxu0 0
      %1465 = vmatpush.bf16.msra.mxu0 0
      %1466 = vmatpush.bf16.msra.mxu0 0
      %1467 = vmatpush.bf16.msra.mxu0 %v1417
      %1468 = vmatmul.bf16.gmra.mxu0 %v1405
      %v1469 = vpop.f32.mrf.mxu0
      %v1470 = vadd.f32 0.0, %v1469
      %v1471 = vpop.f32.mrf.mxu0
      %v1472 = vadd.f32 0.0, %v1471
      %1473 = vmatmul.bf16.gmra.mxu0 %v1408
      %v1474 = vpop.f32.mrf.mxu0
      %v1475 = vadd.f32 0.0, %v1474
      %v1476 = vpop.f32.mrf.mxu0
      %v1477 = vadd.f32 0.0, %v1476
      %1478 = vdwg.mxu0
      %1479 = vmatpush.bf16.msra.mxu0 0
      %1480 = vmatpush.bf16.msra.mxu0 0
      %1481 = vmatpush.bf16.msra.mxu0 0
      %1482 = vmatpush.bf16.msra.mxu0 0
      %1483 = vmatpush.bf16.msra.mxu0 0
      %1484 = vmatpush.bf16.msra.mxu0 0
      %1485 = vmatpush.bf16.msra.mxu0 0
      %1486 = vmatpush.bf16.msra.mxu0 %v1420
      %1487 = vmatmul.bf16.gmra.mxu0 %v1405
      %v1488 = vpop.f32.mrf.mxu0
      %v1489 = vadd.f32 0.0, %v1488
      %v1490 = vpop.f32.mrf.mxu0
      %v1491 = vadd.f32 0.0, %v1490
      %1492 = vmatmul.bf16.gmra.mxu0 %v1408
      %v1493 = vpop.f32.mrf.mxu0
      %v1494 = vadd.f32 0.0, %v1493
      %v1495 = vpop.f32.mrf.mxu0
      %v1496 = vadd.f32 0.0, %v1495
      %1497 = vdwg.mxu0
      %v1498 = vadd.f32 %v1358, %v1432
      %v1499 = vadd.f32 %v1359, %v1451
      %v1500 = vadd.f32 %v1360, %v1470
      %v1501 = vadd.f32 %v1361, %v1489
      %v1502 = vadd.f32 %v1362, %v1434
      %v1503 = vadd.f32 %v1363, %v1453
      %v1504 = vadd.f32 %v1364, %v1472
      %v1505 = vadd.f32 %v1365, %v1491
      %v1506 = vadd.f32 %v1366, %v1437
      %v1507 = vadd.f32 %v1367, %v1456
      %v1508 = vadd.f32 %v1368, %v1475
      %v1509 = vadd.f32 %v1369, %v1494
      %v1510 = vadd.f32 %v1370, %v1439
      %v1511 = vadd.f32 %v1371, %v1458
      %v1512 = vadd.f32 %v1372, %v1477
      %v1513 = vadd.f32 %v1373, %v1496
      %s1514 = scalar_lea.vmem %s2, 144
      %v1515 = vld [vmem:[%s1514] sm:$0xf]
      %v1516 = vld [vmem:[%s1514 + $0x4] sm:$0xf]
      %v1517 = vld [vmem:[%s1514 + $0x8] sm:$0xf]
      %v1518 = vld [vmem:[%s1514 + $0xc] sm:$0xf]
      %v1523 = vunpack.c.l.b16 %v1515
      %v1524 = vunpack.c.l.b16 %v1516
      %v1525 = vunpack.c.l.b16 %v1517
      %v1526 = vunpack.c.l.b16 %v1518
      %v1527 = vpack.c.b16 %v1524, %v1523
      %v1528 = vpack.c.b16 %v1526, %v1525
      %1529 = vrot.lane.b32.xlu0 %v285, 91
      %v1530 = vpop.permute.xlu0 %1529
      %1531 = vrot.lane.b32.xlu0 %v287, 91
      %v1532 = vpop.permute.xlu0 %1531
      %1533 = vrot.lane.b32.xlu0 %v289, 91
      %v1534 = vpop.permute.xlu0 %1533
      %1535 = vrot.lane.b32.xlu0 %v291, 91
      %v1536 = vpop.permute.xlu0 %1535
      %1537 = vrot.lane.b32.xlu0 %v295, 91
      %v1538 = vpop.permute.xlu0 %1537
      %vm1539 = vcmask 744448
      %v1540 = vsel %vm1539, %v1530, %v1532
      %v1541 = vsel %vm1539, %v1532, %v1534
      %v1542 = vsel %vm1539, %v1534, %v1536
      %v1543 = vsel %vm1539, %v1536, %v1538
      %v1545 = vsel %vm335, %v1527, 0
      %v1548 = vsel %vm335, %v1528, 0
      %v1551 = vand.u32 %v1540, %v345
      %v1554 = vand.u32 %v1541, %v345
      %v1557 = vand.u32 %v1542, %v345
      %v1560 = vand.u32 %v1543, %v345
      %1562 = vmatpush.bf16.msra.mxu0 0
      %1563 = vmatpush.bf16.msra.mxu0 0
      %1564 = vmatpush.bf16.msra.mxu0 0
      %1565 = vmatpush.bf16.msra.mxu0 0
      %1566 = vmatpush.bf16.msra.mxu0 0
      %1567 = vmatpush.bf16.msra.mxu0 0
      %1568 = vmatpush.bf16.msra.mxu0 0
      %1569 = vmatpush.bf16.msra.mxu0 %v1551
      %1570 = vmatmul.bf16.gmra.mxu0 %v1545
      %v1571 = vpop.f32.mrf.mxu0
      %v1572 = vadd.f32 0.0, %v1571
      %v1573 = vpop.f32.mrf.mxu0
      %v1574 = vadd.f32 0.0, %v1573
      %1575 = vmatmul.bf16.gmra.mxu0 %v1548
      %v1576 = vpop.f32.mrf.mxu0
      %v1577 = vadd.f32 0.0, %v1576
      %v1578 = vpop.f32.mrf.mxu0
      %v1579 = vadd.f32 0.0, %v1578
      %1580 = vdwg.mxu0
      %1581 = vmatpush.bf16.msra.mxu0 0
      %1582 = vmatpush.bf16.msra.mxu0 0
      %1583 = vmatpush.bf16.msra.mxu0 0
      %1584 = vmatpush.bf16.msra.mxu0 0
      %1585 = vmatpush.bf16.msra.mxu0 0
      %1586 = vmatpush.bf16.msra.mxu0 0
      %1587 = vmatpush.bf16.msra.mxu0 0
      %1588 = vmatpush.bf16.msra.mxu0 %v1554
      %1589 = vmatmul.bf16.gmra.mxu0 %v1545
      %v1590 = vpop.f32.mrf.mxu0
      %v1591 = vadd.f32 0.0, %v1590
      %v1592 = vpop.f32.mrf.mxu0
      %v1593 = vadd.f32 0.0, %v1592
      %1594 = vmatmul.bf16.gmra.mxu0 %v1548
      %v1595 = vpop.f32.mrf.mxu0
      %v1596 = vadd.f32 0.0, %v1595
      %v1597 = vpop.f32.mrf.mxu0
      %v1598 = vadd.f32 0.0, %v1597
      %1599 = vdwg.mxu0
      %1600 = vmatpush.bf16.msra.mxu0 0
      %1601 = vmatpush.bf16.msra.mxu0 0
      %1602 = vmatpush.bf16.msra.mxu0 0
      %1603 = vmatpush.bf16.msra.mxu0 0
      %1604 = vmatpush.bf16.msra.mxu0 0
      %1605 = vmatpush.bf16.msra.mxu0 0
      %1606 = vmatpush.bf16.msra.mxu0 0
      %1607 = vmatpush.bf16.msra.mxu0 %v1557
      %1608 = vmatmul.bf16.gmra.mxu0 %v1545
      %v1609 = vpop.f32.mrf.mxu0
      %v1610 = vadd.f32 0.0, %v1609
      %v1611 = vpop.f32.mrf.mxu0
      %v1612 = vadd.f32 0.0, %v1611
      %1613 = vmatmul.bf16.gmra.mxu0 %v1548
      %v1614 = vpop.f32.mrf.mxu0
      %v1615 = vadd.f32 0.0, %v1614
      %v1616 = vpop.f32.mrf.mxu0
      %v1617 = vadd.f32 0.0, %v1616
      %1618 = vdwg.mxu0
      %1619 = vmatpush.bf16.msra.mxu0 0
      %1620 = vmatpush.bf16.msra.mxu0 0
      %1621 = vmatpush.bf16.msra.mxu0 0
      %1622 = vmatpush.bf16.msra.mxu0 0
      %1623 = vmatpush.bf16.msra.mxu0 0
      %1624 = vmatpush.bf16.msra.mxu0 0
      %1625 = vmatpush.bf16.msra.mxu0 0
      %1626 = vmatpush.bf16.msra.mxu0 %v1560
      %1627 = vmatmul.bf16.gmra.mxu0 %v1545
      %v1628 = vpop.f32.mrf.mxu0
      %v1629 = vadd.f32 0.0, %v1628
      %v1630 = vpop.f32.mrf.mxu0
      %v1631 = vadd.f32 0.0, %v1630
      %1632 = vmatmul.bf16.gmra.mxu0 %v1548
      %v1633 = vpop.f32.mrf.mxu0
      %v1634 = vadd.f32 0.0, %v1633
      %v1635 = vpop.f32.mrf.mxu0
      %v1636 = vadd.f32 0.0, %v1635
      %1637 = vdwg.mxu0
      %v1638 = vadd.f32 %v1498, %v1572
      %v1639 = vadd.f32 %v1499, %v1591
      %v1640 = vadd.f32 %v1500, %v1610
      %v1641 = vadd.f32 %v1501, %v1629
      %v1642 = vadd.f32 %v1502, %v1574
      %v1643 = vadd.f32 %v1503, %v1593
      %v1644 = vadd.f32 %v1504, %v1612
      %v1645 = vadd.f32 %v1505, %v1631
      %v1646 = vadd.f32 %v1506, %v1577
      %v1647 = vadd.f32 %v1507, %v1596
      %v1648 = vadd.f32 %v1508, %v1615
      %v1649 = vadd.f32 %v1509, %v1634
      %v1650 = vadd.f32 %v1510, %v1579
      %v1651 = vadd.f32 %v1511, %v1598
      %v1652 = vadd.f32 %v1512, %v1617
      %v1653 = vadd.f32 %v1513, %v1636
      %s1654 = scalar_lea.vmem %s2, 160
      %v1655 = vld [vmem:[%s1654] sm:$0xf]
      %v1656 = vld [vmem:[%s1654 + $0x4] sm:$0xf]
      %v1657 = vld [vmem:[%s1654 + $0x8] sm:$0xf]
      %v1658 = vld [vmem:[%s1654 + $0xc] sm:$0xf]
      %v1663 = vunpack.c.l.b16 %v1655
      %v1664 = vunpack.c.l.b16 %v1656
      %v1665 = vunpack.c.l.b16 %v1657
      %v1666 = vunpack.c.l.b16 %v1658
      %v1667 = vpack.c.b16 %v1664, %v1663
      %v1668 = vpack.c.b16 %v1666, %v1665
      %1669 = vrot.lane.b32.xlu0 %v285, 90
      %v1670 = vpop.permute.xlu0 %1669
      %1671 = vrot.lane.b32.xlu0 %v287, 90
      %v1672 = vpop.permute.xlu0 %1671
      %1673 = vrot.lane.b32.xlu0 %v289, 90
      %v1674 = vpop.permute.xlu0 %1673
      %1675 = vrot.lane.b32.xlu0 %v291, 90
      %v1676 = vpop.permute.xlu0 %1675
      %1677 = vrot.lane.b32.xlu0 %v295, 90
      %v1678 = vpop.permute.xlu0 %1677
      %vm1679 = vcmask 736256
      %v1680 = vsel %vm1679, %v1670, %v1672
      %v1681 = vsel %vm1679, %v1672, %v1674
      %v1682 = vsel %vm1679, %v1674, %v1676
      %v1683 = vsel %vm1679, %v1676, %v1678
      %v1685 = vsel %vm335, %v1667, 0
      %v1688 = vsel %vm335, %v1668, 0
      %v1691 = vand.u32 %v1680, %v345
      %v1694 = vand.u32 %v1681, %v345
      %v1697 = vand.u32 %v1682, %v345
      %v1700 = vand.u32 %v1683, %v345
      %1702 = vmatpush.bf16.msra.mxu0 0
      %1703 = vmatpush.bf16.msra.mxu0 0
      %1704 = vmatpush.bf16.msra.mxu0 0
      %1705 = vmatpush.bf16.msra.mxu0 0
      %1706 = vmatpush.bf16.msra.mxu0 0
      %1707 = vmatpush.bf16.msra.mxu0 0
      %1708 = vmatpush.bf16.msra.mxu0 0
      %1709 = vmatpush.bf16.msra.mxu0 %v1691
      %1710 = vmatmul.bf16.gmra.mxu0 %v1685
      %v1711 = vpop.f32.mrf.mxu0
      %v1712 = vadd.f32 0.0, %v1711
      %v1713 = vpop.f32.mrf.mxu0
      %v1714 = vadd.f32 0.0, %v1713
      %1715 = vmatmul.bf16.gmra.mxu0 %v1688
      %v1716 = vpop.f32.mrf.mxu0
      %v1717 = vadd.f32 0.0, %v1716
      %v1718 = vpop.f32.mrf.mxu0
      %v1719 = vadd.f32 0.0, %v1718
      %1720 = vdwg.mxu0
      %1721 = vmatpush.bf16.msra.mxu0 0
      %1722 = vmatpush.bf16.msra.mxu0 0
      %1723 = vmatpush.bf16.msra.mxu0 0
      %1724 = vmatpush.bf16.msra.mxu0 0
      %1725 = vmatpush.bf16.msra.mxu0 0
      %1726 = vmatpush.bf16.msra.mxu0 0
      %1727 = vmatpush.bf16.msra.mxu0 0
      %1728 = vmatpush.bf16.msra.mxu0 %v1694
      %1729 = vmatmul.bf16.gmra.mxu0 %v1685
      %v1730 = vpop.f32.mrf.mxu0
      %v1731 = vadd.f32 0.0, %v1730
      %v1732 = vpop.f32.mrf.mxu0
      %v1733 = vadd.f32 0.0, %v1732
      %1734 = vmatmul.bf16.gmra.mxu0 %v1688
      %v1735 = vpop.f32.mrf.mxu0
      %v1736 = vadd.f32 0.0, %v1735
      %v1737 = vpop.f32.mrf.mxu0
      %v1738 = vadd.f32 0.0, %v1737
      %1739 = vdwg.mxu0
      %1740 = vmatpush.bf16.msra.mxu0 0
      %1741 = vmatpush.bf16.msra.mxu0 0
      %1742 = vmatpush.bf16.msra.mxu0 0
      %1743 = vmatpush.bf16.msra.mxu0 0
      %1744 = vmatpush.bf16.msra.mxu0 0
      %1745 = vmatpush.bf16.msra.mxu0 0
      %1746 = vmatpush.bf16.msra.mxu0 0
      %1747 = vmatpush.bf16.msra.mxu0 %v1697
      %1748 = vmatmul.bf16.gmra.mxu0 %v1685
      %v1749 = vpop.f32.mrf.mxu0
      %v1750 = vadd.f32 0.0, %v1749
      %v1751 = vpop.f32.mrf.mxu0
      %v1752 = vadd.f32 0.0, %v1751
      %1753 = vmatmul.bf16.gmra.mxu0 %v1688
      %v1754 = vpop.f32.mrf.mxu0
      %v1755 = vadd.f32 0.0, %v1754
      %v1756 = vpop.f32.mrf.mxu0
      %v1757 = vadd.f32 0.0, %v1756
      %1758 = vdwg.mxu0
      %1759 = vmatpush.bf16.msra.mxu0 0
      %1760 = vmatpush.bf16.msra.mxu0 0
      %1761 = vmatpush.bf16.msra.mxu0 0
      %1762 = vmatpush.bf16.msra.mxu0 0
      %1763 = vmatpush.bf16.msra.mxu0 0
      %1764 = vmatpush.bf16.msra.mxu0 0
      %1765 = vmatpush.bf16.msra.mxu0 0
      %1766 = vmatpush.bf16.msra.mxu0 %v1700
      %1767 = vmatmul.bf16.gmra.mxu0 %v1685
      %v1768 = vpop.f32.mrf.mxu0
      %v1769 = vadd.f32 0.0, %v1768
      %v1770 = vpop.f32.mrf.mxu0
      %v1771 = vadd.f32 0.0, %v1770
      %1772 = vmatmul.bf16.gmra.mxu0 %v1688
      %v1773 = vpop.f32.mrf.mxu0
      %v1774 = vadd.f32 0.0, %v1773
      %v1775 = vpop.f32.mrf.mxu0
      %v1776 = vadd.f32 0.0, %v1775
      %1777 = vdwg.mxu0
      %v1778 = vadd.f32 %v1638, %v1712
      %v1779 = vadd.f32 %v1639, %v1731
      %v1780 = vadd.f32 %v1640, %v1750
      %v1781 = vadd.f32 %v1641, %v1769
      %v1782 = vadd.f32 %v1642, %v1714
      %v1783 = vadd.f32 %v1643, %v1733
      %v1784 = vadd.f32 %v1644, %v1752
      %v1785 = vadd.f32 %v1645, %v1771
      %v1786 = vadd.f32 %v1646, %v1717
      %v1787 = vadd.f32 %v1647, %v1736
      %v1788 = vadd.f32 %v1648, %v1755
      %v1789 = vadd.f32 %v1649, %v1774
      %v1790 = vadd.f32 %v1650, %v1719
      %v1791 = vadd.f32 %v1651, %v1738
      %v1792 = vadd.f32 %v1652, %v1757
      %v1793 = vadd.f32 %v1653, %v1776
      %s1794 = scalar_lea.vmem %s2, 176
      %v1795 = vld [vmem:[%s1794] sm:$0xf]
      %v1796 = vld [vmem:[%s1794 + $0x4] sm:$0xf]
      %v1797 = vld [vmem:[%s1794 + $0x8] sm:$0xf]
      %v1798 = vld [vmem:[%s1794 + $0xc] sm:$0xf]
      %v1803 = vunpack.c.l.b16 %v1795
      %v1804 = vunpack.c.l.b16 %v1796
      %v1805 = vunpack.c.l.b16 %v1797
      %v1806 = vunpack.c.l.b16 %v1798
      %v1807 = vpack.c.b16 %v1804, %v1803
      %v1808 = vpack.c.b16 %v1806, %v1805
      %1809 = vrot.lane.b32.xlu0 %v285, 89
      %v1810 = vpop.permute.xlu0 %1809
      %1811 = vrot.lane.b32.xlu0 %v287, 89
      %v1812 = vpop.permute.xlu0 %1811
      %1813 = vrot.lane.b32.xlu0 %v289, 89
      %v1814 = vpop.permute.xlu0 %1813
      %1815 = vrot.lane.b32.xlu0 %v291, 89
      %v1816 = vpop.permute.xlu0 %1815
      %1817 = vrot.lane.b32.xlu0 %v295, 89
      %v1818 = vpop.permute.xlu0 %1817
      %vm1819 = vcmask 728064
      %v1820 = vsel %vm1819, %v1810, %v1812
      %v1821 = vsel %vm1819, %v1812, %v1814
      %v1822 = vsel %vm1819, %v1814, %v1816
      %v1823 = vsel %vm1819, %v1816, %v1818
      %v1825 = vsel %vm335, %v1807, 0
      %v1828 = vsel %vm335, %v1808, 0
      %v1831 = vand.u32 %v1820, %v345
      %v1834 = vand.u32 %v1821, %v345
      %v1837 = vand.u32 %v1822, %v345
      %v1840 = vand.u32 %v1823, %v345
      %1842 = vmatpush.bf16.msra.mxu0 0
      %1843 = vmatpush.bf16.msra.mxu0 0
      %1844 = vmatpush.bf16.msra.mxu0 0
      %1845 = vmatpush.bf16.msra.mxu0 0
      %1846 = vmatpush.bf16.msra.mxu0 0
      %1847 = vmatpush.bf16.msra.mxu0 0
      %1848 = vmatpush.bf16.msra.mxu0 0
      %1849 = vmatpush.bf16.msra.mxu0 %v1831
      %1850 = vmatmul.bf16.gmra.mxu0 %v1825
      %v1851 = vpop.f32.mrf.mxu0
      %v1852 = vadd.f32 0.0, %v1851
      %v1853 = vpop.f32.mrf.mxu0
      %v1854 = vadd.f32 0.0, %v1853
      %1855 = vmatmul.bf16.gmra.mxu0 %v1828
      %v1856 = vpop.f32.mrf.mxu0
      %v1857 = vadd.f32 0.0, %v1856
      %v1858 = vpop.f32.mrf.mxu0
      %v1859 = vadd.f32 0.0, %v1858
      %1860 = vdwg.mxu0
      %1861 = vmatpush.bf16.msra.mxu0 0
      %1862 = vmatpush.bf16.msra.mxu0 0
      %1863 = vmatpush.bf16.msra.mxu0 0
      %1864 = vmatpush.bf16.msra.mxu0 0
      %1865 = vmatpush.bf16.msra.mxu0 0
      %1866 = vmatpush.bf16.msra.mxu0 0
      %1867 = vmatpush.bf16.msra.mxu0 0
      %1868 = vmatpush.bf16.msra.mxu0 %v1834
      %1869 = vmatmul.bf16.gmra.mxu0 %v1825
      %v1870 = vpop.f32.mrf.mxu0
      %v1871 = vadd.f32 0.0, %v1870
      %v1872 = vpop.f32.mrf.mxu0
      %v1873 = vadd.f32 0.0, %v1872
      %1874 = vmatmul.bf16.gmra.mxu0 %v1828
      %v1875 = vpop.f32.mrf.mxu0
      %v1876 = vadd.f32 0.0, %v1875
      %v1877 = vpop.f32.mrf.mxu0
      %v1878 = vadd.f32 0.0, %v1877
      %1879 = vdwg.mxu0
      %1880 = vmatpush.bf16.msra.mxu0 0
      %1881 = vmatpush.bf16.msra.mxu0 0
      %1882 = vmatpush.bf16.msra.mxu0 0
      %1883 = vmatpush.bf16.msra.mxu0 0
      %1884 = vmatpush.bf16.msra.mxu0 0
      %1885 = vmatpush.bf16.msra.mxu0 0
      %1886 = vmatpush.bf16.msra.mxu0 0
      %1887 = vmatpush.bf16.msra.mxu0 %v1837
      %1888 = vmatmul.bf16.gmra.mxu0 %v1825
      %v1889 = vpop.f32.mrf.mxu0
      %v1890 = vadd.f32 0.0, %v1889
      %v1891 = vpop.f32.mrf.mxu0
      %v1892 = vadd.f32 0.0, %v1891
      %1893 = vmatmul.bf16.gmra.mxu0 %v1828
      %v1894 = vpop.f32.mrf.mxu0
      %v1895 = vadd.f32 0.0, %v1894
      %v1896 = vpop.f32.mrf.mxu0
      %v1897 = vadd.f32 0.0, %v1896
      %1898 = vdwg.mxu0
      %1899 = vmatpush.bf16.msra.mxu0 0
      %1900 = vmatpush.bf16.msra.mxu0 0
      %1901 = vmatpush.bf16.msra.mxu0 0
      %1902 = vmatpush.bf16.msra.mxu0 0
      %1903 = vmatpush.bf16.msra.mxu0 0
      %1904 = vmatpush.bf16.msra.mxu0 0
      %1905 = vmatpush.bf16.msra.mxu0 0
      %1906 = vmatpush.bf16.msra.mxu0 %v1840
      %1907 = vmatmul.bf16.gmra.mxu0 %v1825
      %v1908 = vpop.f32.mrf.mxu0
      %v1909 = vadd.f32 0.0, %v1908
      %v1910 = vpop.f32.mrf.mxu0
      %v1911 = vadd.f32 0.0, %v1910
      %1912 = vmatmul.bf16.gmra.mxu0 %v1828
      %v1913 = vpop.f32.mrf.mxu0
      %v1914 = vadd.f32 0.0, %v1913
      %v1915 = vpop.f32.mrf.mxu0
      %v1916 = vadd.f32 0.0, %v1915
      %1917 = vdwg.mxu0
      %v1918 = vadd.f32 %v1778, %v1852
      %v1919 = vadd.f32 %v1779, %v1871
      %v1920 = vadd.f32 %v1780, %v1890
      %v1921 = vadd.f32 %v1781, %v1909
      %v1922 = vadd.f32 %v1782, %v1854
      %v1923 = vadd.f32 %v1783, %v1873
      %v1924 = vadd.f32 %v1784, %v1892
      %v1925 = vadd.f32 %v1785, %v1911
      %v1926 = vadd.f32 %v1786, %v1857
      %v1927 = vadd.f32 %v1787, %v1876
      %v1928 = vadd.f32 %v1788, %v1895
      %v1929 = vadd.f32 %v1789, %v1914
      %v1930 = vadd.f32 %v1790, %v1859
      %v1931 = vadd.f32 %v1791, %v1878
      %v1932 = vadd.f32 %v1792, %v1897
      %v1933 = vadd.f32 %v1793, %v1916
      %s1934 = scalar_lea.vmem %s2, 192
      %v1935 = vld [vmem:[%s1934] sm:$0xf]
      %v1936 = vld [vmem:[%s1934 + $0x4] sm:$0xf]
      %v1937 = vld [vmem:[%s1934 + $0x8] sm:$0xf]
      %v1938 = vld [vmem:[%s1934 + $0xc] sm:$0xf]
      %v1943 = vunpack.c.l.b16 %v1935
      %v1944 = vunpack.c.l.b16 %v1936
      %v1945 = vunpack.c.l.b16 %v1937
      %v1946 = vunpack.c.l.b16 %v1938
      %v1947 = vpack.c.b16 %v1944, %v1943
      %v1948 = vpack.c.b16 %v1946, %v1945
      %1949 = vrot.lane.b32.xlu0 %v285, 74
      %v1950 = vpop.permute.xlu0 %1949
      %1951 = vrot.lane.b32.xlu0 %v287, 74
      %v1952 = vpop.permute.xlu0 %1951
      %1953 = vrot.lane.b32.xlu0 %v289, 74
      %v1954 = vpop.permute.xlu0 %1953
      %1955 = vrot.lane.b32.xlu0 %v291, 74
      %v1956 = vpop.permute.xlu0 %1955
      %1957 = vrot.lane.b32.xlu0 %v295, 74
      %v1958 = vpop.permute.xlu0 %1957
      %vm1959 = vcmask 605184
      %v1960 = vsel %vm1959, %v1950, %v1952
      %v1961 = vsel %vm1959, %v1952, %v1954
      %v1962 = vsel %vm1959, %v1954, %v1956
      %v1963 = vsel %vm1959, %v1956, %v1958
      %v1965 = vsel %vm335, %v1947, 0
      %v1968 = vsel %vm335, %v1948, 0
      %v1971 = vand.u32 %v1960, %v345
      %v1974 = vand.u32 %v1961, %v345
      %v1977 = vand.u32 %v1962, %v345
      %v1980 = vand.u32 %v1963, %v345
      %1982 = vmatpush.bf16.msra.mxu0 0
      %1983 = vmatpush.bf16.msra.mxu0 0
      %1984 = vmatpush.bf16.msra.mxu0 0
      %1985 = vmatpush.bf16.msra.mxu0 0
      %1986 = vmatpush.bf16.msra.mxu0 0
      %1987 = vmatpush.bf16.msra.mxu0 0
      %1988 = vmatpush.bf16.msra.mxu0 0
      %1989 = vmatpush.bf16.msra.mxu0 %v1971
      %1990 = vmatmul.bf16.gmra.mxu0 %v1965
      %v1991 = vpop.f32.mrf.mxu0
      %v1992 = vadd.f32 0.0, %v1991
      %v1993 = vpop.f32.mrf.mxu0
      %v1994 = vadd.f32 0.0, %v1993
      %1995 = vmatmul.bf16.gmra.mxu0 %v1968
      %v1996 = vpop.f32.mrf.mxu0
      %v1997 = vadd.f32 0.0, %v1996
      %v1998 = vpop.f32.mrf.mxu0
      %v1999 = vadd.f32 0.0, %v1998
      %2000 = vdwg.mxu0
      %2001 = vmatpush.bf16.msra.mxu0 0
      %2002 = vmatpush.bf16.msra.mxu0 0
      %2003 = vmatpush.bf16.msra.mxu0 0
      %2004 = vmatpush.bf16.msra.mxu0 0
      %2005 = vmatpush.bf16.msra.mxu0 0
      %2006 = vmatpush.bf16.msra.mxu0 0
      %2007 = vmatpush.bf16.msra.mxu0 0
      %2008 = vmatpush.bf16.msra.mxu0 %v1974
      %2009 = vmatmul.bf16.gmra.mxu0 %v1965
      %v2010 = vpop.f32.mrf.mxu0
      %v2011 = vadd.f32 0.0, %v2010
      %v2012 = vpop.f32.mrf.mxu0
      %v2013 = vadd.f32 0.0, %v2012
      %2014 = vmatmul.bf16.gmra.mxu0 %v1968
      %v2015 = vpop.f32.mrf.mxu0
      %v2016 = vadd.f32 0.0, %v2015
      %v2017 = vpop.f32.mrf.mxu0
      %v2018 = vadd.f32 0.0, %v2017
      %2019 = vdwg.mxu0
      %2020 = vmatpush.bf16.msra.mxu0 0
      %2021 = vmatpush.bf16.msra.mxu0 0
      %2022 = vmatpush.bf16.msra.mxu0 0
      %2023 = vmatpush.bf16.msra.mxu0 0
      %2024 = vmatpush.bf16.msra.mxu0 0
      %2025 = vmatpush.bf16.msra.mxu0 0
      %2026 = vmatpush.bf16.msra.mxu0 0
      %2027 = vmatpush.bf16.msra.mxu0 %v1977
      %2028 = vmatmul.bf16.gmra.mxu0 %v1965
      %v2029 = vpop.f32.mrf.mxu0
      %v2030 = vadd.f32 0.0, %v2029
      %v2031 = vpop.f32.mrf.mxu0
      %v2032 = vadd.f32 0.0, %v2031
      %2033 = vmatmul.bf16.gmra.mxu0 %v1968
      %v2034 = vpop.f32.mrf.mxu0
      %v2035 = vadd.f32 0.0, %v2034
      %v2036 = vpop.f32.mrf.mxu0
      %v2037 = vadd.f32 0.0, %v2036
      %2038 = vdwg.mxu0
      %2039 = vmatpush.bf16.msra.mxu0 0
      %2040 = vmatpush.bf16.msra.mxu0 0
      %2041 = vmatpush.bf16.msra.mxu0 0
      %2042 = vmatpush.bf16.msra.mxu0 0
      %2043 = vmatpush.bf16.msra.mxu0 0
      %2044 = vmatpush.bf16.msra.mxu0 0
      %2045 = vmatpush.bf16.msra.mxu0 0
      %2046 = vmatpush.bf16.msra.mxu0 %v1980
      %2047 = vmatmul.bf16.gmra.mxu0 %v1965
      %v2048 = vpop.f32.mrf.mxu0
      %v2049 = vadd.f32 0.0, %v2048
      %v2050 = vpop.f32.mrf.mxu0
      %v2051 = vadd.f32 0.0, %v2050
      %2052 = vmatmul.bf16.gmra.mxu0 %v1968
      %v2053 = vpop.f32.mrf.mxu0
      %v2054 = vadd.f32 0.0, %v2053
      %v2055 = vpop.f32.mrf.mxu0
      %v2056 = vadd.f32 0.0, %v2055
      %2057 = vdwg.mxu0
      %v2058 = vadd.f32 %v1918, %v1992
      %v2059 = vadd.f32 %v1919, %v2011
      %v2060 = vadd.f32 %v1920, %v2030
      %v2061 = vadd.f32 %v1921, %v2049
      %v2062 = vadd.f32 %v1922, %v1994
      %v2063 = vadd.f32 %v1923, %v2013
      %v2064 = vadd.f32 %v1924, %v2032
      %v2065 = vadd.f32 %v1925, %v2051
      %v2066 = vadd.f32 %v1926, %v1997
      %v2067 = vadd.f32 %v1927, %v2016
      %v2068 = vadd.f32 %v1928, %v2035
      %v2069 = vadd.f32 %v1929, %v2054
      %v2070 = vadd.f32 %v1930, %v1999
      %v2071 = vadd.f32 %v1931, %v2018
      %v2072 = vadd.f32 %v1932, %v2037
      %v2073 = vadd.f32 %v1933, %v2056
      %s2074 = scalar_lea.vmem %s2, 208
      %v2075 = vld [vmem:[%s2074] sm:$0xf]
      %v2076 = vld [vmem:[%s2074 + $0x4] sm:$0xf]
      %v2077 = vld [vmem:[%s2074 + $0x8] sm:$0xf]
      %v2078 = vld [vmem:[%s2074 + $0xc] sm:$0xf]
      %v2083 = vunpack.c.l.b16 %v2075
      %v2084 = vunpack.c.l.b16 %v2076
      %v2085 = vunpack.c.l.b16 %v2077
      %v2086 = vunpack.c.l.b16 %v2078
      %v2087 = vpack.c.b16 %v2084, %v2083
      %v2088 = vpack.c.b16 %v2086, %v2085
      %2089 = vrot.lane.b32.xlu0 %v285, 73
      %v2090 = vpop.permute.xlu0 %2089
      %2091 = vrot.lane.b32.xlu0 %v287, 73
      %v2092 = vpop.permute.xlu0 %2091
      %2093 = vrot.lane.b32.xlu0 %v289, 73
      %v2094 = vpop.permute.xlu0 %2093
      %2095 = vrot.lane.b32.xlu0 %v291, 73
      %v2096 = vpop.permute.xlu0 %2095
      %2097 = vrot.lane.b32.xlu0 %v295, 73
      %v2098 = vpop.permute.xlu0 %2097
      %vm2099 = vcmask 596992
      %v2100 = vsel %vm2099, %v2090, %v2092
      %v2101 = vsel %vm2099, %v2092, %v2094
      %v2102 = vsel %vm2099, %v2094, %v2096
      %v2103 = vsel %vm2099, %v2096, %v2098
      %v2105 = vsel %vm335, %v2087, 0
      %v2108 = vsel %vm335, %v2088, 0
      %v2111 = vand.u32 %v2100, %v345
      %v2114 = vand.u32 %v2101, %v345
      %v2117 = vand.u32 %v2102, %v345
      %v2120 = vand.u32 %v2103, %v345
      %2122 = vmatpush.bf16.msra.mxu0 0
      %2123 = vmatpush.bf16.msra.mxu0 0
      %2124 = vmatpush.bf16.msra.mxu0 0
      %2125 = vmatpush.bf16.msra.mxu0 0
      %2126 = vmatpush.bf16.msra.mxu0 0
      %2127 = vmatpush.bf16.msra.mxu0 0
      %2128 = vmatpush.bf16.msra.mxu0 0
      %2129 = vmatpush.bf16.msra.mxu0 %v2111
      %2130 = vmatmul.bf16.gmra.mxu0 %v2105
      %v2131 = vpop.f32.mrf.mxu0
      %v2132 = vadd.f32 0.0, %v2131
      %v2133 = vpop.f32.mrf.mxu0
      %v2134 = vadd.f32 0.0, %v2133
      %2135 = vmatmul.bf16.gmra.mxu0 %v2108
      %v2136 = vpop.f32.mrf.mxu0
      %v2137 = vadd.f32 0.0, %v2136
      %v2138 = vpop.f32.mrf.mxu0
      %v2139 = vadd.f32 0.0, %v2138
      %2140 = vdwg.mxu0
      %2141 = vmatpush.bf16.msra.mxu0 0
      %2142 = vmatpush.bf16.msra.mxu0 0
      %2143 = vmatpush.bf16.msra.mxu0 0
      %2144 = vmatpush.bf16.msra.mxu0 0
      %2145 = vmatpush.bf16.msra.mxu0 0
      %2146 = vmatpush.bf16.msra.mxu0 0
      %2147 = vmatpush.bf16.msra.mxu0 0
      %2148 = vmatpush.bf16.msra.mxu0 %v2114
      %2149 = vmatmul.bf16.gmra.mxu0 %v2105
      %v2150 = vpop.f32.mrf.mxu0
      %v2151 = vadd.f32 0.0, %v2150
      %v2152 = vpop.f32.mrf.mxu0
      %v2153 = vadd.f32 0.0, %v2152
      %2154 = vmatmul.bf16.gmra.mxu0 %v2108
      %v2155 = vpop.f32.mrf.mxu0
      %v2156 = vadd.f32 0.0, %v2155
      %v2157 = vpop.f32.mrf.mxu0
      %v2158 = vadd.f32 0.0, %v2157
      %2159 = vdwg.mxu0
      %2160 = vmatpush.bf16.msra.mxu0 0
      %2161 = vmatpush.bf16.msra.mxu0 0
      %2162 = vmatpush.bf16.msra.mxu0 0
      %2163 = vmatpush.bf16.msra.mxu0 0
      %2164 = vmatpush.bf16.msra.mxu0 0
      %2165 = vmatpush.bf16.msra.mxu0 0
      %2166 = vmatpush.bf16.msra.mxu0 0
      %2167 = vmatpush.bf16.msra.mxu0 %v2117
      %2168 = vmatmul.bf16.gmra.mxu0 %v2105
      %v2169 = vpop.f32.mrf.mxu0
      %v2170 = vadd.f32 0.0, %v2169
      %v2171 = vpop.f32.mrf.mxu0
      %v2172 = vadd.f32 0.0, %v2171
      %2173 = vmatmul.bf16.gmra.mxu0 %v2108
      %v2174 = vpop.f32.mrf.mxu0
      %v2175 = vadd.f32 0.0, %v2174
      %v2176 = vpop.f32.mrf.mxu0
      %v2177 = vadd.f32 0.0, %v2176
      %2178 = vdwg.mxu0
      %2179 = vmatpush.bf16.msra.mxu0 0
      %2180 = vmatpush.bf16.msra.mxu0 0
      %2181 = vmatpush.bf16.msra.mxu0 0
      %2182 = vmatpush.bf16.msra.mxu0 0
      %2183 = vmatpush.bf16.msra.mxu0 0
      %2184 = vmatpush.bf16.msra.mxu0 0
      %2185 = vmatpush.bf16.msra.mxu0 0
      %2186 = vmatpush.bf16.msra.mxu0 %v2120
      %2187 = vmatmul.bf16.gmra.mxu0 %v2105
      %v2188 = vpop.f32.mrf.mxu0
      %v2189 = vadd.f32 0.0, %v2188
      %v2190 = vpop.f32.mrf.mxu0
      %v2191 = vadd.f32 0.0, %v2190
      %2192 = vmatmul.bf16.gmra.mxu0 %v2108
      %v2193 = vpop.f32.mrf.mxu0
      %v2194 = vadd.f32 0.0, %v2193
      %v2195 = vpop.f32.mrf.mxu0
      %v2196 = vadd.f32 0.0, %v2195
      %2197 = vdwg.mxu0
      %v2198 = vadd.f32 %v2058, %v2132
      %v2199 = vadd.f32 %v2059, %v2151
      %v2200 = vadd.f32 %v2060, %v2170
      %v2201 = vadd.f32 %v2061, %v2189
      %v2202 = vadd.f32 %v2062, %v2134
      %v2203 = vadd.f32 %v2063, %v2153
      %v2204 = vadd.f32 %v2064, %v2172
      %v2205 = vadd.f32 %v2065, %v2191
      %v2206 = vadd.f32 %v2066, %v2137
      %v2207 = vadd.f32 %v2067, %v2156
      %v2208 = vadd.f32 %v2068, %v2175
      %v2209 = vadd.f32 %v2069, %v2194
      %v2210 = vadd.f32 %v2070, %v2139
      %v2211 = vadd.f32 %v2071, %v2158
      %v2212 = vadd.f32 %v2072, %v2177
      %v2213 = vadd.f32 %v2073, %v2196
      %s2214 = scalar_lea.vmem %s2, 224
      %v2215 = vld [vmem:[%s2214] sm:$0xf]
      %v2216 = vld [vmem:[%s2214 + $0x4] sm:$0xf]
      %v2217 = vld [vmem:[%s2214 + $0x8] sm:$0xf]
      %v2218 = vld [vmem:[%s2214 + $0xc] sm:$0xf]
      %v2223 = vunpack.c.l.b16 %v2215
      %v2224 = vunpack.c.l.b16 %v2216
      %v2225 = vunpack.c.l.b16 %v2217
      %v2226 = vunpack.c.l.b16 %v2218
      %v2227 = vpack.c.b16 %v2224, %v2223
      %v2228 = vpack.c.b16 %v2226, %v2225
      %2229 = vrot.lane.b32.xlu0 %v285, 72
      %v2230 = vpop.permute.xlu0 %2229
      %2231 = vrot.lane.b32.xlu0 %v287, 72
      %v2232 = vpop.permute.xlu0 %2231
      %2233 = vrot.lane.b32.xlu0 %v289, 72
      %v2234 = vpop.permute.xlu0 %2233
      %2235 = vrot.lane.b32.xlu0 %v291, 72
      %v2236 = vpop.permute.xlu0 %2235
      %2237 = vrot.lane.b32.xlu0 %v295, 72
      %v2238 = vpop.permute.xlu0 %2237
      %vm2239 = vcmask 588800
      %v2240 = vsel %vm2239, %v2230, %v2232
      %v2241 = vsel %vm2239, %v2232, %v2234
      %v2242 = vsel %vm2239, %v2234, %v2236
      %v2243 = vsel %vm2239, %v2236, %v2238
      %v2245 = vsel %vm335, %v2227, 0
      %v2248 = vsel %vm335, %v2228, 0
      %v2251 = vand.u32 %v2240, %v345
      %v2254 = vand.u32 %v2241, %v345
      %v2257 = vand.u32 %v2242, %v345
      %v2260 = vand.u32 %v2243, %v345
      %2262 = vmatpush.bf16.msra.mxu0 0
      %2263 = vmatpush.bf16.msra.mxu0 0
      %2264 = vmatpush.bf16.msra.mxu0 0
      %2265 = vmatpush.bf16.msra.mxu0 0
      %2266 = vmatpush.bf16.msra.mxu0 0
      %2267 = vmatpush.bf16.msra.mxu0 0
      %2268 = vmatpush.bf16.msra.mxu0 0
      %2269 = vmatpush.bf16.msra.mxu0 %v2251
      %2270 = vmatmul.bf16.gmra.mxu0 %v2245
      %v2271 = vpop.f32.mrf.mxu0
      %v2272 = vadd.f32 0.0, %v2271
      %v2273 = vpop.f32.mrf.mxu0
      %v2274 = vadd.f32 0.0, %v2273
      %2275 = vmatmul.bf16.gmra.mxu0 %v2248
      %v2276 = vpop.f32.mrf.mxu0
      %v2277 = vadd.f32 0.0, %v2276
      %v2278 = vpop.f32.mrf.mxu0
      %v2279 = vadd.f32 0.0, %v2278
      %2280 = vdwg.mxu0
      %2281 = vmatpush.bf16.msra.mxu0 0
      %2282 = vmatpush.bf16.msra.mxu0 0
      %2283 = vmatpush.bf16.msra.mxu0 0
      %2284 = vmatpush.bf16.msra.mxu0 0
      %2285 = vmatpush.bf16.msra.mxu0 0
      %2286 = vmatpush.bf16.msra.mxu0 0
      %2287 = vmatpush.bf16.msra.mxu0 0
      %2288 = vmatpush.bf16.msra.mxu0 %v2254
      %2289 = vmatmul.bf16.gmra.mxu0 %v2245
      %v2290 = vpop.f32.mrf.mxu0
      %v2291 = vadd.f32 0.0, %v2290
      %v2292 = vpop.f32.mrf.mxu0
      %v2293 = vadd.f32 0.0, %v2292
      %2294 = vmatmul.bf16.gmra.mxu0 %v2248
      %v2295 = vpop.f32.mrf.mxu0
      %v2296 = vadd.f32 0.0, %v2295
      %v2297 = vpop.f32.mrf.mxu0
      %v2298 = vadd.f32 0.0, %v2297
      %2299 = vdwg.mxu0
      %2300 = vmatpush.bf16.msra.mxu0 0
      %2301 = vmatpush.bf16.msra.mxu0 0
      %2302 = vmatpush.bf16.msra.mxu0 0
      %2303 = vmatpush.bf16.msra.mxu0 0
      %2304 = vmatpush.bf16.msra.mxu0 0
      %2305 = vmatpush.bf16.msra.mxu0 0
      %2306 = vmatpush.bf16.msra.mxu0 0
      %2307 = vmatpush.bf16.msra.mxu0 %v2257
      %2308 = vmatmul.bf16.gmra.mxu0 %v2245
      %v2309 = vpop.f32.mrf.mxu0
      %v2310 = vadd.f32 0.0, %v2309
      %v2311 = vpop.f32.mrf.mxu0
      %v2312 = vadd.f32 0.0, %v2311
      %2313 = vmatmul.bf16.gmra.mxu0 %v2248
      %v2314 = vpop.f32.mrf.mxu0
      %v2315 = vadd.f32 0.0, %v2314
      %v2316 = vpop.f32.mrf.mxu0
      %v2317 = vadd.f32 0.0, %v2316
      %2318 = vdwg.mxu0
      %2319 = vmatpush.bf16.msra.mxu0 0
      %2320 = vmatpush.bf16.msra.mxu0 0
      %2321 = vmatpush.bf16.msra.mxu0 0
      %2322 = vmatpush.bf16.msra.mxu0 0
      %2323 = vmatpush.bf16.msra.mxu0 0
      %2324 = vmatpush.bf16.msra.mxu0 0
      %2325 = vmatpush.bf16.msra.mxu0 0
      %2326 = vmatpush.bf16.msra.mxu0 %v2260
      %2327 = vmatmul.bf16.gmra.mxu0 %v2245
      %v2328 = vpop.f32.mrf.mxu0
      %v2329 = vadd.f32 0.0, %v2328
      %v2330 = vpop.f32.mrf.mxu0
      %v2331 = vadd.f32 0.0, %v2330
      %2332 = vmatmul.bf16.gmra.mxu0 %v2248
      %v2333 = vpop.f32.mrf.mxu0
      %v2334 = vadd.f32 0.0, %v2333
      %v2335 = vpop.f32.mrf.mxu0
      %v2336 = vadd.f32 0.0, %v2335
      %2337 = vdwg.mxu0
      %v2338 = vadd.f32 %v2198, %v2272
      %v2339 = vadd.f32 %v2199, %v2291
      %v2340 = vadd.f32 %v2200, %v2310
      %v2341 = vadd.f32 %v2201, %v2329
      %v2342 = vadd.f32 %v2202, %v2274
      %v2343 = vadd.f32 %v2203, %v2293
      %v2344 = vadd.f32 %v2204, %v2312
      %v2345 = vadd.f32 %v2205, %v2331
      %v2346 = vadd.f32 %v2206, %v2277
      %v2347 = vadd.f32 %v2207, %v2296
      %v2348 = vadd.f32 %v2208, %v2315
      %v2349 = vadd.f32 %v2209, %v2334
      %v2350 = vadd.f32 %v2210, %v2279
      %v2351 = vadd.f32 %v2211, %v2298
      %v2352 = vadd.f32 %v2212, %v2317
      %v2353 = vadd.f32 %v2213, %v2336
      %s2354 = scalar_lea.vmem %s2, 240
      %v2355 = vld [vmem:[%s2354] sm:$0xf]
      %v2356 = vld [vmem:[%s2354 + $0x4] sm:$0xf]
      %v2357 = vld [vmem:[%s2354 + $0x8] sm:$0xf]
      %v2358 = vld [vmem:[%s2354 + $0xc] sm:$0xf]
      %v2363 = vunpack.c.l.b16 %v2355
      %v2364 = vunpack.c.l.b16 %v2356
      %v2365 = vunpack.c.l.b16 %v2357
      %v2366 = vunpack.c.l.b16 %v2358
      %v2367 = vpack.c.b16 %v2364, %v2363
      %v2368 = vpack.c.b16 %v2366, %v2365
      %2369 = vrot.lane.b32.xlu0 %v285, 71
      %v2370 = vpop.permute.xlu0 %2369
      %2371 = vrot.lane.b32.xlu0 %v287, 71
      %v2372 = vpop.permute.xlu0 %2371
      %2373 = vrot.lane.b32.xlu0 %v289, 71
      %v2374 = vpop.permute.xlu0 %2373
      %2375 = vrot.lane.b32.xlu0 %v291, 71
      %v2376 = vpop.permute.xlu0 %2375
      %2377 = vrot.lane.b32.xlu0 %v295, 71
      %v2378 = vpop.permute.xlu0 %2377
      %vm2379 = vcmask 580608
      %v2380 = vsel %vm2379, %v2370, %v2372
      %v2381 = vsel %vm2379, %v2372, %v2374
      %v2382 = vsel %vm2379, %v2374, %v2376
      %v2383 = vsel %vm2379, %v2376, %v2378
      %v2385 = vsel %vm335, %v2367, 0
      %v2388 = vsel %vm335, %v2368, 0
      %v2391 = vand.u32 %v2380, %v345
      %v2394 = vand.u32 %v2381, %v345
      %v2397 = vand.u32 %v2382, %v345
      %v2400 = vand.u32 %v2383, %v345
      %2402 = vmatpush.bf16.msra.mxu0 0
      %2403 = vmatpush.bf16.msra.mxu0 0
      %2404 = vmatpush.bf16.msra.mxu0 0
      %2405 = vmatpush.bf16.msra.mxu0 0
      %2406 = vmatpush.bf16.msra.mxu0 0
      %2407 = vmatpush.bf16.msra.mxu0 0
      %2408 = vmatpush.bf16.msra.mxu0 0
      %2409 = vmatpush.bf16.msra.mxu0 %v2391
      %2410 = vmatmul.bf16.gmra.mxu0 %v2385
      %v2411 = vpop.f32.mrf.mxu0
      %v2412 = vadd.f32 0.0, %v2411
      %v2413 = vpop.f32.mrf.mxu0
      %v2414 = vadd.f32 0.0, %v2413
      %2415 = vmatmul.bf16.gmra.mxu0 %v2388
      %v2416 = vpop.f32.mrf.mxu0
      %v2417 = vadd.f32 0.0, %v2416
      %v2418 = vpop.f32.mrf.mxu0
      %v2419 = vadd.f32 0.0, %v2418
      %2420 = vdwg.mxu0
      %2421 = vmatpush.bf16.msra.mxu0 0
      %2422 = vmatpush.bf16.msra.mxu0 0
      %2423 = vmatpush.bf16.msra.mxu0 0
      %2424 = vmatpush.bf16.msra.mxu0 0
      %2425 = vmatpush.bf16.msra.mxu0 0
      %2426 = vmatpush.bf16.msra.mxu0 0
      %2427 = vmatpush.bf16.msra.mxu0 0
      %2428 = vmatpush.bf16.msra.mxu0 %v2394
      %2429 = vmatmul.bf16.gmra.mxu0 %v2385
      %v2430 = vpop.f32.mrf.mxu0
      %v2431 = vadd.f32 0.0, %v2430
      %v2432 = vpop.f32.mrf.mxu0
      %v2433 = vadd.f32 0.0, %v2432
      %2434 = vmatmul.bf16.gmra.mxu0 %v2388
      %v2435 = vpop.f32.mrf.mxu0
      %v2436 = vadd.f32 0.0, %v2435
      %v2437 = vpop.f32.mrf.mxu0
      %v2438 = vadd.f32 0.0, %v2437
      %2439 = vdwg.mxu0
      %2440 = vmatpush.bf16.msra.mxu0 0
      %2441 = vmatpush.bf16.msra.mxu0 0
      %2442 = vmatpush.bf16.msra.mxu0 0
      %2443 = vmatpush.bf16.msra.mxu0 0
      %2444 = vmatpush.bf16.msra.mxu0 0
      %2445 = vmatpush.bf16.msra.mxu0 0
      %2446 = vmatpush.bf16.msra.mxu0 0
      %2447 = vmatpush.bf16.msra.mxu0 %v2397
      %2448 = vmatmul.bf16.gmra.mxu0 %v2385
      %v2449 = vpop.f32.mrf.mxu0
      %v2450 = vadd.f32 0.0, %v2449
      %v2451 = vpop.f32.mrf.mxu0
      %v2452 = vadd.f32 0.0, %v2451
      %2453 = vmatmul.bf16.gmra.mxu0 %v2388
      %v2454 = vpop.f32.mrf.mxu0
      %v2455 = vadd.f32 0.0, %v2454
      %v2456 = vpop.f32.mrf.mxu0
      %v2457 = vadd.f32 0.0, %v2456
      %2458 = vdwg.mxu0
      %2459 = vmatpush.bf16.msra.mxu0 0
      %2460 = vmatpush.bf16.msra.mxu0 0
      %2461 = vmatpush.bf16.msra.mxu0 0
      %2462 = vmatpush.bf16.msra.mxu0 0
      %2463 = vmatpush.bf16.msra.mxu0 0
      %2464 = vmatpush.bf16.msra.mxu0 0
      %2465 = vmatpush.bf16.msra.mxu0 0
      %2466 = vmatpush.bf16.msra.mxu0 %v2400
      %2467 = vmatmul.bf16.gmra.mxu0 %v2385
      %v2468 = vpop.f32.mrf.mxu0
      %v2469 = vadd.f32 0.0, %v2468
      %v2470 = vpop.f32.mrf.mxu0
      %v2471 = vadd.f32 0.0, %v2470
      %2472 = vmatmul.bf16.gmra.mxu0 %v2388
      %v2473 = vpop.f32.mrf.mxu0
      %v2474 = vadd.f32 0.0, %v2473
      %v2475 = vpop.f32.mrf.mxu0
      %v2476 = vadd.f32 0.0, %v2475
      %2477 = vdwg.mxu0
      %v2478 = vadd.f32 %v2338, %v2412
      %v2479 = vadd.f32 %v2339, %v2431
      %v2480 = vadd.f32 %v2340, %v2450
      %v2481 = vadd.f32 %v2341, %v2469
      %v2482 = vadd.f32 %v2342, %v2414
      %v2483 = vadd.f32 %v2343, %v2433
      %v2484 = vadd.f32 %v2344, %v2452
      %v2485 = vadd.f32 %v2345, %v2471
      %v2486 = vadd.f32 %v2346, %v2417
      %v2487 = vadd.f32 %v2347, %v2436
      %v2488 = vadd.f32 %v2348, %v2455
      %v2489 = vadd.f32 %v2349, %v2474
      %v2490 = vadd.f32 %v2350, %v2419
      %v2491 = vadd.f32 %v2351, %v2438
      %v2492 = vadd.f32 %v2352, %v2457
      %v2493 = vadd.f32 %v2353, %v2476
      %2495 = vset.pattern.permute.xlu0 0
      %2496 = vperm.xlu0 %2495, %v297
      %v2497 = vpop.permute.xlu0 %2496
      %2500 = vset.pattern.permute.xlu0 0
      %2501 = vperm.xlu0 %2500, %v298
      %v2502 = vpop.permute.xlu0 %2501
      %2505 = vset.pattern.permute.xlu0 0
      %2506 = vperm.xlu0 %2505, %v299
      %v2507 = vpop.permute.xlu0 %2506
      %2510 = vset.pattern.permute.xlu0 0
      %2511 = vperm.xlu0 %2510, %v300
      %v2512 = vpop.permute.xlu0 %2511
      %v2514 = vadd.f32 %v2478, %v2497
      %v2515 = vadd.f32 %v2479, %v2497
      %v2516 = vadd.f32 %v2480, %v2497
      %v2517 = vadd.f32 %v2481, %v2497
      %v2518 = vadd.f32 %v2482, %v2502
      %v2519 = vadd.f32 %v2483, %v2502
      %v2520 = vadd.f32 %v2484, %v2502
      %v2521 = vadd.f32 %v2485, %v2502
      %v2522 = vadd.f32 %v2486, %v2507
      %v2523 = vadd.f32 %v2487, %v2507
      %v2524 = vadd.f32 %v2488, %v2507
      %v2525 = vadd.f32 %v2489, %v2507
      %v2526 = vadd.f32 %v2490, %v2512
      %v2527 = vadd.f32 %v2491, %v2512
      %v2528 = vadd.f32 %v2492, %v2512
      %v2529 = vadd.f32 %v2493, %v2512
      %vm2530 = vcmp.ge.f32.partialorder %v2514, 0.0
      %vm2531 = vcmp.ge.f32.partialorder %v2515, 0.0
      %vm2532 = vcmp.ge.f32.partialorder %v2516, 0.0
      %vm2533 = vcmp.ge.f32.partialorder %v2517, 0.0
      %vm2534 = vcmp.ge.f32.partialorder %v2518, 0.0
      %vm2535 = vcmp.ge.f32.partialorder %v2519, 0.0
      %vm2536 = vcmp.ge.f32.partialorder %v2520, 0.0
      %vm2537 = vcmp.ge.f32.partialorder %v2521, 0.0
      %vm2538 = vcmp.ge.f32.partialorder %v2522, 0.0
      %vm2539 = vcmp.ge.f32.partialorder %v2523, 0.0
      %vm2540 = vcmp.ge.f32.partialorder %v2524, 0.0
      %vm2541 = vcmp.ge.f32.partialorder %v2525, 0.0
      %vm2542 = vcmp.ge.f32.partialorder %v2526, 0.0
      %vm2543 = vcmp.ge.f32.partialorder %v2527, 0.0
      %vm2544 = vcmp.ge.f32.partialorder %v2528, 0.0
      %vm2545 = vcmp.ge.f32.partialorder %v2529, 0.0
      %v2546 = vmul.f32 %v2514, 0.2
      %v2547 = vmul.f32 %v2515, 0.2
      %v2548 = vmul.f32 %v2516, 0.2
      %v2549 = vmul.f32 %v2517, 0.2
      %v2550 = vmul.f32 %v2518, 0.2
      %v2551 = vmul.f32 %v2519, 0.2
      %v2552 = vmul.f32 %v2520, 0.2
      %v2553 = vmul.f32 %v2521, 0.2
      %v2554 = vmul.f32 %v2522, 0.2
      %v2555 = vmul.f32 %v2523, 0.2
      %v2556 = vmul.f32 %v2524, 0.2
      %v2557 = vmul.f32 %v2525, 0.2
      %v2558 = vmul.f32 %v2526, 0.2
      %v2559 = vmul.f32 %v2527, 0.2
      %v2560 = vmul.f32 %v2528, 0.2
      %v2561 = vmul.f32 %v2529, 0.2
      %v2562 = vsel %vm2530, %v2514, %v2546
      %v2563 = vsel %vm2531, %v2515, %v2547
      %v2564 = vsel %vm2532, %v2516, %v2548
      %v2565 = vsel %vm2533, %v2517, %v2549
      %v2566 = vsel %vm2534, %v2518, %v2550
      %v2567 = vsel %vm2535, %v2519, %v2551
      %v2568 = vsel %vm2536, %v2520, %v2552
      %v2569 = vsel %vm2537, %v2521, %v2553
      %v2570 = vsel %vm2538, %v2522, %v2554
      %v2571 = vsel %vm2539, %v2523, %v2555
      %v2572 = vsel %vm2540, %v2524, %v2556
      %v2573 = vsel %vm2541, %v2525, %v2557
      %v2574 = vsel %vm2542, %v2526, %v2558
      %v2575 = vsel %vm2543, %v2527, %v2559
      %v2576 = vsel %vm2544, %v2528, %v2560
      %v2577 = vsel %vm2545, %v2529, %v2561
      %v2578 = vpack.c.bf16 %v2563, %v2562
      %v2579 = vpack.c.bf16 %v2565, %v2564
      %v2580 = vpack.c.bf16 %v2567, %v2566
      %v2581 = vpack.c.bf16 %v2569, %v2568
      %v2582 = vpack.c.bf16 %v2571, %v2570
      %v2583 = vpack.c.bf16 %v2573, %v2572
      %v2584 = vpack.c.bf16 %v2575, %v2574
      %v2585 = vpack.c.bf16 %v2577, %v2576
      %2586 = vst [vmem:[%s278] sm:$0xff] %v2578
      %2587 = vst [vmem:[%s278 + $0x8] sm:$0xff] %v2579
      %2588 = vst [vmem:[%s278 + $0x10] sm:$0xff] %v2580
      %2589 = vst [vmem:[%s278 + $0x18] sm:$0xff] %v2581
      %2590 = vst [vmem:[%s278 + $0x20] sm:$0xff] %v2582
      %2591 = vst [vmem:[%s278 + $0x28] sm:$0xff] %v2583
      %2592 = vst [vmem:[%s278 + $0x30] sm:$0xff] %v2584
      %2593 = vst [vmem:[%s278 + $0x38] sm:$0xff] %v2585
      %s2594 = smul.u32 4, %s20
      %p2595 = scmp.lt.s32.totalorder %s19, 1
      %s2596 = scalar_select %p2595, %s19, 1
      %p2597 = scmp.lt.s32.totalorder %s2594, 3
      %s2598 = scalar_select %p2597, %s2594, 3
      %s2599 = smul.addr %s2596, 16
      %s2600 = sadd.s32 %s2598, %s2599
      %s2601 = smul.addr %s2600, 4
      %s2602 = scalar_lea.vmem %s4, %s2601
      // Predicated region
      $region37: #{_lambda_.5} parent=35 // pred_check
        %p2603 = pneg %p147
      $region38: #{_lambda_.5} parent=35 // pred_check_branch
        %2605 = sbr.rel (%p2603) target = $region40
      $region39: #{_lambda_.5} parent=35 // pred_region
        %s2606 = smul.u32 4, %s20
      $region40: #{_lambda_.5} parent=35 // pred_fallthru
        _
    $region36: #{_lambda_.5} parent=5 // pred_fallthru
      _
    %p2607 = scmp.le.s32.totalorder 2, %s10
    // Predicated region
    $region41: #{_lambda_.5} parent=5 // pred_check
      %p2608 = pneg %p2607
    $region42: #{_lambda_.5} parent=5 // pred_check_branch
      %2610 = sbr.rel (%p2608) target = $region44
    $region43: #{_lambda_.5} parent=5 // pred_region
      %s2611 = ssub.s32 %s10, 2
      // Predicated region
      $region45: #{_lambda_.5} parent=43 // pred_check
        %p2612 = pneg %p153
      $region46: #{_lambda_.5} parent=43 // pred_check_branch
        %2614 = sbr.rel (%p2612) target = $region48
      $region47: #{_lambda_.5} parent=43 // pred_region
        %s2615 = smul.u32 4, %s22
        %p2616 = scmp.lt.s32.totalorder %s21, 1
        %s2617 = scalar_select %p2616, %s21, 1
        %p2618 = scmp.lt.s32.totalorder %s2615, 3
        %s2619 = scalar_select %p2618, %s2615, 3
        %s2620 = smul.addr %s2617, 16
        %s2621 = sadd.s32 %s2619, %s2620
        %s2622 = smul.addr %s2621, 4
        %s2623 = scalar_lea.vmem %s4, %s2622
      $region48: #{_lambda_.5} parent=43 // pred_fallthru
        _
    $region44: #{_lambda_.5} parent=5 // pred_fallthru
      _
  $region6: #{_lambda_.5} parent=0 // loop_footer
    %s14 = sadd.s32 1, %s10
  $region7: #{_lambda_.5} parent=0 // loop_footer_branch
    %9 = sbr.rel target = $region3
  $region8: #{_lambda_.5} parent=0 // loop_exit
    _

// kernel: tile.6
$region0: #{tile.6}
  #allocation0 [shape = 's32[1]{0}', space=sflag, size = 0x4, scoped, tag = 'scoped memory for tile.6']
  %s0 = inlined_call_operand.vmem [shape: f32[64], index: 0, kind: input, shape index: {}]
  %s1 = inlined_call_operand.vmem [shape: f32[2,64], index: 1, kind: output, shape index: {}]
  // Predicated region
  $region2: #{tile.6} parent=0 // pred_check
    _
  $region3: #{tile.6} parent=0 // pred_check_branch
    %3 = sbr.rel (0) target = $region5
  $region4: #{tile.6} parent=0 // pred_region
    _
  $region5: #{tile.6} parent=0 // pred_fallthru
    _
  %v4 = vld [vmem:[%s0] ss:$0 sm:$0xff]
  %5 = vst [vmem:[%s1] sm:$0x3] %v4

// kernel: tile.7
$region0: #{tile.7}
  %s0 = inlined_call_operand.vmem [shape: f32[2,64], index: 0, kind: input, shape index: {}]
  %s1 = inlined_call_operand.vmem [shape: f32[1,128], index: 1, kind: output, shape index: {}]
  $region1: #{tile.7} parent=0
    #allocation0 [shape = 'u8[4096]{0}', space=vmem, size = 0x1000, scoped, tag = 'scoped mem for output reshape']
    #allocation1 [shape = 'u8[4096]{0}', space=vmem, size = 0x1000, scoped, tag = 'scoped mem for input reshape']
    %s3 = ssub.s32 4, 1
    %v4 = vld [vmem:[%s0] sm:%s3]
    %5 = vst [vmem:[#allocation1] sm:%s3] %v4
    %v6 = vld [vmem:[#allocation1] sm:$0x1]
    %vm7 = vcmask 523264
    %8 = vst.msk [vmem:[#allocation0] sm:$0x1] %vm7, %v6
    %s9 = scalar_lea.vmem [#allocation1], 1
    %v10 = vld [vmem:[%s9] sm:$0x1]
    %11 = vrot.lane.b32.xlu0 %v10, 64
    %v12 = vpop.permute.xlu0 %11
    %vm13 = vcmask 1048064
    %14 = vst.msk [vmem:[#allocation0] sm:$0x1] %vm13, %v12
    %s16 = ssub.s32 2, 1
    %v17 = vld [vmem:[#allocation0] sm:%s16]
    %s19 = ssub.s32 2, 1
    %20 = vst [vmem:[%s1] sm:%s19] %v17

// kernel: _lambda_.6
$region0: #{_lambda_.6}
  #allocation0 [shape = 'u32[]', space=smem, size = 0x4, offset = 0x4, fixed_abs, tag = 'smem constant byte address 0x4 - core index']
  #allocation1 [shape = 'u32[72,128]{1,0:T(1,128)}', space=vmem, size = 0x9000, scoped, tag = 'internal scratch']
  %s0 = inlined_call_operand.vmem [shape: bf16[49,1024], index: 0, kind: input, shape index: {}]
  %s1 = inlined_call_operand.vmem [shape: bf16[1024,128], index: 1, kind: input, shape index: {}]
  %s2 = inlined_call_operand.vmem [shape: f32[1,128], index: 2, kind: input, shape index: {}]
  %s3 = inlined_call_operand.vmem [shape: bf16[49,128], index: 3, kind: output, shape index: {}]
  %s4 = sld [smem:[#allocation0]]
  $region59: #{_lambda_.6} parent=0
    _
  %s6 = ssub.s32 1, %s4
  %s7 = scalar_select 0, %s6, %s4
  $region1: #{_lambda_.6} parent=0
    #allocation2 [shape = 'u8[16384]{0}', space=vmem, size = 0x4000, scoped, tag = 'output window, operand 0, single buffered']
    // Predicated region
    $region2: #{_lambda_.6} parent=1 // pred_check
      _
    $region3: #{_lambda_.6} parent=1 // pred_check_branch
      %9 = sbr.rel (0) target = $region5
    $region4: #{_lambda_.6} parent=1 // pred_region
      _
    $region5: #{_lambda_.6} parent=1 // pred_fallthru
      _
    // Predicated region
    $region6: #{_lambda_.6} parent=1 // pred_check
      _
    $region7: #{_lambda_.6} parent=1 // pred_check_branch
      %11 = sbr.rel (0) target = $region9
    $region8: #{_lambda_.6} parent=1 // pred_region
      _
    $region9: #{_lambda_.6} parent=1 // pred_fallthru
      _
    // Predicated region
    $region10: #{_lambda_.6} parent=1 // pred_check
      _
    $region11: #{_lambda_.6} parent=1 // pred_check_branch
      %13 = sbr.rel (0) target = $region13
    $region12: #{_lambda_.6} parent=1 // pred_region
      _
    $region13: #{_lambda_.6} parent=1 // pred_fallthru
      _
    %v14 = vld [vmem:[%s0] sm:$0xff]
    %v15 = vld [vmem:[%s0 + $0x8] sm:$0xff]
    %v16 = vld [vmem:[%s0 + $0x10] sm:$0xff]
    %v17 = vld [vmem:[%s0 + $0x18] sm:$0xff]
    %v18 = vld [vmem:[%s0 + $0x20] sm:$0xff]
    %v19 = vld [vmem:[%s0 + $0x28] sm:$0xff]
    %v20 = vld [vmem:[%s0 + $0x30] sm:$0xff]
    %v21 = vld [vmem:[%s0 + $0x38] sm:$0xff]
    %v22 = vld [vmem:[%s0 + $0x40] sm:$0xff]
    %v23 = vld [vmem:[%s0 + $0x48] sm:$0xff]
    %v24 = vld [vmem:[%s0 + $0x50] sm:$0xff]
    %v25 = vld [vmem:[%s0 + $0x58] sm:$0xff]
    %v26 = vld [vmem:[%s0 + $0x60] sm:$0xff]
    %v27 = vld [vmem:[%s0 + $0x68] sm:$0xff]
    %v28 = vld [vmem:[%s0 + $0x70] sm:$0xff]
    %v29 = vld [vmem:[%s0 + $0x78] sm:$0xff]
    %v30 = vld [vmem:[%s0 + $0x80] sm:$0xff]
    %v31 = vld [vmem:[%s0 + $0x88] sm:$0xff]
    %v32 = vld [vmem:[%s0 + $0x90] sm:$0xff]
    %v33 = vld [vmem:[%s0 + $0x98] sm:$0xff]
    %v34 = vld [vmem:[%s0 + $0xa0] sm:$0xff]
    %v35 = vld [vmem:[%s0 + $0xa8] sm:$0xff]
    %v36 = vld [vmem:[%s0 + $0xb0] sm:$0xff]
    %v37 = vld [vmem:[%s0 + $0xb8] sm:$0xff]
    %v38 = vld [vmem:[%s0 + $0xc0] sm:$0xff]
    %v39 = vld [vmem:[%s0 + $0xc8] sm:$0xff]
    %v40 = vld [vmem:[%s0 + $0xd0] sm:$0xff]
    %v41 = vld [vmem:[%s0 + $0xd8] sm:$0xff]
    %v42 = vld [vmem:[%s0 + $0xe0] sm:$0xff]
    %v43 = vld [vmem:[%s0 + $0xe8] sm:$0xff]
    %v44 = vld [vmem:[%s0 + $0xf0] sm:$0xff]
    %v45 = vld [vmem:[%s0 + $0xf8] sm:$0xff]
    %v46 = vld [vmem:[%s1] sm:$0xf]
    %v47 = vld [vmem:[%s1 + $0x4] sm:$0xf]
    %v48 = vld [vmem:[%s1 + $0x8] sm:$0xf]
    %v49 = vld [vmem:[%s1 + $0xc] sm:$0xf]
    %v50 = vld [vmem:[%s1 + $0x10] sm:$0xf]
    %v51 = vld [vmem:[%s1 + $0x14] sm:$0xf]
    %v52 = vld [vmem:[%s1 + $0x18] sm:$0xf]
    %v53 = vld [vmem:[%s1 + $0x1c] sm:$0xf]
    %v54 = vld [vmem:[%s1 + $0x20] sm:$0xf]
    %v55 = vld [vmem:[%s1 + $0x24] sm:$0xf]
    %v56 = vld [vmem:[%s1 + $0x28] sm:$0xf]
    %v57 = vld [vmem:[%s1 + $0x2c] sm:$0xf]
    %v58 = vld [vmem:[%s1 + $0x30] sm:$0xf]
    %v59 = vld [vmem:[%s1 + $0x34] sm:$0xf]
    %v60 = vld [vmem:[%s1 + $0x38] sm:$0xf]
    %v61 = vld [vmem:[%s1 + $0x3c] sm:$0xf]
    %v62 = vld [vmem:[%s1 + $0x40] sm:$0xf]
    %v63 = vld [vmem:[%s1 + $0x44] sm:$0xf]
    %v64 = vld [vmem:[%s1 + $0x48] sm:$0xf]
    %v65 = vld [vmem:[%s1 + $0x4c] sm:$0xf]
    %v66 = vld [vmem:[%s1 + $0x50] sm:$0xf]
    %v67 = vld [vmem:[%s1 + $0x54] sm:$0xf]
    %v68 = vld [vmem:[%s1 + $0x58] sm:$0xf]
    %v69 = vld [vmem:[%s1 + $0x5c] sm:$0xf]
    %v70 = vld [vmem:[%s1 + $0x60] sm:$0xf]
    %v71 = vld [vmem:[%s1 + $0x64] sm:$0xf]
    %v72 = vld [vmem:[%s1 + $0x68] sm:$0xf]
    %v73 = vld [vmem:[%s1 + $0x6c] sm:$0xf]
    %v74 = vld [vmem:[%s1 + $0x70] sm:$0xf]
    %v75 = vld [vmem:[%s1 + $0x74] sm:$0xf]
    %v76 = vld [vmem:[%s1 + $0x78] sm:$0xf]
    %v77 = vld [vmem:[%s1 + $0x7c] sm:$0xf]
    %v78 = vld [vmem:[%s1 + $0x80] sm:$0xf]
    %v79 = vld [vmem:[%s1 + $0x84] sm:$0xf]
    %v80 = vld [vmem:[%s1 + $0x88] sm:$0xf]
    %v81 = vld [vmem:[%s1 + $0x8c] sm:$0xf]
    %v82 = vld [vmem:[%s1 + $0x90] sm:$0xf]
    %v83 = vld [vmem:[%s1 + $0x94] sm:$0xf]
    %v84 = vld [vmem:[%s1 + $0x98] sm:$0xf]
    %v85 = vld [vmem:[%s1 + $0x9c] sm:$0xf]
    %v86 = vld [vmem:[%s1 + $0xa0] sm:$0xf]
    %v87 = vld [vmem:[%s1 + $0xa4] sm:$0xf]
    %v88 = vld [vmem:[%s1 + $0xa8] sm:$0xf]
    %v89 = vld [vmem:[%s1 + $0xac] sm:$0xf]
    %v90 = vld [vmem:[%s1 + $0xb0] sm:$0xf]
    %v91 = vld [vmem:[%s1 + $0xb4] sm:$0xf]
    %v92 = vld [vmem:[%s1 + $0xb8] sm:$0xf]
    %v93 = vld [vmem:[%s1 + $0xbc] sm:$0xf]
    %v94 = vld [vmem:[%s1 + $0xc0] sm:$0xf]
    %v95 = vld [vmem:[%s1 + $0xc4] sm:$0xf]
    %v96 = vld [vmem:[%s1 + $0xc8] sm:$0xf]
    %v97 = vld [vmem:[%s1 + $0xcc] sm:$0xf]
    %v98 = vld [vmem:[%s1 + $0xd0] sm:$0xf]
    %v99 = vld [vmem:[%s1 + $0xd4] sm:$0xf]
    %v100 = vld [vmem:[%s1 + $0xd8] sm:$0xf]
    %v101 = vld [vmem:[%s1 + $0xdc] sm:$0xf]
    %v102 = vld [vmem:[%s1 + $0xe0] sm:$0xf]
    %v103 = vld [vmem:[%s1 + $0xe4] sm:$0xf]
    %v104 = vld [vmem:[%s1 + $0xe8] sm:$0xf]
    %v105 = vld [vmem:[%s1 + $0xec] sm:$0xf]
    %v106 = vld [vmem:[%s1 + $0xf0] sm:$0xf]
    %v107 = vld [vmem:[%s1 + $0xf4] sm:$0xf]
    %v108 = vld [vmem:[%s1 + $0xf8] sm:$0xf]
    %v109 = vld [vmem:[%s1 + $0xfc] sm:$0xf]
    %v110 = vld [vmem:[%s1 + $0x100] sm:$0xf]
    %v111 = vld [vmem:[%s1 + $0x104] sm:$0xf]
    %v112 = vld [vmem:[%s1 + $0x108] sm:$0xf]
    %v113 = vld [vmem:[%s1 + $0x10c] sm:$0xf]
    %v114 = vld [vmem:[%s1 + $0x110] sm:$0xf]
    %v115 = vld [vmem:[%s1 + $0x114] sm:$0xf]
    %v116 = vld [vmem:[%s1 + $0x118] sm:$0xf]
    %v117 = vld [vmem:[%s1 + $0x11c] sm:$0xf]
    %v118 = vld [vmem:[%s1 + $0x120] sm:$0xf]
    %v119 = vld [vmem:[%s1 + $0x124] sm:$0xf]
    %v120 = vld [vmem:[%s1 + $0x128] sm:$0xf]
    %v121 = vld [vmem:[%s1 + $0x12c] sm:$0xf]
    %v122 = vld [vmem:[%s1 + $0x130] sm:$0xf]
    %v123 = vld [vmem:[%s1 + $0x134] sm:$0xf]
    %v124 = vld [vmem:[%s1 + $0x138] sm:$0xf]
    %v125 = vld [vmem:[%s1 + $0x13c] sm:$0xf]
    %v126 = vld [vmem:[%s1 + $0x140] sm:$0xf]
    %v127 = vld [vmem:[%s1 + $0x144] sm:$0xf]
    %v128 = vld [vmem:[%s1 + $0x148] sm:$0xf]
    %v129 = vld [vmem:[%s1 + $0x14c] sm:$0xf]
    %v130 = vld [vmem:[%s1 + $0x150] sm:$0xf]
    %v131 = vld [vmem:[%s1 + $0x154] sm:$0xf]
    %v132 = vld [vmem:[%s1 + $0x158] sm:$0xf]
    %v133 = vld [vmem:[%s1 + $0x15c] sm:$0xf]
    %v134 = vld [vmem:[%s1 + $0x160] sm:$0xf]
    %v135 = vld [vmem:[%s1 + $0x164] sm:$0xf]
    %v136 = vld [vmem:[%s1 + $0x168] sm:$0xf]
    %v137 = vld [vmem:[%s1 + $0x16c] sm:$0xf]
    %v138 = vld [vmem:[%s1 + $0x170] sm:$0xf]
    %v139 = vld [vmem:[%s1 + $0x174] sm:$0xf]
    %v140 = vld [vmem:[%s1 + $0x178] sm:$0xf]
    %v141 = vld [vmem:[%s1 + $0x17c] sm:$0xf]
    %v142 = vld [vmem:[%s1 + $0x180] sm:$0xf]
    %v143 = vld [vmem:[%s1 + $0x184] sm:$0xf]
    %v144 = vld [vmem:[%s1 + $0x188] sm:$0xf]
    %v145 = vld [vmem:[%s1 + $0x18c] sm:$0xf]
    %v146 = vld [vmem:[%s1 + $0x190] sm:$0xf]
    %v147 = vld [vmem:[%s1 + $0x194] sm:$0xf]
    %v148 = vld [vmem:[%s1 + $0x198] sm:$0xf]
    %v149 = vld [vmem:[%s1 + $0x19c] sm:$0xf]
    %v150 = vld [vmem:[%s1 + $0x1a0] sm:$0xf]
    %v151 = vld [vmem:[%s1 + $0x1a4] sm:$0xf]
    %v152 = vld [vmem:[%s1 + $0x1a8] sm:$0xf]
    %v153 = vld [vmem:[%s1 + $0x1ac] sm:$0xf]
    %v154 = vld [vmem:[%s1 + $0x1b0] sm:$0xf]
    %v155 = vld [vmem:[%s1 + $0x1b4] sm:$0xf]
    %v156 = vld [vmem:[%s1 + $0x1b8] sm:$0xf]
    %v157 = vld [vmem:[%s1 + $0x1bc] sm:$0xf]
    %v158 = vld [vmem:[%s1 + $0x1c0] sm:$0xf]
    %v159 = vld [vmem:[%s1 + $0x1c4] sm:$0xf]
    %v160 = vld [vmem:[%s1 + $0x1c8] sm:$0xf]
    %v161 = vld [vmem:[%s1 + $0x1cc] sm:$0xf]
    %v162 = vld [vmem:[%s1 + $0x1d0] sm:$0xf]
    %v163 = vld [vmem:[%s1 + $0x1d4] sm:$0xf]
    %v164 = vld [vmem:[%s1 + $0x1d8] sm:$0xf]
    %v165 = vld [vmem:[%s1 + $0x1dc] sm:$0xf]
    %v166 = vld [vmem:[%s1 + $0x1e0] sm:$0xf]
    %v167 = vld [vmem:[%s1 + $0x1e4] sm:$0xf]
    %v168 = vld [vmem:[%s1 + $0x1e8] sm:$0xf]
    %v169 = vld [vmem:[%s1 + $0x1ec] sm:$0xf]
    %v170 = vld [vmem:[%s1 + $0x1f0] sm:$0xf]
    %v171 = vld [vmem:[%s1 + $0x1f4] sm:$0xf]
    %v172 = vld [vmem:[%s1 + $0x1f8] sm:$0xf]
    %v173 = vld [vmem:[%s1 + $0x1fc] sm:$0xf]
    %v174 = vld [vmem:[%s2] sm:$0x1]
    %v176 = vperm.slane %v174, 0
    %v210 = vunpack.c.l.b16 %v14
    %v211 = vunpack.c.h.b16 %v14
    %v212 = vunpack.c.l.b16 %v15
    %v213 = vunpack.c.h.b16 %v15
    %v214 = vunpack.c.l.b16 %v16
    %v215 = vunpack.c.h.b16 %v16
    %v216 = vunpack.c.l.b16 %v17
    %v217 = vunpack.c.h.b16 %v17
    %v218 = vunpack.c.l.b16 %v18
    %v219 = vunpack.c.h.b16 %v18
    %v220 = vunpack.c.l.b16 %v19
    %v221 = vunpack.c.h.b16 %v19
    %v222 = vunpack.c.l.b16 %v20
    %v223 = vunpack.c.h.b16 %v20
    %v224 = vunpack.c.l.b16 %v21
    %v225 = vunpack.c.h.b16 %v21
    %v226 = vunpack.c.l.b16 %v22
    %v227 = vunpack.c.h.b16 %v22
    %v228 = vunpack.c.l.b16 %v23
    %v229 = vunpack.c.h.b16 %v23
    %v230 = vunpack.c.l.b16 %v24
    %v231 = vunpack.c.h.b16 %v24
    %v232 = vunpack.c.l.b16 %v25
    %v233 = vunpack.c.h.b16 %v25
    %v234 = vunpack.c.l.b16 %v26
    %v235 = vunpack.c.h.b16 %v26
    %v236 = vunpack.c.l.b16 %v27
    %v237 = vunpack.c.h.b16 %v27
    %v238 = vunpack.c.l.b16 %v28
    %v239 = vunpack.c.h.b16 %v28
    %v240 = vunpack.c.l.b16 %v29
    %v241 = vunpack.c.h.b16 %v29
    %v242 = vunpack.c.l.b16 %v30
    %v243 = vunpack.c.h.b16 %v30
    %v244 = vunpack.c.l.b16 %v31
    %v245 = vunpack.c.h.b16 %v31
    %v246 = vunpack.c.l.b16 %v32
    %v247 = vunpack.c.h.b16 %v32
    %v248 = vunpack.c.l.b16 %v33
    %v249 = vunpack.c.h.b16 %v33
    %v250 = vunpack.c.l.b16 %v34
    %v251 = vunpack.c.h.b16 %v34
    %v252 = vunpack.c.l.b16 %v35
    %v253 = vunpack.c.h.b16 %v35
    %v254 = vunpack.c.l.b16 %v36
    %v255 = vunpack.c.h.b16 %v36
    %v256 = vunpack.c.l.b16 %v37
    %v257 = vunpack.c.h.b16 %v37
    %v258 = vunpack.c.l.b16 %v38
    %v259 = vunpack.c.h.b16 %v38
    %v260 = vunpack.c.l.b16 %v39
    %v261 = vunpack.c.h.b16 %v39
    %v262 = vunpack.c.l.b16 %v40
    %v263 = vunpack.c.h.b16 %v40
    %v264 = vunpack.c.l.b16 %v41
    %v265 = vunpack.c.h.b16 %v41
    %v266 = vunpack.c.l.b16 %v42
    %v267 = vunpack.c.h.b16 %v42
    %v268 = vunpack.c.l.b16 %v43
    %v269 = vunpack.c.h.b16 %v43
    %v270 = vunpack.c.l.b16 %v44
    %v271 = vunpack.c.h.b16 %v44
    %v272 = vunpack.c.l.b16 %v45
    %v273 = vunpack.c.h.b16 %v45
    %v274 = vpack.c.b16 %v218, %v210
    %v275 = vpack.c.b16 %v219, %v211
    %v276 = vpack.c.b16 %v220, %v212
    %v277 = vpack.c.b16 %v221, %v213
    %v278 = vpack.c.b16 %v222, %v214
    %v279 = vpack.c.b16 %v223, %v215
    %v280 = vpack.c.b16 %v224, %v216
    %v281 = vpack.c.b16 %v225, %v217
    %v282 = vpack.c.b16 %v234, %v226
    %v283 = vpack.c.b16 %v235, %v227
    %v284 = vpack.c.b16 %v236, %v228
    %v285 = vpack.c.b16 %v237, %v229
    %v286 = vpack.c.b16 %v238, %v230
    %v287 = vpack.c.b16 %v239, %v231
    %v288 = vpack.c.b16 %v240, %v232
    %v289 = vpack.c.b16 %v241, %v233
    %v290 = vpack.c.b16 %v250, %v242
    %v291 = vpack.c.b16 %v251, %v243
    %v292 = vpack.c.b16 %v252, %v244
    %v293 = vpack.c.b16 %v253, %v245
    %v294 = vpack.c.b16 %v254, %v246
    %v295 = vpack.c.b16 %v255, %v247
    %v296 = vpack.c.b16 %v256, %v248
    %v297 = vpack.c.b16 %v257, %v249
    %v298 = vpack.c.b16 %v266, %v258
    %v299 = vpack.c.b16 %v267, %v259
    %v300 = vpack.c.b16 %v268, %v260
    %v301 = vpack.c.b16 %v269, %v261
    %v302 = vpack.c.b16 %v270, %v262
    %v303 = vpack.c.b16 %v271, %v263
    %v304 = vpack.c.b16 %v272, %v264
    %v305 = vpack.c.b16 %v273, %v265
    %v466 = vunpack.c.l.b16 %v46
    %v467 = vunpack.c.l.b16 %v47
    %v468 = vunpack.c.l.b16 %v48
    %v469 = vunpack.c.l.b16 %v49
    %v470 = vunpack.c.l.b16 %v50
    %v471 = vunpack.c.l.b16 %v51
    %v472 = vunpack.c.l.b16 %v52
    %v473 = vunpack.c.l.b16 %v53
    %v474 = vunpack.c.l.b16 %v54
    %v475 = vunpack.c.l.b16 %v55
    %v476 = vunpack.c.l.b16 %v56
    %v477 = vunpack.c.l.b16 %v57
    %v478 = vunpack.c.l.b16 %v58
    %v479 = vunpack.c.l.b16 %v59
    %v480 = vunpack.c.l.b16 %v60
    %v481 = vunpack.c.l.b16 %v61
    %v482 = vunpack.c.l.b16 %v62
    %v483 = vunpack.c.l.b16 %v63
    %v484 = vunpack.c.l.b16 %v64
    %v485 = vunpack.c.l.b16 %v65
    %v486 = vunpack.c.l.b16 %v66
    %v487 = vunpack.c.l.b16 %v67
    %v488 = vunpack.c.l.b16 %v68
    %v489 = vunpack.c.l.b16 %v69
    %v490 = vunpack.c.l.b16 %v70
    %v491 = vunpack.c.l.b16 %v71
    %v492 = vunpack.c.l.b16 %v72
    %v493 = vunpack.c.l.b16 %v73
    %v494 = vunpack.c.l.b16 %v74
    %v495 = vunpack.c.l.b16 %v75
    %v496 = vunpack.c.l.b16 %v76
    %v497 = vunpack.c.l.b16 %v77
    %v498 = vunpack.c.l.b16 %v78
    %v499 = vunpack.c.l.b16 %v79
    %v500 = vunpack.c.l.b16 %v80
    %v501 = vunpack.c.l.b16 %v81
    %v502 = vunpack.c.l.b16 %v82
    %v503 = vunpack.c.l.b16 %v83
    %v504 = vunpack.c.l.b16 %v84
    %v505 = vunpack.c.l.b16 %v85
    %v506 = vunpack.c.l.b16 %v86
    %v507 = vunpack.c.l.b16 %v87
    %v508 = vunpack.c.l.b16 %v88
    %v509 = vunpack.c.l.b16 %v89
    %v510 = vunpack.c.l.b16 %v90
    %v511 = vunpack.c.l.b16 %v91
    %v512 = vunpack.c.l.b16 %v92
    %v513 = vunpack.c.l.b16 %v93
    %v514 = vunpack.c.l.b16 %v94
    %v515 = vunpack.c.l.b16 %v95
    %v516 = vunpack.c.l.b16 %v96
    %v517 = vunpack.c.l.b16 %v97
    %v518 = vunpack.c.l.b16 %v98
    %v519 = vunpack.c.l.b16 %v99
    %v520 = vunpack.c.l.b16 %v100
    %v521 = vunpack.c.l.b16 %v101
    %v522 = vunpack.c.l.b16 %v102
    %v523 = vunpack.c.l.b16 %v103
    %v524 = vunpack.c.l.b16 %v104
    %v525 = vunpack.c.l.b16 %v105
    %v526 = vunpack.c.l.b16 %v106
    %v527 = vunpack.c.l.b16 %v107
    %v528 = vunpack.c.l.b16 %v108
    %v529 = vunpack.c.l.b16 %v109
    %v530 = vunpack.c.l.b16 %v110
    %v531 = vunpack.c.l.b16 %v111
    %v532 = vunpack.c.l.b16 %v112
    %v533 = vunpack.c.l.b16 %v113
    %v534 = vunpack.c.l.b16 %v114
    %v535 = vunpack.c.l.b16 %v115
    %v536 = vunpack.c.l.b16 %v116
    %v537 = vunpack.c.l.b16 %v117
    %v538 = vunpack.c.l.b16 %v118
    %v539 = vunpack.c.l.b16 %v119
    %v540 = vunpack.c.l.b16 %v120
    %v541 = vunpack.c.l.b16 %v121
    %v542 = vunpack.c.l.b16 %v122
    %v543 = vunpack.c.l.b16 %v123
    %v544 = vunpack.c.l.b16 %v124
    %v545 = vunpack.c.l.b16 %v125
    %v546 = vunpack.c.l.b16 %v126
    %v547 = vunpack.c.l.b16 %v127
    %v548 = vunpack.c.l.b16 %v128
    %v549 = vunpack.c.l.b16 %v129
    %v550 = vunpack.c.l.b16 %v130
    %v551 = vunpack.c.l.b16 %v131
    %v552 = vunpack.c.l.b16 %v132
    %v553 = vunpack.c.l.b16 %v133
    %v554 = vunpack.c.l.b16 %v134
    %v555 = vunpack.c.l.b16 %v135
    %v556 = vunpack.c.l.b16 %v136
    %v557 = vunpack.c.l.b16 %v137
    %v558 = vunpack.c.l.b16 %v138
    %v559 = vunpack.c.l.b16 %v139
    %v560 = vunpack.c.l.b16 %v140
    %v561 = vunpack.c.l.b16 %v141
    %v562 = vunpack.c.l.b16 %v142
    %v563 = vunpack.c.l.b16 %v143
    %v564 = vunpack.c.l.b16 %v144
    %v565 = vunpack.c.l.b16 %v145
    %v566 = vunpack.c.l.b16 %v146
    %v567 = vunpack.c.l.b16 %v147
    %v568 = vunpack.c.l.b16 %v148
    %v569 = vunpack.c.l.b16 %v149
    %v570 = vunpack.c.l.b16 %v150
    %v571 = vunpack.c.l.b16 %v151
    %v572 = vunpack.c.l.b16 %v152
    %v573 = vunpack.c.l.b16 %v153
    %v574 = vunpack.c.l.b16 %v154
    %v575 = vunpack.c.l.b16 %v155
    %v576 = vunpack.c.l.b16 %v156
    %v577 = vunpack.c.l.b16 %v157
    %v578 = vunpack.c.l.b16 %v158
    %v579 = vunpack.c.l.b16 %v159
    %v580 = vunpack.c.l.b16 %v160
    %v581 = vunpack.c.l.b16 %v161
    %v582 = vunpack.c.l.b16 %v162
    %v583 = vunpack.c.l.b16 %v163
    %v584 = vunpack.c.l.b16 %v164
    %v585 = vunpack.c.l.b16 %v165
    %v586 = vunpack.c.l.b16 %v166
    %v587 = vunpack.c.l.b16 %v167
    %v588 = vunpack.c.l.b16 %v168
    %v589 = vunpack.c.l.b16 %v169
    %v590 = vunpack.c.l.b16 %v170
    %v591 = vunpack.c.l.b16 %v171
    %v592 = vunpack.c.l.b16 %v172
    %v593 = vunpack.c.l.b16 %v173
    %v594 = vpack.c.b16 %v467, %v466
    %v595 = vpack.c.b16 %v469, %v468
    %v596 = vpack.c.b16 %v471, %v470
    %v597 = vpack.c.b16 %v473, %v472
    %v598 = vpack.c.b16 %v475, %v474
    %v599 = vpack.c.b16 %v477, %v476
    %v600 = vpack.c.b16 %v479, %v478
    %v601 = vpack.c.b16 %v481, %v480
    %v602 = vpack.c.b16 %v483, %v482
    %v603 = vpack.c.b16 %v485, %v484
    %v604 = vpack.c.b16 %v487, %v486
    %v605 = vpack.c.b16 %v489, %v488
    %v606 = vpack.c.b16 %v491, %v490
    %v607 = vpack.c.b16 %v493, %v492
    %v608 = vpack.c.b16 %v495, %v494
    %v609 = vpack.c.b16 %v497, %v496
    %v610 = vpack.c.b16 %v499, %v498
    %v611 = vpack.c.b16 %v501, %v500
    %v612 = vpack.c.b16 %v503, %v502
    %v613 = vpack.c.b16 %v505, %v504
    %v614 = vpack.c.b16 %v507, %v506
    %v615 = vpack.c.b16 %v509, %v508
    %v616 = vpack.c.b16 %v511, %v510
    %v617 = vpack.c.b16 %v513, %v512
    %v618 = vpack.c.b16 %v515, %v514
    %v619 = vpack.c.b16 %v517, %v516
    %v620 = vpack.c.b16 %v519, %v518
    %v621 = vpack.c.b16 %v521, %v520
    %v622 = vpack.c.b16 %v523, %v522
    %v623 = vpack.c.b16 %v525, %v524
    %v624 = vpack.c.b16 %v527, %v526
    %v625 = vpack.c.b16 %v529, %v528
    %v626 = vpack.c.b16 %v531, %v530
    %v627 = vpack.c.b16 %v533, %v532
    %v628 = vpack.c.b16 %v535, %v534
    %v629 = vpack.c.b16 %v537, %v536
    %v630 = vpack.c.b16 %v539, %v538
    %v631 = vpack.c.b16 %v541, %v540
    %v632 = vpack.c.b16 %v543, %v542
    %v633 = vpack.c.b16 %v545, %v544
    %v634 = vpack.c.b16 %v547, %v546
    %v635 = vpack.c.b16 %v549, %v548
    %v636 = vpack.c.b16 %v551, %v550
    %v637 = vpack.c.b16 %v553, %v552
    %v638 = vpack.c.b16 %v555, %v554
    %v639 = vpack.c.b16 %v557, %v556
    %v640 = vpack.c.b16 %v559, %v558
    %v641 = vpack.c.b16 %v561, %v560
    %v642 = vpack.c.b16 %v563, %v562
    %v643 = vpack.c.b16 %v565, %v564
    %v644 = vpack.c.b16 %v567, %v566
    %v645 = vpack.c.b16 %v569, %v568
    %v646 = vpack.c.b16 %v571, %v570
    %v647 = vpack.c.b16 %v573, %v572
    %v648 = vpack.c.b16 %v575, %v574
    %v649 = vpack.c.b16 %v577, %v576
    %v650 = vpack.c.b16 %v579, %v578
    %v651 = vpack.c.b16 %v581, %v580
    %v652 = vpack.c.b16 %v583, %v582
    %v653 = vpack.c.b16 %v585, %v584
    %v654 = vpack.c.b16 %v587, %v586
    %v655 = vpack.c.b16 %v589, %v588
    %v656 = vpack.c.b16 %v591, %v590
    %v657 = vpack.c.b16 %v593, %v592
    %722 = vmatpush.bf16.msra.mxu0 %v601
    %723 = vmatpush.bf16.msra.mxu0 %v600
    %724 = vmatpush.bf16.msra.mxu0 %v599
    %725 = vmatpush.bf16.msra.mxu0 %v598
    %726 = vmatpush.bf16.msra.mxu0 %v597
    %727 = vmatpush.bf16.msra.mxu0 %v596
    %728 = vmatpush.bf16.msra.mxu0 %v595
    %729 = vmatpush.bf16.msra.mxu0 %v594
    %730 = vmatmul.bf16.gmra.mxu0 %v274
    %v731 = vpop.f32.mrf.mxu0
    %v732 = vadd.f32 %v176, %v731
    %v733 = vpop.f32.mrf.mxu0
    %v734 = vadd.f32 %v176, %v733
    %735 = vmatmul.bf16.gmra.mxu0 %v282
    %v736 = vpop.f32.mrf.mxu0
    %v737 = vadd.f32 %v176, %v736
    %v738 = vpop.f32.mrf.mxu0
    %v739 = vadd.f32 %v176, %v738
    %740 = vmatmul.bf16.gmra.mxu0 %v290
    %v741 = vpop.f32.mrf.mxu0
    %v742 = vadd.f32 %v176, %v741
    %v743 = vpop.f32.mrf.mxu0
    %v744 = vadd.f32 %v176, %v743
    %745 = vmatmul.bf16.gmra.mxu0 %v298
    %v746 = vpop.f32.mrf.mxu0
    %v747 = vadd.f32 %v176, %v746
    %v748 = vpop.f32.mrf.mxu0
    %v749 = vadd.f32 %v176, %v748
    %750 = vdwg.mxu0
    %751 = vmatpush.bf16.msra.mxu0 %v609
    %752 = vmatpush.bf16.msra.mxu0 %v608
    %753 = vmatpush.bf16.msra.mxu0 %v607
    %754 = vmatpush.bf16.msra.mxu0 %v606
    %755 = vmatpush.bf16.msra.mxu0 %v605
    %756 = vmatpush.bf16.msra.mxu0 %v604
    %757 = vmatpush.bf16.msra.mxu0 %v603
    %758 = vmatpush.bf16.msra.mxu0 %v602
    %759 = vmatmul.bf16.gmra.mxu0 %v275
    %v760 = vpop.f32.mrf.mxu0
    %v761 = vadd.f32 %v732, %v760
    %v762 = vpop.f32.mrf.mxu0
    %v763 = vadd.f32 %v734, %v762
    %764 = vmatmul.bf16.gmra.mxu0 %v283
    %v765 = vpop.f32.mrf.mxu0
    %v766 = vadd.f32 %v737, %v765
    %v767 = vpop.f32.mrf.mxu0
    %v768 = vadd.f32 %v739, %v767
    %769 = vmatmul.bf16.gmra.mxu0 %v291
    %v770 = vpop.f32.mrf.mxu0
    %v771 = vadd.f32 %v742, %v770
    %v772 = vpop.f32.mrf.mxu0
    %v773 = vadd.f32 %v744, %v772
    %774 = vmatmul.bf16.gmra.mxu0 %v299
    %v775 = vpop.f32.mrf.mxu0
    %v776 = vadd.f32 %v747, %v775
    %v777 = vpop.f32.mrf.mxu0
    %v778 = vadd.f32 %v749, %v777
    %779 = vdwg.mxu0
    %780 = vmatpush.bf16.msra.mxu0 %v617
    %781 = vmatpush.bf16.msra.mxu0 %v616
    %782 = vmatpush.bf16.msra.mxu0 %v615
    %783 = vmatpush.bf16.msra.mxu0 %v614
    %784 = vmatpush.bf16.msra.mxu0 %v613
    %785 = vmatpush.bf16.msra.mxu0 %v612
    %786 = vmatpush.bf16.msra.mxu0 %v611
    %787 = vmatpush.bf16.msra.mxu0 %v610
    %788 = vmatmul.bf16.gmra.mxu0 %v276
    %v789 = vpop.f32.mrf.mxu0
    %v790 = vadd.f32 %v761, %v789
    %v791 = vpop.f32.mrf.mxu0
    %v792 = vadd.f32 %v763, %v791
    %793 = vmatmul.bf16.gmra.mxu0 %v284
    %v794 = vpop.f32.mrf.mxu0
    %v795 = vadd.f32 %v766, %v794
    %v796 = vpop.f32.mrf.mxu0
    %v797 = vadd.f32 %v768, %v796
    %798 = vmatmul.bf16.gmra.mxu0 %v292
    %v799 = vpop.f32.mrf.mxu0
    %v800 = vadd.f32 %v771, %v799
    %v801 = vpop.f32.mrf.mxu0
    %v802 = vadd.f32 %v773, %v801
    %803 = vmatmul.bf16.gmra.mxu0 %v300
    %v804 = vpop.f32.mrf.mxu0
    %v805 = vadd.f32 %v776, %v804
    %v806 = vpop.f32.mrf.mxu0
    %v807 = vadd.f32 %v778, %v806
    %808 = vdwg.mxu0
    %809 = vmatpush.bf16.msra.mxu0 %v625
    %810 = vmatpush.bf16.msra.mxu0 %v624
    %811 = vmatpush.bf16.msra.mxu0 %v623
    %812 = vmatpush.bf16.msra.mxu0 %v622
    %813 = vmatpush.bf16.msra.mxu0 %v621
    %814 = vmatpush.bf16.msra.mxu0 %v620
    %815 = vmatpush.bf16.msra.mxu0 %v619
    %816 = vmatpush.bf16.msra.mxu0 %v618
    %817 = vmatmul.bf16.gmra.mxu0 %v277
    %v818 = vpop.f32.mrf.mxu0
    %v819 = vadd.f32 %v790, %v818
    %v820 = vpop.f32.mrf.mxu0
    %v821 = vadd.f32 %v792, %v820
    %822 = vmatmul.bf16.gmra.mxu0 %v285
    %v823 = vpop.f32.mrf.mxu0
    %v824 = vadd.f32 %v795, %v823
    %v825 = vpop.f32.mrf.mxu0
    %v826 = vadd.f32 %v797, %v825
    %827 = vmatmul.bf16.gmra.mxu0 %v293
    %v828 = vpop.f32.mrf.mxu0
    %v829 = vadd.f32 %v800, %v828
    %v830 = vpop.f32.mrf.mxu0
    %v831 = vadd.f32 %v802, %v830
    %832 = vmatmul.bf16.gmra.mxu0 %v301
    %v833 = vpop.f32.mrf.mxu0
    %v834 = vadd.f32 %v805, %v833
    %v835 = vpop.f32.mrf.mxu0
    %v836 = vadd.f32 %v807, %v835
    %837 = vdwg.mxu0
    %838 = vmatpush.bf16.msra.mxu0 %v633
    %839 = vmatpush.bf16.msra.mxu0 %v632
    %840 = vmatpush.bf16.msra.mxu0 %v631
    %841 = vmatpush.bf16.msra.mxu0 %v630
    %842 = vmatpush.bf16.msra.mxu0 %v629
    %843 = vmatpush.bf16.msra.mxu0 %v628
    %844 = vmatpush.bf16.msra.mxu0 %v627
    %845 = vmatpush.bf16.msra.mxu0 %v626
    %846 = vmatmul.bf16.gmra.mxu0 %v278
    %v847 = vpop.f32.mrf.mxu0
    %v848 = vadd.f32 %v819, %v847
    %v849 = vpop.f32.mrf.mxu0
    %v850 = vadd.f32 %v821, %v849
    %851 = vmatmul.bf16.gmra.mxu0 %v286
    %v852 = vpop.f32.mrf.mxu0
    %v853 = vadd.f32 %v824, %v852
    %v854 = vpop.f32.mrf.mxu0
    %v855 = vadd.f32 %v826, %v854
    %856 = vmatmul.bf16.gmra.mxu0 %v294
    %v857 = vpop.f32.mrf.mxu0
    %v858 = vadd.f32 %v829, %v857
    %v859 = vpop.f32.mrf.mxu0
    %v860 = vadd.f32 %v831, %v859
    %861 = vmatmul.bf16.gmra.mxu0 %v302
    %v862 = vpop.f32.mrf.mxu0
    %v863 = vadd.f32 %v834, %v862
    %v864 = vpop.f32.mrf.mxu0
    %v865 = vadd.f32 %v836, %v864
    %866 = vdwg.mxu0
    %867 = vmatpush.bf16.msra.mxu0 %v641
    %868 = vmatpush.bf16.msra.mxu0 %v640
    %869 = vmatpush.bf16.msra.mxu0 %v639
    %870 = vmatpush.bf16.msra.mxu0 %v638
    %871 = vmatpush.bf16.msra.mxu0 %v637
    %872 = vmatpush.bf16.msra.mxu0 %v636
    %873 = vmatpush.bf16.msra.mxu0 %v635
    %874 = vmatpush.bf16.msra.mxu0 %v634
    %875 = vmatmul.bf16.gmra.mxu0 %v279
    %v876 = vpop.f32.mrf.mxu0
    %v877 = vadd.f32 %v848, %v876
    %v878 = vpop.f32.mrf.mxu0
    %v879 = vadd.f32 %v850, %v878
    %880 = vmatmul.bf16.gmra.mxu0 %v287
    %v881 = vpop.f32.mrf.mxu0
    %v882 = vadd.f32 %v853, %v881
    %v883 = vpop.f32.mrf.mxu0
    %v884 = vadd.f32 %v855, %v883
    %885 = vmatmul.bf16.gmra.mxu0 %v295
    %v886 = vpop.f32.mrf.mxu0
    %v887 = vadd.f32 %v858, %v886
    %v888 = vpop.f32.mrf.mxu0
    %v889 = vadd.f32 %v860, %v888
    %890 = vmatmul.bf16.gmra.mxu0 %v303
    %v891 = vpop.f32.mrf.mxu0
    %v892 = vadd.f32 %v863, %v891
    %v893 = vpop.f32.mrf.mxu0
    %v894 = vadd.f32 %v865, %v893
    %895 = vdwg.mxu0
    %896 = vmatpush.bf16.msra.mxu0 %v649
    %897 = vmatpush.bf16.msra.mxu0 %v648
    %898 = vmatpush.bf16.msra.mxu0 %v647
    %899 = vmatpush.bf16.msra.mxu0 %v646
    %900 = vmatpush.bf16.msra.mxu0 %v645
    %901 = vmatpush.bf16.msra.mxu0 %v644
    %902 = vmatpush.bf16.msra.mxu0 %v643
    %903 = vmatpush.bf16.msra.mxu0 %v642
    %904 = vmatmul.bf16.gmra.mxu0 %v280
    %v905 = vpop.f32.mrf.mxu0
    %v906 = vadd.f32 %v877, %v905
    %v907 = vpop.f32.mrf.mxu0
    %v908 = vadd.f32 %v879, %v907
    %909 = vmatmul.bf16.gmra.mxu0 %v288
    %v910 = vpop.f32.mrf.mxu0
    %v911 = vadd.f32 %v882, %v910
    %v912 = vpop.f32.mrf.mxu0
    %v913 = vadd.f32 %v884, %v912
    %914 = vmatmul.bf16.gmra.mxu0 %v296
    %v915 = vpop.f32.mrf.mxu0
    %v916 = vadd.f32 %v887, %v915
    %v917 = vpop.f32.mrf.mxu0
    %v918 = vadd.f32 %v889, %v917
    %919 = vmatmul.bf16.gmra.mxu0 %v304
    %v920 = vpop.f32.mrf.mxu0
    %v921 = vadd.f32 %v892, %v920
    %v922 = vpop.f32.mrf.mxu0
    %v923 = vadd.f32 %v894, %v922
    %924 = vdwg.mxu0
    %925 = vmatpush.bf16.msra.mxu0 %v657
    %926 = vmatpush.bf16.msra.mxu0 %v656
    %927 = vmatpush.bf16.msra.mxu0 %v655
    %928 = vmatpush.bf16.msra.mxu0 %v654
    %929 = vmatpush.bf16.msra.mxu0 %v653
    %930 = vmatpush.bf16.msra.mxu0 %v652
    %931 = vmatpush.bf16.msra.mxu0 %v651
    %932 = vmatpush.bf16.msra.mxu0 %v650
    %933 = vmatmul.bf16.gmra.mxu0 %v281
    %v934 = vpop.f32.mrf.mxu0
    %v935 = vadd.f32 %v906, %v934
    %v936 = vpop.f32.mrf.mxu0
    %v937 = vadd.f32 %v908, %v936
    %938 = vmatmul.bf16.gmra.mxu0 %v289
    %v939 = vpop.f32.mrf.mxu0
    %v940 = vadd.f32 %v911, %v939
    %v941 = vpop.f32.mrf.mxu0
    %v942 = vadd.f32 %v913, %v941
    %943 = vmatmul.bf16.gmra.mxu0 %v297
    %v944 = vpop.f32.mrf.mxu0
    %v945 = vadd.f32 %v916, %v944
    %v946 = vpop.f32.mrf.mxu0
    %v947 = vadd.f32 %v918, %v946
    %948 = vmatmul.bf16.gmra.mxu0 %v305
    %v949 = vpop.f32.mrf.mxu0
    %v950 = vadd.f32 %v921, %v949
    %v951 = vpop.f32.mrf.mxu0
    %v952 = vadd.f32 %v923, %v951
    %953 = vdwg.mxu0
    %vm954 = vcmp.ge.f32.partialorder %v935, 0.0
    %vm955 = vcmp.ge.f32.partialorder %v937, 0.0
    %vm956 = vcmp.ge.f32.partialorder %v940, 0.0
    %vm957 = vcmp.ge.f32.partialorder %v942, 0.0
    %vm958 = vcmp.ge.f32.partialorder %v945, 0.0
    %vm959 = vcmp.ge.f32.partialorder %v947, 0.0
    %vm960 = vcmp.ge.f32.partialorder %v950, 0.0
    %vm961 = vcmp.ge.f32.partialorder %v952, 0.0
    %v962 = vmul.f32 %v935, 0.2
    %v963 = vmul.f32 %v937, 0.2
    %v964 = vmul.f32 %v940, 0.2
    %v965 = vmul.f32 %v942, 0.2
    %v966 = vmul.f32 %v945, 0.2
    %v967 = vmul.f32 %v947, 0.2
    %v968 = vmul.f32 %v950, 0.2
    %v969 = vmul.f32 %v952, 0.2
    %v970 = vsel %vm954, %v935, %v962
    %v971 = vsel %vm955, %v937, %v963
    %v972 = vsel %vm956, %v940, %v964
    %v973 = vsel %vm957, %v942, %v965
    %v974 = vsel %vm958, %v945, %v966
    %v975 = vsel %vm959, %v947, %v967
    %v976 = vsel %vm960, %v950, %v968
    %v977 = vsel %vm961, %v952, %v969
    %v978 = vpack.c.bf16 %v970, %v970
    %v979 = vpack.c.bf16 %v971, %v971
    %v980 = vpack.c.bf16 %v972, %v972
    %v981 = vpack.c.bf16 %v973, %v973
    %v982 = vpack.c.bf16 %v974, %v974
    %v983 = vpack.c.bf16 %v975, %v975
    %v984 = vpack.c.bf16 %v976, %v976
    %v985 = vpack.c.bf16 %v977, %v977
    %986 = vst [vmem:[#allocation2] sm:$0xf] %v978
    %987 = vst [vmem:[#allocation2 + $0x4] sm:$0xf] %v979
    %988 = vst [vmem:[#allocation2 + $0x8] sm:$0xf] %v980
    %989 = vst [vmem:[#allocation2 + $0xc] sm:$0xf] %v981
    %990 = vst [vmem:[#allocation2 + $0x10] sm:$0xf] %v982
    %991 = vst [vmem:[#allocation2 + $0x14] sm:$0xf] %v983
    %992 = vst [vmem:[#allocation2 + $0x18] sm:$0xf] %v984
    %993 = vst [vmem:[#allocation2 + $0x1c] sm:$0xf] %v985
    // Predicated region
    $region14: #{_lambda_.6} parent=1 // pred_check
      _
    $region15: #{_lambda_.6} parent=1 // pred_check_branch
      %995 = sbr.rel (0) target = $region17
    $region16: #{_lambda_.6} parent=1 // pred_region
      // Predicated region
      $region18: #{_lambda_.6} parent=16 // pred_check
        _
      $region19: #{_lambda_.6} parent=16 // pred_check_branch
        %997 = sbr.rel (0) target = $region21
      $region20: #{_lambda_.6} parent=16 // pred_region
        // Predicated region
        $region22: #{_lambda_.6} parent=20 // pred_check
          _
        $region23: #{_lambda_.6} parent=20 // pred_check_branch
          %999 = sbr.rel target = $region25
        $region24: #{_lambda_.6} parent=20 // pred_region
          // Predicated region
          $region37: #{_lambda_.6} parent=24 // pred_check
            _
          $region38: #{_lambda_.6} parent=24 // pred_check_branch
            %1027 = sbr.rel (0) target = $region40
          $region39: #{_lambda_.6} parent=24 // pred_region
            loop: start=0, step=1, limit=1
            $region41: #{_lambda_.6} parent=39 // loop_pre_header
              _
            $region42: #{_lambda_.6} parent=39 // loop_header
              %s1029 = sphi 0, %s1033
              %p1030 = scmp.ge.s32.totalorder %s1029, 1
              %s1034 = sphi [#allocation2], [#allocation2]
              %s1035 = sphi %s3, %s3
            $region43: #{_lambda_.6} parent=39 // loop_header_branch
              %1032 = sbr.rel (%p1030) target = $region47
            $region44: #{_lambda_.6} parent=39 // loop_body
              _
            $region45: #{_lambda_.6} parent=39 // loop_footer
              %s1033 = sadd.s32 1, %s1029
            $region46: #{_lambda_.6} parent=39 // loop_footer_branch
              %1028 = sbr.rel target = $region42
            $region47: #{_lambda_.6} parent=39 // loop_exit
              _
            %s1037 = ssub.s32 16, 1
            loop: start=0, step=1, limit=1
            $region48: #{_lambda_.6} parent=39 // loop_pre_header
              _
            $region49: #{_lambda_.6} parent=39 // loop_header
              %s1039 = sphi 0, %s1043
              %p1040 = scmp.ge.s32.totalorder %s1039, 1
              %s1044 = sphi [#allocation2], [#allocation2]
              %s1045 = sphi %s3, %s3
            $region50: #{_lambda_.6} parent=39 // loop_header_branch
              %1042 = sbr.rel (%p1040) target = $region54
            $region51: #{_lambda_.6} parent=39 // loop_body
              %v1046 = vld [vmem:[%s1044] sm:%s1037]
              %1047 = vst [vmem:[%s1045] sm:%s1037] %v1046
              %v1048 = vld [vmem:[%s1044 + $0x4] sm:%s1037]
              %1049 = vst [vmem:[%s1045 + $0x4] sm:%s1037] %v1048
              %v1050 = vld [vmem:[%s1044 + $0x8] sm:%s1037]
              %1051 = vst [vmem:[%s1045 + $0x8] sm:%s1037] %v1050
              %v1052 = vld [vmem:[%s1044 + $0xc] sm:%s1037]
              %1053 = vst [vmem:[%s1045 + $0xc] sm:%s1037] %v1052
              %v1054 = vld [vmem:[%s1044 + $0x10] sm:%s1037]
              %1055 = vst [vmem:[%s1045 + $0x10] sm:%s1037] %v1054
              %v1056 = vld [vmem:[%s1044 + $0x14] sm:%s1037]
              %1057 = vst [vmem:[%s1045 + $0x14] sm:%s1037] %v1056
              %v1058 = vld [vmem:[%s1044 + $0x18] sm:%s1037]
              %1059 = vst [vmem:[%s1045 + $0x18] sm:%s1037] %v1058
            $region52: #{_lambda_.6} parent=39 // loop_footer
              %s1043 = sadd.s32 1, %s1039
            $region53: #{_lambda_.6} parent=39 // loop_footer_branch
              %1038 = sbr.rel target = $region49
            $region54: #{_lambda_.6} parent=39 // loop_exit
              _
          $region40: #{_lambda_.6} parent=24 // pred_fallthru
            _
        $region25: #{_lambda_.6} parent=20 // pred_fallthru
          _
        // Predicated region
        $region26: #{_lambda_.6} parent=20 // pred_check
          _
        $region27: #{_lambda_.6} parent=20 // pred_check_branch
          %1001 = sbr.rel (0) target = $region29
        $region28: #{_lambda_.6} parent=20 // pred_region
          %s1003 = ssub.s32 16, 1
          loop: start=0, step=1, limit=1
          $region30: #{_lambda_.6} parent=28 // loop_pre_header
            _
          $region31: #{_lambda_.6} parent=28 // loop_header
            %s1005 = sphi 0, %s1009
            %p1006 = scmp.ge.s32.totalorder %s1005, 1
            %s1010 = sphi [#allocation2], [#allocation2]
            %s1011 = sphi %s3, %s3
          $region32: #{_lambda_.6} parent=28 // loop_header_branch
            %1008 = sbr.rel (%p1006) target = $region36
          $region33: #{_lambda_.6} parent=28 // loop_body
            %v1012 = vld [vmem:[%s1010] sm:%s1003]
            %1013 = vst [vmem:[%s1011] sm:%s1003] %v1012
            %v1014 = vld [vmem:[%s1010 + $0x4] sm:%s1003]
            %1015 = vst [vmem:[%s1011 + $0x4] sm:%s1003] %v1014
            %v1016 = vld [vmem:[%s1010 + $0x8] sm:%s1003]
            %1017 = vst [vmem:[%s1011 + $0x8] sm:%s1003] %v1016
            %v1018 = vld [vmem:[%s1010 + $0xc] sm:%s1003]
            %1019 = vst [vmem:[%s1011 + $0xc] sm:%s1003] %v1018
            %v1020 = vld [vmem:[%s1010 + $0x10] sm:%s1003]
            %1021 = vst [vmem:[%s1011 + $0x10] sm:%s1003] %v1020
            %v1022 = vld [vmem:[%s1010 + $0x14] sm:%s1003]
            %1023 = vst [vmem:[%s1011 + $0x14] sm:%s1003] %v1022
            %v1024 = vld [vmem:[%s1010 + $0x18] sm:%s1003]
            %1025 = vst [vmem:[%s1011 + $0x18] sm:%s1003] %v1024
          $region34: #{_lambda_.6} parent=28 // loop_footer
            %s1009 = sadd.s32 1, %s1005
          $region35: #{_lambda_.6} parent=28 // loop_footer_branch
            %1004 = sbr.rel target = $region31
          $region36: #{_lambda_.6} parent=28 // loop_exit
            _
        $region29: #{_lambda_.6} parent=20 // pred_fallthru
          _
      $region21: #{_lambda_.6} parent=16 // pred_fallthru
        _
      %1060 = vnop
    $region17: #{_lambda_.6} parent=1 // pred_fallthru
      _
    // Predicated region
    $region55: #{_lambda_.6} parent=1 // pred_check
      _
    $region56: #{_lambda_.6} parent=1 // pred_check_branch
      %1062 = sbr.rel (0) target = $region58
    $region57: #{_lambda_.6} parent=1 // pred_region
      _
    $region58: #{_lambda_.6} parent=1 // pred_fallthru
      _

// kernel: _lambda_.9
$region0: #{_lambda_.9}
  #allocation0 [shape = 'u32[]', space=smem, size = 0x4, offset = 0x4, fixed_abs, tag = 'smem constant byte address 0x4 - core index']
  #allocation1 [shape = 'u32[72,128]{1,0:T(1,128)}', space=vmem, size = 0x9000, scoped, tag = 'internal scratch']
  #allocation2 [shape = 'f32[1,1]{1,0:T(1,128)S(1)}', space=vmem, size = 0x200, scoped, tag = 'scoped memory for _lambda_.9']
  %s0 = inlined_call_operand.vmem [shape: bf16[2,256], index: 0, kind: input, shape index: {}]
  %s1 = inlined_call_operand.vmem [shape: bf16[1,256], index: 1, kind: input, shape index: {}]
  %s2 = inlined_call_operand.<no memory space> [shape: f32[1,1], index: 2, kind: input, shape index: {}]
  %s3 = inlined_call_operand.vmem [shape: f32[2,1], index: 3, kind: output, shape index: {}]
  %s4 = sld [smem:[#allocation0]]
  $region30: #{_lambda_.9} parent=0
    _
  %s6 = ssub.s32 1, %s4
  %s7 = scalar_select 0, %s6, %s4
  %v8 = vstv %s2
  %9 = vst [vmem:[#allocation2] sm:$0x1] %v8
  // Predicated region
  $region2: #{_lambda_.9} parent=0 // pred_check
    _
  $region3: #{_lambda_.9} parent=0 // pred_check_branch
    %11 = sbr.rel (0) target = $region5
  $region4: #{_lambda_.9} parent=0 // pred_region
    _
  $region5: #{_lambda_.9} parent=0 // pred_fallthru
    _
  // Predicated region
  $region6: #{_lambda_.9} parent=0 // pred_check
    _
  $region7: #{_lambda_.9} parent=0 // pred_check_branch
    %13 = sbr.rel (0) target = $region9
  $region8: #{_lambda_.9} parent=0 // pred_region
    _
  $region9: #{_lambda_.9} parent=0 // pred_fallthru
    _
  // Predicated region
  $region10: #{_lambda_.9} parent=0 // pred_check
    _
  $region11: #{_lambda_.9} parent=0 // pred_check_branch
    %15 = sbr.rel (0) target = $region13
  $region12: #{_lambda_.9} parent=0 // pred_region
    _
  $region13: #{_lambda_.9} parent=0 // pred_fallthru
    _
  %p16 = scmp.eq.s32.totalorder 0, 0
  // Predicated region
  $region14: #{_lambda_.9} parent=0 // pred_check
    %p17 = pneg %p16
  $region15: #{_lambda_.9} parent=0 // pred_check_branch
    %19 = sbr.rel (%p17) target = $region17
  $region16: #{_lambda_.9} parent=0 // pred_region
    %vm20 = vcmask 1024
    %21 = vst.msk [vmem:[%s3] sm:$0x3] %vm20, 0.0
  $region17: #{_lambda_.9} parent=0 // pred_fallthru
    _
  %v22 = vld [vmem:[%s0] sm:$0x3]
  %v23 = vunpack.c.l.bf16 %v22
  %v24 = vld [vmem:[%s1] sm:$0x3]
  %v25 = vunpack.c.l.bf16 %v24
  %v27 = vperm.slane %v25, 0
  %v28 = vperm.slane %v25, 2
  %v31 = vperm.slane %v27, 0
  %v32 = vperm.slane %v28, 0
  %v35 = vrot.slane %v32, 6
  %vm36 = vcmask 1041408
  %v37 = vsel %vm36, %v31, %v35
  %v39 = vmul.f32 %v23, %v37
  %v40 = vld [vmem:[%s3] sm:$0x3]
  %42 = vst [vmem:[#allocation1] ss:$4 sm:$0xff] %v39
  %v43 = vld.sshfl [vmem:[#allocation1] sm:$0xff pattern:$0x73625140]
  %v44 = vld.sshfl [vmem:[#allocation1 + $0x8] sm:$0xff pattern:$0x73625140]
  %v47 = vsel %vm36, %v43, 0.0
  %v48 = vsel %vm36, %v44, 0.0
  %v49 = vadd.f32 %v47, %v48
  %50 = vadd.xlane.f32.xlu0 %v49
  %v51 = vpop.xlane.xlu0 %50
  %v52 = vadd.f32 %v40, %v51
  %vm53 = vcmask 1024
  %54 = vst.msk [vmem:[%s3] sm:$0x3] %vm53, %v52
  // Predicated region
  $region18: #{_lambda_.9} parent=0 // pred_check
    %p55 = pneg %p16
  $region19: #{_lambda_.9} parent=0 // pred_check_branch
    %57 = sbr.rel (%p55) target = $region21
  $region20: #{_lambda_.9} parent=0 // pred_region
    %v58 = vld [vmem:[%s3] sm:$0x3]
    %v59 = vld [vmem:[#allocation2] sm:$0x1]
    %v61 = vperm.slane %v59, 0
    %v63 = vadd.f32 %v58, %v61
    %64 = vst.msk [vmem:[%s3] sm:$0x3] %vm53, %v63
  $region21: #{_lambda_.9} parent=0 // pred_fallthru
    _
  // Predicated region
  $region22: #{_lambda_.9} parent=0 // pred_check
    _
  $region23: #{_lambda_.9} parent=0 // pred_check_branch
    %66 = sbr.rel (0) target = $region25
  $region24: #{_lambda_.9} parent=0 // pred_region
    _
  $region25: #{_lambda_.9} parent=0 // pred_fallthru
    _
  // Predicated region
  $region26: #{_lambda_.9} parent=0 // pred_check
    _
  $region27: #{_lambda_.9} parent=0 // pred_check_branch
    %68 = sbr.rel (0) target = $region29
  $region28: #{_lambda_.9} parent=0 // pred_region
    _
  $region29: #{_lambda_.9} parent=0 // pred_fallthru
    _

// kernel: _lambda_.7
$region0: #{_lambda_.7}
  #allocation0 [shape = 'u32[]', space=smem, size = 0x4, offset = 0x4, fixed_abs, tag = 'smem constant byte address 0x4 - core index']
  #allocation1 [shape = 'u32[72,128]{1,0:T(1,128)}', space=vmem, size = 0x9000, scoped, tag = 'internal scratch']
  %s0 = inlined_call_operand.vmem [shape: bf16[18,1024], index: 0, kind: input, shape index: {}]
  %s1 = inlined_call_operand.vmem [shape: bf16[1024,128], index: 1, kind: input, shape index: {}]
  %s2 = inlined_call_operand.vmem [shape: f32[1,128], index: 2, kind: input, shape index: {}]
  %s3 = inlined_call_operand.vmem [shape: bf16[18,128], index: 3, kind: output, shape index: {}]
  %s4 = sld [smem:[#allocation0]]
  $region59: #{_lambda_.7} parent=0
    _
  %s6 = ssub.s32 1, %s4
  %s7 = scalar_select 0, %s6, %s4
  $region1: #{_lambda_.7} parent=0
    #allocation2 [shape = 'u8[16384]{0}', space=vmem, size = 0x4000, scoped, tag = 'output window, operand 0, single buffered']
    // Predicated region
    $region2: #{_lambda_.7} parent=1 // pred_check
      _
    $region3: #{_lambda_.7} parent=1 // pred_check_branch
      %9 = sbr.rel (0) target = $region5
    $region4: #{_lambda_.7} parent=1 // pred_region
      _
    $region5: #{_lambda_.7} parent=1 // pred_fallthru
      _
    // Predicated region
    $region6: #{_lambda_.7} parent=1 // pred_check
      _
    $region7: #{_lambda_.7} parent=1 // pred_check_branch
      %11 = sbr.rel (0) target = $region9
    $region8: #{_lambda_.7} parent=1 // pred_region
      _
    $region9: #{_lambda_.7} parent=1 // pred_fallthru
      _
    // Predicated region
    $region10: #{_lambda_.7} parent=1 // pred_check
      _
    $region11: #{_lambda_.7} parent=1 // pred_check_branch
      %13 = sbr.rel (0) target = $region13
    $region12: #{_lambda_.7} parent=1 // pred_region
      _
    $region13: #{_lambda_.7} parent=1 // pred_fallthru
      _
    %v14 = vld [vmem:[%s0] sm:$0xff]
    %v15 = vld [vmem:[%s0 + $0x8] sm:$0xff]
    %v16 = vld [vmem:[%s0 + $0x10] sm:$0xff]
    %v17 = vld [vmem:[%s0 + $0x18] sm:$0xff]
    %v18 = vld [vmem:[%s0 + $0x20] sm:$0xff]
    %v19 = vld [vmem:[%s0 + $0x28] sm:$0xff]
    %v20 = vld [vmem:[%s0 + $0x30] sm:$0xff]
    %v21 = vld [vmem:[%s0 + $0x38] sm:$0xff]
    %v22 = vld [vmem:[%s0 + $0x40] sm:$0xff]
    %v23 = vld [vmem:[%s0 + $0x48] sm:$0xff]
    %v24 = vld [vmem:[%s0 + $0x50] sm:$0xff]
    %v25 = vld [vmem:[%s0 + $0x58] sm:$0xff]
    %v26 = vld [vmem:[%s0 + $0x60] sm:$0xff]
    %v27 = vld [vmem:[%s0 + $0x68] sm:$0xff]
    %v28 = vld [vmem:[%s0 + $0x70] sm:$0xff]
    %v29 = vld [vmem:[%s0 + $0x78] sm:$0xff]
    %v30 = vld [vmem:[%s0 + $0x80] sm:$0xff]
    %v31 = vld [vmem:[%s0 + $0x88] sm:$0xff]
    %v32 = vld [vmem:[%s0 + $0x90] sm:$0xff]
    %v33 = vld [vmem:[%s0 + $0x98] sm:$0xff]
    %v34 = vld [vmem:[%s0 + $0xa0] sm:$0xff]
    %v35 = vld [vmem:[%s0 + $0xa8] sm:$0xff]
    %v36 = vld [vmem:[%s0 + $0xb0] sm:$0xff]
    %v37 = vld [vmem:[%s0 + $0xb8] sm:$0xff]
    %v38 = vld [vmem:[%s0 + $0xc0] sm:$0xff]
    %v39 = vld [vmem:[%s0 + $0xc8] sm:$0xff]
    %v40 = vld [vmem:[%s0 + $0xd0] sm:$0xff]
    %v41 = vld [vmem:[%s0 + $0xd8] sm:$0xff]
    %v42 = vld [vmem:[%s0 + $0xe0] sm:$0xff]
    %v43 = vld [vmem:[%s0 + $0xe8] sm:$0xff]
    %v44 = vld [vmem:[%s0 + $0xf0] sm:$0xff]
    %v45 = vld [vmem:[%s0 + $0xf8] sm:$0xff]
    %v46 = vld [vmem:[%s1] sm:$0xf]
    %v47 = vld [vmem:[%s1 + $0x4] sm:$0xf]
    %v48 = vld [vmem:[%s1 + $0x8] sm:$0xf]
    %v49 = vld [vmem:[%s1 + $0xc] sm:$0xf]
    %v50 = vld [vmem:[%s1 + $0x10] sm:$0xf]
    %v51 = vld [vmem:[%s1 + $0x14] sm:$0xf]
    %v52 = vld [vmem:[%s1 + $0x18] sm:$0xf]
    %v53 = vld [vmem:[%s1 + $0x1c] sm:$0xf]
    %v54 = vld [vmem:[%s1 + $0x20] sm:$0xf]
    %v55 = vld [vmem:[%s1 + $0x24] sm:$0xf]
    %v56 = vld [vmem:[%s1 + $0x28] sm:$0xf]
    %v57 = vld [vmem:[%s1 + $0x2c] sm:$0xf]
    %v58 = vld [vmem:[%s1 + $0x30] sm:$0xf]
    %v59 = vld [vmem:[%s1 + $0x34] sm:$0xf]
    %v60 = vld [vmem:[%s1 + $0x38] sm:$0xf]
    %v61 = vld [vmem:[%s1 + $0x3c] sm:$0xf]
    %v62 = vld [vmem:[%s1 + $0x40] sm:$0xf]
    %v63 = vld [vmem:[%s1 + $0x44] sm:$0xf]
    %v64 = vld [vmem:[%s1 + $0x48] sm:$0xf]
    %v65 = vld [vmem:[%s1 + $0x4c] sm:$0xf]
    %v66 = vld [vmem:[%s1 + $0x50] sm:$0xf]
    %v67 = vld [vmem:[%s1 + $0x54] sm:$0xf]
    %v68 = vld [vmem:[%s1 + $0x58] sm:$0xf]
    %v69 = vld [vmem:[%s1 + $0x5c] sm:$0xf]
    %v70 = vld [vmem:[%s1 + $0x60] sm:$0xf]
    %v71 = vld [vmem:[%s1 + $0x64] sm:$0xf]
    %v72 = vld [vmem:[%s1 + $0x68] sm:$0xf]
    %v73 = vld [vmem:[%s1 + $0x6c] sm:$0xf]
    %v74 = vld [vmem:[%s1 + $0x70] sm:$0xf]
    %v75 = vld [vmem:[%s1 + $0x74] sm:$0xf]
    %v76 = vld [vmem:[%s1 + $0x78] sm:$0xf]
    %v77 = vld [vmem:[%s1 + $0x7c] sm:$0xf]
    %v78 = vld [vmem:[%s1 + $0x80] sm:$0xf]
    %v79 = vld [vmem:[%s1 + $0x84] sm:$0xf]
    %v80 = vld [vmem:[%s1 + $0x88] sm:$0xf]
    %v81 = vld [vmem:[%s1 + $0x8c] sm:$0xf]
    %v82 = vld [vmem:[%s1 + $0x90] sm:$0xf]
    %v83 = vld [vmem:[%s1 + $0x94] sm:$0xf]
    %v84 = vld [vmem:[%s1 + $0x98] sm:$0xf]
    %v85 = vld [vmem:[%s1 + $0x9c] sm:$0xf]
    %v86 = vld [vmem:[%s1 + $0xa0] sm:$0xf]
    %v87 = vld [vmem:[%s1 + $0xa4] sm:$0xf]
    %v88 = vld [vmem:[%s1 + $0xa8] sm:$0xf]
    %v89 = vld [vmem:[%s1 + $0xac] sm:$0xf]
    %v90 = vld [vmem:[%s1 + $0xb0] sm:$0xf]
    %v91 = vld [vmem:[%s1 + $0xb4] sm:$0xf]
    %v92 = vld [vmem:[%s1 + $0xb8] sm:$0xf]
    %v93 = vld [vmem:[%s1 + $0xbc] sm:$0xf]
    %v94 = vld [vmem:[%s1 + $0xc0] sm:$0xf]
    %v95 = vld [vmem:[%s1 + $0xc4] sm:$0xf]
    %v96 = vld [vmem:[%s1 + $0xc8] sm:$0xf]
    %v97 = vld [vmem:[%s1 + $0xcc] sm:$0xf]
    %v98 = vld [vmem:[%s1 + $0xd0] sm:$0xf]
    %v99 = vld [vmem:[%s1 + $0xd4] sm:$0xf]
    %v100 = vld [vmem:[%s1 + $0xd8] sm:$0xf]
    %v101 = vld [vmem:[%s1 + $0xdc] sm:$0xf]
    %v102 = vld [vmem:[%s1 + $0xe0] sm:$0xf]
    %v103 = vld [vmem:[%s1 + $0xe4] sm:$0xf]
    %v104 = vld [vmem:[%s1 + $0xe8] sm:$0xf]
    %v105 = vld [vmem:[%s1 + $0xec] sm:$0xf]
    %v106 = vld [vmem:[%s1 + $0xf0] sm:$0xf]
    %v107 = vld [vmem:[%s1 + $0xf4] sm:$0xf]
    %v108 = vld [vmem:[%s1 + $0xf8] sm:$0xf]
    %v109 = vld [vmem:[%s1 + $0xfc] sm:$0xf]
    %v110 = vld [vmem:[%s1 + $0x100] sm:$0xf]
    %v111 = vld [vmem:[%s1 + $0x104] sm:$0xf]
    %v112 = vld [vmem:[%s1 + $0x108] sm:$0xf]
    %v113 = vld [vmem:[%s1 + $0x10c] sm:$0xf]
    %v114 = vld [vmem:[%s1 + $0x110] sm:$0xf]
    %v115 = vld [vmem:[%s1 + $0x114] sm:$0xf]
    %v116 = vld [vmem:[%s1 + $0x118] sm:$0xf]
    %v117 = vld [vmem:[%s1 + $0x11c] sm:$0xf]
    %v118 = vld [vmem:[%s1 + $0x120] sm:$0xf]
    %v119 = vld [vmem:[%s1 + $0x124] sm:$0xf]
    %v120 = vld [vmem:[%s1 + $0x128] sm:$0xf]
    %v121 = vld [vmem:[%s1 + $0x12c] sm:$0xf]
    %v122 = vld [vmem:[%s1 + $0x130] sm:$0xf]
    %v123 = vld [vmem:[%s1 + $0x134] sm:$0xf]
    %v124 = vld [vmem:[%s1 + $0x138] sm:$0xf]
    %v125 = vld [vmem:[%s1 + $0x13c] sm:$0xf]
    %v126 = vld [vmem:[%s1 + $0x140] sm:$0xf]
    %v127 = vld [vmem:[%s1 + $0x144] sm:$0xf]
    %v128 = vld [vmem:[%s1 + $0x148] sm:$0xf]
    %v129 = vld [vmem:[%s1 + $0x14c] sm:$0xf]
    %v130 = vld [vmem:[%s1 + $0x150] sm:$0xf]
    %v131 = vld [vmem:[%s1 + $0x154] sm:$0xf]
    %v132 = vld [vmem:[%s1 + $0x158] sm:$0xf]
    %v133 = vld [vmem:[%s1 + $0x15c] sm:$0xf]
    %v134 = vld [vmem:[%s1 + $0x160] sm:$0xf]
    %v135 = vld [vmem:[%s1 + $0x164] sm:$0xf]
    %v136 = vld [vmem:[%s1 + $0x168] sm:$0xf]
    %v137 = vld [vmem:[%s1 + $0x16c] sm:$0xf]
    %v138 = vld [vmem:[%s1 + $0x170] sm:$0xf]
    %v139 = vld [vmem:[%s1 + $0x174] sm:$0xf]
    %v140 = vld [vmem:[%s1 + $0x178] sm:$0xf]
    %v141 = vld [vmem:[%s1 + $0x17c] sm:$0xf]
    %v142 = vld [vmem:[%s1 + $0x180] sm:$0xf]
    %v143 = vld [vmem:[%s1 + $0x184] sm:$0xf]
    %v144 = vld [vmem:[%s1 + $0x188] sm:$0xf]
    %v145 = vld [vmem:[%s1 + $0x18c] sm:$0xf]
    %v146 = vld [vmem:[%s1 + $0x190] sm:$0xf]
    %v147 = vld [vmem:[%s1 + $0x194] sm:$0xf]
    %v148 = vld [vmem:[%s1 + $0x198] sm:$0xf]
    %v149 = vld [vmem:[%s1 + $0x19c] sm:$0xf]
    %v150 = vld [vmem:[%s1 + $0x1a0] sm:$0xf]
    %v151 = vld [vmem:[%s1 + $0x1a4] sm:$0xf]
    %v152 = vld [vmem:[%s1 + $0x1a8] sm:$0xf]
    %v153 = vld [vmem:[%s1 + $0x1ac] sm:$0xf]
    %v154 = vld [vmem:[%s1 + $0x1b0] sm:$0xf]
    %v155 = vld [vmem:[%s1 + $0x1b4] sm:$0xf]
    %v156 = vld [vmem:[%s1 + $0x1b8] sm:$0xf]
    %v157 = vld [vmem:[%s1 + $0x1bc] sm:$0xf]
    %v158 = vld [vmem:[%s1 + $0x1c0] sm:$0xf]
    %v159 = vld [vmem:[%s1 + $0x1c4] sm:$0xf]
    %v160 = vld [vmem:[%s1 + $0x1c8] sm:$0xf]
    %v161 = vld [vmem:[%s1 + $0x1cc] sm:$0xf]
    %v162 = vld [vmem:[%s1 + $0x1d0] sm:$0xf]
    %v163 = vld [vmem:[%s1 + $0x1d4] sm:$0xf]
    %v164 = vld [vmem:[%s1 + $0x1d8] sm:$0xf]
    %v165 = vld [vmem:[%s1 + $0x1dc] sm:$0xf]
    %v166 = vld [vmem:[%s1 + $0x1e0] sm:$0xf]
    %v167 = vld [vmem:[%s1 + $0x1e4] sm:$0xf]
    %v168 = vld [vmem:[%s1 + $0x1e8] sm:$0xf]
    %v169 = vld [vmem:[%s1 + $0x1ec] sm:$0xf]
    %v170 = vld [vmem:[%s1 + $0x1f0] sm:$0xf]
    %v171 = vld [vmem:[%s1 + $0x1f4] sm:$0xf]
    %v172 = vld [vmem:[%s1 + $0x1f8] sm:$0xf]
    %v173 = vld [vmem:[%s1 + $0x1fc] sm:$0xf]
    %v174 = vld [vmem:[%s2] sm:$0x1]
    %v176 = vperm.slane %v174, 0
    %v210 = vunpack.c.l.b16 %v14
    %v211 = vunpack.c.h.b16 %v14
    %v212 = vunpack.c.l.b16 %v15
    %v213 = vunpack.c.h.b16 %v15
    %v214 = vunpack.c.l.b16 %v16
    %v215 = vunpack.c.h.b16 %v16
    %v216 = vunpack.c.l.b16 %v17
    %v217 = vunpack.c.h.b16 %v17
    %v218 = vunpack.c.l.b16 %v18
    %v219 = vunpack.c.h.b16 %v18
    %v220 = vunpack.c.l.b16 %v19
    %v221 = vunpack.c.h.b16 %v19
    %v222 = vunpack.c.l.b16 %v20
    %v223 = vunpack.c.h.b16 %v20
    %v224 = vunpack.c.l.b16 %v21
    %v225 = vunpack.c.h.b16 %v21
    %v226 = vunpack.c.l.b16 %v22
    %v227 = vunpack.c.h.b16 %v22
    %v228 = vunpack.c.l.b16 %v23
    %v229 = vunpack.c.h.b16 %v23
    %v230 = vunpack.c.l.b16 %v24
    %v231 = vunpack.c.h.b16 %v24
    %v232 = vunpack.c.l.b16 %v25
    %v233 = vunpack.c.h.b16 %v25
    %v234 = vunpack.c.l.b16 %v26
    %v235 = vunpack.c.h.b16 %v26
    %v236 = vunpack.c.l.b16 %v27
    %v237 = vunpack.c.h.b16 %v27
    %v238 = vunpack.c.l.b16 %v28
    %v239 = vunpack.c.h.b16 %v28
    %v240 = vunpack.c.l.b16 %v29
    %v241 = vunpack.c.h.b16 %v29
    %v242 = vunpack.c.l.b16 %v30
    %v243 = vunpack.c.h.b16 %v30
    %v244 = vunpack.c.l.b16 %v31
    %v245 = vunpack.c.h.b16 %v31
    %v246 = vunpack.c.l.b16 %v32
    %v247 = vunpack.c.h.b16 %v32
    %v248 = vunpack.c.l.b16 %v33
    %v249 = vunpack.c.h.b16 %v33
    %v250 = vunpack.c.l.b16 %v34
    %v251 = vunpack.c.h.b16 %v34
    %v252 = vunpack.c.l.b16 %v35
    %v253 = vunpack.c.h.b16 %v35
    %v254 = vunpack.c.l.b16 %v36
    %v255 = vunpack.c.h.b16 %v36
    %v256 = vunpack.c.l.b16 %v37
    %v257 = vunpack.c.h.b16 %v37
    %v258 = vunpack.c.l.b16 %v38
    %v259 = vunpack.c.h.b16 %v38
    %v260 = vunpack.c.l.b16 %v39
    %v261 = vunpack.c.h.b16 %v39
    %v262 = vunpack.c.l.b16 %v40
    %v263 = vunpack.c.h.b16 %v40
    %v264 = vunpack.c.l.b16 %v41
    %v265 = vunpack.c.h.b16 %v41
    %v266 = vunpack.c.l.b16 %v42
    %v267 = vunpack.c.h.b16 %v42
    %v268 = vunpack.c.l.b16 %v43
    %v269 = vunpack.c.h.b16 %v43
    %v270 = vunpack.c.l.b16 %v44
    %v271 = vunpack.c.h.b16 %v44
    %v272 = vunpack.c.l.b16 %v45
    %v273 = vunpack.c.h.b16 %v45
    %v274 = vpack.c.b16 %v218, %v210
    %v275 = vpack.c.b16 %v219, %v211
    %v276 = vpack.c.b16 %v220, %v212
    %v277 = vpack.c.b16 %v221, %v213
    %v278 = vpack.c.b16 %v222, %v214
    %v279 = vpack.c.b16 %v223, %v215
    %v280 = vpack.c.b16 %v224, %v216
    %v281 = vpack.c.b16 %v225, %v217
    %v282 = vpack.c.b16 %v234, %v226
    %v283 = vpack.c.b16 %v235, %v227
    %v284 = vpack.c.b16 %v236, %v228
    %v285 = vpack.c.b16 %v237, %v229
    %v286 = vpack.c.b16 %v238, %v230
    %v287 = vpack.c.b16 %v239, %v231
    %v288 = vpack.c.b16 %v240, %v232
    %v289 = vpack.c.b16 %v241, %v233
    %v290 = vpack.c.b16 %v250, %v242
    %v291 = vpack.c.b16 %v251, %v243
    %v292 = vpack.c.b16 %v252, %v244
    %v293 = vpack.c.b16 %v253, %v245
    %v294 = vpack.c.b16 %v254, %v246
    %v295 = vpack.c.b16 %v255, %v247
    %v296 = vpack.c.b16 %v256, %v248
    %v297 = vpack.c.b16 %v257, %v249
    %v298 = vpack.c.b16 %v266, %v258
    %v299 = vpack.c.b16 %v267, %v259
    %v300 = vpack.c.b16 %v268, %v260
    %v301 = vpack.c.b16 %v269, %v261
    %v302 = vpack.c.b16 %v270, %v262
    %v303 = vpack.c.b16 %v271, %v263
    %v304 = vpack.c.b16 %v272, %v264
    %v305 = vpack.c.b16 %v273, %v265
    %v466 = vunpack.c.l.b16 %v46
    %v467 = vunpack.c.l.b16 %v47
    %v468 = vunpack.c.l.b16 %v48
    %v469 = vunpack.c.l.b16 %v49
    %v470 = vunpack.c.l.b16 %v50
    %v471 = vunpack.c.l.b16 %v51
    %v472 = vunpack.c.l.b16 %v52
    %v473 = vunpack.c.l.b16 %v53
    %v474 = vunpack.c.l.b16 %v54
    %v475 = vunpack.c.l.b16 %v55
    %v476 = vunpack.c.l.b16 %v56
    %v477 = vunpack.c.l.b16 %v57
    %v478 = vunpack.c.l.b16 %v58
    %v479 = vunpack.c.l.b16 %v59
    %v480 = vunpack.c.l.b16 %v60
    %v481 = vunpack.c.l.b16 %v61
    %v482 = vunpack.c.l.b16 %v62
    %v483 = vunpack.c.l.b16 %v63
    %v484 = vunpack.c.l.b16 %v64
    %v485 = vunpack.c.l.b16 %v65
    %v486 = vunpack.c.l.b16 %v66
    %v487 = vunpack.c.l.b16 %v67
    %v488 = vunpack.c.l.b16 %v68
    %v489 = vunpack.c.l.b16 %v69
    %v490 = vunpack.c.l.b16 %v70
    %v491 = vunpack.c.l.b16 %v71
    %v492 = vunpack.c.l.b16 %v72
    %v493 = vunpack.c.l.b16 %v73
    %v494 = vunpack.c.l.b16 %v74
    %v495 = vunpack.c.l.b16 %v75
    %v496 = vunpack.c.l.b16 %v76
    %v497 = vunpack.c.l.b16 %v77
    %v498 = vunpack.c.l.b16 %v78
    %v499 = vunpack.c.l.b16 %v79
    %v500 = vunpack.c.l.b16 %v80
    %v501 = vunpack.c.l.b16 %v81
    %v502 = vunpack.c.l.b16 %v82
    %v503 = vunpack.c.l.b16 %v83
    %v504 = vunpack.c.l.b16 %v84
    %v505 = vunpack.c.l.b16 %v85
    %v506 = vunpack.c.l.b16 %v86
    %v507 = vunpack.c.l.b16 %v87
    %v508 = vunpack.c.l.b16 %v88
    %v509 = vunpack.c.l.b16 %v89
    %v510 = vunpack.c.l.b16 %v90
    %v511 = vunpack.c.l.b16 %v91
    %v512 = vunpack.c.l.b16 %v92
    %v513 = vunpack.c.l.b16 %v93
    %v514 = vunpack.c.l.b16 %v94
    %v515 = vunpack.c.l.b16 %v95
    %v516 = vunpack.c.l.b16 %v96
    %v517 = vunpack.c.l.b16 %v97
    %v518 = vunpack.c.l.b16 %v98
    %v519 = vunpack.c.l.b16 %v99
    %v520 = vunpack.c.l.b16 %v100
    %v521 = vunpack.c.l.b16 %v101
    %v522 = vunpack.c.l.b16 %v102
    %v523 = vunpack.c.l.b16 %v103
    %v524 = vunpack.c.l.b16 %v104
    %v525 = vunpack.c.l.b16 %v105
    %v526 = vunpack.c.l.b16 %v106
    %v527 = vunpack.c.l.b16 %v107
    %v528 = vunpack.c.l.b16 %v108
    %v529 = vunpack.c.l.b16 %v109
    %v530 = vunpack.c.l.b16 %v110
    %v531 = vunpack.c.l.b16 %v111
    %v532 = vunpack.c.l.b16 %v112
    %v533 = vunpack.c.l.b16 %v113
    %v534 = vunpack.c.l.b16 %v114
    %v535 = vunpack.c.l.b16 %v115
    %v536 = vunpack.c.l.b16 %v116
    %v537 = vunpack.c.l.b16 %v117
    %v538 = vunpack.c.l.b16 %v118
    %v539 = vunpack.c.l.b16 %v119
    %v540 = vunpack.c.l.b16 %v120
    %v541 = vunpack.c.l.b16 %v121
    %v542 = vunpack.c.l.b16 %v122
    %v543 = vunpack.c.l.b16 %v123
    %v544 = vunpack.c.l.b16 %v124
    %v545 = vunpack.c.l.b16 %v125
    %v546 = vunpack.c.l.b16 %v126
    %v547 = vunpack.c.l.b16 %v127
    %v548 = vunpack.c.l.b16 %v128
    %v549 = vunpack.c.l.b16 %v129
    %v550 = vunpack.c.l.b16 %v130
    %v551 = vunpack.c.l.b16 %v131
    %v552 = vunpack.c.l.b16 %v132
    %v553 = vunpack.c.l.b16 %v133
    %v554 = vunpack.c.l.b16 %v134
    %v555 = vunpack.c.l.b16 %v135
    %v556 = vunpack.c.l.b16 %v136
    %v557 = vunpack.c.l.b16 %v137
    %v558 = vunpack.c.l.b16 %v138
    %v559 = vunpack.c.l.b16 %v139
    %v560 = vunpack.c.l.b16 %v140
    %v561 = vunpack.c.l.b16 %v141
    %v562 = vunpack.c.l.b16 %v142
    %v563 = vunpack.c.l.b16 %v143
    %v564 = vunpack.c.l.b16 %v144
    %v565 = vunpack.c.l.b16 %v145
    %v566 = vunpack.c.l.b16 %v146
    %v567 = vunpack.c.l.b16 %v147
    %v568 = vunpack.c.l.b16 %v148
    %v569 = vunpack.c.l.b16 %v149
    %v570 = vunpack.c.l.b16 %v150
    %v571 = vunpack.c.l.b16 %v151
    %v572 = vunpack.c.l.b16 %v152
    %v573 = vunpack.c.l.b16 %v153
    %v574 = vunpack.c.l.b16 %v154
    %v575 = vunpack.c.l.b16 %v155
    %v576 = vunpack.c.l.b16 %v156
    %v577 = vunpack.c.l.b16 %v157
    %v578 = vunpack.c.l.b16 %v158
    %v579 = vunpack.c.l.b16 %v159
    %v580 = vunpack.c.l.b16 %v160
    %v581 = vunpack.c.l.b16 %v161
    %v582 = vunpack.c.l.b16 %v162
    %v583 = vunpack.c.l.b16 %v163
    %v584 = vunpack.c.l.b16 %v164
    %v585 = vunpack.c.l.b16 %v165
    %v586 = vunpack.c.l.b16 %v166
    %v587 = vunpack.c.l.b16 %v167
    %v588 = vunpack.c.l.b16 %v168
    %v589 = vunpack.c.l.b16 %v169
    %v590 = vunpack.c.l.b16 %v170
    %v591 = vunpack.c.l.b16 %v171
    %v592 = vunpack.c.l.b16 %v172
    %v593 = vunpack.c.l.b16 %v173
    %v594 = vpack.c.b16 %v467, %v466
    %v595 = vpack.c.b16 %v469, %v468
    %v596 = vpack.c.b16 %v471, %v470
    %v597 = vpack.c.b16 %v473, %v472
    %v598 = vpack.c.b16 %v475, %v474
    %v599 = vpack.c.b16 %v477, %v476
    %v600 = vpack.c.b16 %v479, %v478
    %v601 = vpack.c.b16 %v481, %v480
    %v602 = vpack.c.b16 %v483, %v482
    %v603 = vpack.c.b16 %v485, %v484
    %v604 = vpack.c.b16 %v487, %v486
    %v605 = vpack.c.b16 %v489, %v488
    %v606 = vpack.c.b16 %v491, %v490
    %v607 = vpack.c.b16 %v493, %v492
    %v608 = vpack.c.b16 %v495, %v494
    %v609 = vpack.c.b16 %v497, %v496
    %v610 = vpack.c.b16 %v499, %v498
    %v611 = vpack.c.b16 %v501, %v500
    %v612 = vpack.c.b16 %v503, %v502
    %v613 = vpack.c.b16 %v505, %v504
    %v614 = vpack.c.b16 %v507, %v506
    %v615 = vpack.c.b16 %v509, %v508
    %v616 = vpack.c.b16 %v511, %v510
    %v617 = vpack.c.b16 %v513, %v512
    %v618 = vpack.c.b16 %v515, %v514
    %v619 = vpack.c.b16 %v517, %v516
    %v620 = vpack.c.b16 %v519, %v518
    %v621 = vpack.c.b16 %v521, %v520
    %v622 = vpack.c.b16 %v523, %v522
    %v623 = vpack.c.b16 %v525, %v524
    %v624 = vpack.c.b16 %v527, %v526
    %v625 = vpack.c.b16 %v529, %v528
    %v626 = vpack.c.b16 %v531, %v530
    %v627 = vpack.c.b16 %v533, %v532
    %v628 = vpack.c.b16 %v535, %v534
    %v629 = vpack.c.b16 %v537, %v536
    %v630 = vpack.c.b16 %v539, %v538
    %v631 = vpack.c.b16 %v541, %v540
    %v632 = vpack.c.b16 %v543, %v542
    %v633 = vpack.c.b16 %v545, %v544
    %v634 = vpack.c.b16 %v547, %v546
    %v635 = vpack.c.b16 %v549, %v548
    %v636 = vpack.c.b16 %v551, %v550
    %v637 = vpack.c.b16 %v553, %v552
    %v638 = vpack.c.b16 %v555, %v554
    %v639 = vpack.c.b16 %v557, %v556
    %v640 = vpack.c.b16 %v559, %v558
    %v641 = vpack.c.b16 %v561, %v560
    %v642 = vpack.c.b16 %v563, %v562
    %v643 = vpack.c.b16 %v565, %v564
    %v644 = vpack.c.b16 %v567, %v566
    %v645 = vpack.c.b16 %v569, %v568
    %v646 = vpack.c.b16 %v571, %v570
    %v647 = vpack.c.b16 %v573, %v572
    %v648 = vpack.c.b16 %v575, %v574
    %v649 = vpack.c.b16 %v577, %v576
    %v650 = vpack.c.b16 %v579, %v578
    %v651 = vpack.c.b16 %v581, %v580
    %v652 = vpack.c.b16 %v583, %v582
    %v653 = vpack.c.b16 %v585, %v584
    %v654 = vpack.c.b16 %v587, %v586
    %v655 = vpack.c.b16 %v589, %v588
    %v656 = vpack.c.b16 %v591, %v590
    %v657 = vpack.c.b16 %v593, %v592
    %722 = vmatpush.bf16.msra.mxu0 %v601
    %723 = vmatpush.bf16.msra.mxu0 %v600
    %724 = vmatpush.bf16.msra.mxu0 %v599
    %725 = vmatpush.bf16.msra.mxu0 %v598
    %726 = vmatpush.bf16.msra.mxu0 %v597
    %727 = vmatpush.bf16.msra.mxu0 %v596
    %728 = vmatpush.bf16.msra.mxu0 %v595
    %729 = vmatpush.bf16.msra.mxu0 %v594
    %730 = vmatmul.bf16.gmra.mxu0 %v274
    %v731 = vpop.f32.mrf.mxu0
    %v732 = vadd.f32 %v176, %v731
    %v733 = vpop.f32.mrf.mxu0
    %v734 = vadd.f32 %v176, %v733
    %735 = vmatmul.bf16.gmra.mxu0 %v282
    %v736 = vpop.f32.mrf.mxu0
    %v737 = vadd.f32 %v176, %v736
    %v738 = vpop.f32.mrf.mxu0
    %v739 = vadd.f32 %v176, %v738
    %740 = vmatmul.bf16.gmra.mxu0 %v290
    %v741 = vpop.f32.mrf.mxu0
    %v742 = vadd.f32 %v176, %v741
    %v743 = vpop.f32.mrf.mxu0
    %v744 = vadd.f32 %v176, %v743
    %745 = vmatmul.bf16.gmra.mxu0 %v298
    %v746 = vpop.f32.mrf.mxu0
    %v747 = vadd.f32 %v176, %v746
    %v748 = vpop.f32.mrf.mxu0
    %v749 = vadd.f32 %v176, %v748
    %750 = vdwg.mxu0
    %751 = vmatpush.bf16.msra.mxu0 %v609
    %752 = vmatpush.bf16.msra.mxu0 %v608
    %753 = vmatpush.bf16.msra.mxu0 %v607
    %754 = vmatpush.bf16.msra.mxu0 %v606
    %755 = vmatpush.bf16.msra.mxu0 %v605
    %756 = vmatpush.bf16.msra.mxu0 %v604
    %757 = vmatpush.bf16.msra.mxu0 %v603
    %758 = vmatpush.bf16.msra.mxu0 %v602
    %759 = vmatmul.bf16.gmra.mxu0 %v275
    %v760 = vpop.f32.mrf.mxu0
    %v761 = vadd.f32 %v732, %v760
    %v762 = vpop.f32.mrf.mxu0
    %v763 = vadd.f32 %v734, %v762
    %764 = vmatmul.bf16.gmra.mxu0 %v283
    %v765 = vpop.f32.mrf.mxu0
    %v766 = vadd.f32 %v737, %v765
    %v767 = vpop.f32.mrf.mxu0
    %v768 = vadd.f32 %v739, %v767
    %769 = vmatmul.bf16.gmra.mxu0 %v291
    %v770 = vpop.f32.mrf.mxu0
    %v771 = vadd.f32 %v742, %v770
    %v772 = vpop.f32.mrf.mxu0
    %v773 = vadd.f32 %v744, %v772
    %774 = vmatmul.bf16.gmra.mxu0 %v299
    %v775 = vpop.f32.mrf.mxu0
    %v776 = vadd.f32 %v747, %v775
    %v777 = vpop.f32.mrf.mxu0
    %v778 = vadd.f32 %v749, %v777
    %779 = vdwg.mxu0
    %780 = vmatpush.bf16.msra.mxu0 %v617
    %781 = vmatpush.bf16.msra.mxu0 %v616
    %782 = vmatpush.bf16.msra.mxu0 %v615
    %783 = vmatpush.bf16.msra.mxu0 %v614
    %784 = vmatpush.bf16.msra.mxu0 %v613
    %785 = vmatpush.bf16.msra.mxu0 %v612
    %786 = vmatpush.bf16.msra.mxu0 %v611
    %787 = vmatpush.bf16.msra.mxu0 %v610
    %788 = vmatmul.bf16.gmra.mxu0 %v276
    %v789 = vpop.f32.mrf.mxu0
    %v790 = vadd.f32 %v761, %v789
    %v791 = vpop.f32.mrf.mxu0
    %v792 = vadd.f32 %v763, %v791
    %793 = vmatmul.bf16.gmra.mxu0 %v284
    %v794 = vpop.f32.mrf.mxu0
    %v795 = vadd.f32 %v766, %v794
    %v796 = vpop.f32.mrf.mxu0
    %v797 = vadd.f32 %v768, %v796
    %798 = vmatmul.bf16.gmra.mxu0 %v292
    %v799 = vpop.f32.mrf.mxu0
    %v800 = vadd.f32 %v771, %v799
    %v801 = vpop.f32.mrf.mxu0
    %v802 = vadd.f32 %v773, %v801
    %803 = vmatmul.bf16.gmra.mxu0 %v300
    %v804 = vpop.f32.mrf.mxu0
    %v805 = vadd.f32 %v776, %v804
    %v806 = vpop.f32.mrf.mxu0
    %v807 = vadd.f32 %v778, %v806
    %808 = vdwg.mxu0
    %809 = vmatpush.bf16.msra.mxu0 %v625
    %810 = vmatpush.bf16.msra.mxu0 %v624
    %811 = vmatpush.bf16.msra.mxu0 %v623
    %812 = vmatpush.bf16.msra.mxu0 %v622
    %813 = vmatpush.bf16.msra.mxu0 %v621
    %814 = vmatpush.bf16.msra.mxu0 %v620
    %815 = vmatpush.bf16.msra.mxu0 %v619
    %816 = vmatpush.bf16.msra.mxu0 %v618
    %817 = vmatmul.bf16.gmra.mxu0 %v277
    %v818 = vpop.f32.mrf.mxu0
    %v819 = vadd.f32 %v790, %v818
    %v820 = vpop.f32.mrf.mxu0
    %v821 = vadd.f32 %v792, %v820
    %822 = vmatmul.bf16.gmra.mxu0 %v285
    %v823 = vpop.f32.mrf.mxu0
    %v824 = vadd.f32 %v795, %v823
    %v825 = vpop.f32.mrf.mxu0
    %v826 = vadd.f32 %v797, %v825
    %827 = vmatmul.bf16.gmra.mxu0 %v293
    %v828 = vpop.f32.mrf.mxu0
    %v829 = vadd.f32 %v800, %v828
    %v830 = vpop.f32.mrf.mxu0
    %v831 = vadd.f32 %v802, %v830
    %832 = vmatmul.bf16.gmra.mxu0 %v301
    %v833 = vpop.f32.mrf.mxu0
    %v834 = vadd.f32 %v805, %v833
    %v835 = vpop.f32.mrf.mxu0
    %v836 = vadd.f32 %v807, %v835
    %837 = vdwg.mxu0
    %838 = vmatpush.bf16.msra.mxu0 %v633
    %839 = vmatpush.bf16.msra.mxu0 %v632
    %840 = vmatpush.bf16.msra.mxu0 %v631
    %841 = vmatpush.bf16.msra.mxu0 %v630
    %842 = vmatpush.bf16.msra.mxu0 %v629
    %843 = vmatpush.bf16.msra.mxu0 %v628
    %844 = vmatpush.bf16.msra.mxu0 %v627
    %845 = vmatpush.bf16.msra.mxu0 %v626
    %846 = vmatmul.bf16.gmra.mxu0 %v278
    %v847 = vpop.f32.mrf.mxu0
    %v848 = vadd.f32 %v819, %v847
    %v849 = vpop.f32.mrf.mxu0
    %v850 = vadd.f32 %v821, %v849
    %851 = vmatmul.bf16.gmra.mxu0 %v286
    %v852 = vpop.f32.mrf.mxu0
    %v853 = vadd.f32 %v824, %v852
    %v854 = vpop.f32.mrf.mxu0
    %v855 = vadd.f32 %v826, %v854
    %856 = vmatmul.bf16.gmra.mxu0 %v294
    %v857 = vpop.f32.mrf.mxu0
    %v858 = vadd.f32 %v829, %v857
    %v859 = vpop.f32.mrf.mxu0
    %v860 = vadd.f32 %v831, %v859
    %861 = vmatmul.bf16.gmra.mxu0 %v302
    %v862 = vpop.f32.mrf.mxu0
    %v863 = vadd.f32 %v834, %v862
    %v864 = vpop.f32.mrf.mxu0
    %v865 = vadd.f32 %v836, %v864
    %866 = vdwg.mxu0
    %867 = vmatpush.bf16.msra.mxu0 %v641
    %868 = vmatpush.bf16.msra.mxu0 %v640
    %869 = vmatpush.bf16.msra.mxu0 %v639
    %870 = vmatpush.bf16.msra.mxu0 %v638
    %871 = vmatpush.bf16.msra.mxu0 %v637
    %872 = vmatpush.bf16.msra.mxu0 %v636
    %873 = vmatpush.bf16.msra.mxu0 %v635
    %874 = vmatpush.bf16.msra.mxu0 %v634
    %875 = vmatmul.bf16.gmra.mxu0 %v279
    %v876 = vpop.f32.mrf.mxu0
    %v877 = vadd.f32 %v848, %v876
    %v878 = vpop.f32.mrf.mxu0
    %v879 = vadd.f32 %v850, %v878
    %880 = vmatmul.bf16.gmra.mxu0 %v287
    %v881 = vpop.f32.mrf.mxu0
    %v882 = vadd.f32 %v853, %v881
    %v883 = vpop.f32.mrf.mxu0
    %v884 = vadd.f32 %v855, %v883
    %885 = vmatmul.bf16.gmra.mxu0 %v295
    %v886 = vpop.f32.mrf.mxu0
    %v887 = vadd.f32 %v858, %v886
    %v888 = vpop.f32.mrf.mxu0
    %v889 = vadd.f32 %v860, %v888
    %890 = vmatmul.bf16.gmra.mxu0 %v303
    %v891 = vpop.f32.mrf.mxu0
    %v892 = vadd.f32 %v863, %v891
    %v893 = vpop.f32.mrf.mxu0
    %v894 = vadd.f32 %v865, %v893
    %895 = vdwg.mxu0
    %896 = vmatpush.bf16.msra.mxu0 %v649
    %897 = vmatpush.bf16.msra.mxu0 %v648
    %898 = vmatpush.bf16.msra.mxu0 %v647
    %899 = vmatpush.bf16.msra.mxu0 %v646
    %900 = vmatpush.bf16.msra.mxu0 %v645
    %901 = vmatpush.bf16.msra.mxu0 %v644
    %902 = vmatpush.bf16.msra.mxu0 %v643
    %903 = vmatpush.bf16.msra.mxu0 %v642
    %904 = vmatmul.bf16.gmra.mxu0 %v280
    %v905 = vpop.f32.mrf.mxu0
    %v906 = vadd.f32 %v877, %v905
    %v907 = vpop.f32.mrf.mxu0
    %v908 = vadd.f32 %v879, %v907
    %909 = vmatmul.bf16.gmra.mxu0 %v288
    %v910 = vpop.f32.mrf.mxu0
    %v911 = vadd.f32 %v882, %v910
    %v912 = vpop.f32.mrf.mxu0
    %v913 = vadd.f32 %v884, %v912
    %914 = vmatmul.bf16.gmra.mxu0 %v296
    %v915 = vpop.f32.mrf.mxu0
    %v916 = vadd.f32 %v887, %v915
    %v917 = vpop.f32.mrf.mxu0
    %v918 = vadd.f32 %v889, %v917
    %919 = vmatmul.bf16.gmra.mxu0 %v304
    %v920 = vpop.f32.mrf.mxu0
    %v921 = vadd.f32 %v892, %v920
    %v922 = vpop.f32.mrf.mxu0
    %v923 = vadd.f32 %v894, %v922
    %924 = vdwg.mxu0
    %925 = vmatpush.bf16.msra.mxu0 %v657
    %926 = vmatpush.bf16.msra.mxu0 %v656
    %927 = vmatpush.bf16.msra.mxu0 %v655
    %928 = vmatpush.bf16.msra.mxu0 %v654
    %929 = vmatpush.bf16.msra.mxu0 %v653
    %930 = vmatpush.bf16.msra.mxu0 %v652
    %931 = vmatpush.bf16.msra.mxu0 %v651
    %932 = vmatpush.bf16.msra.mxu0 %v650
    %933 = vmatmul.bf16.gmra.mxu0 %v281
    %v934 = vpop.f32.mrf.mxu0
    %v935 = vadd.f32 %v906, %v934
    %v936 = vpop.f32.mrf.mxu0
    %v937 = vadd.f32 %v908, %v936
    %938 = vmatmul.bf16.gmra.mxu0 %v289
    %v939 = vpop.f32.mrf.mxu0
    %v940 = vadd.f32 %v911, %v939
    %v941 = vpop.f32.mrf.mxu0
    %v942 = vadd.f32 %v913, %v941
    %943 = vmatmul.bf16.gmra.mxu0 %v297
    %v944 = vpop.f32.mrf.mxu0
    %v945 = vadd.f32 %v916, %v944
    %v946 = vpop.f32.mrf.mxu0
    %v947 = vadd.f32 %v918, %v946
    %948 = vmatmul.bf16.gmra.mxu0 %v305
    %v949 = vpop.f32.mrf.mxu0
    %v950 = vadd.f32 %v921, %v949
    %v951 = vpop.f32.mrf.mxu0
    %v952 = vadd.f32 %v923, %v951
    %953 = vdwg.mxu0
    %vm954 = vcmp.ge.f32.partialorder %v935, 0.0
    %vm955 = vcmp.ge.f32.partialorder %v937, 0.0
    %vm956 = vcmp.ge.f32.partialorder %v940, 0.0
    %vm957 = vcmp.ge.f32.partialorder %v942, 0.0
    %vm958 = vcmp.ge.f32.partialorder %v945, 0.0
    %vm959 = vcmp.ge.f32.partialorder %v947, 0.0
    %vm960 = vcmp.ge.f32.partialorder %v950, 0.0
    %vm961 = vcmp.ge.f32.partialorder %v952, 0.0
    %v962 = vmul.f32 %v935, 0.2
    %v963 = vmul.f32 %v937, 0.2
    %v964 = vmul.f32 %v940, 0.2
    %v965 = vmul.f32 %v942, 0.2
    %v966 = vmul.f32 %v945, 0.2
    %v967 = vmul.f32 %v947, 0.2
    %v968 = vmul.f32 %v950, 0.2
    %v969 = vmul.f32 %v952, 0.2
    %v970 = vsel %vm954, %v935, %v962
    %v971 = vsel %vm955, %v937, %v963
    %v972 = vsel %vm956, %v940, %v964
    %v973 = vsel %vm957, %v942, %v965
    %v974 = vsel %vm958, %v945, %v966
    %v975 = vsel %vm959, %v947, %v967
    %v976 = vsel %vm960, %v950, %v968
    %v977 = vsel %vm961, %v952, %v969
    %v978 = vpack.c.bf16 %v970, %v970
    %v979 = vpack.c.bf16 %v971, %v971
    %v980 = vpack.c.bf16 %v972, %v972
    %v981 = vpack.c.bf16 %v973, %v973
    %v982 = vpack.c.bf16 %v974, %v974
    %v983 = vpack.c.bf16 %v975, %v975
    %v984 = vpack.c.bf16 %v976, %v976
    %v985 = vpack.c.bf16 %v977, %v977
    %986 = vst [vmem:[#allocation2] sm:$0xf] %v978
    %987 = vst [vmem:[#allocation2 + $0x4] sm:$0xf] %v979
    %988 = vst [vmem:[#allocation2 + $0x8] sm:$0xf] %v980
    %989 = vst [vmem:[#allocation2 + $0xc] sm:$0xf] %v981
    %990 = vst [vmem:[#allocation2 + $0x10] sm:$0xf] %v982
    %991 = vst [vmem:[#allocation2 + $0x14] sm:$0xf] %v983
    %992 = vst [vmem:[#allocation2 + $0x18] sm:$0xf] %v984
    %993 = vst [vmem:[#allocation2 + $0x1c] sm:$0xf] %v985
    // Predicated region
    $region14: #{_lambda_.7} parent=1 // pred_check
      _
    $region15: #{_lambda_.7} parent=1 // pred_check_branch
      %995 = sbr.rel (0) target = $region17
    $region16: #{_lambda_.7} parent=1 // pred_region
      // Predicated region
      $region18: #{_lambda_.7} parent=16 // pred_check
        _
      $region19: #{_lambda_.7} parent=16 // pred_check_branch
        %997 = sbr.rel (0) target = $region21
      $region20: #{_lambda_.7} parent=16 // pred_region
        // Predicated region
        $region22: #{_lambda_.7} parent=20 // pred_check
          _
        $region23: #{_lambda_.7} parent=20 // pred_check_branch
          %999 = sbr.rel target = $region25
        $region24: #{_lambda_.7} parent=20 // pred_region
          // Predicated region
          $region37: #{_lambda_.7} parent=24 // pred_check
            _
          $region38: #{_lambda_.7} parent=24 // pred_check_branch
            %1019 = sbr.rel (0) target = $region40
          $region39: #{_lambda_.7} parent=24 // pred_region
            loop: start=0, step=1, limit=1
            $region41: #{_lambda_.7} parent=39 // loop_pre_header
              _
            $region42: #{_lambda_.7} parent=39 // loop_header
              %s1021 = sphi 0, %s1025
              %p1022 = scmp.ge.s32.totalorder %s1021, 1
              %s1026 = sphi [#allocation2], [#allocation2]
              %s1027 = sphi %s3, %s3
            $region43: #{_lambda_.7} parent=39 // loop_header_branch
              %1024 = sbr.rel (%p1022) target = $region47
            $region44: #{_lambda_.7} parent=39 // loop_body
              _
            $region45: #{_lambda_.7} parent=39 // loop_footer
              %s1025 = sadd.s32 1, %s1021
            $region46: #{_lambda_.7} parent=39 // loop_footer_branch
              %1020 = sbr.rel target = $region42
            $region47: #{_lambda_.7} parent=39 // loop_exit
              _
            %s1029 = ssub.s32 16, 1
            loop: start=0, step=1, limit=1
            $region48: #{_lambda_.7} parent=39 // loop_pre_header
              _
            $region49: #{_lambda_.7} parent=39 // loop_header
              %s1031 = sphi 0, %s1035
              %p1032 = scmp.ge.s32.totalorder %s1031, 1
              %s1036 = sphi [#allocation2], [#allocation2]
              %s1037 = sphi %s3, %s3
            $region50: #{_lambda_.7} parent=39 // loop_header_branch
              %1034 = sbr.rel (%p1032) target = $region54
            $region51: #{_lambda_.7} parent=39 // loop_body
              %v1038 = vld [vmem:[%s1036] sm:%s1029]
              %1039 = vst [vmem:[%s1037] sm:%s1029] %v1038
              %v1040 = vld [vmem:[%s1036 + $0x4] sm:%s1029]
              %1041 = vst [vmem:[%s1037 + $0x4] sm:%s1029] %v1040
              %v1042 = vld [vmem:[%s1036 + $0x8] sm:%s1029]
              %1043 = vst [vmem:[%s1037 + $0x8] sm:%s1029] %v1042
            $region52: #{_lambda_.7} parent=39 // loop_footer
              %s1035 = sadd.s32 1, %s1031
            $region53: #{_lambda_.7} parent=39 // loop_footer_branch
              %1030 = sbr.rel target = $region49
            $region54: #{_lambda_.7} parent=39 // loop_exit
              _
          $region40: #{_lambda_.7} parent=24 // pred_fallthru
            _
        $region25: #{_lambda_.7} parent=20 // pred_fallthru
          _
        // Predicated region
        $region26: #{_lambda_.7} parent=20 // pred_check
          _
        $region27: #{_lambda_.7} parent=20 // pred_check_branch
          %1001 = sbr.rel (0) target = $region29
        $region28: #{_lambda_.7} parent=20 // pred_region
          %s1003 = ssub.s32 16, 1
          loop: start=0, step=1, limit=1
          $region30: #{_lambda_.7} parent=28 // loop_pre_header
            _
          $region31: #{_lambda_.7} parent=28 // loop_header
            %s1005 = sphi 0, %s1009
            %p1006 = scmp.ge.s32.totalorder %s1005, 1
            %s1010 = sphi [#allocation2], [#allocation2]
            %s1011 = sphi %s3, %s3
          $region32: #{_lambda_.7} parent=28 // loop_header_branch
            %1008 = sbr.rel (%p1006) target = $region36
          $region33: #{_lambda_.7} parent=28 // loop_body
            %v1012 = vld [vmem:[%s1010] sm:%s1003]
            %1013 = vst [vmem:[%s1011] sm:%s1003] %v1012
            %v1014 = vld [vmem:[%s1010 + $0x4] sm:%s1003]
            %1015 = vst [vmem:[%s1011 + $0x4] sm:%s1003] %v1014
            %v1016 = vld [vmem:[%s1010 + $0x8] sm:%s1003]
            %1017 = vst [vmem:[%s1011 + $0x8] sm:%s1003] %v1016
          $region34: #{_lambda_.7} parent=28 // loop_footer
            %s1009 = sadd.s32 1, %s1005
          $region35: #{_lambda_.7} parent=28 // loop_footer_branch
            %1004 = sbr.rel target = $region31
          $region36: #{_lambda_.7} parent=28 // loop_exit
            _
        $region29: #{_lambda_.7} parent=20 // pred_fallthru
          _
      $region21: #{_lambda_.7} parent=16 // pred_fallthru
        _
      %1044 = vnop
    $region17: #{_lambda_.7} parent=1 // pred_fallthru
      _
    // Predicated region
    $region55: #{_lambda_.7} parent=1 // pred_check
      _
    $region56: #{_lambda_.7} parent=1 // pred_check_branch
      %1046 = sbr.rel (0) target = $region58
    $region57: #{_lambda_.7} parent=1 // pred_region
      _
    $region58: #{_lambda_.7} parent=1 // pred_fallthru
      _

// kernel: _lambda_.8
$region0: #{_lambda_.8}
  #allocation0 [shape = 'u32[]', space=smem, size = 0x4, offset = 0x4, fixed_abs, tag = 'smem constant byte address 0x4 - core index']
  #allocation1 [shape = 'u32[72,128]{1,0:T(1,128)}', space=vmem, size = 0x9000, scoped, tag = 'internal scratch']
  %s0 = inlined_call_operand.vmem [shape: bf16[2,2048], index: 0, kind: input, shape index: {}]
  %s1 = inlined_call_operand.vmem [shape: bf16[2048,256], index: 1, kind: input, shape index: {}]
  %s2 = inlined_call_operand.vmem [shape: f32[1,256], index: 2, kind: input, shape index: {}]
  %s3 = inlined_call_operand.vmem [shape: bf16[2,256], index: 3, kind: output, shape index: {}]
  %s4 = sld [smem:[#allocation0]]
  $region52: #{_lambda_.8} parent=0
    _
  %s6 = ssub.s32 1, %s4
  %s7 = scalar_select 0, %s6, %s4
  $region1: #{_lambda_.8} parent=0
    #allocation2 [shape = 'u8[32768]{0}', space=vmem, size = 0x8000, scoped, tag = 'output window, operand 0, single buffered']
    // Predicated region
    $region2: #{_lambda_.8} parent=1 // pred_check
      _
    $region3: #{_lambda_.8} parent=1 // pred_check_branch
      %9 = sbr.rel (0) target = $region5
    $region4: #{_lambda_.8} parent=1 // pred_region
      _
    $region5: #{_lambda_.8} parent=1 // pred_fallthru
      _
    // Predicated region
    $region6: #{_lambda_.8} parent=1 // pred_check
      _
    $region7: #{_lambda_.8} parent=1 // pred_check_branch
      %11 = sbr.rel (0) target = $region9
    $region8: #{_lambda_.8} parent=1 // pred_region
      _
    $region9: #{_lambda_.8} parent=1 // pred_fallthru
      _
    // Predicated region
    $region10: #{_lambda_.8} parent=1 // pred_check
      _
    $region11: #{_lambda_.8} parent=1 // pred_check_branch
      %13 = sbr.rel (0) target = $region13
    $region12: #{_lambda_.8} parent=1 // pred_region
      _
    $region13: #{_lambda_.8} parent=1 // pred_fallthru
      _
    %v14 = vld [vmem:[%s0] sm:$0xff]
    %v15 = vld [vmem:[%s0 + $0x8] sm:$0xff]
    %v16 = vld [vmem:[%s0 + $0x10] sm:$0xff]
    %v17 = vld [vmem:[%s0 + $0x18] sm:$0xff]
    %v18 = vld [vmem:[%s0 + $0x20] sm:$0xff]
    %v19 = vld [vmem:[%s0 + $0x28] sm:$0xff]
    %v20 = vld [vmem:[%s0 + $0x30] sm:$0xff]
    %v21 = vld [vmem:[%s0 + $0x38] sm:$0xff]
    %v22 = vld [vmem:[%s0 + $0x40] sm:$0xff]
    %v23 = vld [vmem:[%s0 + $0x48] sm:$0xff]
    %v24 = vld [vmem:[%s0 + $0x50] sm:$0xff]
    %v25 = vld [vmem:[%s0 + $0x58] sm:$0xff]
    %v26 = vld [vmem:[%s0 + $0x60] sm:$0xff]
    %v27 = vld [vmem:[%s0 + $0x68] sm:$0xff]
    %v28 = vld [vmem:[%s0 + $0x70] sm:$0xff]
    %v29 = vld [vmem:[%s0 + $0x78] sm:$0xff]
    %v30 = vld [vmem:[%s0 + $0x80] sm:$0xff]
    %v31 = vld [vmem:[%s0 + $0x88] sm:$0xff]
    %v32 = vld [vmem:[%s0 + $0x90] sm:$0xff]
    %v33 = vld [vmem:[%s0 + $0x98] sm:$0xff]
    %v34 = vld [vmem:[%s0 + $0xa0] sm:$0xff]
    %v35 = vld [vmem:[%s0 + $0xa8] sm:$0xff]
    %v36 = vld [vmem:[%s0 + $0xb0] sm:$0xff]
    %v37 = vld [vmem:[%s0 + $0xb8] sm:$0xff]
    %v38 = vld [vmem:[%s0 + $0xc0] sm:$0xff]
    %v39 = vld [vmem:[%s0 + $0xc8] sm:$0xff]
    %v40 = vld [vmem:[%s0 + $0xd0] sm:$0xff]
    %v41 = vld [vmem:[%s0 + $0xd8] sm:$0xff]
    %v42 = vld [vmem:[%s0 + $0xe0] sm:$0xff]
    %v43 = vld [vmem:[%s0 + $0xe8] sm:$0xff]
    %v44 = vld [vmem:[%s0 + $0xf0] sm:$0xff]
    %v45 = vld [vmem:[%s0 + $0xf8] sm:$0xff]
    %v46 = vld [vmem:[%s0 + $0x100] sm:$0xff]
    %v47 = vld [vmem:[%s0 + $0x108] sm:$0xff]
    %v48 = vld [vmem:[%s0 + $0x110] sm:$0xff]
    %v49 = vld [vmem:[%s0 + $0x118] sm:$0xff]
    %v50 = vld [vmem:[%s0 + $0x120] sm:$0xff]
    %v51 = vld [vmem:[%s0 + $0x128] sm:$0xff]
    %v52 = vld [vmem:[%s0 + $0x130] sm:$0xff]
    %v53 = vld [vmem:[%s0 + $0x138] sm:$0xff]
    %v54 = vld [vmem:[%s0 + $0x140] sm:$0xff]
    %v55 = vld [vmem:[%s0 + $0x148] sm:$0xff]
    %v56 = vld [vmem:[%s0 + $0x150] sm:$0xff]
    %v57 = vld [vmem:[%s0 + $0x158] sm:$0xff]
    %v58 = vld [vmem:[%s0 + $0x160] sm:$0xff]
    %v59 = vld [vmem:[%s0 + $0x168] sm:$0xff]
    %v60 = vld [vmem:[%s0 + $0x170] sm:$0xff]
    %v61 = vld [vmem:[%s0 + $0x178] sm:$0xff]
    %v62 = vld [vmem:[%s0 + $0x180] sm:$0xff]
    %v63 = vld [vmem:[%s0 + $0x188] sm:$0xff]
    %v64 = vld [vmem:[%s0 + $0x190] sm:$0xff]
    %v65 = vld [vmem:[%s0 + $0x198] sm:$0xff]
    %v66 = vld [vmem:[%s0 + $0x1a0] sm:$0xff]
    %v67 = vld [vmem:[%s0 + $0x1a8] sm:$0xff]
    %v68 = vld [vmem:[%s0 + $0x1b0] sm:$0xff]
    %v69 = vld [vmem:[%s0 + $0x1b8] sm:$0xff]
    %v70 = vld [vmem:[%s0 + $0x1c0] sm:$0xff]
    %v71 = vld [vmem:[%s0 + $0x1c8] sm:$0xff]
    %v72 = vld [vmem:[%s0 + $0x1d0] sm:$0xff]
    %v73 = vld [vmem:[%s0 + $0x1d8] sm:$0xff]
    %v74 = vld [vmem:[%s0 + $0x1e0] sm:$0xff]
    %v75 = vld [vmem:[%s0 + $0x1e8] sm:$0xff]
    %v76 = vld [vmem:[%s0 + $0x1f0] sm:$0xff]
    %v77 = vld [vmem:[%s0 + $0x1f8] sm:$0xff]
    %v78 = vld [vmem:[%s1] sm:$0xff]
    %v79 = vld [vmem:[%s1 + $0x8] sm:$0xff]
    %v80 = vld [vmem:[%s1 + $0x10] sm:$0xff]
    %v81 = vld [vmem:[%s1 + $0x18] sm:$0xff]
    %v82 = vld [vmem:[%s1 + $0x20] sm:$0xff]
    %v83 = vld [vmem:[%s1 + $0x28] sm:$0xff]
    %v84 = vld [vmem:[%s1 + $0x30] sm:$0xff]
    %v85 = vld [vmem:[%s1 + $0x38] sm:$0xff]
    %v86 = vld [vmem:[%s1 + $0x40] sm:$0xff]
    %v87 = vld [vmem:[%s1 + $0x48] sm:$0xff]
    %v88 = vld [vmem:[%s1 + $0x50] sm:$0xff]
    %v89 = vld [vmem:[%s1 + $0x58] sm:$0xff]
    %v90 = vld [vmem:[%s1 + $0x60] sm:$0xff]
    %v91 = vld [vmem:[%s1 + $0x68] sm:$0xff]
    %v92 = vld [vmem:[%s1 + $0x70] sm:$0xff]
    %v93 = vld [vmem:[%s1 + $0x78] sm:$0xff]
    %v94 = vld [vmem:[%s1 + $0x80] sm:$0xff]
    %v95 = vld [vmem:[%s1 + $0x88] sm:$0xff]
    %v96 = vld [vmem:[%s1 + $0x90] sm:$0xff]
    %v97 = vld [vmem:[%s1 + $0x98] sm:$0xff]
    %v98 = vld [vmem:[%s1 + $0xa0] sm:$0xff]
    %v99 = vld [vmem:[%s1 + $0xa8] sm:$0xff]
    %v100 = vld [vmem:[%s1 + $0xb0] sm:$0xff]
    %v101 = vld [vmem:[%s1 + $0xb8] sm:$0xff]
    %v102 = vld [vmem:[%s1 + $0xc0] sm:$0xff]
    %v103 = vld [vmem:[%s1 + $0xc8] sm:$0xff]
    %v104 = vld [vmem:[%s1 + $0xd0] sm:$0xff]
    %v105 = vld [vmem:[%s1 + $0xd8] sm:$0xff]
    %v106 = vld [vmem:[%s1 + $0xe0] sm:$0xff]
    %v107 = vld [vmem:[%s1 + $0xe8] sm:$0xff]
    %v108 = vld [vmem:[%s1 + $0xf0] sm:$0xff]
    %v109 = vld [vmem:[%s1 + $0xf8] sm:$0xff]
    %v110 = vld [vmem:[%s1 + $0x100] sm:$0xff]
    %v111 = vld [vmem:[%s1 + $0x108] sm:$0xff]
    %v112 = vld [vmem:[%s1 + $0x110] sm:$0xff]
    %v113 = vld [vmem:[%s1 + $0x118] sm:$0xff]
    %v114 = vld [vmem:[%s1 + $0x120] sm:$0xff]
    %v115 = vld [vmem:[%s1 + $0x128] sm:$0xff]
    %v116 = vld [vmem:[%s1 + $0x130] sm:$0xff]
    %v117 = vld [vmem:[%s1 + $0x138] sm:$0xff]
    %v118 = vld [vmem:[%s1 + $0x140] sm:$0xff]
    %v119 = vld [vmem:[%s1 + $0x148] sm:$0xff]
    %v120 = vld [vmem:[%s1 + $0x150] sm:$0xff]
    %v121 = vld [vmem:[%s1 + $0x158] sm:$0xff]
    %v122 = vld [vmem:[%s1 + $0x160] sm:$0xff]
    %v123 = vld [vmem:[%s1 + $0x168] sm:$0xff]
    %v124 = vld [vmem:[%s1 + $0x170] sm:$0xff]
    %v125 = vld [vmem:[%s1 + $0x178] sm:$0xff]
    %v126 = vld [vmem:[%s1 + $0x180] sm:$0xff]
    %v127 = vld [vmem:[%s1 + $0x188] sm:$0xff]
    %v128 = vld [vmem:[%s1 + $0x190] sm:$0xff]
    %v129 = vld [vmem:[%s1 + $0x198] sm:$0xff]
    %v130 = vld [vmem:[%s1 + $0x1a0] sm:$0xff]
    %v131 = vld [vmem:[%s1 + $0x1a8] sm:$0xff]
    %v132 = vld [vmem:[%s1 + $0x1b0] sm:$0xff]
    %v133 = vld [vmem:[%s1 + $0x1b8] sm:$0xff]
    %v134 = vld [vmem:[%s1 + $0x1c0] sm:$0xff]
    %v135 = vld [vmem:[%s1 + $0x1c8] sm:$0xff]
    %v136 = vld [vmem:[%s1 + $0x1d0] sm:$0xff]
    %v137 = vld [vmem:[%s1 + $0x1d8] sm:$0xff]
    %v138 = vld [vmem:[%s1 + $0x1e0] sm:$0xff]
    %v139 = vld [vmem:[%s1 + $0x1e8] sm:$0xff]
    %v140 = vld [vmem:[%s1 + $0x1f0] sm:$0xff]
    %v141 = vld [vmem:[%s1 + $0x1f8] sm:$0xff]
    %v142 = vld [vmem:[%s1 + $0x200] sm:$0xff]
    %v143 = vld [vmem:[%s1 + $0x208] sm:$0xff]
    %v144 = vld [vmem:[%s1 + $0x210] sm:$0xff]
    %v145 = vld [vmem:[%s1 + $0x218] sm:$0xff]
    %v146 = vld [vmem:[%s1 + $0x220] sm:$0xff]
    %v147 = vld [vmem:[%s1 + $0x228] sm:$0xff]
    %v148 = vld [vmem:[%s1 + $0x230] sm:$0xff]
    %v149 = vld [vmem:[%s1 + $0x238] sm:$0xff]
    %v150 = vld [vmem:[%s1 + $0x240] sm:$0xff]
    %v151 = vld [vmem:[%s1 + $0x248] sm:$0xff]
    %v152 = vld [vmem:[%s1 + $0x250] sm:$0xff]
    %v153 = vld [vmem:[%s1 + $0x258] sm:$0xff]
    %v154 = vld [vmem:[%s1 + $0x260] sm:$0xff]
    %v155 = vld [vmem:[%s1 + $0x268] sm:$0xff]
    %v156 = vld [vmem:[%s1 + $0x270] sm:$0xff]
    %v157 = vld [vmem:[%s1 + $0x278] sm:$0xff]
    %v158 = vld [vmem:[%s1 + $0x280] sm:$0xff]
    %v159 = vld [vmem:[%s1 + $0x288] sm:$0xff]
    %v160 = vld [vmem:[%s1 + $0x290] sm:$0xff]
    %v161 = vld [vmem:[%s1 + $0x298] sm:$0xff]
    %v162 = vld [vmem:[%s1 + $0x2a0] sm:$0xff]
    %v163 = vld [vmem:[%s1 + $0x2a8] sm:$0xff]
    %v164 = vld [vmem:[%s1 + $0x2b0] sm:$0xff]
    %v165 = vld [vmem:[%s1 + $0x2b8] sm:$0xff]
    %v166 = vld [vmem:[%s1 + $0x2c0] sm:$0xff]
    %v167 = vld [vmem:[%s1 + $0x2c8] sm:$0xff]
    %v168 = vld [vmem:[%s1 + $0x2d0] sm:$0xff]
    %v169 = vld [vmem:[%s1 + $0x2d8] sm:$0xff]
    %v170 = vld [vmem:[%s1 + $0x2e0] sm:$0xff]
    %v171 = vld [vmem:[%s1 + $0x2e8] sm:$0xff]
    %v172 = vld [vmem:[%s1 + $0x2f0] sm:$0xff]
    %v173 = vld [vmem:[%s1 + $0x2f8] sm:$0xff]
    %v174 = vld [vmem:[%s1 + $0x300] sm:$0xff]
    %v175 = vld [vmem:[%s1 + $0x308] sm:$0xff]
    %v176 = vld [vmem:[%s1 + $0x310] sm:$0xff]
    %v177 = vld [vmem:[%s1 + $0x318] sm:$0xff]
    %v178 = vld [vmem:[%s1 + $0x320] sm:$0xff]
    %v179 = vld [vmem:[%s1 + $0x328] sm:$0xff]
    %v180 = vld [vmem:[%s1 + $0x330] sm:$0xff]
    %v181 = vld [vmem:[%s1 + $0x338] sm:$0xff]
    %v182 = vld [vmem:[%s1 + $0x340] sm:$0xff]
    %v183 = vld [vmem:[%s1 + $0x348] sm:$0xff]
    %v184 = vld [vmem:[%s1 + $0x350] sm:$0xff]
    %v185 = vld [vmem:[%s1 + $0x358] sm:$0xff]
    %v186 = vld [vmem:[%s1 + $0x360] sm:$0xff]
    %v187 = vld [vmem:[%s1 + $0x368] sm:$0xff]
    %v188 = vld [vmem:[%s1 + $0x370] sm:$0xff]
    %v189 = vld [vmem:[%s1 + $0x378] sm:$0xff]
    %v190 = vld [vmem:[%s1 + $0x380] sm:$0xff]
    %v191 = vld [vmem:[%s1 + $0x388] sm:$0xff]
    %v192 = vld [vmem:[%s1 + $0x390] sm:$0xff]
    %v193 = vld [vmem:[%s1 + $0x398] sm:$0xff]
    %v194 = vld [vmem:[%s1 + $0x3a0] sm:$0xff]
    %v195 = vld [vmem:[%s1 + $0x3a8] sm:$0xff]
    %v196 = vld [vmem:[%s1 + $0x3b0] sm:$0xff]
    %v197 = vld [vmem:[%s1 + $0x3b8] sm:$0xff]
    %v198 = vld [vmem:[%s1 + $0x3c0] sm:$0xff]
    %v199 = vld [vmem:[%s1 + $0x3c8] sm:$0xff]
    %v200 = vld [vmem:[%s1 + $0x3d0] sm:$0xff]
    %v201 = vld [vmem:[%s1 + $0x3d8] sm:$0xff]
    %v202 = vld [vmem:[%s1 + $0x3e0] sm:$0xff]
    %v203 = vld [vmem:[%s1 + $0x3e8] sm:$0xff]
    %v204 = vld [vmem:[%s1 + $0x3f0] sm:$0xff]
    %v205 = vld [vmem:[%s1 + $0x3f8] sm:$0xff]
    %v206 = vld [vmem:[%s1 + $0x400] sm:$0xff]
    %v207 = vld [vmem:[%s1 + $0x408] sm:$0xff]
    %v208 = vld [vmem:[%s1 + $0x410] sm:$0xff]
    %v209 = vld [vmem:[%s1 + $0x418] sm:$0xff]
    %v210 = vld [vmem:[%s1 + $0x420] sm:$0xff]
    %v211 = vld [vmem:[%s1 + $0x428] sm:$0xff]
    %v212 = vld [vmem:[%s1 + $0x430] sm:$0xff]
    %v213 = vld [vmem:[%s1 + $0x438] sm:$0xff]
    %v214 = vld [vmem:[%s1 + $0x440] sm:$0xff]
    %v215 = vld [vmem:[%s1 + $0x448] sm:$0xff]
    %v216 = vld [vmem:[%s1 + $0x450] sm:$0xff]
    %v217 = vld [vmem:[%s1 + $0x458] sm:$0xff]
    %v218 = vld [vmem:[%s1 + $0x460] sm:$0xff]
    %v219 = vld [vmem:[%s1 + $0x468] sm:$0xff]
    %v220 = vld [vmem:[%s1 + $0x470] sm:$0xff]
    %v221 = vld [vmem:[%s1 + $0x478] sm:$0xff]
    %v222 = vld [vmem:[%s1 + $0x480] sm:$0xff]
    %v223 = vld [vmem:[%s1 + $0x488] sm:$0xff]
    %v224 = vld [vmem:[%s1 + $0x490] sm:$0xff]
    %v225 = vld [vmem:[%s1 + $0x498] sm:$0xff]
    %v226 = vld [vmem:[%s1 + $0x4a0] sm:$0xff]
    %v227 = vld [vmem:[%s1 + $0x4a8] sm:$0xff]
    %v228 = vld [vmem:[%s1 + $0x4b0] sm:$0xff]
    %v229 = vld [vmem:[%s1 + $0x4b8] sm:$0xff]
    %v230 = vld [vmem:[%s1 + $0x4c0] sm:$0xff]
    %v231 = vld [vmem:[%s1 + $0x4c8] sm:$0xff]
    %v232 = vld [vmem:[%s1 + $0x4d0] sm:$0xff]
    %v233 = vld [vmem:[%s1 + $0x4d8] sm:$0xff]
    %v234 = vld [vmem:[%s1 + $0x4e0] sm:$0xff]
    %v235 = vld [vmem:[%s1 + $0x4e8] sm:$0xff]
    %v236 = vld [vmem:[%s1 + $0x4f0] sm:$0xff]
    %v237 = vld [vmem:[%s1 + $0x4f8] sm:$0xff]
    %v238 = vld [vmem:[%s1 + $0x500] sm:$0xff]
    %v239 = vld [vmem:[%s1 + $0x508] sm:$0xff]
    %v240 = vld [vmem:[%s1 + $0x510] sm:$0xff]
    %v241 = vld [vmem:[%s1 + $0x518] sm:$0xff]
    %v242 = vld [vmem:[%s1 + $0x520] sm:$0xff]
    %v243 = vld [vmem:[%s1 + $0x528] sm:$0xff]
    %v244 = vld [vmem:[%s1 + $0x530] sm:$0xff]
    %v245 = vld [vmem:[%s1 + $0x538] sm:$0xff]
    %v246 = vld [vmem:[%s1 + $0x540] sm:$0xff]
    %v247 = vld [vmem:[%s1 + $0x548] sm:$0xff]
    %v248 = vld [vmem:[%s1 + $0x550] sm:$0xff]
    %v249 = vld [vmem:[%s1 + $0x558] sm:$0xff]
    %v250 = vld [vmem:[%s1 + $0x560] sm:$0xff]
    %v251 = vld [vmem:[%s1 + $0x568] sm:$0xff]
    %v252 = vld [vmem:[%s1 + $0x570] sm:$0xff]
    %v253 = vld [vmem:[%s1 + $0x578] sm:$0xff]
    %v254 = vld [vmem:[%s1 + $0x580] sm:$0xff]
    %v255 = vld [vmem:[%s1 + $0x588] sm:$0xff]
    %v256 = vld [vmem:[%s1 + $0x590] sm:$0xff]
    %v257 = vld [vmem:[%s1 + $0x598] sm:$0xff]
    %v258 = vld [vmem:[%s1 + $0x5a0] sm:$0xff]
    %v259 = vld [vmem:[%s1 + $0x5a8] sm:$0xff]
    %v260 = vld [vmem:[%s1 + $0x5b0] sm:$0xff]
    %v261 = vld [vmem:[%s1 + $0x5b8] sm:$0xff]
    %v262 = vld [vmem:[%s1 + $0x5c0] sm:$0xff]
    %v263 = vld [vmem:[%s1 + $0x5c8] sm:$0xff]
    %v264 = vld [vmem:[%s1 + $0x5d0] sm:$0xff]
    %v265 = vld [vmem:[%s1 + $0x5d8] sm:$0xff]
    %v266 = vld [vmem:[%s1 + $0x5e0] sm:$0xff]
    %v267 = vld [vmem:[%s1 + $0x5e8] sm:$0xff]
    %v268 = vld [vmem:[%s1 + $0x5f0] sm:$0xff]
    %v269 = vld [vmem:[%s1 + $0x5f8] sm:$0xff]
    %v270 = vld [vmem:[%s1 + $0x600] sm:$0xff]
    %v271 = vld [vmem:[%s1 + $0x608] sm:$0xff]
    %v272 = vld [vmem:[%s1 + $0x610] sm:$0xff]
    %v273 = vld [vmem:[%s1 + $0x618] sm:$0xff]
    %v274 = vld [vmem:[%s1 + $0x620] sm:$0xff]
    %v275 = vld [vmem:[%s1 + $0x628] sm:$0xff]
    %v276 = vld [vmem:[%s1 + $0x630] sm:$0xff]
    %v277 = vld [vmem:[%s1 + $0x638] sm:$0xff]
    %v278 = vld [vmem:[%s1 + $0x640] sm:$0xff]
    %v279 = vld [vmem:[%s1 + $0x648] sm:$0xff]
    %v280 = vld [vmem:[%s1 + $0x650] sm:$0xff]
    %v281 = vld [vmem:[%s1 + $0x658] sm:$0xff]
    %v282 = vld [vmem:[%s1 + $0x660] sm:$0xff]
    %v283 = vld [vmem:[%s1 + $0x668] sm:$0xff]
    %v284 = vld [vmem:[%s1 + $0x670] sm:$0xff]
    %v285 = vld [vmem:[%s1 + $0x678] sm:$0xff]
    %v286 = vld [vmem:[%s1 + $0x680] sm:$0xff]
    %v287 = vld [vmem:[%s1 + $0x688] sm:$0xff]
    %v288 = vld [vmem:[%s1 + $0x690] sm:$0xff]
    %v289 = vld [vmem:[%s1 + $0x698] sm:$0xff]
    %v290 = vld [vmem:[%s1 + $0x6a0] sm:$0xff]
    %v291 = vld [vmem:[%s1 + $0x6a8] sm:$0xff]
    %v292 = vld [vmem:[%s1 + $0x6b0] sm:$0xff]
    %v293 = vld [vmem:[%s1 + $0x6b8] sm:$0xff]
    %v294 = vld [vmem:[%s1 + $0x6c0] sm:$0xff]
    %v295 = vld [vmem:[%s1 + $0x6c8] sm:$0xff]
    %v296 = vld [vmem:[%s1 + $0x6d0] sm:$0xff]
    %v297 = vld [vmem:[%s1 + $0x6d8] sm:$0xff]
    %v298 = vld [vmem:[%s1 + $0x6e0] sm:$0xff]
    %v299 = vld [vmem:[%s1 + $0x6e8] sm:$0xff]
    %v300 = vld [vmem:[%s1 + $0x6f0] sm:$0xff]
    %v301 = vld [vmem:[%s1 + $0x6f8] sm:$0xff]
    %v302 = vld [vmem:[%s1 + $0x700] sm:$0xff]
    %v303 = vld [vmem:[%s1 + $0x708] sm:$0xff]
    %v304 = vld [vmem:[%s1 + $0x710] sm:$0xff]
    %v305 = vld [vmem:[%s1 + $0x718] sm:$0xff]
    %v306 = vld [vmem:[%s1 + $0x720] sm:$0xff]
    %v307 = vld [vmem:[%s1 + $0x728] sm:$0xff]
    %v308 = vld [vmem:[%s1 + $0x730] sm:$0xff]
    %v309 = vld [vmem:[%s1 + $0x738] sm:$0xff]
    %v310 = vld [vmem:[%s1 + $0x740] sm:$0xff]
    %v311 = vld [vmem:[%s1 + $0x748] sm:$0xff]
    %v312 = vld [vmem:[%s1 + $0x750] sm:$0xff]
    %v313 = vld [vmem:[%s1 + $0x758] sm:$0xff]
    %v314 = vld [vmem:[%s1 + $0x760] sm:$0xff]
    %v315 = vld [vmem:[%s1 + $0x768] sm:$0xff]
    %v316 = vld [vmem:[%s1 + $0x770] sm:$0xff]
    %v317 = vld [vmem:[%s1 + $0x778] sm:$0xff]
    %v318 = vld [vmem:[%s1 + $0x780] sm:$0xff]
    %v319 = vld [vmem:[%s1 + $0x788] sm:$0xff]
    %v320 = vld [vmem:[%s1 + $0x790] sm:$0xff]
    %v321 = vld [vmem:[%s1 + $0x798] sm:$0xff]
    %v322 = vld [vmem:[%s1 + $0x7a0] sm:$0xff]
    %v323 = vld [vmem:[%s1 + $0x7a8] sm:$0xff]
    %v324 = vld [vmem:[%s1 + $0x7b0] sm:$0xff]
    %v325 = vld [vmem:[%s1 + $0x7b8] sm:$0xff]
    %v326 = vld [vmem:[%s1 + $0x7c0] sm:$0xff]
    %v327 = vld [vmem:[%s1 + $0x7c8] sm:$0xff]
    %v328 = vld [vmem:[%s1 + $0x7d0] sm:$0xff]
    %v329 = vld [vmem:[%s1 + $0x7d8] sm:$0xff]
    %v330 = vld [vmem:[%s1 + $0x7e0] sm:$0xff]
    %v331 = vld [vmem:[%s1 + $0x7e8] sm:$0xff]
    %v332 = vld [vmem:[%s1 + $0x7f0] sm:$0xff]
    %v333 = vld [vmem:[%s1 + $0x7f8] sm:$0xff]
    %v334 = vld [vmem:[%s2] sm:$0x3]
    %v336 = vperm.slane %v334, 0
    %v337 = vperm.slane %v334, 1
    %341 = vst [vmem:[#allocation1] ss:$9 sm:$0xff] %v14
    %s343 = scalar_lea.vmem [#allocation1], 1
    %344 = vst [vmem:[%s343] ss:$9 sm:$0xff] %v16
    %s346 = scalar_lea.vmem [#allocation1], 2
    %347 = vst [vmem:[%s346] ss:$9 sm:$0xff] %v18
    %s349 = scalar_lea.vmem [#allocation1], 3
    %350 = vst [vmem:[%s349] ss:$9 sm:$0xff] %v20
    %s352 = scalar_lea.vmem [#allocation1], 4
    %353 = vst [vmem:[%s352] ss:$9 sm:$0xff] %v22
    %s355 = scalar_lea.vmem [#allocation1], 5
    %356 = vst [vmem:[%s355] ss:$9 sm:$0xff] %v24
    %s358 = scalar_lea.vmem [#allocation1], 6
    %359 = vst [vmem:[%s358] ss:$9 sm:$0xff] %v26
    %s361 = scalar_lea.vmem [#allocation1], 7
    %362 = vst [vmem:[%s361] ss:$9 sm:$0xff] %v28
    %v363 = vld [vmem:[#allocation1] sm:$0xff]
    %v364 = vld [vmem:[#allocation1 + $0x9] sm:$0xff]
    %v365 = vld [vmem:[#allocation1 + $0x12] sm:$0xff]
    %v366 = vld [vmem:[#allocation1 + $0x1b] sm:$0xff]
    %v367 = vld [vmem:[#allocation1 + $0x24] sm:$0xff]
    %v368 = vld [vmem:[#allocation1 + $0x2d] sm:$0xff]
    %v369 = vld [vmem:[#allocation1 + $0x36] sm:$0xff]
    %v370 = vld [vmem:[#allocation1 + $0x3f] sm:$0xff]
    %372 = vst [vmem:[#allocation1] ss:$9 sm:$0xff] %v15
    %374 = vst [vmem:[%s343] ss:$9 sm:$0xff] %v17
    %376 = vst [vmem:[%s346] ss:$9 sm:$0xff] %v19
    %378 = vst [vmem:[%s349] ss:$9 sm:$0xff] %v21
    %380 = vst [vmem:[%s352] ss:$9 sm:$0xff] %v23
    %382 = vst [vmem:[%s355] ss:$9 sm:$0xff] %v25
    %384 = vst [vmem:[%s358] ss:$9 sm:$0xff] %v27
    %386 = vst [vmem:[%s361] ss:$9 sm:$0xff] %v29
    %v387 = vld [vmem:[#allocation1] sm:$0xff]
    %v388 = vld [vmem:[#allocation1 + $0x9] sm:$0xff]
    %v389 = vld [vmem:[#allocation1 + $0x12] sm:$0xff]
    %v390 = vld [vmem:[#allocation1 + $0x1b] sm:$0xff]
    %v391 = vld [vmem:[#allocation1 + $0x24] sm:$0xff]
    %v392 = vld [vmem:[#allocation1 + $0x2d] sm:$0xff]
    %v393 = vld [vmem:[#allocation1 + $0x36] sm:$0xff]
    %v394 = vld [vmem:[#allocation1 + $0x3f] sm:$0xff]
    %396 = vst [vmem:[#allocation1] ss:$9 sm:$0xff] %v30
    %398 = vst [vmem:[%s343] ss:$9 sm:$0xff] %v32
    %400 = vst [vmem:[%s346] ss:$9 sm:$0xff] %v34
    %402 = vst [vmem:[%s349] ss:$9 sm:$0xff] %v36
    %404 = vst [vmem:[%s352] ss:$9 sm:$0xff] %v38
    %406 = vst [vmem:[%s355] ss:$9 sm:$0xff] %v40
    %408 = vst [vmem:[%s358] ss:$9 sm:$0xff] %v42
    %410 = vst [vmem:[%s361] ss:$9 sm:$0xff] %v44
    %v411 = vld [vmem:[#allocation1] sm:$0xff]
    %v412 = vld [vmem:[#allocation1 + $0x9] sm:$0xff]
    %v413 = vld [vmem:[#allocation1 + $0x12] sm:$0xff]
    %v414 = vld [vmem:[#allocation1 + $0x1b] sm:$0xff]
    %v415 = vld [vmem:[#allocation1 + $0x24] sm:$0xff]
    %v416 = vld [vmem:[#allocation1 + $0x2d] sm:$0xff]
    %v417 = vld [vmem:[#allocation1 + $0x36] sm:$0xff]
    %v418 = vld [vmem:[#allocation1 + $0x3f] sm:$0xff]
    %420 = vst [vmem:[#allocation1] ss:$9 sm:$0xff] %v31
    %422 = vst [vmem:[%s343] ss:$9 sm:$0xff] %v33
    %424 = vst [vmem:[%s346] ss:$9 sm:$0xff] %v35
    %426 = vst [vmem:[%s349] ss:$9 sm:$0xff] %v37
    %428 = vst [vmem:[%s352] ss:$9 sm:$0xff] %v39
    %430 = vst [vmem:[%s355] ss:$9 sm:$0xff] %v41
    %432 = vst [vmem:[%s358] ss:$9 sm:$0xff] %v43
    %434 = vst [vmem:[%s361] ss:$9 sm:$0xff] %v45
    %v435 = vld [vmem:[#allocation1] sm:$0xff]
    %v436 = vld [vmem:[#allocation1 + $0x9] sm:$0xff]
    %v437 = vld [vmem:[#allocation1 + $0x12] sm:$0xff]
    %v438 = vld [vmem:[#allocation1 + $0x1b] sm:$0xff]
    %v439 = vld [vmem:[#allocation1 + $0x24] sm:$0xff]
    %v440 = vld [vmem:[#allocation1 + $0x2d] sm:$0xff]
    %v441 = vld [vmem:[#allocation1 + $0x36] sm:$0xff]
    %v442 = vld [vmem:[#allocation1 + $0x3f] sm:$0xff]
    %444 = vst [vmem:[#allocation1] ss:$9 sm:$0xff] %v46
    %446 = vst [vmem:[%s343] ss:$9 sm:$0xff] %v48
    %448 = vst [vmem:[%s346] ss:$9 sm:$0xff] %v50
    %450 = vst [vmem:[%s349] ss:$9 sm:$0xff] %v52
    %452 = vst [vmem:[%s352] ss:$9 sm:$0xff] %v54
    %454 = vst [vmem:[%s355] ss:$9 sm:$0xff] %v56
    %456 = vst [vmem:[%s358] ss:$9 sm:$0xff] %v58
    %458 = vst [vmem:[%s361] ss:$9 sm:$0xff] %v60
    %v459 = vld [vmem:[#allocation1] sm:$0xff]
    %v460 = vld [vmem:[#allocation1 + $0x9] sm:$0xff]
    %v461 = vld [vmem:[#allocation1 + $0x12] sm:$0xff]
    %v462 = vld [vmem:[#allocation1 + $0x1b] sm:$0xff]
    %v463 = vld [vmem:[#allocation1 + $0x24] sm:$0xff]
    %v464 = vld [vmem:[#allocation1 + $0x2d] sm:$0xff]
    %v465 = vld [vmem:[#allocation1 + $0x36] sm:$0xff]
    %v466 = vld [vmem:[#allocation1 + $0x3f] sm:$0xff]
    %468 = vst [vmem:[#allocation1] ss:$9 sm:$0xff] %v47
    %470 = vst [vmem:[%s343] ss:$9 sm:$0xff] %v49
    %472 = vst [vmem:[%s346] ss:$9 sm:$0xff] %v51
    %474 = vst [vmem:[%s349] ss:$9 sm:$0xff] %v53
    %476 = vst [vmem:[%s352] ss:$9 sm:$0xff] %v55
    %478 = vst [vmem:[%s355] ss:$9 sm:$0xff] %v57
    %480 = vst [vmem:[%s358] ss:$9 sm:$0xff] %v59
    %482 = vst [vmem:[%s361] ss:$9 sm:$0xff] %v61
    %v483 = vld [vmem:[#allocation1] sm:$0xff]
    %v484 = vld [vmem:[#allocation1 + $0x9] sm:$0xff]
    %v485 = vld [vmem:[#allocation1 + $0x12] sm:$0xff]
    %v486 = vld [vmem:[#allocation1 + $0x1b] sm:$0xff]
    %v487 = vld [vmem:[#allocation1 + $0x24] sm:$0xff]
    %v488 = vld [vmem:[#allocation1 + $0x2d] sm:$0xff]
    %v489 = vld [vmem:[#allocation1 + $0x36] sm:$0xff]
    %v490 = vld [vmem:[#allocation1 + $0x3f] sm:$0xff]
    %492 = vst [vmem:[#allocation1] ss:$9 sm:$0xff] %v62
    %494 = vst [vmem:[%s343] ss:$9 sm:$0xff] %v64
    %496 = vst [vmem:[%s346] ss:$9 sm:$0xff] %v66
    %498 = vst [vmem:[%s349] ss:$9 sm:$0xff] %v68
    %500 = vst [vmem:[%s352] ss:$9 sm:$0xff] %v70
    %502 = vst [vmem:[%s355] ss:$9 sm:$0xff] %v72
    %504 = vst [vmem:[%s358] ss:$9 sm:$0xff] %v74
    %506 = vst [vmem:[%s361] ss:$9 sm:$0xff] %v76
    %v507 = vld [vmem:[#allocation1] sm:$0xff]
    %v508 = vld [vmem:[#allocation1 + $0x9] sm:$0xff]
    %v509 = vld [vmem:[#allocation1 + $0x12] sm:$0xff]
    %v510 = vld [vmem:[#allocation1 + $0x1b] sm:$0xff]
    %v511 = vld [vmem:[#allocation1 + $0x24] sm:$0xff]
    %v512 = vld [vmem:[#allocation1 + $0x2d] sm:$0xff]
    %v513 = vld [vmem:[#allocation1 + $0x36] sm:$0xff]
    %v514 = vld [vmem:[#allocation1 + $0x3f] sm:$0xff]
    %516 = vst [vmem:[#allocation1] ss:$9 sm:$0xff] %v63
    %518 = vst [vmem:[%s343] ss:$9 sm:$0xff] %v65
    %520 = vst [vmem:[%s346] ss:$9 sm:$0xff] %v67
    %522 = vst [vmem:[%s349] ss:$9 sm:$0xff] %v69
    %524 = vst [vmem:[%s352] ss:$9 sm:$0xff] %v71
    %526 = vst [vmem:[%s355] ss:$9 sm:$0xff] %v73
    %528 = vst [vmem:[%s358] ss:$9 sm:$0xff] %v75
    %530 = vst [vmem:[%s361] ss:$9 sm:$0xff] %v77
    %v531 = vld [vmem:[#allocation1] sm:$0xff]
    %v532 = vld [vmem:[#allocation1 + $0x9] sm:$0xff]
    %v533 = vld [vmem:[#allocation1 + $0x12] sm:$0xff]
    %v534 = vld [vmem:[#allocation1 + $0x1b] sm:$0xff]
    %v535 = vld [vmem:[#allocation1 + $0x24] sm:$0xff]
    %v536 = vld [vmem:[#allocation1 + $0x2d] sm:$0xff]
    %v537 = vld [vmem:[#allocation1 + $0x36] sm:$0xff]
    %v538 = vld [vmem:[#allocation1 + $0x3f] sm:$0xff]
    %v859 = vunpack.c.l.b16 %v78
    %v860 = vunpack.c.h.b16 %v78
    %v861 = vunpack.c.l.b16 %v79
    %v862 = vunpack.c.h.b16 %v79
    %v863 = vunpack.c.l.b16 %v80
    %v864 = vunpack.c.h.b16 %v80
    %v865 = vunpack.c.l.b16 %v81
    %v866 = vunpack.c.h.b16 %v81
    %v867 = vunpack.c.l.b16 %v82
    %v868 = vunpack.c.h.b16 %v82
    %v869 = vunpack.c.l.b16 %v83
    %v870 = vunpack.c.h.b16 %v83
    %v871 = vunpack.c.l.b16 %v84
    %v872 = vunpack.c.h.b16 %v84
    %v873 = vunpack.c.l.b16 %v85
    %v874 = vunpack.c.h.b16 %v85
    %v875 = vunpack.c.l.b16 %v86
    %v876 = vunpack.c.h.b16 %v86
    %v877 = vunpack.c.l.b16 %v87
    %v878 = vunpack.c.h.b16 %v87
    %v879 = vunpack.c.l.b16 %v88
    %v880 = vunpack.c.h.b16 %v88
    %v881 = vunpack.c.l.b16 %v89
    %v882 = vunpack.c.h.b16 %v89
    %v883 = vunpack.c.l.b16 %v90
    %v884 = vunpack.c.h.b16 %v90
    %v885 = vunpack.c.l.b16 %v91
    %v886 = vunpack.c.h.b16 %v91
    %v887 = vunpack.c.l.b16 %v92
    %v888 = vunpack.c.h.b16 %v92
    %v889 = vunpack.c.l.b16 %v93
    %v890 = vunpack.c.h.b16 %v93
    %v891 = vunpack.c.l.b16 %v94
    %v892 = vunpack.c.h.b16 %v94
    %v893 = vunpack.c.l.b16 %v95
    %v894 = vunpack.c.h.b16 %v95
    %v895 = vunpack.c.l.b16 %v96
    %v896 = vunpack.c.h.b16 %v96
    %v897 = vunpack.c.l.b16 %v97
    %v898 = vunpack.c.h.b16 %v97
    %v899 = vunpack.c.l.b16 %v98
    %v900 = vunpack.c.h.b16 %v98
    %v901 = vunpack.c.l.b16 %v99
    %v902 = vunpack.c.h.b16 %v99
    %v903 = vunpack.c.l.b16 %v100
    %v904 = vunpack.c.h.b16 %v100
    %v905 = vunpack.c.l.b16 %v101
    %v906 = vunpack.c.h.b16 %v101
    %v907 = vunpack.c.l.b16 %v102
    %v908 = vunpack.c.h.b16 %v102
    %v909 = vunpack.c.l.b16 %v103
    %v910 = vunpack.c.h.b16 %v103
    %v911 = vunpack.c.l.b16 %v104
    %v912 = vunpack.c.h.b16 %v104
    %v913 = vunpack.c.l.b16 %v105
    %v914 = vunpack.c.h.b16 %v105
    %v915 = vunpack.c.l.b16 %v106
    %v916 = vunpack.c.h.b16 %v106
    %v917 = vunpack.c.l.b16 %v107
    %v918 = vunpack.c.h.b16 %v107
    %v919 = vunpack.c.l.b16 %v108
    %v920 = vunpack.c.h.b16 %v108
    %v921 = vunpack.c.l.b16 %v109
    %v922 = vunpack.c.h.b16 %v109
    %v923 = vunpack.c.l.b16 %v110
    %v924 = vunpack.c.h.b16 %v110
    %v925 = vunpack.c.l.b16 %v111
    %v926 = vunpack.c.h.b16 %v111
    %v927 = vunpack.c.l.b16 %v112
    %v928 = vunpack.c.h.b16 %v112
    %v929 = vunpack.c.l.b16 %v113
    %v930 = vunpack.c.h.b16 %v113
    %v931 = vunpack.c.l.b16 %v114
    %v932 = vunpack.c.h.b16 %v114
    %v933 = vunpack.c.l.b16 %v115
    %v934 = vunpack.c.h.b16 %v115
    %v935 = vunpack.c.l.b16 %v116
    %v936 = vunpack.c.h.b16 %v116
    %v937 = vunpack.c.l.b16 %v117
    %v938 = vunpack.c.h.b16 %v117
    %v939 = vunpack.c.l.b16 %v118
    %v940 = vunpack.c.h.b16 %v118
    %v941 = vunpack.c.l.b16 %v119
    %v942 = vunpack.c.h.b16 %v119
    %v943 = vunpack.c.l.b16 %v120
    %v944 = vunpack.c.h.b16 %v120
    %v945 = vunpack.c.l.b16 %v121
    %v946 = vunpack.c.h.b16 %v121
    %v947 = vunpack.c.l.b16 %v122
    %v948 = vunpack.c.h.b16 %v122
    %v949 = vunpack.c.l.b16 %v123
    %v950 = vunpack.c.h.b16 %v123
    %v951 = vunpack.c.l.b16 %v124
    %v952 = vunpack.c.h.b16 %v124
    %v953 = vunpack.c.l.b16 %v125
    %v954 = vunpack.c.h.b16 %v125
    %v955 = vunpack.c.l.b16 %v126
    %v956 = vunpack.c.h.b16 %v126
    %v957 = vunpack.c.l.b16 %v127
    %v958 = vunpack.c.h.b16 %v127
    %v959 = vunpack.c.l.b16 %v128
    %v960 = vunpack.c.h.b16 %v128
    %v961 = vunpack.c.l.b16 %v129
    %v962 = vunpack.c.h.b16 %v129
    %v963 = vunpack.c.l.b16 %v130
    %v964 = vunpack.c.h.b16 %v130
    %v965 = vunpack.c.l.b16 %v131
    %v966 = vunpack.c.h.b16 %v131
    %v967 = vunpack.c.l.b16 %v132
    %v968 = vunpack.c.h.b16 %v132
    %v969 = vunpack.c.l.b16 %v133
    %v970 = vunpack.c.h.b16 %v133
    %v971 = vunpack.c.l.b16 %v134
    %v972 = vunpack.c.h.b16 %v134
    %v973 = vunpack.c.l.b16 %v135
    %v974 = vunpack.c.h.b16 %v135
    %v975 = vunpack.c.l.b16 %v136
    %v976 = vunpack.c.h.b16 %v136
    %v977 = vunpack.c.l.b16 %v137
    %v978 = vunpack.c.h.b16 %v137
    %v979 = vunpack.c.l.b16 %v138
    %v980 = vunpack.c.h.b16 %v138
    %v981 = vunpack.c.l.b16 %v139
    %v982 = vunpack.c.h.b16 %v139
    %v983 = vunpack.c.l.b16 %v140
    %v984 = vunpack.c.h.b16 %v140
    %v985 = vunpack.c.l.b16 %v141
    %v986 = vunpack.c.h.b16 %v141
    %v987 = vunpack.c.l.b16 %v142
    %v988 = vunpack.c.h.b16 %v142
    %v989 = vunpack.c.l.b16 %v143
    %v990 = vunpack.c.h.b16 %v143
    %v991 = vunpack.c.l.b16 %v144
    %v992 = vunpack.c.h.b16 %v144
    %v993 = vunpack.c.l.b16 %v145
    %v994 = vunpack.c.h.b16 %v145
    %v995 = vunpack.c.l.b16 %v146
    %v996 = vunpack.c.h.b16 %v146
    %v997 = vunpack.c.l.b16 %v147
    %v998 = vunpack.c.h.b16 %v147
    %v999 = vunpack.c.l.b16 %v148
    %v1000 = vunpack.c.h.b16 %v148
    %v1001 = vunpack.c.l.b16 %v149
    %v1002 = vunpack.c.h.b16 %v149
    %v1003 = vunpack.c.l.b16 %v150
    %v1004 = vunpack.c.h.b16 %v150
    %v1005 = vunpack.c.l.b16 %v151
    %v1006 = vunpack.c.h.b16 %v151
    %v1007 = vunpack.c.l.b16 %v152
    %v1008 = vunpack.c.h.b16 %v152
    %v1009 = vunpack.c.l.b16 %v153
    %v1010 = vunpack.c.h.b16 %v153
    %v1011 = vunpack.c.l.b16 %v154
    %v1012 = vunpack.c.h.b16 %v154
    %v1013 = vunpack.c.l.b16 %v155
    %v1014 = vunpack.c.h.b16 %v155
    %v1015 = vunpack.c.l.b16 %v156
    %v1016 = vunpack.c.h.b16 %v156
    %v1017 = vunpack.c.l.b16 %v157
    %v1018 = vunpack.c.h.b16 %v157
    %v1019 = vunpack.c.l.b16 %v158
    %v1020 = vunpack.c.h.b16 %v158
    %v1021 = vunpack.c.l.b16 %v159
    %v1022 = vunpack.c.h.b16 %v159
    %v1023 = vunpack.c.l.b16 %v160
    %v1024 = vunpack.c.h.b16 %v160
    %v1025 = vunpack.c.l.b16 %v161
    %v1026 = vunpack.c.h.b16 %v161
    %v1027 = vunpack.c.l.b16 %v162
    %v1028 = vunpack.c.h.b16 %v162
    %v1029 = vunpack.c.l.b16 %v163
    %v1030 = vunpack.c.h.b16 %v163
    %v1031 = vunpack.c.l.b16 %v164
    %v1032 = vunpack.c.h.b16 %v164
    %v1033 = vunpack.c.l.b16 %v165
    %v1034 = vunpack.c.h.b16 %v165
    %v1035 = vunpack.c.l.b16 %v166
    %v1036 = vunpack.c.h.b16 %v166
    %v1037 = vunpack.c.l.b16 %v167
    %v1038 = vunpack.c.h.b16 %v167
    %v1039 = vunpack.c.l.b16 %v168
    %v1040 = vunpack.c.h.b16 %v168
    %v1041 = vunpack.c.l.b16 %v169
    %v1042 = vunpack.c.h.b16 %v169
    %v1043 = vunpack.c.l.b16 %v170
    %v1044 = vunpack.c.h.b16 %v170
    %v1045 = vunpack.c.l.b16 %v171
    %v1046 = vunpack.c.h.b16 %v171
    %v1047 = vunpack.c.l.b16 %v172
    %v1048 = vunpack.c.h.b16 %v172
    %v1049 = vunpack.c.l.b16 %v173
    %v1050 = vunpack.c.h.b16 %v173
    %v1051 = vunpack.c.l.b16 %v174
    %v1052 = vunpack.c.h.b16 %v174
    %v1053 = vunpack.c.l.b16 %v175
    %v1054 = vunpack.c.h.b16 %v175
    %v1055 = vunpack.c.l.b16 %v176
    %v1056 = vunpack.c.h.b16 %v176
    %v1057 = vunpack.c.l.b16 %v177
    %v1058 = vunpack.c.h.b16 %v177
    %v1059 = vunpack.c.l.b16 %v178
    %v1060 = vunpack.c.h.b16 %v178
    %v1061 = vunpack.c.l.b16 %v179
    %v1062 = vunpack.c.h.b16 %v179
    %v1063 = vunpack.c.l.b16 %v180
    %v1064 = vunpack.c.h.b16 %v180
    %v1065 = vunpack.c.l.b16 %v181
    %v1066 = vunpack.c.h.b16 %v181
    %v1067 = vunpack.c.l.b16 %v182
    %v1068 = vunpack.c.h.b16 %v182
    %v1069 = vunpack.c.l.b16 %v183
    %v1070 = vunpack.c.h.b16 %v183
    %v1071 = vunpack.c.l.b16 %v184
    %v1072 = vunpack.c.h.b16 %v184
    %v1073 = vunpack.c.l.b16 %v185
    %v1074 = vunpack.c.h.b16 %v185
    %v1075 = vunpack.c.l.b16 %v186
    %v1076 = vunpack.c.h.b16 %v186
    %v1077 = vunpack.c.l.b16 %v187
    %v1078 = vunpack.c.h.b16 %v187
    %v1079 = vunpack.c.l.b16 %v188
    %v1080 = vunpack.c.h.b16 %v188
    %v1081 = vunpack.c.l.b16 %v189
    %v1082 = vunpack.c.h.b16 %v189
    %v1083 = vunpack.c.l.b16 %v190
    %v1084 = vunpack.c.h.b16 %v190
    %v1085 = vunpack.c.l.b16 %v191
    %v1086 = vunpack.c.h.b16 %v191
    %v1087 = vunpack.c.l.b16 %v192
    %v1088 = vunpack.c.h.b16 %v192
    %v1089 = vunpack.c.l.b16 %v193
    %v1090 = vunpack.c.h.b16 %v193
    %v1091 = vunpack.c.l.b16 %v194
    %v1092 = vunpack.c.h.b16 %v194
    %v1093 = vunpack.c.l.b16 %v195
    %v1094 = vunpack.c.h.b16 %v195
    %v1095 = vunpack.c.l.b16 %v196
    %v1096 = vunpack.c.h.b16 %v196
    %v1097 = vunpack.c.l.b16 %v197
    %v1098 = vunpack.c.h.b16 %v197
    %v1099 = vunpack.c.l.b16 %v198
    %v1100 = vunpack.c.h.b16 %v198
    %v1101 = vunpack.c.l.b16 %v199
    %v1102 = vunpack.c.h.b16 %v199
    %v1103 = vunpack.c.l.b16 %v200
    %v1104 = vunpack.c.h.b16 %v200
    %v1105 = vunpack.c.l.b16 %v201
    %v1106 = vunpack.c.h.b16 %v201
    %v1107 = vunpack.c.l.b16 %v202
    %v1108 = vunpack.c.h.b16 %v202
    %v1109 = vunpack.c.l.b16 %v203
    %v1110 = vunpack.c.h.b16 %v203
    %v1111 = vunpack.c.l.b16 %v204
    %v1112 = vunpack.c.h.b16 %v204
    %v1113 = vunpack.c.l.b16 %v205
    %v1114 = vunpack.c.h.b16 %v205
    %v1115 = vunpack.c.l.b16 %v206
    %v1116 = vunpack.c.h.b16 %v206
    %v1117 = vunpack.c.l.b16 %v207
    %v1118 = vunpack.c.h.b16 %v207
    %v1119 = vunpack.c.l.b16 %v208
    %v1120 = vunpack.c.h.b16 %v208
    %v1121 = vunpack.c.l.b16 %v209
    %v1122 = vunpack.c.h.b16 %v209
    %v1123 = vunpack.c.l.b16 %v210
    %v1124 = vunpack.c.h.b16 %v210
    %v1125 = vunpack.c.l.b16 %v211
    %v1126 = vunpack.c.h.b16 %v211
    %v1127 = vunpack.c.l.b16 %v212
    %v1128 = vunpack.c.h.b16 %v212
    %v1129 = vunpack.c.l.b16 %v213
    %v1130 = vunpack.c.h.b16 %v213
    %v1131 = vunpack.c.l.b16 %v214
    %v1132 = vunpack.c.h.b16 %v214
    %v1133 = vunpack.c.l.b16 %v215
    %v1134 = vunpack.c.h.b16 %v215
    %v1135 = vunpack.c.l.b16 %v216
    %v1136 = vunpack.c.h.b16 %v216
    %v1137 = vunpack.c.l.b16 %v217
    %v1138 = vunpack.c.h.b16 %v217
    %v1139 = vunpack.c.l.b16 %v218
    %v1140 = vunpack.c.h.b16 %v218
    %v1141 = vunpack.c.l.b16 %v219
    %v1142 = vunpack.c.h.b16 %v219
    %v1143 = vunpack.c.l.b16 %v220
    %v1144 = vunpack.c.h.b16 %v220
    %v1145 = vunpack.c.l.b16 %v221
    %v1146 = vunpack.c.h.b16 %v221
    %v1147 = vunpack.c.l.b16 %v222
    %v1148 = vunpack.c.h.b16 %v222
    %v1149 = vunpack.c.l.b16 %v223
    %v1150 = vunpack.c.h.b16 %v223
    %v1151 = vunpack.c.l.b16 %v224
    %v1152 = vunpack.c.h.b16 %v224
    %v1153 = vunpack.c.l.b16 %v225
    %v1154 = vunpack.c.h.b16 %v225
    %v1155 = vunpack.c.l.b16 %v226
    %v1156 = vunpack.c.h.b16 %v226
    %v1157 = vunpack.c.l.b16 %v227
    %v1158 = vunpack.c.h.b16 %v227
    %v1159 = vunpack.c.l.b16 %v228
    %v1160 = vunpack.c.h.b16 %v228
    %v1161 = vunpack.c.l.b16 %v229
    %v1162 = vunpack.c.h.b16 %v229
    %v1163 = vunpack.c.l.b16 %v230
    %v1164 = vunpack.c.h.b16 %v230
    %v1165 = vunpack.c.l.b16 %v231
    %v1166 = vunpack.c.h.b16 %v231
    %v1167 = vunpack.c.l.b16 %v232
    %v1168 = vunpack.c.h.b16 %v232
    %v1169 = vunpack.c.l.b16 %v233
    %v1170 = vunpack.c.h.b16 %v233
    %v1171 = vunpack.c.l.b16 %v234
    %v1172 = vunpack.c.h.b16 %v234
    %v1173 = vunpack.c.l.b16 %v235
    %v1174 = vunpack.c.h.b16 %v235
    %v1175 = vunpack.c.l.b16 %v236
    %v1176 = vunpack.c.h.b16 %v236
    %v1177 = vunpack.c.l.b16 %v237
    %v1178 = vunpack.c.h.b16 %v237
    %v1179 = vunpack.c.l.b16 %v238
    %v1180 = vunpack.c.h.b16 %v238
    %v1181 = vunpack.c.l.b16 %v239
    %v1182 = vunpack.c.h.b16 %v239
    %v1183 = vunpack.c.l.b16 %v240
    %v1184 = vunpack.c.h.b16 %v240
    %v1185 = vunpack.c.l.b16 %v241
    %v1186 = vunpack.c.h.b16 %v241
    %v1187 = vunpack.c.l.b16 %v242
    %v1188 = vunpack.c.h.b16 %v242
    %v1189 = vunpack.c.l.b16 %v243
    %v1190 = vunpack.c.h.b16 %v243
    %v1191 = vunpack.c.l.b16 %v244
    %v1192 = vunpack.c.h.b16 %v244
    %v1193 = vunpack.c.l.b16 %v245
    %v1194 = vunpack.c.h.b16 %v245
    %v1195 = vunpack.c.l.b16 %v246
    %v1196 = vunpack.c.h.b16 %v246
    %v1197 = vunpack.c.l.b16 %v247
    %v1198 = vunpack.c.h.b16 %v247
    %v1199 = vunpack.c.l.b16 %v248
    %v1200 = vunpack.c.h.b16 %v248
    %v1201 = vunpack.c.l.b16 %v249
    %v1202 = vunpack.c.h.b16 %v249
    %v1203 = vunpack.c.l.b16 %v250
    %v1204 = vunpack.c.h.b16 %v250
    %v1205 = vunpack.c.l.b16 %v251
    %v1206 = vunpack.c.h.b16 %v251
    %v1207 = vunpack.c.l.b16 %v252
    %v1208 = vunpack.c.h.b16 %v252
    %v1209 = vunpack.c.l.b16 %v253
    %v1210 = vunpack.c.h.b16 %v253
    %v1211 = vunpack.c.l.b16 %v254
    %v1212 = vunpack.c.h.b16 %v254
    %v1213 = vunpack.c.l.b16 %v255
    %v1214 = vunpack.c.h.b16 %v255
    %v1215 = vunpack.c.l.b16 %v256
    %v1216 = vunpack.c.h.b16 %v256
    %v1217 = vunpack.c.l.b16 %v257
    %v1218 = vunpack.c.h.b16 %v257
    %v1219 = vunpack.c.l.b16 %v258
    %v1220 = vunpack.c.h.b16 %v258
    %v1221 = vunpack.c.l.b16 %v259
    %v1222 = vunpack.c.h.b16 %v259
    %v1223 = vunpack.c.l.b16 %v260
    %v1224 = vunpack.c.h.b16 %v260
    %v1225 = vunpack.c.l.b16 %v261
    %v1226 = vunpack.c.h.b16 %v261
    %v1227 = vunpack.c.l.b16 %v262
    %v1228 = vunpack.c.h.b16 %v262
    %v1229 = vunpack.c.l.b16 %v263
    %v1230 = vunpack.c.h.b16 %v263
    %v1231 = vunpack.c.l.b16 %v264
    %v1232 = vunpack.c.h.b16 %v264
    %v1233 = vunpack.c.l.b16 %v265
    %v1234 = vunpack.c.h.b16 %v265
    %v1235 = vunpack.c.l.b16 %v266
    %v1236 = vunpack.c.h.b16 %v266
    %v1237 = vunpack.c.l.b16 %v267
    %v1238 = vunpack.c.h.b16 %v267
    %v1239 = vunpack.c.l.b16 %v268
    %v1240 = vunpack.c.h.b16 %v268
    %v1241 = vunpack.c.l.b16 %v269
    %v1242 = vunpack.c.h.b16 %v269
    %v1243 = vunpack.c.l.b16 %v270
    %v1244 = vunpack.c.h.b16 %v270
    %v1245 = vunpack.c.l.b16 %v271
    %v1246 = vunpack.c.h.b16 %v271
    %v1247 = vunpack.c.l.b16 %v272
    %v1248 = vunpack.c.h.b16 %v272
    %v1249 = vunpack.c.l.b16 %v273
    %v1250 = vunpack.c.h.b16 %v273
    %v1251 = vunpack.c.l.b16 %v274
    %v1252 = vunpack.c.h.b16 %v274
    %v1253 = vunpack.c.l.b16 %v275
    %v1254 = vunpack.c.h.b16 %v275
    %v1255 = vunpack.c.l.b16 %v276
    %v1256 = vunpack.c.h.b16 %v276
    %v1257 = vunpack.c.l.b16 %v277
    %v1258 = vunpack.c.h.b16 %v277
    %v1259 = vunpack.c.l.b16 %v278
    %v1260 = vunpack.c.h.b16 %v278
    %v1261 = vunpack.c.l.b16 %v279
    %v1262 = vunpack.c.h.b16 %v279
    %v1263 = vunpack.c.l.b16 %v280
    %v1264 = vunpack.c.h.b16 %v280
    %v1265 = vunpack.c.l.b16 %v281
    %v1266 = vunpack.c.h.b16 %v281
    %v1267 = vunpack.c.l.b16 %v282
    %v1268 = vunpack.c.h.b16 %v282
    %v1269 = vunpack.c.l.b16 %v283
    %v1270 = vunpack.c.h.b16 %v283
    %v1271 = vunpack.c.l.b16 %v284
    %v1272 = vunpack.c.h.b16 %v284
    %v1273 = vunpack.c.l.b16 %v285
    %v1274 = vunpack.c.h.b16 %v285
    %v1275 = vunpack.c.l.b16 %v286
    %v1276 = vunpack.c.h.b16 %v286
    %v1277 = vunpack.c.l.b16 %v287
    %v1278 = vunpack.c.h.b16 %v287
    %v1279 = vunpack.c.l.b16 %v288
    %v1280 = vunpack.c.h.b16 %v288
    %v1281 = vunpack.c.l.b16 %v289
    %v1282 = vunpack.c.h.b16 %v289
    %v1283 = vunpack.c.l.b16 %v290
    %v1284 = vunpack.c.h.b16 %v290
    %v1285 = vunpack.c.l.b16 %v291
    %v1286 = vunpack.c.h.b16 %v291
    %v1287 = vunpack.c.l.b16 %v292
    %v1288 = vunpack.c.h.b16 %v292
    %v1289 = vunpack.c.l.b16 %v293
    %v1290 = vunpack.c.h.b16 %v293
    %v1291 = vunpack.c.l.b16 %v294
    %v1292 = vunpack.c.h.b16 %v294
    %v1293 = vunpack.c.l.b16 %v295
    %v1294 = vunpack.c.h.b16 %v295
    %v1295 = vunpack.c.l.b16 %v296
    %v1296 = vunpack.c.h.b16 %v296
    %v1297 = vunpack.c.l.b16 %v297
    %v1298 = vunpack.c.h.b16 %v297
    %v1299 = vunpack.c.l.b16 %v298
    %v1300 = vunpack.c.h.b16 %v298
    %v1301 = vunpack.c.l.b16 %v299
    %v1302 = vunpack.c.h.b16 %v299
    %v1303 = vunpack.c.l.b16 %v300
    %v1304 = vunpack.c.h.b16 %v300
    %v1305 = vunpack.c.l.b16 %v301
    %v1306 = vunpack.c.h.b16 %v301
    %v1307 = vunpack.c.l.b16 %v302
    %v1308 = vunpack.c.h.b16 %v302
    %v1309 = vunpack.c.l.b16 %v303
    %v1310 = vunpack.c.h.b16 %v303
    %v1311 = vunpack.c.l.b16 %v304
    %v1312 = vunpack.c.h.b16 %v304
    %v1313 = vunpack.c.l.b16 %v305
    %v1314 = vunpack.c.h.b16 %v305
    %v1315 = vunpack.c.l.b16 %v306
    %v1316 = vunpack.c.h.b16 %v306
    %v1317 = vunpack.c.l.b16 %v307
    %v1318 = vunpack.c.h.b16 %v307
    %v1319 = vunpack.c.l.b16 %v308
    %v1320 = vunpack.c.h.b16 %v308
    %v1321 = vunpack.c.l.b16 %v309
    %v1322 = vunpack.c.h.b16 %v309
    %v1323 = vunpack.c.l.b16 %v310
    %v1324 = vunpack.c.h.b16 %v310
    %v1325 = vunpack.c.l.b16 %v311
    %v1326 = vunpack.c.h.b16 %v311
    %v1327 = vunpack.c.l.b16 %v312
    %v1328 = vunpack.c.h.b16 %v312
    %v1329 = vunpack.c.l.b16 %v313
    %v1330 = vunpack.c.h.b16 %v313
    %v1331 = vunpack.c.l.b16 %v314
    %v1332 = vunpack.c.h.b16 %v314
    %v1333 = vunpack.c.l.b16 %v315
    %v1334 = vunpack.c.h.b16 %v315
    %v1335 = vunpack.c.l.b16 %v316
    %v1336 = vunpack.c.h.b16 %v316
    %v1337 = vunpack.c.l.b16 %v317
    %v1338 = vunpack.c.h.b16 %v317
    %v1339 = vunpack.c.l.b16 %v318
    %v1340 = vunpack.c.h.b16 %v318
    %v1341 = vunpack.c.l.b16 %v319
    %v1342 = vunpack.c.h.b16 %v319
    %v1343 = vunpack.c.l.b16 %v320
    %v1344 = vunpack.c.h.b16 %v320
    %v1345 = vunpack.c.l.b16 %v321
    %v1346 = vunpack.c.h.b16 %v321
    %v1347 = vunpack.c.l.b16 %v322
    %v1348 = vunpack.c.h.b16 %v322
    %v1349 = vunpack.c.l.b16 %v323
    %v1350 = vunpack.c.h.b16 %v323
    %v1351 = vunpack.c.l.b16 %v324
    %v1352 = vunpack.c.h.b16 %v324
    %v1353 = vunpack.c.l.b16 %v325
    %v1354 = vunpack.c.h.b16 %v325
    %v1355 = vunpack.c.l.b16 %v326
    %v1356 = vunpack.c.h.b16 %v326
    %v1357 = vunpack.c.l.b16 %v327
    %v1358 = vunpack.c.h.b16 %v327
    %v1359 = vunpack.c.l.b16 %v328
    %v1360 = vunpack.c.h.b16 %v328
    %v1361 = vunpack.c.l.b16 %v329
    %v1362 = vunpack.c.h.b16 %v329
    %v1363 = vunpack.c.l.b16 %v330
    %v1364 = vunpack.c.h.b16 %v330
    %v1365 = vunpack.c.l.b16 %v331
    %v1366 = vunpack.c.h.b16 %v331
    %v1367 = vunpack.c.l.b16 %v332
    %v1368 = vunpack.c.h.b16 %v332
    %v1369 = vunpack.c.l.b16 %v333
    %v1370 = vunpack.c.h.b16 %v333
    %v1371 = vpack.c.b16 %v861, %v859
    %v1372 = vpack.c.b16 %v862, %v860
    %v1373 = vpack.c.b16 %v865, %v863
    %v1374 = vpack.c.b16 %v866, %v864
    %v1375 = vpack.c.b16 %v869, %v867
    %v1376 = vpack.c.b16 %v870, %v868
    %v1377 = vpack.c.b16 %v873, %v871
    %v1378 = vpack.c.b16 %v874, %v872
    %v1379 = vpack.c.b16 %v877, %v875
    %v1380 = vpack.c.b16 %v878, %v876
    %v1381 = vpack.c.b16 %v881, %v879
    %v1382 = vpack.c.b16 %v882, %v880
    %v1383 = vpack.c.b16 %v885, %v883
    %v1384 = vpack.c.b16 %v886, %v884
    %v1385 = vpack.c.b16 %v889, %v887
    %v1386 = vpack.c.b16 %v890, %v888
    %v1387 = vpack.c.b16 %v893, %v891
    %v1388 = vpack.c.b16 %v894, %v892
    %v1389 = vpack.c.b16 %v897, %v895
    %v1390 = vpack.c.b16 %v898, %v896
    %v1391 = vpack.c.b16 %v901, %v899
    %v1392 = vpack.c.b16 %v902, %v900
    %v1393 = vpack.c.b16 %v905, %v903
    %v1394 = vpack.c.b16 %v906, %v904
    %v1395 = vpack.c.b16 %v909, %v907
    %v1396 = vpack.c.b16 %v910, %v908
    %v1397 = vpack.c.b16 %v913, %v911
    %v1398 = vpack.c.b16 %v914, %v912
    %v1399 = vpack.c.b16 %v917, %v915
    %v1400 = vpack.c.b16 %v918, %v916
    %v1401 = vpack.c.b16 %v921, %v919
    %v1402 = vpack.c.b16 %v922, %v920
    %v1403 = vpack.c.b16 %v925, %v923
    %v1404 = vpack.c.b16 %v926, %v924
    %v1405 = vpack.c.b16 %v929, %v927
    %v1406 = vpack.c.b16 %v930, %v928
    %v1407 = vpack.c.b16 %v933, %v931
    %v1408 = vpack.c.b16 %v934, %v932
    %v1409 = vpack.c.b16 %v937, %v935
    %v1410 = vpack.c.b16 %v938, %v936
    %v1411 = vpack.c.b16 %v941, %v939
    %v1412 = vpack.c.b16 %v942, %v940
    %v1413 = vpack.c.b16 %v945, %v943
    %v1414 = vpack.c.b16 %v946, %v944
    %v1415 = vpack.c.b16 %v949, %v947
    %v1416 = vpack.c.b16 %v950, %v948
    %v1417 = vpack.c.b16 %v953, %v951
    %v1418 = vpack.c.b16 %v954, %v952
    %v1419 = vpack.c.b16 %v957, %v955
    %v1420 = vpack.c.b16 %v958, %v956
    %v1421 = vpack.c.b16 %v961, %v959
    %v1422 = vpack.c.b16 %v962, %v960
    %v1423 = vpack.c.b16 %v965, %v963
    %v1424 = vpack.c.b16 %v966, %v964
    %v1425 = vpack.c.b16 %v969, %v967
    %v1426 = vpack.c.b16 %v970, %v968
    %v1427 = vpack.c.b16 %v973, %v971
    %v1428 = vpack.c.b16 %v974, %v972
    %v1429 = vpack.c.b16 %v977, %v975
    %v1430 = vpack.c.b16 %v978, %v976
    %v1431 = vpack.c.b16 %v981, %v979
    %v1432 = vpack.c.b16 %v982, %v980
    %v1433 = vpack.c.b16 %v985, %v983
    %v1434 = vpack.c.b16 %v986, %v984
    %v1435 = vpack.c.b16 %v989, %v987
    %v1436 = vpack.c.b16 %v990, %v988
    %v1437 = vpack.c.b16 %v993, %v991
    %v1438 = vpack.c.b16 %v994, %v992
    %v1439 = vpack.c.b16 %v997, %v995
    %v1440 = vpack.c.b16 %v998, %v996
    %v1441 = vpack.c.b16 %v1001, %v999
    %v1442 = vpack.c.b16 %v1002, %v1000
    %v1443 = vpack.c.b16 %v1005, %v1003
    %v1444 = vpack.c.b16 %v1006, %v1004
    %v1445 = vpack.c.b16 %v1009, %v1007
    %v1446 = vpack.c.b16 %v1010, %v1008
    %v1447 = vpack.c.b16 %v1013, %v1011
    %v1448 = vpack.c.b16 %v1014, %v1012
    %v1449 = vpack.c.b16 %v1017, %v1015
    %v1450 = vpack.c.b16 %v1018, %v1016
    %v1451 = vpack.c.b16 %v1021, %v1019
    %v1452 = vpack.c.b16 %v1022, %v1020
    %v1453 = vpack.c.b16 %v1025, %v1023
    %v1454 = vpack.c.b16 %v1026, %v1024
    %v1455 = vpack.c.b16 %v1029, %v1027
    %v1456 = vpack.c.b16 %v1030, %v1028
    %v1457 = vpack.c.b16 %v1033, %v1031
    %v1458 = vpack.c.b16 %v1034, %v1032
    %v1459 = vpack.c.b16 %v1037, %v1035
    %v1460 = vpack.c.b16 %v1038, %v1036
    %v1461 = vpack.c.b16 %v1041, %v1039
    %v1462 = vpack.c.b16 %v1042, %v1040
    %v1463 = vpack.c.b16 %v1045, %v1043
    %v1464 = vpack.c.b16 %v1046, %v1044
    %v1465 = vpack.c.b16 %v1049, %v1047
    %v1466 = vpack.c.b16 %v1050, %v1048
    %v1467 = vpack.c.b16 %v1053, %v1051
    %v1468 = vpack.c.b16 %v1054, %v1052
    %v1469 = vpack.c.b16 %v1057, %v1055
    %v1470 = vpack.c.b16 %v1058, %v1056
    %v1471 = vpack.c.b16 %v1061, %v1059
    %v1472 = vpack.c.b16 %v1062, %v1060
    %v1473 = vpack.c.b16 %v1065, %v1063
    %v1474 = vpack.c.b16 %v1066, %v1064
    %v1475 = vpack.c.b16 %v1069, %v1067
    %v1476 = vpack.c.b16 %v1070, %v1068
    %v1477 = vpack.c.b16 %v1073, %v1071
    %v1478 = vpack.c.b16 %v1074, %v1072
    %v1479 = vpack.c.b16 %v1077, %v1075
    %v1480 = vpack.c.b16 %v1078, %v1076
    %v1481 = vpack.c.b16 %v1081, %v1079
    %v1482 = vpack.c.b16 %v1082, %v1080
    %v1483 = vpack.c.b16 %v1085, %v1083
    %v1484 = vpack.c.b16 %v1086, %v1084
    %v1485 = vpack.c.b16 %v1089, %v1087
    %v1486 = vpack.c.b16 %v1090, %v1088
    %v1487 = vpack.c.b16 %v1093, %v1091
    %v1488 = vpack.c.b16 %v1094, %v1092
    %v1489 = vpack.c.b16 %v1097, %v1095
    %v1490 = vpack.c.b16 %v1098, %v1096
    %v1491 = vpack.c.b16 %v1101, %v1099
    %v1492 = vpack.c.b16 %v1102, %v1100
    %v1493 = vpack.c.b16 %v1105, %v1103
    %v1494 = vpack.c.b16 %v1106, %v1104
    %v1495 = vpack.c.b16 %v1109, %v1107
    %v1496 = vpack.c.b16 %v1110, %v1108
    %v1497 = vpack.c.b16 %v1113, %v1111
    %v1498 = vpack.c.b16 %v1114, %v1112
    %v1499 = vpack.c.b16 %v1117, %v1115
    %v1500 = vpack.c.b16 %v1118, %v1116
    %v1501 = vpack.c.b16 %v1121, %v1119
    %v1502 = vpack.c.b16 %v1122, %v1120
    %v1503 = vpack.c.b16 %v1125, %v1123
    %v1504 = vpack.c.b16 %v1126, %v1124
    %v1505 = vpack.c.b16 %v1129, %v1127
    %v1506 = vpack.c.b16 %v1130, %v1128
    %v1507 = vpack.c.b16 %v1133, %v1131
    %v1508 = vpack.c.b16 %v1134, %v1132
    %v1509 = vpack.c.b16 %v1137, %v1135
    %v1510 = vpack.c.b16 %v1138, %v1136
    %v1511 = vpack.c.b16 %v1141, %v1139
    %v1512 = vpack.c.b16 %v1142, %v1140
    %v1513 = vpack.c.b16 %v1145, %v1143
    %v1514 = vpack.c.b16 %v1146, %v1144
    %v1515 = vpack.c.b16 %v1149, %v1147
    %v1516 = vpack.c.b16 %v1150, %v1148
    %v1517 = vpack.c.b16 %v1153, %v1151
    %v1518 = vpack.c.b16 %v1154, %v1152
    %v1519 = vpack.c.b16 %v1157, %v1155
    %v1520 = vpack.c.b16 %v1158, %v1156
    %v1521 = vpack.c.b16 %v1161, %v1159
    %v1522 = vpack.c.b16 %v1162, %v1160
    %v1523 = vpack.c.b16 %v1165, %v1163
    %v1524 = vpack.c.b16 %v1166, %v1164
    %v1525 = vpack.c.b16 %v1169, %v1167
    %v1526 = vpack.c.b16 %v1170, %v1168
    %v1527 = vpack.c.b16 %v1173, %v1171
    %v1528 = vpack.c.b16 %v1174, %v1172
    %v1529 = vpack.c.b16 %v1177, %v1175
    %v1530 = vpack.c.b16 %v1178, %v1176
    %v1531 = vpack.c.b16 %v1181, %v1179
    %v1532 = vpack.c.b16 %v1182, %v1180
    %v1533 = vpack.c.b16 %v1185, %v1183
    %v1534 = vpack.c.b16 %v1186, %v1184
    %v1535 = vpack.c.b16 %v1189, %v1187
    %v1536 = vpack.c.b16 %v1190, %v1188
    %v1537 = vpack.c.b16 %v1193, %v1191
    %v1538 = vpack.c.b16 %v1194, %v1192
    %v1539 = vpack.c.b16 %v1197, %v1195
    %v1540 = vpack.c.b16 %v1198, %v1196
    %v1541 = vpack.c.b16 %v1201, %v1199
    %v1542 = vpack.c.b16 %v1202, %v1200
    %v1543 = vpack.c.b16 %v1205, %v1203
    %v1544 = vpack.c.b16 %v1206, %v1204
    %v1545 = vpack.c.b16 %v1209, %v1207
    %v1546 = vpack.c.b16 %v1210, %v1208
    %v1547 = vpack.c.b16 %v1213, %v1211
    %v1548 = vpack.c.b16 %v1214, %v1212
    %v1549 = vpack.c.b16 %v1217, %v1215
    %v1550 = vpack.c.b16 %v1218, %v1216
    %v1551 = vpack.c.b16 %v1221, %v1219
    %v1552 = vpack.c.b16 %v1222, %v1220
    %v1553 = vpack.c.b16 %v1225, %v1223
    %v1554 = vpack.c.b16 %v1226, %v1224
    %v1555 = vpack.c.b16 %v1229, %v1227
    %v1556 = vpack.c.b16 %v1230, %v1228
    %v1557 = vpack.c.b16 %v1233, %v1231
    %v1558 = vpack.c.b16 %v1234, %v1232
    %v1559 = vpack.c.b16 %v1237, %v1235
    %v1560 = vpack.c.b16 %v1238, %v1236
    %v1561 = vpack.c.b16 %v1241, %v1239
    %v1562 = vpack.c.b16 %v1242, %v1240
    %v1563 = vpack.c.b16 %v1245, %v1243
    %v1564 = vpack.c.b16 %v1246, %v1244
    %v1565 = vpack.c.b16 %v1249, %v1247
    %v1566 = vpack.c.b16 %v1250, %v1248
    %v1567 = vpack.c.b16 %v1253, %v1251
    %v1568 = vpack.c.b16 %v1254, %v1252
    %v1569 = vpack.c.b16 %v1257, %v1255
    %v1570 = vpack.c.b16 %v1258, %v1256
    %v1571 = vpack.c.b16 %v1261, %v1259
    %v1572 = vpack.c.b16 %v1262, %v1260
    %v1573 = vpack.c.b16 %v1265, %v1263
    %v1574 = vpack.c.b16 %v1266, %v1264
    %v1575 = vpack.c.b16 %v1269, %v1267
    %v1576 = vpack.c.b16 %v1270, %v1268
    %v1577 = vpack.c.b16 %v1273, %v1271
    %v1578 = vpack.c.b16 %v1274, %v1272
    %v1579 = vpack.c.b16 %v1277, %v1275
    %v1580 = vpack.c.b16 %v1278, %v1276
    %v1581 = vpack.c.b16 %v1281, %v1279
    %v1582 = vpack.c.b16 %v1282, %v1280
    %v1583 = vpack.c.b16 %v1285, %v1283
    %v1584 = vpack.c.b16 %v1286, %v1284
    %v1585 = vpack.c.b16 %v1289, %v1287
    %v1586 = vpack.c.b16 %v1290, %v1288
    %v1587 = vpack.c.b16 %v1293, %v1291
    %v1588 = vpack.c.b16 %v1294, %v1292
    %v1589 = vpack.c.b16 %v1297, %v1295
    %v1590 = vpack.c.b16 %v1298, %v1296
    %v1591 = vpack.c.b16 %v1301, %v1299
    %v1592 = vpack.c.b16 %v1302, %v1300
    %v1593 = vpack.c.b16 %v1305, %v1303
    %v1594 = vpack.c.b16 %v1306, %v1304
    %v1595 = vpack.c.b16 %v1309, %v1307
    %v1596 = vpack.c.b16 %v1310, %v1308
    %v1597 = vpack.c.b16 %v1313, %v1311
    %v1598 = vpack.c.b16 %v1314, %v1312
    %v1599 = vpack.c.b16 %v1317, %v1315
    %v1600 = vpack.c.b16 %v1318, %v1316
    %v1601 = vpack.c.b16 %v1321, %v1319
    %v1602 = vpack.c.b16 %v1322, %v1320
    %v1603 = vpack.c.b16 %v1325, %v1323
    %v1604 = vpack.c.b16 %v1326, %v1324
    %v1605 = vpack.c.b16 %v1329, %v1327
    %v1606 = vpack.c.b16 %v1330, %v1328
    %v1607 = vpack.c.b16 %v1333, %v1331
    %v1608 = vpack.c.b16 %v1334, %v1332
    %v1609 = vpack.c.b16 %v1337, %v1335
    %v1610 = vpack.c.b16 %v1338, %v1336
    %v1611 = vpack.c.b16 %v1341, %v1339
    %v1612 = vpack.c.b16 %v1342, %v1340
    %v1613 = vpack.c.b16 %v1345, %v1343
    %v1614 = vpack.c.b16 %v1346, %v1344
    %v1615 = vpack.c.b16 %v1349, %v1347
    %v1616 = vpack.c.b16 %v1350, %v1348
    %v1617 = vpack.c.b16 %v1353, %v1351
    %v1618 = vpack.c.b16 %v1354, %v1352
    %v1619 = vpack.c.b16 %v1357, %v1355
    %v1620 = vpack.c.b16 %v1358, %v1356
    %v1621 = vpack.c.b16 %v1361, %v1359
    %v1622 = vpack.c.b16 %v1362, %v1360
    %v1623 = vpack.c.b16 %v1365, %v1363
    %v1624 = vpack.c.b16 %v1366, %v1364
    %v1625 = vpack.c.b16 %v1369, %v1367
    %v1626 = vpack.c.b16 %v1370, %v1368
    %1883 = vmatpush.bf16.msra.mxu0 %v1385
    %1884 = vmatpush.bf16.msra.mxu0 %v1383
    %1885 = vmatpush.bf16.msra.mxu0 %v1381
    %1886 = vmatpush.bf16.msra.mxu0 %v1379
    %1887 = vmatpush.bf16.msra.mxu0 %v1377
    %1888 = vmatpush.bf16.msra.mxu0 %v1375
    %1889 = vmatpush.bf16.msra.mxu0 %v1373
    %1890 = vmatpush.bf16.msra.mxu0 %v1371
    %1891 = vmatmul.bf16.gmra.mxu0 %v363
    %v1892 = vpop.f32.mrf.mxu0
    %v1893 = vadd.f32 %v336, %v1892
    %v1894 = vpop.f32.mrf.mxu0
    %v1895 = vadd.f32 %v336, %v1894
    %1896 = vmatmul.bf16.gmra.mxu0 %v411
    %v1897 = vpop.f32.mrf.mxu0
    %v1898 = vadd.f32 %v336, %v1897
    %v1899 = vpop.f32.mrf.mxu0
    %v1900 = vadd.f32 %v336, %v1899
    %1901 = vmatmul.bf16.gmra.mxu0 %v459
    %v1902 = vpop.f32.mrf.mxu0
    %v1903 = vadd.f32 %v336, %v1902
    %v1904 = vpop.f32.mrf.mxu0
    %v1905 = vadd.f32 %v336, %v1904
    %1906 = vmatmul.bf16.gmra.mxu0 %v507
    %v1907 = vpop.f32.mrf.mxu0
    %v1908 = vadd.f32 %v336, %v1907
    %v1909 = vpop.f32.mrf.mxu0
    %v1910 = vadd.f32 %v336, %v1909
    %1911 = vdwg.mxu0
    %1912 = vmatpush.bf16.msra.mxu0 %v1401
    %1913 = vmatpush.bf16.msra.mxu0 %v1399
    %1914 = vmatpush.bf16.msra.mxu0 %v1397
    %1915 = vmatpush.bf16.msra.mxu0 %v1395
    %1916 = vmatpush.bf16.msra.mxu0 %v1393
    %1917 = vmatpush.bf16.msra.mxu0 %v1391
    %1918 = vmatpush.bf16.msra.mxu0 %v1389
    %1919 = vmatpush.bf16.msra.mxu0 %v1387
    %1920 = vmatmul.bf16.gmra.mxu0 %v364
    %v1921 = vpop.f32.mrf.mxu0
    %v1922 = vadd.f32 %v1893, %v1921
    %v1923 = vpop.f32.mrf.mxu0
    %v1924 = vadd.f32 %v1895, %v1923
    %1925 = vmatmul.bf16.gmra.mxu0 %v412
    %v1926 = vpop.f32.mrf.mxu0
    %v1927 = vadd.f32 %v1898, %v1926
    %v1928 = vpop.f32.mrf.mxu0
    %v1929 = vadd.f32 %v1900, %v1928
    %1930 = vmatmul.bf16.gmra.mxu0 %v460
    %v1931 = vpop.f32.mrf.mxu0
    %v1932 = vadd.f32 %v1903, %v1931
    %v1933 = vpop.f32.mrf.mxu0
    %v1934 = vadd.f32 %v1905, %v1933
    %1935 = vmatmul.bf16.gmra.mxu0 %v508
    %v1936 = vpop.f32.mrf.mxu0
    %v1937 = vadd.f32 %v1908, %v1936
    %v1938 = vpop.f32.mrf.mxu0
    %v1939 = vadd.f32 %v1910, %v1938
    %1940 = vdwg.mxu0
    %1941 = vmatpush.bf16.msra.mxu0 %v1417
    %1942 = vmatpush.bf16.msra.mxu0 %v1415
    %1943 = vmatpush.bf16.msra.mxu0 %v1413
    %1944 = vmatpush.bf16.msra.mxu0 %v1411
    %1945 = vmatpush.bf16.msra.mxu0 %v1409
    %1946 = vmatpush.bf16.msra.mxu0 %v1407
    %1947 = vmatpush.bf16.msra.mxu0 %v1405
    %1948 = vmatpush.bf16.msra.mxu0 %v1403
    %1949 = vmatmul.bf16.gmra.mxu0 %v365
    %v1950 = vpop.f32.mrf.mxu0
    %v1951 = vadd.f32 %v1922, %v1950
    %v1952 = vpop.f32.mrf.mxu0
    %v1953 = vadd.f32 %v1924, %v1952
    %1954 = vmatmul.bf16.gmra.mxu0 %v413
    %v1955 = vpop.f32.mrf.mxu0
    %v1956 = vadd.f32 %v1927, %v1955
    %v1957 = vpop.f32.mrf.mxu0
    %v1958 = vadd.f32 %v1929, %v1957
    %1959 = vmatmul.bf16.gmra.mxu0 %v461
    %v1960 = vpop.f32.mrf.mxu0
    %v1961 = vadd.f32 %v1932, %v1960
    %v1962 = vpop.f32.mrf.mxu0
    %v1963 = vadd.f32 %v1934, %v1962
    %1964 = vmatmul.bf16.gmra.mxu0 %v509
    %v1965 = vpop.f32.mrf.mxu0
    %v1966 = vadd.f32 %v1937, %v1965
    %v1967 = vpop.f32.mrf.mxu0
    %v1968 = vadd.f32 %v1939, %v1967
    %1969 = vdwg.mxu0
    %1970 = vmatpush.bf16.msra.mxu0 %v1433
    %1971 = vmatpush.bf16.msra.mxu0 %v1431
    %1972 = vmatpush.bf16.msra.mxu0 %v1429
    %1973 = vmatpush.bf16.msra.mxu0 %v1427
    %1974 = vmatpush.bf16.msra.mxu0 %v1425
    %1975 = vmatpush.bf16.msra.mxu0 %v1423
    %1976 = vmatpush.bf16.msra.mxu0 %v1421
    %1977 = vmatpush.bf16.msra.mxu0 %v1419
    %1978 = vmatmul.bf16.gmra.mxu0 %v366
    %v1979 = vpop.f32.mrf.mxu0
    %v1980 = vadd.f32 %v1951, %v1979
    %v1981 = vpop.f32.mrf.mxu0
    %v1982 = vadd.f32 %v1953, %v1981
    %1983 = vmatmul.bf16.gmra.mxu0 %v414
    %v1984 = vpop.f32.mrf.mxu0
    %v1985 = vadd.f32 %v1956, %v1984
    %v1986 = vpop.f32.mrf.mxu0
    %v1987 = vadd.f32 %v1958, %v1986
    %1988 = vmatmul.bf16.gmra.mxu0 %v462
    %v1989 = vpop.f32.mrf.mxu0
    %v1990 = vadd.f32 %v1961, %v1989
    %v1991 = vpop.f32.mrf.mxu0
    %v1992 = vadd.f32 %v1963, %v1991
    %1993 = vmatmul.bf16.gmra.mxu0 %v510
    %v1994 = vpop.f32.mrf.mxu0
    %v1995 = vadd.f32 %v1966, %v1994
    %v1996 = vpop.f32.mrf.mxu0
    %v1997 = vadd.f32 %v1968, %v1996
    %1998 = vdwg.mxu0
    %1999 = vmatpush.bf16.msra.mxu0 %v1449
    %2000 = vmatpush.bf16.msra.mxu0 %v1447
    %2001 = vmatpush.bf16.msra.mxu0 %v1445
    %2002 = vmatpush.bf16.msra.mxu0 %v1443
    %2003 = vmatpush.bf16.msra.mxu0 %v1441
    %2004 = vmatpush.bf16.msra.mxu0 %v1439
    %2005 = vmatpush.bf16.msra.mxu0 %v1437
    %2006 = vmatpush.bf16.msra.mxu0 %v1435
    %2007 = vmatmul.bf16.gmra.mxu0 %v367
    %v2008 = vpop.f32.mrf.mxu0
    %v2009 = vadd.f32 %v1980, %v2008
    %v2010 = vpop.f32.mrf.mxu0
    %v2011 = vadd.f32 %v1982, %v2010
    %2012 = vmatmul.bf16.gmra.mxu0 %v415
    %v2013 = vpop.f32.mrf.mxu0
    %v2014 = vadd.f32 %v1985, %v2013
    %v2015 = vpop.f32.mrf.mxu0
    %v2016 = vadd.f32 %v1987, %v2015
    %2017 = vmatmul.bf16.gmra.mxu0 %v463
    %v2018 = vpop.f32.mrf.mxu0
    %v2019 = vadd.f32 %v1990, %v2018
    %v2020 = vpop.f32.mrf.mxu0
    %v2021 = vadd.f32 %v1992, %v2020
    %2022 = vmatmul.bf16.gmra.mxu0 %v511
    %v2023 = vpop.f32.mrf.mxu0
    %v2024 = vadd.f32 %v1995, %v2023
    %v2025 = vpop.f32.mrf.mxu0
    %v2026 = vadd.f32 %v1997, %v2025
    %2027 = vdwg.mxu0
    %2028 = vmatpush.bf16.msra.mxu0 %v1465
    %2029 = vmatpush.bf16.msra.mxu0 %v1463
    %2030 = vmatpush.bf16.msra.mxu0 %v1461
    %2031 = vmatpush.bf16.msra.mxu0 %v1459
    %2032 = vmatpush.bf16.msra.mxu0 %v1457
    %2033 = vmatpush.bf16.msra.mxu0 %v1455
    %2034 = vmatpush.bf16.msra.mxu0 %v1453
    %2035 = vmatpush.bf16.msra.mxu0 %v1451
    %2036 = vmatmul.bf16.gmra.mxu0 %v368
    %v2037 = vpop.f32.mrf.mxu0
    %v2038 = vadd.f32 %v2009, %v2037
    %v2039 = vpop.f32.mrf.mxu0
    %v2040 = vadd.f32 %v2011, %v2039
    %2041 = vmatmul.bf16.gmra.mxu0 %v416
    %v2042 = vpop.f32.mrf.mxu0
    %v2043 = vadd.f32 %v2014, %v2042
    %v2044 = vpop.f32.mrf.mxu0
    %v2045 = vadd.f32 %v2016, %v2044
    %2046 = vmatmul.bf16.gmra.mxu0 %v464
    %v2047 = vpop.f32.mrf.mxu0
    %v2048 = vadd.f32 %v2019, %v2047
    %v2049 = vpop.f32.mrf.mxu0
    %v2050 = vadd.f32 %v2021, %v2049
    %2051 = vmatmul.bf16.gmra.mxu0 %v512
    %v2052 = vpop.f32.mrf.mxu0
    %v2053 = vadd.f32 %v2024, %v2052
    %v2054 = vpop.f32.mrf.mxu0
    %v2055 = vadd.f32 %v2026, %v2054
    %2056 = vdwg.mxu0
    %2057 = vmatpush.bf16.msra.mxu0 %v1481
    %2058 = vmatpush.bf16.msra.mxu0 %v1479
    %2059 = vmatpush.bf16.msra.mxu0 %v1477
    %2060 = vmatpush.bf16.msra.mxu0 %v1475
    %2061 = vmatpush.bf16.msra.mxu0 %v1473
    %2062 = vmatpush.bf16.msra.mxu0 %v1471
    %2063 = vmatpush.bf16.msra.mxu0 %v1469
    %2064 = vmatpush.bf16.msra.mxu0 %v1467
    %2065 = vmatmul.bf16.gmra.mxu0 %v369
    %v2066 = vpop.f32.mrf.mxu0
    %v2067 = vadd.f32 %v2038, %v2066
    %v2068 = vpop.f32.mrf.mxu0
    %v2069 = vadd.f32 %v2040, %v2068
    %2070 = vmatmul.bf16.gmra.mxu0 %v417
    %v2071 = vpop.f32.mrf.mxu0
    %v2072 = vadd.f32 %v2043, %v2071
    %v2073 = vpop.f32.mrf.mxu0
    %v2074 = vadd.f32 %v2045, %v2073
    %2075 = vmatmul.bf16.gmra.mxu0 %v465
    %v2076 = vpop.f32.mrf.mxu0
    %v2077 = vadd.f32 %v2048, %v2076
    %v2078 = vpop.f32.mrf.mxu0
    %v2079 = vadd.f32 %v2050, %v2078
    %2080 = vmatmul.bf16.gmra.mxu0 %v513
    %v2081 = vpop.f32.mrf.mxu0
    %v2082 = vadd.f32 %v2053, %v2081
    %v2083 = vpop.f32.mrf.mxu0
    %v2084 = vadd.f32 %v2055, %v2083
    %2085 = vdwg.mxu0
    %2086 = vmatpush.bf16.msra.mxu0 %v1497
    %2087 = vmatpush.bf16.msra.mxu0 %v1495
    %2088 = vmatpush.bf16.msra.mxu0 %v1493
    %2089 = vmatpush.bf16.msra.mxu0 %v1491
    %2090 = vmatpush.bf16.msra.mxu0 %v1489
    %2091 = vmatpush.bf16.msra.mxu0 %v1487
    %2092 = vmatpush.bf16.msra.mxu0 %v1485
    %2093 = vmatpush.bf16.msra.mxu0 %v1483
    %2094 = vmatmul.bf16.gmra.mxu0 %v370
    %v2095 = vpop.f32.mrf.mxu0
    %v2096 = vadd.f32 %v2067, %v2095
    %v2097 = vpop.f32.mrf.mxu0
    %v2098 = vadd.f32 %v2069, %v2097
    %2099 = vmatmul.bf16.gmra.mxu0 %v418
    %v2100 = vpop.f32.mrf.mxu0
    %v2101 = vadd.f32 %v2072, %v2100
    %v2102 = vpop.f32.mrf.mxu0
    %v2103 = vadd.f32 %v2074, %v2102
    %2104 = vmatmul.bf16.gmra.mxu0 %v466
    %v2105 = vpop.f32.mrf.mxu0
    %v2106 = vadd.f32 %v2077, %v2105
    %v2107 = vpop.f32.mrf.mxu0
    %v2108 = vadd.f32 %v2079, %v2107
    %2109 = vmatmul.bf16.gmra.mxu0 %v514
    %v2110 = vpop.f32.mrf.mxu0
    %v2111 = vadd.f32 %v2082, %v2110
    %v2112 = vpop.f32.mrf.mxu0
    %v2113 = vadd.f32 %v2084, %v2112
    %2114 = vdwg.mxu0
    %2115 = vmatpush.bf16.msra.mxu0 %v1513
    %2116 = vmatpush.bf16.msra.mxu0 %v1511
    %2117 = vmatpush.bf16.msra.mxu0 %v1509
    %2118 = vmatpush.bf16.msra.mxu0 %v1507
    %2119 = vmatpush.bf16.msra.mxu0 %v1505
    %2120 = vmatpush.bf16.msra.mxu0 %v1503
    %2121 = vmatpush.bf16.msra.mxu0 %v1501
    %2122 = vmatpush.bf16.msra.mxu0 %v1499
    %2123 = vmatmul.bf16.gmra.mxu0 %v387
    %v2124 = vpop.f32.mrf.mxu0
    %v2125 = vadd.f32 %v2096, %v2124
    %v2126 = vpop.f32.mrf.mxu0
    %v2127 = vadd.f32 %v2098, %v2126
    %2128 = vmatmul.bf16.gmra.mxu0 %v435
    %v2129 = vpop.f32.mrf.mxu0
    %v2130 = vadd.f32 %v2101, %v2129
    %v2131 = vpop.f32.mrf.mxu0
    %v2132 = vadd.f32 %v2103, %v2131
    %2133 = vmatmul.bf16.gmra.mxu0 %v483
    %v2134 = vpop.f32.mrf.mxu0
    %v2135 = vadd.f32 %v2106, %v2134
    %v2136 = vpop.f32.mrf.mxu0
    %v2137 = vadd.f32 %v2108, %v2136
    %2138 = vmatmul.bf16.gmra.mxu0 %v531
    %v2139 = vpop.f32.mrf.mxu0
    %v2140 = vadd.f32 %v2111, %v2139
    %v2141 = vpop.f32.mrf.mxu0
    %v2142 = vadd.f32 %v2113, %v2141
    %2143 = vdwg.mxu0
    %2144 = vmatpush.bf16.msra.mxu0 %v1529
    %2145 = vmatpush.bf16.msra.mxu0 %v1527
    %2146 = vmatpush.bf16.msra.mxu0 %v1525
    %2147 = vmatpush.bf16.msra.mxu0 %v1523
    %2148 = vmatpush.bf16.msra.mxu0 %v1521
    %2149 = vmatpush.bf16.msra.mxu0 %v1519
    %2150 = vmatpush.bf16.msra.mxu0 %v1517
    %2151 = vmatpush.bf16.msra.mxu0 %v1515
    %2152 = vmatmul.bf16.gmra.mxu0 %v388
    %v2153 = vpop.f32.mrf.mxu0
    %v2154 = vadd.f32 %v2125, %v2153
    %v2155 = vpop.f32.mrf.mxu0
    %v2156 = vadd.f32 %v2127, %v2155
    %2157 = vmatmul.bf16.gmra.mxu0 %v436
    %v2158 = vpop.f32.mrf.mxu0
    %v2159 = vadd.f32 %v2130, %v2158
    %v2160 = vpop.f32.mrf.mxu0
    %v2161 = vadd.f32 %v2132, %v2160
    %2162 = vmatmul.bf16.gmra.mxu0 %v484
    %v2163 = vpop.f32.mrf.mxu0
    %v2164 = vadd.f32 %v2135, %v2163
    %v2165 = vpop.f32.mrf.mxu0
    %v2166 = vadd.f32 %v2137, %v2165
    %2167 = vmatmul.bf16.gmra.mxu0 %v532
    %v2168 = vpop.f32.mrf.mxu0
    %v2169 = vadd.f32 %v2140, %v2168
    %v2170 = vpop.f32.mrf.mxu0
    %v2171 = vadd.f32 %v2142, %v2170
    %2172 = vdwg.mxu0
    %2173 = vmatpush.bf16.msra.mxu0 %v1545
    %2174 = vmatpush.bf16.msra.mxu0 %v1543
    %2175 = vmatpush.bf16.msra.mxu0 %v1541
    %2176 = vmatpush.bf16.msra.mxu0 %v1539
    %2177 = vmatpush.bf16.msra.mxu0 %v1537
    %2178 = vmatpush.bf16.msra.mxu0 %v1535
    %2179 = vmatpush.bf16.msra.mxu0 %v1533
    %2180 = vmatpush.bf16.msra.mxu0 %v1531
    %2181 = vmatmul.bf16.gmra.mxu0 %v389
    %v2182 = vpop.f32.mrf.mxu0
    %v2183 = vadd.f32 %v2154, %v2182
    %v2184 = vpop.f32.mrf.mxu0
    %v2185 = vadd.f32 %v2156, %v2184
    %2186 = vmatmul.bf16.gmra.mxu0 %v437
    %v2187 = vpop.f32.mrf.mxu0
    %v2188 = vadd.f32 %v2159, %v2187
    %v2189 = vpop.f32.mrf.mxu0
    %v2190 = vadd.f32 %v2161, %v2189
    %2191 = vmatmul.bf16.gmra.mxu0 %v485
    %v2192 = vpop.f32.mrf.mxu0
    %v2193 = vadd.f32 %v2164, %v2192
    %v2194 = vpop.f32.mrf.mxu0
    %v2195 = vadd.f32 %v2166, %v2194
    %2196 = vmatmul.bf16.gmra.mxu0 %v533
    %v2197 = vpop.f32.mrf.mxu0
    %v2198 = vadd.f32 %v2169, %v2197
    %v2199 = vpop.f32.mrf.mxu0
    %v2200 = vadd.f32 %v2171, %v2199
    %2201 = vdwg.mxu0
    %2202 = vmatpush.bf16.msra.mxu0 %v1561
    %2203 = vmatpush.bf16.msra.mxu0 %v1559
    %2204 = vmatpush.bf16.msra.mxu0 %v1557
    %2205 = vmatpush.bf16.msra.mxu0 %v1555
    %2206 = vmatpush.bf16.msra.mxu0 %v1553
    %2207 = vmatpush.bf16.msra.mxu0 %v1551
    %2208 = vmatpush.bf16.msra.mxu0 %v1549
    %2209 = vmatpush.bf16.msra.mxu0 %v1547
    %2210 = vmatmul.bf16.gmra.mxu0 %v390
    %v2211 = vpop.f32.mrf.mxu0
    %v2212 = vadd.f32 %v2183, %v2211
    %v2213 = vpop.f32.mrf.mxu0
    %v2214 = vadd.f32 %v2185, %v2213
    %2215 = vmatmul.bf16.gmra.mxu0 %v438
    %v2216 = vpop.f32.mrf.mxu0
    %v2217 = vadd.f32 %v2188, %v2216
    %v2218 = vpop.f32.mrf.mxu0
    %v2219 = vadd.f32 %v2190, %v2218
    %2220 = vmatmul.bf16.gmra.mxu0 %v486
    %v2221 = vpop.f32.mrf.mxu0
    %v2222 = vadd.f32 %v2193, %v2221
    %v2223 = vpop.f32.mrf.mxu0
    %v2224 = vadd.f32 %v2195, %v2223
    %2225 = vmatmul.bf16.gmra.mxu0 %v534
    %v2226 = vpop.f32.mrf.mxu0
    %v2227 = vadd.f32 %v2198, %v2226
    %v2228 = vpop.f32.mrf.mxu0
    %v2229 = vadd.f32 %v2200, %v2228
    %2230 = vdwg.mxu0
    %2231 = vmatpush.bf16.msra.mxu0 %v1577
    %2232 = vmatpush.bf16.msra.mxu0 %v1575
    %2233 = vmatpush.bf16.msra.mxu0 %v1573
    %2234 = vmatpush.bf16.msra.mxu0 %v1571
    %2235 = vmatpush.bf16.msra.mxu0 %v1569
    %2236 = vmatpush.bf16.msra.mxu0 %v1567
    %2237 = vmatpush.bf16.msra.mxu0 %v1565
    %2238 = vmatpush.bf16.msra.mxu0 %v1563
    %2239 = vmatmul.bf16.gmra.mxu0 %v391
    %v2240 = vpop.f32.mrf.mxu0
    %v2241 = vadd.f32 %v2212, %v2240
    %v2242 = vpop.f32.mrf.mxu0
    %v2243 = vadd.f32 %v2214, %v2242
    %2244 = vmatmul.bf16.gmra.mxu0 %v439
    %v2245 = vpop.f32.mrf.mxu0
    %v2246 = vadd.f32 %v2217, %v2245
    %v2247 = vpop.f32.mrf.mxu0
    %v2248 = vadd.f32 %v2219, %v2247
    %2249 = vmatmul.bf16.gmra.mxu0 %v487
    %v2250 = vpop.f32.mrf.mxu0
    %v2251 = vadd.f32 %v2222, %v2250
    %v2252 = vpop.f32.mrf.mxu0
    %v2253 = vadd.f32 %v2224, %v2252
    %2254 = vmatmul.bf16.gmra.mxu0 %v535
    %v2255 = vpop.f32.mrf.mxu0
    %v2256 = vadd.f32 %v2227, %v2255
    %v2257 = vpop.f32.mrf.mxu0
    %v2258 = vadd.f32 %v2229, %v2257
    %2259 = vdwg.mxu0
    %2260 = vmatpush.bf16.msra.mxu0 %v1593
    %2261 = vmatpush.bf16.msra.mxu0 %v1591
    %2262 = vmatpush.bf16.msra.mxu0 %v1589
    %2263 = vmatpush.bf16.msra.mxu0 %v1587
    %2264 = vmatpush.bf16.msra.mxu0 %v1585
    %2265 = vmatpush.bf16.msra.mxu0 %v1583
    %2266 = vmatpush.bf16.msra.mxu0 %v1581
    %2267 = vmatpush.bf16.msra.mxu0 %v1579
    %2268 = vmatmul.bf16.gmra.mxu0 %v392
    %v2269 = vpop.f32.mrf.mxu0
    %v2270 = vadd.f32 %v2241, %v2269
    %v2271 = vpop.f32.mrf.mxu0
    %v2272 = vadd.f32 %v2243, %v2271
    %2273 = vmatmul.bf16.gmra.mxu0 %v440
    %v2274 = vpop.f32.mrf.mxu0
    %v2275 = vadd.f32 %v2246, %v2274
    %v2276 = vpop.f32.mrf.mxu0
    %v2277 = vadd.f32 %v2248, %v2276
    %2278 = vmatmul.bf16.gmra.mxu0 %v488
    %v2279 = vpop.f32.mrf.mxu0
    %v2280 = vadd.f32 %v2251, %v2279
    %v2281 = vpop.f32.mrf.mxu0
    %v2282 = vadd.f32 %v2253, %v2281
    %2283 = vmatmul.bf16.gmra.mxu0 %v536
    %v2284 = vpop.f32.mrf.mxu0
    %v2285 = vadd.f32 %v2256, %v2284
    %v2286 = vpop.f32.mrf.mxu0
    %v2287 = vadd.f32 %v2258, %v2286
    %2288 = vdwg.mxu0
    %2289 = vmatpush.bf16.msra.mxu0 %v1609
    %2290 = vmatpush.bf16.msra.mxu0 %v1607
    %2291 = vmatpush.bf16.msra.mxu0 %v1605
    %2292 = vmatpush.bf16.msra.mxu0 %v1603
    %2293 = vmatpush.bf16.msra.mxu0 %v1601
    %2294 = vmatpush.bf16.msra.mxu0 %v1599
    %2295 = vmatpush.bf16.msra.mxu0 %v1597
    %2296 = vmatpush.bf16.msra.mxu0 %v1595
    %2297 = vmatmul.bf16.gmra.mxu0 %v393
    %v2298 = vpop.f32.mrf.mxu0
    %v2299 = vadd.f32 %v2270, %v2298
    %v2300 = vpop.f32.mrf.mxu0
    %v2301 = vadd.f32 %v2272, %v2300
    %2302 = vmatmul.bf16.gmra.mxu0 %v441
    %v2303 = vpop.f32.mrf.mxu0
    %v2304 = vadd.f32 %v2275, %v2303
    %v2305 = vpop.f32.mrf.mxu0
    %v2306 = vadd.f32 %v2277, %v2305
    %2307 = vmatmul.bf16.gmra.mxu0 %v489
    %v2308 = vpop.f32.mrf.mxu0
    %v2309 = vadd.f32 %v2280, %v2308
    %v2310 = vpop.f32.mrf.mxu0
    %v2311 = vadd.f32 %v2282, %v2310
    %2312 = vmatmul.bf16.gmra.mxu0 %v537
    %v2313 = vpop.f32.mrf.mxu0
    %v2314 = vadd.f32 %v2285, %v2313
    %v2315 = vpop.f32.mrf.mxu0
    %v2316 = vadd.f32 %v2287, %v2315
    %2317 = vdwg.mxu0
    %2318 = vmatpush.bf16.msra.mxu0 %v1625
    %2319 = vmatpush.bf16.msra.mxu0 %v1623
    %2320 = vmatpush.bf16.msra.mxu0 %v1621
    %2321 = vmatpush.bf16.msra.mxu0 %v1619
    %2322 = vmatpush.bf16.msra.mxu0 %v1617
    %2323 = vmatpush.bf16.msra.mxu0 %v1615
    %2324 = vmatpush.bf16.msra.mxu0 %v1613
    %2325 = vmatpush.bf16.msra.mxu0 %v1611
    %2326 = vmatmul.bf16.gmra.mxu0 %v394
    %v2327 = vpop.f32.mrf.mxu0
    %v2328 = vadd.f32 %v2299, %v2327
    %v2329 = vpop.f32.mrf.mxu0
    %v2330 = vadd.f32 %v2301, %v2329
    %2331 = vmatmul.bf16.gmra.mxu0 %v442
    %v2332 = vpop.f32.mrf.mxu0
    %v2333 = vadd.f32 %v2304, %v2332
    %v2334 = vpop.f32.mrf.mxu0
    %v2335 = vadd.f32 %v2306, %v2334
    %2336 = vmatmul.bf16.gmra.mxu0 %v490
    %v2337 = vpop.f32.mrf.mxu0
    %v2338 = vadd.f32 %v2309, %v2337
    %v2339 = vpop.f32.mrf.mxu0
    %v2340 = vadd.f32 %v2311, %v2339
    %2341 = vmatmul.bf16.gmra.mxu0 %v538
    %v2342 = vpop.f32.mrf.mxu0
    %v2343 = vadd.f32 %v2314, %v2342
    %v2344 = vpop.f32.mrf.mxu0
    %v2345 = vadd.f32 %v2316, %v2344
    %2346 = vdwg.mxu0
    %2347 = vmatpush.bf16.msra.mxu0 %v1386
    %2348 = vmatpush.bf16.msra.mxu0 %v1384
    %2349 = vmatpush.bf16.msra.mxu0 %v1382
    %2350 = vmatpush.bf16.msra.mxu0 %v1380
    %2351 = vmatpush.bf16.msra.mxu0 %v1378
    %2352 = vmatpush.bf16.msra.mxu0 %v1376
    %2353 = vmatpush.bf16.msra.mxu0 %v1374
    %2354 = vmatpush.bf16.msra.mxu0 %v1372
    %2355 = vmatmul.bf16.gmra.mxu0 %v363
    %v2356 = vpop.f32.mrf.mxu0
    %v2357 = vadd.f32 %v337, %v2356
    %v2358 = vpop.f32.mrf.mxu0
    %v2359 = vadd.f32 %v337, %v2358
    %2360 = vmatmul.bf16.gmra.mxu0 %v411
    %v2361 = vpop.f32.mrf.mxu0
    %v2362 = vadd.f32 %v337, %v2361
    %v2363 = vpop.f32.mrf.mxu0
    %v2364 = vadd.f32 %v337, %v2363
    %2365 = vmatmul.bf16.gmra.mxu0 %v459
    %v2366 = vpop.f32.mrf.mxu0
    %v2367 = vadd.f32 %v337, %v2366
    %v2368 = vpop.f32.mrf.mxu0
    %v2369 = vadd.f32 %v337, %v2368
    %2370 = vmatmul.bf16.gmra.mxu0 %v507
    %v2371 = vpop.f32.mrf.mxu0
    %v2372 = vadd.f32 %v337, %v2371
    %v2373 = vpop.f32.mrf.mxu0
    %v2374 = vadd.f32 %v337, %v2373
    %2375 = vdwg.mxu0
    %2376 = vmatpush.bf16.msra.mxu0 %v1402
    %2377 = vmatpush.bf16.msra.mxu0 %v1400
    %2378 = vmatpush.bf16.msra.mxu0 %v1398
    %2379 = vmatpush.bf16.msra.mxu0 %v1396
    %2380 = vmatpush.bf16.msra.mxu0 %v1394
    %2381 = vmatpush.bf16.msra.mxu0 %v1392
    %2382 = vmatpush.bf16.msra.mxu0 %v1390
    %2383 = vmatpush.bf16.msra.mxu0 %v1388
    %2384 = vmatmul.bf16.gmra.mxu0 %v364
    %v2385 = vpop.f32.mrf.mxu0
    %v2386 = vadd.f32 %v2357, %v2385
    %v2387 = vpop.f32.mrf.mxu0
    %v2388 = vadd.f32 %v2359, %v2387
    %2389 = vmatmul.bf16.gmra.mxu0 %v412
    %v2390 = vpop.f32.mrf.mxu0
    %v2391 = vadd.f32 %v2362, %v2390
    %v2392 = vpop.f32.mrf.mxu0
    %v2393 = vadd.f32 %v2364, %v2392
    %2394 = vmatmul.bf16.gmra.mxu0 %v460
    %v2395 = vpop.f32.mrf.mxu0
    %v2396 = vadd.f32 %v2367, %v2395
    %v2397 = vpop.f32.mrf.mxu0
    %v2398 = vadd.f32 %v2369, %v2397
    %2399 = vmatmul.bf16.gmra.mxu0 %v508
    %v2400 = vpop.f32.mrf.mxu0
    %v2401 = vadd.f32 %v2372, %v2400
    %v2402 = vpop.f32.mrf.mxu0
    %v2403 = vadd.f32 %v2374, %v2402
    %2404 = vdwg.mxu0
    %2405 = vmatpush.bf16.msra.mxu0 %v1418
    %2406 = vmatpush.bf16.msra.mxu0 %v1416
    %2407 = vmatpush.bf16.msra.mxu0 %v1414
    %2408 = vmatpush.bf16.msra.mxu0 %v1412
    %2409 = vmatpush.bf16.msra.mxu0 %v1410
    %2410 = vmatpush.bf16.msra.mxu0 %v1408
    %2411 = vmatpush.bf16.msra.mxu0 %v1406
    %2412 = vmatpush.bf16.msra.mxu0 %v1404
    %2413 = vmatmul.bf16.gmra.mxu0 %v365
    %v2414 = vpop.f32.mrf.mxu0
    %v2415 = vadd.f32 %v2386, %v2414
    %v2416 = vpop.f32.mrf.mxu0
    %v2417 = vadd.f32 %v2388, %v2416
    %2418 = vmatmul.bf16.gmra.mxu0 %v413
    %v2419 = vpop.f32.mrf.mxu0
    %v2420 = vadd.f32 %v2391, %v2419
    %v2421 = vpop.f32.mrf.mxu0
    %v2422 = vadd.f32 %v2393, %v2421
    %2423 = vmatmul.bf16.gmra.mxu0 %v461
    %v2424 = vpop.f32.mrf.mxu0
    %v2425 = vadd.f32 %v2396, %v2424
    %v2426 = vpop.f32.mrf.mxu0
    %v2427 = vadd.f32 %v2398, %v2426
    %2428 = vmatmul.bf16.gmra.mxu0 %v509
    %v2429 = vpop.f32.mrf.mxu0
    %v2430 = vadd.f32 %v2401, %v2429
    %v2431 = vpop.f32.mrf.mxu0
    %v2432 = vadd.f32 %v2403, %v2431
    %2433 = vdwg.mxu0
    %2434 = vmatpush.bf16.msra.mxu0 %v1434
    %2435 = vmatpush.bf16.msra.mxu0 %v1432
    %2436 = vmatpush.bf16.msra.mxu0 %v1430
    %2437 = vmatpush.bf16.msra.mxu0 %v1428
    %2438 = vmatpush.bf16.msra.mxu0 %v1426
    %2439 = vmatpush.bf16.msra.mxu0 %v1424
    %2440 = vmatpush.bf16.msra.mxu0 %v1422
    %2441 = vmatpush.bf16.msra.mxu0 %v1420
    %2442 = vmatmul.bf16.gmra.mxu0 %v366
    %v2443 = vpop.f32.mrf.mxu0
    %v2444 = vadd.f32 %v2415, %v2443
    %v2445 = vpop.f32.mrf.mxu0
    %v2446 = vadd.f32 %v2417, %v2445
    %2447 = vmatmul.bf16.gmra.mxu0 %v414
    %v2448 = vpop.f32.mrf.mxu0
    %v2449 = vadd.f32 %v2420, %v2448
    %v2450 = vpop.f32.mrf.mxu0
    %v2451 = vadd.f32 %v2422, %v2450
    %2452 = vmatmul.bf16.gmra.mxu0 %v462
    %v2453 = vpop.f32.mrf.mxu0
    %v2454 = vadd.f32 %v2425, %v2453
    %v2455 = vpop.f32.mrf.mxu0
    %v2456 = vadd.f32 %v2427, %v2455
    %2457 = vmatmul.bf16.gmra.mxu0 %v510
    %v2458 = vpop.f32.mrf.mxu0
    %v2459 = vadd.f32 %v2430, %v2458
    %v2460 = vpop.f32.mrf.mxu0
    %v2461 = vadd.f32 %v2432, %v2460
    %2462 = vdwg.mxu0
    %2463 = vmatpush.bf16.msra.mxu0 %v1450
    %2464 = vmatpush.bf16.msra.mxu0 %v1448
    %2465 = vmatpush.bf16.msra.mxu0 %v1446
    %2466 = vmatpush.bf16.msra.mxu0 %v1444
    %2467 = vmatpush.bf16.msra.mxu0 %v1442
    %2468 = vmatpush.bf16.msra.mxu0 %v1440
    %2469 = vmatpush.bf16.msra.mxu0 %v1438
    %2470 = vmatpush.bf16.msra.mxu0 %v1436
    %2471 = vmatmul.bf16.gmra.mxu0 %v367
    %v2472 = vpop.f32.mrf.mxu0
    %v2473 = vadd.f32 %v2444, %v2472
    %v2474 = vpop.f32.mrf.mxu0
    %v2475 = vadd.f32 %v2446, %v2474
    %2476 = vmatmul.bf16.gmra.mxu0 %v415
    %v2477 = vpop.f32.mrf.mxu0
    %v2478 = vadd.f32 %v2449, %v2477
    %v2479 = vpop.f32.mrf.mxu0
    %v2480 = vadd.f32 %v2451, %v2479
    %2481 = vmatmul.bf16.gmra.mxu0 %v463
    %v2482 = vpop.f32.mrf.mxu0
    %v2483 = vadd.f32 %v2454, %v2482
    %v2484 = vpop.f32.mrf.mxu0
    %v2485 = vadd.f32 %v2456, %v2484
    %2486 = vmatmul.bf16.gmra.mxu0 %v511
    %v2487 = vpop.f32.mrf.mxu0
    %v2488 = vadd.f32 %v2459, %v2487
    %v2489 = vpop.f32.mrf.mxu0
    %v2490 = vadd.f32 %v2461, %v2489
    %2491 = vdwg.mxu0
    %2492 = vmatpush.bf16.msra.mxu0 %v1466
    %2493 = vmatpush.bf16.msra.mxu0 %v1464
    %2494 = vmatpush.bf16.msra.mxu0 %v1462
    %2495 = vmatpush.bf16.msra.mxu0 %v1460
    %2496 = vmatpush.bf16.msra.mxu0 %v1458
    %2497 = vmatpush.bf16.msra.mxu0 %v1456
    %2498 = vmatpush.bf16.msra.mxu0 %v1454
    %2499 = vmatpush.bf16.msra.mxu0 %v1452
    %2500 = vmatmul.bf16.gmra.mxu0 %v368
    %v2501 = vpop.f32.mrf.mxu0
    %v2502 = vadd.f32 %v2473, %v2501
    %v2503 = vpop.f32.mrf.mxu0
    %v2504 = vadd.f32 %v2475, %v2503
    %2505 = vmatmul.bf16.gmra.mxu0 %v416
    %v2506 = vpop.f32.mrf.mxu0
    %v2507 = vadd.f32 %v2478, %v2506
    %v2508 = vpop.f32.mrf.mxu0
    %v2509 = vadd.f32 %v2480, %v2508
    %2510 = vmatmul.bf16.gmra.mxu0 %v464
    %v2511 = vpop.f32.mrf.mxu0
    %v2512 = vadd.f32 %v2483, %v2511
    %v2513 = vpop.f32.mrf.mxu0
    %v2514 = vadd.f32 %v2485, %v2513
    %2515 = vmatmul.bf16.gmra.mxu0 %v512
    %v2516 = vpop.f32.mrf.mxu0
    %v2517 = vadd.f32 %v2488, %v2516
    %v2518 = vpop.f32.mrf.mxu0
    %v2519 = vadd.f32 %v2490, %v2518
    %2520 = vdwg.mxu0
    %2521 = vmatpush.bf16.msra.mxu0 %v1482
    %2522 = vmatpush.bf16.msra.mxu0 %v1480
    %2523 = vmatpush.bf16.msra.mxu0 %v1478
    %2524 = vmatpush.bf16.msra.mxu0 %v1476
    %2525 = vmatpush.bf16.msra.mxu0 %v1474
    %2526 = vmatpush.bf16.msra.mxu0 %v1472
    %2527 = vmatpush.bf16.msra.mxu0 %v1470
    %2528 = vmatpush.bf16.msra.mxu0 %v1468
    %2529 = vmatmul.bf16.gmra.mxu0 %v369
    %v2530 = vpop.f32.mrf.mxu0
    %v2531 = vadd.f32 %v2502, %v2530
    %v2532 = vpop.f32.mrf.mxu0
    %v2533 = vadd.f32 %v2504, %v2532
    %2534 = vmatmul.bf16.gmra.mxu0 %v417
    %v2535 = vpop.f32.mrf.mxu0
    %v2536 = vadd.f32 %v2507, %v2535
    %v2537 = vpop.f32.mrf.mxu0
    %v2538 = vadd.f32 %v2509, %v2537
    %2539 = vmatmul.bf16.gmra.mxu0 %v465
    %v2540 = vpop.f32.mrf.mxu0
    %v2541 = vadd.f32 %v2512, %v2540
    %v2542 = vpop.f32.mrf.mxu0
    %v2543 = vadd.f32 %v2514, %v2542
    %2544 = vmatmul.bf16.gmra.mxu0 %v513
    %v2545 = vpop.f32.mrf.mxu0
    %v2546 = vadd.f32 %v2517, %v2545
    %v2547 = vpop.f32.mrf.mxu0
    %v2548 = vadd.f32 %v2519, %v2547
    %2549 = vdwg.mxu0
    %2550 = vmatpush.bf16.msra.mxu0 %v1498
    %2551 = vmatpush.bf16.msra.mxu0 %v1496
    %2552 = vmatpush.bf16.msra.mxu0 %v1494
    %2553 = vmatpush.bf16.msra.mxu0 %v1492
    %2554 = vmatpush.bf16.msra.mxu0 %v1490
    %2555 = vmatpush.bf16.msra.mxu0 %v1488
    %2556 = vmatpush.bf16.msra.mxu0 %v1486
    %2557 = vmatpush.bf16.msra.mxu0 %v1484
    %2558 = vmatmul.bf16.gmra.mxu0 %v370
    %v2559 = vpop.f32.mrf.mxu0
    %v2560 = vadd.f32 %v2531, %v2559
    %v2561 = vpop.f32.mrf.mxu0
    %v2562 = vadd.f32 %v2533, %v2561
    %2563 = vmatmul.bf16.gmra.mxu0 %v418
    %v2564 = vpop.f32.mrf.mxu0
    %v2565 = vadd.f32 %v2536, %v2564
    %v2566 = vpop.f32.mrf.mxu0
    %v2567 = vadd.f32 %v2538, %v2566
    %2568 = vmatmul.bf16.gmra.mxu0 %v466
    %v2569 = vpop.f32.mrf.mxu0
    %v2570 = vadd.f32 %v2541, %v2569
    %v2571 = vpop.f32.mrf.mxu0
    %v2572 = vadd.f32 %v2543, %v2571
    %2573 = vmatmul.bf16.gmra.mxu0 %v514
    %v2574 = vpop.f32.mrf.mxu0
    %v2575 = vadd.f32 %v2546, %v2574
    %v2576 = vpop.f32.mrf.mxu0
    %v2577 = vadd.f32 %v2548, %v2576
    %2578 = vdwg.mxu0
    %2579 = vmatpush.bf16.msra.mxu0 %v1514
    %2580 = vmatpush.bf16.msra.mxu0 %v1512
    %2581 = vmatpush.bf16.msra.mxu0 %v1510
    %2582 = vmatpush.bf16.msra.mxu0 %v1508
    %2583 = vmatpush.bf16.msra.mxu0 %v1506
    %2584 = vmatpush.bf16.msra.mxu0 %v1504
    %2585 = vmatpush.bf16.msra.mxu0 %v1502
    %2586 = vmatpush.bf16.msra.mxu0 %v1500
    %2587 = vmatmul.bf16.gmra.mxu0 %v387
    %v2588 = vpop.f32.mrf.mxu0
    %v2589 = vadd.f32 %v2560, %v2588
    %v2590 = vpop.f32.mrf.mxu0
    %v2591 = vadd.f32 %v2562, %v2590
    %2592 = vmatmul.bf16.gmra.mxu0 %v435
    %v2593 = vpop.f32.mrf.mxu0
    %v2594 = vadd.f32 %v2565, %v2593
    %v2595 = vpop.f32.mrf.mxu0
    %v2596 = vadd.f32 %v2567, %v2595
    %2597 = vmatmul.bf16.gmra.mxu0 %v483
    %v2598 = vpop.f32.mrf.mxu0
    %v2599 = vadd.f32 %v2570, %v2598
    %v2600 = vpop.f32.mrf.mxu0
    %v2601 = vadd.f32 %v2572, %v2600
    %2602 = vmatmul.bf16.gmra.mxu0 %v531
    %v2603 = vpop.f32.mrf.mxu0
    %v2604 = vadd.f32 %v2575, %v2603
    %v2605 = vpop.f32.mrf.mxu0
    %v2606 = vadd.f32 %v2577, %v2605
    %2607 = vdwg.mxu0
    %2608 = vmatpush.bf16.msra.mxu0 %v1530
    %2609 = vmatpush.bf16.msra.mxu0 %v1528
    %2610 = vmatpush.bf16.msra.mxu0 %v1526
    %2611 = vmatpush.bf16.msra.mxu0 %v1524
    %2612 = vmatpush.bf16.msra.mxu0 %v1522
    %2613 = vmatpush.bf16.msra.mxu0 %v1520
    %2614 = vmatpush.bf16.msra.mxu0 %v1518
    %2615 = vmatpush.bf16.msra.mxu0 %v1516
    %2616 = vmatmul.bf16.gmra.mxu0 %v388
    %v2617 = vpop.f32.mrf.mxu0
    %v2618 = vadd.f32 %v2589, %v2617
    %v2619 = vpop.f32.mrf.mxu0
    %v2620 = vadd.f32 %v2591, %v2619
    %2621 = vmatmul.bf16.gmra.mxu0 %v436
    %v2622 = vpop.f32.mrf.mxu0
    %v2623 = vadd.f32 %v2594, %v2622
    %v2624 = vpop.f32.mrf.mxu0
    %v2625 = vadd.f32 %v2596, %v2624
    %2626 = vmatmul.bf16.gmra.mxu0 %v484
    %v2627 = vpop.f32.mrf.mxu0
    %v2628 = vadd.f32 %v2599, %v2627
    %v2629 = vpop.f32.mrf.mxu0
    %v2630 = vadd.f32 %v2601, %v2629
    %2631 = vmatmul.bf16.gmra.mxu0 %v532
    %v2632 = vpop.f32.mrf.mxu0
    %v2633 = vadd.f32 %v2604, %v2632
    %v2634 = vpop.f32.mrf.mxu0
    %v2635 = vadd.f32 %v2606, %v2634
    %2636 = vdwg.mxu0
    %2637 = vmatpush.bf16.msra.mxu0 %v1546
    %2638 = vmatpush.bf16.msra.mxu0 %v1544
    %2639 = vmatpush.bf16.msra.mxu0 %v1542
    %2640 = vmatpush.bf16.msra.mxu0 %v1540
    %2641 = vmatpush.bf16.msra.mxu0 %v1538
    %2642 = vmatpush.bf16.msra.mxu0 %v1536
    %2643 = vmatpush.bf16.msra.mxu0 %v1534
    %2644 = vmatpush.bf16.msra.mxu0 %v1532
    %2645 = vmatmul.bf16.gmra.mxu0 %v389
    %v2646 = vpop.f32.mrf.mxu0
    %v2647 = vadd.f32 %v2618, %v2646
    %v2648 = vpop.f32.mrf.mxu0
    %v2649 = vadd.f32 %v2620, %v2648
    %2650 = vmatmul.bf16.gmra.mxu0 %v437
    %v2651 = vpop.f32.mrf.mxu0
    %v2652 = vadd.f32 %v2623, %v2651
    %v2653 = vpop.f32.mrf.mxu0
    %v2654 = vadd.f32 %v2625, %v2653
    %2655 = vmatmul.bf16.gmra.mxu0 %v485
    %v2656 = vpop.f32.mrf.mxu0
    %v2657 = vadd.f32 %v2628, %v2656
    %v2658 = vpop.f32.mrf.mxu0
    %v2659 = vadd.f32 %v2630, %v2658
    %2660 = vmatmul.bf16.gmra.mxu0 %v533
    %v2661 = vpop.f32.mrf.mxu0
    %v2662 = vadd.f32 %v2633, %v2661
    %v2663 = vpop.f32.mrf.mxu0
    %v2664 = vadd.f32 %v2635, %v2663
    %2665 = vdwg.mxu0
    %2666 = vmatpush.bf16.msra.mxu0 %v1562
    %2667 = vmatpush.bf16.msra.mxu0 %v1560
    %2668 = vmatpush.bf16.msra.mxu0 %v1558
    %2669 = vmatpush.bf16.msra.mxu0 %v1556
    %2670 = vmatpush.bf16.msra.mxu0 %v1554
    %2671 = vmatpush.bf16.msra.mxu0 %v1552
    %2672 = vmatpush.bf16.msra.mxu0 %v1550
    %2673 = vmatpush.bf16.msra.mxu0 %v1548
    %2674 = vmatmul.bf16.gmra.mxu0 %v390
    %v2675 = vpop.f32.mrf.mxu0
    %v2676 = vadd.f32 %v2647, %v2675
    %v2677 = vpop.f32.mrf.mxu0
    %v2678 = vadd.f32 %v2649, %v2677
    %2679 = vmatmul.bf16.gmra.mxu0 %v438
    %v2680 = vpop.f32.mrf.mxu0
    %v2681 = vadd.f32 %v2652, %v2680
    %v2682 = vpop.f32.mrf.mxu0
    %v2683 = vadd.f32 %v2654, %v2682
    %2684 = vmatmul.bf16.gmra.mxu0 %v486
    %v2685 = vpop.f32.mrf.mxu0
    %v2686 = vadd.f32 %v2657, %v2685
    %v2687 = vpop.f32.mrf.mxu0
    %v2688 = vadd.f32 %v2659, %v2687
    %2689 = vmatmul.bf16.gmra.mxu0 %v534
    %v2690 = vpop.f32.mrf.mxu0
    %v2691 = vadd.f32 %v2662, %v2690
    %v2692 = vpop.f32.mrf.mxu0
    %v2693 = vadd.f32 %v2664, %v2692
    %2694 = vdwg.mxu0
    %2695 = vmatpush.bf16.msra.mxu0 %v1578
    %2696 = vmatpush.bf16.msra.mxu0 %v1576
    %2697 = vmatpush.bf16.msra.mxu0 %v1574
    %2698 = vmatpush.bf16.msra.mxu0 %v1572
    %2699 = vmatpush.bf16.msra.mxu0 %v1570
    %2700 = vmatpush.bf16.msra.mxu0 %v1568
    %2701 = vmatpush.bf16.msra.mxu0 %v1566
    %2702 = vmatpush.bf16.msra.mxu0 %v1564
    %2703 = vmatmul.bf16.gmra.mxu0 %v391
    %v2704 = vpop.f32.mrf.mxu0
    %v2705 = vadd.f32 %v2676, %v2704
    %v2706 = vpop.f32.mrf.mxu0
    %v2707 = vadd.f32 %v2678, %v2706
    %2708 = vmatmul.bf16.gmra.mxu0 %v439
    %v2709 = vpop.f32.mrf.mxu0
    %v2710 = vadd.f32 %v2681, %v2709
    %v2711 = vpop.f32.mrf.mxu0
    %v2712 = vadd.f32 %v2683, %v2711
    %2713 = vmatmul.bf16.gmra.mxu0 %v487
    %v2714 = vpop.f32.mrf.mxu0
    %v2715 = vadd.f32 %v2686, %v2714
    %v2716 = vpop.f32.mrf.mxu0
    %v2717 = vadd.f32 %v2688, %v2716
    %2718 = vmatmul.bf16.gmra.mxu0 %v535
    %v2719 = vpop.f32.mrf.mxu0
    %v2720 = vadd.f32 %v2691, %v2719
    %v2721 = vpop.f32.mrf.mxu0
    %v2722 = vadd.f32 %v2693, %v2721
    %2723 = vdwg.mxu0
    %2724 = vmatpush.bf16.msra.mxu0 %v1594
    %2725 = vmatpush.bf16.msra.mxu0 %v1592
    %2726 = vmatpush.bf16.msra.mxu0 %v1590
    %2727 = vmatpush.bf16.msra.mxu0 %v1588
    %2728 = vmatpush.bf16.msra.mxu0 %v1586
    %2729 = vmatpush.bf16.msra.mxu0 %v1584
    %2730 = vmatpush.bf16.msra.mxu0 %v1582
    %2731 = vmatpush.bf16.msra.mxu0 %v1580
    %2732 = vmatmul.bf16.gmra.mxu0 %v392
    %v2733 = vpop.f32.mrf.mxu0
    %v2734 = vadd.f32 %v2705, %v2733
    %v2735 = vpop.f32.mrf.mxu0
    %v2736 = vadd.f32 %v2707, %v2735
    %2737 = vmatmul.bf16.gmra.mxu0 %v440
    %v2738 = vpop.f32.mrf.mxu0
    %v2739 = vadd.f32 %v2710, %v2738
    %v2740 = vpop.f32.mrf.mxu0
    %v2741 = vadd.f32 %v2712, %v2740
    %2742 = vmatmul.bf16.gmra.mxu0 %v488
    %v2743 = vpop.f32.mrf.mxu0
    %v2744 = vadd.f32 %v2715, %v2743
    %v2745 = vpop.f32.mrf.mxu0
    %v2746 = vadd.f32 %v2717, %v2745
    %2747 = vmatmul.bf16.gmra.mxu0 %v536
    %v2748 = vpop.f32.mrf.mxu0
    %v2749 = vadd.f32 %v2720, %v2748
    %v2750 = vpop.f32.mrf.mxu0
    %v2751 = vadd.f32 %v2722, %v2750
    %2752 = vdwg.mxu0
    %2753 = vmatpush.bf16.msra.mxu0 %v1610
    %2754 = vmatpush.bf16.msra.mxu0 %v1608
    %2755 = vmatpush.bf16.msra.mxu0 %v1606
    %2756 = vmatpush.bf16.msra.mxu0 %v1604
    %2757 = vmatpush.bf16.msra.mxu0 %v1602
    %2758 = vmatpush.bf16.msra.mxu0 %v1600
    %2759 = vmatpush.bf16.msra.mxu0 %v1598
    %2760 = vmatpush.bf16.msra.mxu0 %v1596
    %2761 = vmatmul.bf16.gmra.mxu0 %v393
    %v2762 = vpop.f32.mrf.mxu0
    %v2763 = vadd.f32 %v2734, %v2762
    %v2764 = vpop.f32.mrf.mxu0
    %v2765 = vadd.f32 %v2736, %v2764
    %2766 = vmatmul.bf16.gmra.mxu0 %v441
    %v2767 = vpop.f32.mrf.mxu0
    %v2768 = vadd.f32 %v2739, %v2767
    %v2769 = vpop.f32.mrf.mxu0
    %v2770 = vadd.f32 %v2741, %v2769
    %2771 = vmatmul.bf16.gmra.mxu0 %v489
    %v2772 = vpop.f32.mrf.mxu0
    %v2773 = vadd.f32 %v2744, %v2772
    %v2774 = vpop.f32.mrf.mxu0
    %v2775 = vadd.f32 %v2746, %v2774
    %2776 = vmatmul.bf16.gmra.mxu0 %v537
    %v2777 = vpop.f32.mrf.mxu0
    %v2778 = vadd.f32 %v2749, %v2777
    %v2779 = vpop.f32.mrf.mxu0
    %v2780 = vadd.f32 %v2751, %v2779
    %2781 = vdwg.mxu0
    %2782 = vmatpush.bf16.msra.mxu0 %v1626
    %2783 = vmatpush.bf16.msra.mxu0 %v1624
    %2784 = vmatpush.bf16.msra.mxu0 %v1622
    %2785 = vmatpush.bf16.msra.mxu0 %v1620
    %2786 = vmatpush.bf16.msra.mxu0 %v1618
    %2787 = vmatpush.bf16.msra.mxu0 %v1616
    %2788 = vmatpush.bf16.msra.mxu0 %v1614
    %2789 = vmatpush.bf16.msra.mxu0 %v1612
    %2790 = vmatmul.bf16.gmra.mxu0 %v394
    %v2791 = vpop.f32.mrf.mxu0
    %v2792 = vadd.f32 %v2763, %v2791
    %v2793 = vpop.f32.mrf.mxu0
    %v2794 = vadd.f32 %v2765, %v2793
    %2795 = vmatmul.bf16.gmra.mxu0 %v442
    %v2796 = vpop.f32.mrf.mxu0
    %v2797 = vadd.f32 %v2768, %v2796
    %v2798 = vpop.f32.mrf.mxu0
    %v2799 = vadd.f32 %v2770, %v2798
    %2800 = vmatmul.bf16.gmra.mxu0 %v490
    %v2801 = vpop.f32.mrf.mxu0
    %v2802 = vadd.f32 %v2773, %v2801
    %v2803 = vpop.f32.mrf.mxu0
    %v2804 = vadd.f32 %v2775, %v2803
    %2805 = vmatmul.bf16.gmra.mxu0 %v538
    %v2806 = vpop.f32.mrf.mxu0
    %v2807 = vadd.f32 %v2778, %v2806
    %v2808 = vpop.f32.mrf.mxu0
    %v2809 = vadd.f32 %v2780, %v2808
    %2810 = vdwg.mxu0
    %vm2811 = vcmp.ge.f32.partialorder %v2328, 0.0
    %vm2812 = vcmp.ge.f32.partialorder %v2792, 0.0
    %vm2813 = vcmp.ge.f32.partialorder %v2330, 0.0
    %vm2814 = vcmp.ge.f32.partialorder %v2794, 0.0
    %vm2815 = vcmp.ge.f32.partialorder %v2333, 0.0
    %vm2816 = vcmp.ge.f32.partialorder %v2797, 0.0
    %vm2817 = vcmp.ge.f32.partialorder %v2335, 0.0
    %vm2818 = vcmp.ge.f32.partialorder %v2799, 0.0
    %vm2819 = vcmp.ge.f32.partialorder %v2338, 0.0
    %vm2820 = vcmp.ge.f32.partialorder %v2802, 0.0
    %vm2821 = vcmp.ge.f32.partialorder %v2340, 0.0
    %vm2822 = vcmp.ge.f32.partialorder %v2804, 0.0
    %vm2823 = vcmp.ge.f32.partialorder %v2343, 0.0
    %vm2824 = vcmp.ge.f32.partialorder %v2807, 0.0
    %vm2825 = vcmp.ge.f32.partialorder %v2345, 0.0
    %vm2826 = vcmp.ge.f32.partialorder %v2809, 0.0
    %v2827 = vmul.f32 %v2328, 0.2
    %v2828 = vmul.f32 %v2792, 0.2
    %v2829 = vmul.f32 %v2330, 0.2
    %v2830 = vmul.f32 %v2794, 0.2
    %v2831 = vmul.f32 %v2333, 0.2
    %v2832 = vmul.f32 %v2797, 0.2
    %v2833 = vmul.f32 %v2335, 0.2
    %v2834 = vmul.f32 %v2799, 0.2
    %v2835 = vmul.f32 %v2338, 0.2
    %v2836 = vmul.f32 %v2802, 0.2
    %v2837 = vmul.f32 %v2340, 0.2
    %v2838 = vmul.f32 %v2804, 0.2
    %v2839 = vmul.f32 %v2343, 0.2
    %v2840 = vmul.f32 %v2807, 0.2
    %v2841 = vmul.f32 %v2345, 0.2
    %v2842 = vmul.f32 %v2809, 0.2
    %v2843 = vsel %vm2811, %v2328, %v2827
    %v2844 = vsel %vm2812, %v2792, %v2828
    %v2845 = vsel %vm2813, %v2330, %v2829
    %v2846 = vsel %vm2814, %v2794, %v2830
    %v2847 = vsel %vm2815, %v2333, %v2831
    %v2848 = vsel %vm2816, %v2797, %v2832
    %v2849 = vsel %vm2817, %v2335, %v2833
    %v2850 = vsel %vm2818, %v2799, %v2834
    %v2851 = vsel %vm2819, %v2338, %v2835
    %v2852 = vsel %vm2820, %v2802, %v2836
    %v2853 = vsel %vm2821, %v2340, %v2837
    %v2854 = vsel %vm2822, %v2804, %v2838
    %v2855 = vsel %vm2823, %v2343, %v2839
    %v2856 = vsel %vm2824, %v2807, %v2840
    %v2857 = vsel %vm2825, %v2345, %v2841
    %v2858 = vsel %vm2826, %v2809, %v2842
    %v2859 = vpack.c.bf16 %v2844, %v2843
    %v2860 = vpack.c.bf16 %v2846, %v2845
    %v2861 = vpack.c.bf16 %v2848, %v2847
    %v2862 = vpack.c.bf16 %v2850, %v2849
    %v2863 = vpack.c.bf16 %v2852, %v2851
    %v2864 = vpack.c.bf16 %v2854, %v2853
    %v2865 = vpack.c.bf16 %v2856, %v2855
    %v2866 = vpack.c.bf16 %v2858, %v2857
    %v2875 = vrot.slane %v2859, 3
    %v2876 = vrot.slane %v2860, 3
    %v2877 = vrot.slane %v2861, 3
    %v2878 = vrot.slane %v2862, 3
    %v2879 = vrot.slane %v2863, 3
    %v2880 = vrot.slane %v2864, 3
    %v2881 = vrot.slane %v2865, 3
    %v2882 = vrot.slane %v2866, 3
    %vm2883 = vcmask 1040384
    %v2886 = vsel %vm2883, %v2859, %v2875
    %vm2887 = vcmask 1041409
    %v2888 = vsel %vm2887, %v2859, %v2875
    %v2890 = vrot.slane %v2888, 1
    %vm2891 = vcmask 1042434
    %v2892 = vsel %vm2891, %v2859, %v2875
    %v2894 = vrot.slane %v2892, 2
    %vm2895 = vcmask 1043459
    %v2896 = vsel %vm2895, %v2859, %v2875
    %v2898 = vrot.slane %v2896, 3
    %v2901 = vsel %vm2883, %v2860, %v2876
    %v2902 = vsel %vm2887, %v2860, %v2876
    %v2904 = vrot.slane %v2902, 1
    %v2905 = vsel %vm2891, %v2860, %v2876
    %v2907 = vrot.slane %v2905, 2
    %v2908 = vsel %vm2895, %v2860, %v2876
    %v2910 = vrot.slane %v2908, 3
    %v2913 = vsel %vm2883, %v2861, %v2877
    %v2914 = vsel %vm2887, %v2861, %v2877
    %v2916 = vrot.slane %v2914, 1
    %v2917 = vsel %vm2891, %v2861, %v2877
    %v2919 = vrot.slane %v2917, 2
    %v2920 = vsel %vm2895, %v2861, %v2877
    %v2922 = vrot.slane %v2920, 3
    %v2925 = vsel %vm2883, %v2862, %v2878
    %v2926 = vsel %vm2887, %v2862, %v2878
    %v2928 = vrot.slane %v2926, 1
    %v2929 = vsel %vm2891, %v2862, %v2878
    %v2931 = vrot.slane %v2929, 2
    %v2932 = vsel %vm2895, %v2862, %v2878
    %v2934 = vrot.slane %v2932, 3
    %v2937 = vsel %vm2883, %v2863, %v2879
    %v2938 = vsel %vm2887, %v2863, %v2879
    %v2940 = vrot.slane %v2938, 1
    %v2941 = vsel %vm2891, %v2863, %v2879
    %v2943 = vrot.slane %v2941, 2
    %v2944 = vsel %vm2895, %v2863, %v2879
    %v2946 = vrot.slane %v2944, 3
    %v2949 = vsel %vm2883, %v2864, %v2880
    %v2950 = vsel %vm2887, %v2864, %v2880
    %v2952 = vrot.slane %v2950, 1
    %v2953 = vsel %vm2891, %v2864, %v2880
    %v2955 = vrot.slane %v2953, 2
    %v2956 = vsel %vm2895, %v2864, %v2880
    %v2958 = vrot.slane %v2956, 3
    %v2961 = vsel %vm2883, %v2865, %v2881
    %v2962 = vsel %vm2887, %v2865, %v2881
    %v2964 = vrot.slane %v2962, 1
    %v2965 = vsel %vm2891, %v2865, %v2881
    %v2967 = vrot.slane %v2965, 2
    %v2968 = vsel %vm2895, %v2865, %v2881
    %v2970 = vrot.slane %v2968, 3
    %v2973 = vsel %vm2883, %v2866, %v2882
    %v2974 = vsel %vm2887, %v2866, %v2882
    %v2976 = vrot.slane %v2974, 1
    %v2977 = vsel %vm2891, %v2866, %v2882
    %v2979 = vrot.slane %v2977, 2
    %v2980 = vsel %vm2895, %v2866, %v2882
    %v2982 = vrot.slane %v2980, 3
    %3015 = vst [vmem:[#allocation2] sm:$0x3] %v2886
    %3016 = vst [vmem:[#allocation2 + $0x2] sm:$0x3] %v2890
    %3017 = vst [vmem:[#allocation2 + $0x4] sm:$0x3] %v2894
    %3018 = vst [vmem:[#allocation2 + $0x6] sm:$0x3] %v2898
    %3019 = vst [vmem:[#allocation2 + $0x8] sm:$0x3] %v2901
    %3020 = vst [vmem:[#allocation2 + $0xa] sm:$0x3] %v2904
    %3021 = vst [vmem:[#allocation2 + $0xc] sm:$0x3] %v2907
    %3022 = vst [vmem:[#allocation2 + $0xe] sm:$0x3] %v2910
    %3023 = vst [vmem:[#allocation2 + $0x10] sm:$0x3] %v2913
    %3024 = vst [vmem:[#allocation2 + $0x12] sm:$0x3] %v2916
    %3025 = vst [vmem:[#allocation2 + $0x14] sm:$0x3] %v2919
    %3026 = vst [vmem:[#allocation2 + $0x16] sm:$0x3] %v2922
    %3027 = vst [vmem:[#allocation2 + $0x18] sm:$0x3] %v2925
    %3028 = vst [vmem:[#allocation2 + $0x1a] sm:$0x3] %v2928
    %3029 = vst [vmem:[#allocation2 + $0x1c] sm:$0x3] %v2931
    %3030 = vst [vmem:[#allocation2 + $0x1e] sm:$0x3] %v2934
    %3031 = vst [vmem:[#allocation2 + $0x20] sm:$0x3] %v2937
    %3032 = vst [vmem:[#allocation2 + $0x22] sm:$0x3] %v2940
    %3033 = vst [vmem:[#allocation2 + $0x24] sm:$0x3] %v2943
    %3034 = vst [vmem:[#allocation2 + $0x26] sm:$0x3] %v2946
    %3035 = vst [vmem:[#allocation2 + $0x28] sm:$0x3] %v2949
    %3036 = vst [vmem:[#allocation2 + $0x2a] sm:$0x3] %v2952
    %3037 = vst [vmem:[#allocation2 + $0x2c] sm:$0x3] %v2955
    %3038 = vst [vmem:[#allocation2 + $0x2e] sm:$0x3] %v2958
    %3039 = vst [vmem:[#allocation2 + $0x30] sm:$0x3] %v2961
    %3040 = vst [vmem:[#allocation2 + $0x32] sm:$0x3] %v2964
    %3041 = vst [vmem:[#allocation2 + $0x34] sm:$0x3] %v2967
    %3042 = vst [vmem:[#allocation2 + $0x36] sm:$0x3] %v2970
    %3043 = vst [vmem:[#allocation2 + $0x38] sm:$0x3] %v2973
    %3044 = vst [vmem:[#allocation2 + $0x3a] sm:$0x3] %v2976
    %3045 = vst [vmem:[#allocation2 + $0x3c] sm:$0x3] %v2979
    %3046 = vst [vmem:[#allocation2 + $0x3e] sm:$0x3] %v2982
    // Predicated region
    $region14: #{_lambda_.8} parent=1 // pred_check
      _
    $region15: #{_lambda_.8} parent=1 // pred_check_branch
      %3048 = sbr.rel (0) target = $region17
    $region16: #{_lambda_.8} parent=1 // pred_region
      // Predicated region
      $region18: #{_lambda_.8} parent=16 // pred_check
        _
      $region19: #{_lambda_.8} parent=16 // pred_check_branch
        %3050 = sbr.rel (0) target = $region21
      $region20: #{_lambda_.8} parent=16 // pred_region
        // Predicated region
        $region22: #{_lambda_.8} parent=20 // pred_check
          _
        $region23: #{_lambda_.8} parent=20 // pred_check_branch
          %3052 = sbr.rel target = $region25
        $region24: #{_lambda_.8} parent=20 // pred_region
          // Predicated region
          $region37: #{_lambda_.8} parent=24 // pred_check
            _
          $region38: #{_lambda_.8} parent=24 // pred_check_branch
            %3068 = sbr.rel (0) target = $region40
          $region39: #{_lambda_.8} parent=24 // pred_region
            %s3070 = ssub.s32 4, 1
            loop: start=0, step=1, limit=1
            $region41: #{_lambda_.8} parent=39 // loop_pre_header
              _
            $region42: #{_lambda_.8} parent=39 // loop_header
              %s3072 = sphi 0, %s3076
              %p3073 = scmp.ge.s32.totalorder %s3072, 1
              %s3077 = sphi [#allocation2], [#allocation2]
              %s3078 = sphi %s3, %s3
            $region43: #{_lambda_.8} parent=39 // loop_header_branch
              %3075 = sbr.rel (%p3073) target = $region47
            $region44: #{_lambda_.8} parent=39 // loop_body
              %v3079 = vld [vmem:[%s3077] sm:%s3070]
              %3080 = vst [vmem:[%s3078] sm:%s3070] %v3079
            $region45: #{_lambda_.8} parent=39 // loop_footer
              %s3076 = sadd.s32 1, %s3072
            $region46: #{_lambda_.8} parent=39 // loop_footer_branch
              %3071 = sbr.rel target = $region42
            $region47: #{_lambda_.8} parent=39 // loop_exit
              _
          $region40: #{_lambda_.8} parent=24 // pred_fallthru
            _
        $region25: #{_lambda_.8} parent=20 // pred_fallthru
          _
        // Predicated region
        $region26: #{_lambda_.8} parent=20 // pred_check
          _
        $region27: #{_lambda_.8} parent=20 // pred_check_branch
          %3054 = sbr.rel (0) target = $region29
        $region28: #{_lambda_.8} parent=20 // pred_region
          %s3056 = ssub.s32 4, 1
          loop: start=0, step=1, limit=1
          $region30: #{_lambda_.8} parent=28 // loop_pre_header
            _
          $region31: #{_lambda_.8} parent=28 // loop_header
            %s3058 = sphi 0, %s3062
            %p3059 = scmp.ge.s32.totalorder %s3058, 1
            %s3063 = sphi [#allocation2], [#allocation2]
            %s3064 = sphi %s3, %s3
          $region32: #{_lambda_.8} parent=28 // loop_header_branch
            %3061 = sbr.rel (%p3059) target = $region36
          $region33: #{_lambda_.8} parent=28 // loop_body
            %v3065 = vld [vmem:[%s3063] sm:%s3056]
            %3066 = vst [vmem:[%s3064] sm:%s3056] %v3065
          $region34: #{_lambda_.8} parent=28 // loop_footer
            %s3062 = sadd.s32 1, %s3058
          $region35: #{_lambda_.8} parent=28 // loop_footer_branch
            %3057 = sbr.rel target = $region31
          $region36: #{_lambda_.8} parent=28 // loop_exit
            _
        $region29: #{_lambda_.8} parent=20 // pred_fallthru
          _
      $region21: #{_lambda_.8} parent=16 // pred_fallthru
        _
      %3081 = vnop
    $region17: #{_lambda_.8} parent=1 // pred_fallthru
      _
    // Predicated region
    $region48: #{_lambda_.8} parent=1 // pred_check
      _
    $region49: #{_lambda_.8} parent=1 // pred_check_branch
      %3083 = sbr.rel (0) target = $region51
    $region50: #{_lambda_.8} parent=1 // pred_region
      _
    $region51: #{_lambda_.8} parent=1 // pred_fallthru
      _

</llo_original>
